<compile_context>
chip_gen: v5e
topology: v5e:2x2
jax: 0.10.0
libtpu: 0.0.40
codegen_flags: <defaults>
</compile_context>

<pallas_src>
import math

import jax
import jax.numpy as jnp
from jax.experimental import pallas as pl
from jax.experimental.pallas import tpu as pltpu

# --- small, module-consistent configuration (synthetic sizes) -----------------
SEQ_LEN = 8          # module default 48
TICKS = 4            # module default 12
NUM_SECTIONS = SEQ_LEN // TICKS
NUM_PITCHES = 128    # module default 128
LATENT = 128         # module: 512
COND_HIDDEN = 128    # module: 1024   (multiple of 128 -> lane-aligned gate slices)
COND_OUT = 128       # module: 512
DEC_HIDDEN = 128     # module: 1024


def _gate_update(gates, c):
    """PyTorch-semantics LSTM state update from pre-activation gates (1, 4H)."""
    H = c.shape[-1]
    i = jax.nn.sigmoid(gates[:, 0 * H:1 * H])
    f = jax.nn.sigmoid(gates[:, 1 * H:2 * H])
    g = jnp.tanh(gates[:, 2 * H:3 * H])
    o = jax.nn.sigmoid(gates[:, 3 * H:4 * H])
    c_new = f * c + i * g
    h_new = o * jnp.tanh(c_new)
    return h_new, c_new


def _softmax(x):
    m = jnp.max(x, axis=-1, keepdims=True)
    e = jnp.exp(x - m)
    s = jnp.sum(e, axis=-1, keepdims=True)
    # approx reciprocal on the (otherwise idle) EUP + one Newton-Raphson step
    # recovers ~f32 accuracy while keeping the divide off the VPU critical path.
    r = pl.reciprocal(s, approx=True)
    r = r * (2.0 - s * r)
    return e * r


def decoder_kernel(z_ref,
                   ci_w_ref, ci_b_ref,
                   c0_whh_ref, c0_b_ref,
                   c1_w_ref, c1_b_ref,
                   co_w_ref, co_b_ref,
                   di_w_ref, di_b_ref,
                   d0_wbar_ref, d0_b_ref, d0_wx_ref,
                   d1_w_ref, d1_b_ref,
                   fc_w_ref, fc_b_ref,
                   probs_ref,
                   bar_pre_ref, h0_init_ref):
    bf16 = jnp.bfloat16

    # ---- conductor_init_first_hidden: Linear + Tanh -> layer-0 hidden --------
    z = z_ref[...].astype(bf16)                                      # (1, LATENT)
    h_c0 = jnp.tanh(jnp.dot(z, ci_w_ref[...],
                            preferred_element_type=jnp.float32) + ci_b_ref[...])
    c_c0 = jnp.zeros_like(h_c0)
    h_c1 = jnp.zeros_like(h_c0)
    c_c1 = jnp.zeros_like(h_c0)

    # ---- conductor LSTM over the all-zeros conductor_input -------------------
    # Layer 0's input is identically zero, so its W_ih term vanishes.
    h_c1_rows = []
    for _ in range(NUM_SECTIONS):                      # tiny (2 / 4) -> unrolled
        gates0 = jnp.dot(h_c0.astype(bf16), c0_whh_ref[...],
                         preferred_element_type=jnp.float32) + c0_b_ref[...]
        h_c0, c_c0 = _gate_update(gates0, c_c0)
        x1 = jnp.concatenate([h_c0, h_c1], axis=-1).astype(bf16)
        gates1 = jnp.dot(x1, c1_w_ref[...],
                         preferred_element_type=jnp.float32) + c1_b_ref[...]
        h_c1, c_c1 = _gate_update(gates1, c_c1)
        h_c1_rows.append(h_c1)

    # ---- bar-level matmuls batched over all sections (3 MXU calls total) -----
    h_c1_stack = jnp.concatenate(h_c1_rows, axis=0).astype(bf16)     # (NS, Hc)
    bar_codes = jnp.dot(h_c1_stack, co_w_ref[...],
                        preferred_element_type=jnp.float32) + co_b_ref[...]
    bar_codes_bf = bar_codes.astype(bf16)                            # (NS, COND_OUT)
    # decoder_init_first_hidden for every bar at once
    h0_init_ref[...] = jnp.tanh(
        jnp.dot(bar_codes_bf, di_w_ref[...],
                preferred_element_type=jnp.float32) + di_b_ref[...])
    # hoisted bar_state contribution (and bias) of decoder-LSTM layer 0
    bar_pre_ref[...] = jnp.dot(bar_codes_bf, d0_wbar_ref[...],
                               preferred_element_type=jnp.float32) + d0_b_ref[...]

    # ---- autoregressive decoder: fori over bars, TICKS inner loop unrolled ---
    def bar_body(bar, dec_out):
        bar_pre = bar_pre_ref[pl.ds(bar, 1), :]                      # (1, 4H)
        h_d0 = h0_init_ref[pl.ds(bar, 1), :]                         # (1, H)
        c_d0 = jnp.zeros_like(h_d0)
        h_d1 = jnp.zeros_like(h_d0)
        c_d1 = jnp.zeros_like(h_d0)
        for t in range(TICKS):
            x0 = jnp.concatenate([dec_out, h_d0], axis=-1).astype(bf16)
            gates0 = jnp.dot(x0, d0_wx_ref[...],
                             preferred_element_type=jnp.float32) + bar_pre
            h_d0, c_d0 = _gate_update(gates0, c_d0)
            x1 = jnp.concatenate([h_d0, h_d1], axis=-1).astype(bf16)
            gates1 = jnp.dot(x1, d1_w_ref[...],
                             preferred_element_type=jnp.float32) + d1_b_ref[...]
            h_d1, c_d1 = _gate_update(gates1, c_d1)
            logits = jnp.dot(h_d1.astype(bf16), fc_w_ref[...],
                             preferred_element_type=jnp.float32) + fc_b_ref[...]
            dec_out = _softmax(logits)                               # (1, P) f32
            # per-step row store: hidden under the serial recurrence latency
            probs_ref[pl.ds(bar * TICKS + t, 1), :] = dec_out
        return dec_out

    jax.lax.fori_loop(0, NUM_SECTIONS, bar_body,
                      jnp.zeros((1, NUM_PITCHES), jnp.float32))      # start token


def decoder_forward(z, packed_params):
    args = (z,) + tuple(packed_params)
    out = pl.pallas_call(
        decoder_kernel,
        out_shape=jax.ShapeDtypeStruct((SEQ_LEN, NUM_PITCHES), jnp.float32),
        in_specs=[pl.BlockSpec(memory_space=pltpu.MemorySpace.VMEM)] * len(args),
        out_specs=pl.BlockSpec(memory_space=pltpu.MemorySpace.VMEM),
        scratch_shapes=[
            pltpu.VMEM((NUM_SECTIONS, 4 * DEC_HIDDEN), jnp.float32),  # bar_pre
            pltpu.VMEM((NUM_SECTIONS, DEC_HIDDEN), jnp.float32),      # h_d0 init
        ],
        # ~1 MB weights at synthetic sizes; at module defaults raise this on
        # v6e/v5e (~64 MiB bf16) and stream from HBM on v7x (64 MiB physical).
        compiler_params=pltpu.CompilerParams(vmem_limit_bytes=32 * 1024 * 1024),
    )(*args)
    return out.reshape(1, SEQ_LEN, NUM_PITCHES)


# ------------------------- parameter construction ----------------------------
def make_params(key):
    """Deterministic synthetic init (PyTorch-style uniform(-1/sqrt(fan), 1/sqrt(fan))).

    Weights are stored transposed vs PyTorch: (in_features, out_features)."""
    specs = [
        # (shape, fan)
        ((LATENT, COND_HIDDEN), LATENT),                 # conductor_init_first_hidden W
        ((1, COND_HIDDEN), LATENT),                      # conductor_init_first_hidden b
        ((NUM_PITCHES, 4 * COND_HIDDEN), COND_HIDDEN),   # conductor lstm l0 W_ih (unused: zero input)
        ((COND_HIDDEN, 4 * COND_HIDDEN), COND_HIDDEN),   # conductor lstm l0 W_hh
        ((1, 4 * COND_HIDDEN), COND_HIDDEN),             # conductor lstm l0 bias (b_ih+b_hh)
        ((COND_HIDDEN, 4 * COND_HIDDEN), COND_HIDDEN),   # conductor lstm l1 W_ih
        ((COND_HIDDEN, 4 * COND_HIDDEN), COND_HIDDEN),   # conductor lstm l1 W_hh
        ((1, 4 * COND_HIDDEN), COND_HIDDEN),             # conductor lstm l1 bias
        ((COND_HIDDEN, COND_OUT), COND_HIDDEN),          # conductor_output W
        ((1, COND_OUT), COND_HIDDEN),                    # conductor_output b
        ((COND_OUT, DEC_HIDDEN), COND_OUT),              # decoder_init_first_hidden W
        ((1, DEC_HIDDEN), COND_OUT),                     # decoder_init_first_hidden b
        ((COND_OUT + NUM_PITCHES, 4 * DEC_HIDDEN), DEC_HIDDEN),  # decoder lstm l0 W_ih
        ((DEC_HIDDEN, 4 * DEC_HIDDEN), DEC_HIDDEN),      # decoder lstm l0 W_hh
        ((1, 4 * DEC_HIDDEN), DEC_HIDDEN),               # decoder lstm l0 bias
        ((DEC_HIDDEN, 4 * DEC_HIDDEN), DEC_HIDDEN),      # decoder lstm l1 W_ih
        ((DEC_HIDDEN, 4 * DEC_HIDDEN), DEC_HIDDEN),      # decoder lstm l1 W_hh
        ((1, 4 * DEC_HIDDEN), DEC_HIDDEN),               # decoder lstm l1 bias
        ((DEC_HIDDEN, NUM_PITCHES), DEC_HIDDEN),         # fc_head W
        ((1, NUM_PITCHES), DEC_HIDDEN),                  # fc_head b
    ]
    keys = jax.random.split(key, len(specs))
    params = []
    for k, (shape, fan) in zip(keys, specs):
        bound = 1.0 / math.sqrt(fan)
        params.append(jax.random.uniform(k, shape, jnp.float32, -bound, bound))
    return tuple(params)


def pack_params(params):
    """Repack PyTorch-style f32 params into the kernel's fused bf16 layout."""
    (ci_w, ci_b, _c0_wih, c0_whh, c0_b, c1_wih, c1_whh, c1_b, co_w, co_b,
     di_w, di_b, d0_wih, d0_whh, d0_b, d1_wih, d1_whh, d1_b, fc_w, fc_b) = params
    bf = lambda w: w.astype(jnp.bfloat16)
    # _c0_wih multiplies the all-zeros conductor_input -> dropped entirely.
    c1_w = jnp.concatenate([c1_wih, c1_whh], axis=0)        # (2*Hc, 4*Hc)
    d0_wbar = d0_wih[:COND_OUT, :]                          # bar_state rows, hoisted
    d0_wx = jnp.concatenate([d0_wih[COND_OUT:, :], d0_whh], axis=0)  # (P+Hd, 4*Hd)
    d1_w = jnp.concatenate([d1_wih, d1_whh], axis=0)        # (2*Hd, 4*Hd)
    return (bf(ci_w), ci_b,
            bf(c0_whh), c0_b,
            bf(c1_w), c1_b,
            bf(co_w), co_b,
            bf(di_w), di_b,
            bf(d0_wbar), d0_b, bf(d0_wx),
            bf(d1_w), d1_b,
            bf(fc_w), fc_b)


# ------------------------------- reference -----------------------------------
def _bdot(x, w):
    """bf16 x bf16 -> f32 matmul, mirroring the kernel's quantization."""
    return jnp.dot(x.astype(jnp.bfloat16), w.astype(jnp.bfloat16),
                   preferred_element_type=jnp.float32)


def _lstm_cell_ref(x, h, c, w_ih, w_hh, b):
    gates = _bdot(x, w_ih) + _bdot(h, w_hh) + b
    H = h.shape[-1]
    i = jax.nn.sigmoid(gates[:, 0 * H:1 * H])
    f = jax.nn.sigmoid(gates[:, 1 * H:2 * H])
    g = jnp.tanh(gates[:, 2 * H:3 * H])
    o = jax.nn.sigmoid(gates[:, 3 * H:4 * H])
    c_new = f * c + i * g
    h_new = o * jnp.tanh(c_new)
    return h_new, c_new


def _softmax_ref(x):
    m = jnp.max(x, axis=-1, keepdims=True)
    e = jnp.exp(x - m)
    return e / jnp.sum(e, axis=-1, keepdims=True)


def decoder_reference(z, params):
    """Pure-JAX reference mirroring the PyTorch forward (eval, no teacher forcing),
    with the same bf16 weight/activation quantization as the kernel."""
    (ci_w, ci_b, c0_wih, c0_whh, c0_b, c1_wih, c1_whh, c1_b, co_w, co_b,
     di_w, di_b, d0_wih, d0_whh, d0_b, d1_wih, d1_whh, d1_b, fc_w, fc_b) = params
    h_c0 = jnp.tanh(_bdot(z, ci_w) + ci_b)
    c_c0 = jnp.zeros_like(h_c0)
    h_c1 = jnp.zeros_like(h_c0)
    c_c1 = jnp.zeros_like(h_c0)
    x_zero = jnp.zeros((1, NUM_PITCHES), jnp.float32)
    bar_codes = []
    for _ in range(NUM_SECTIONS):
        h_c0, c_c0 = _lstm_cell_ref(x_zero, h_c0, c_c0, c0_wih, c0_whh, c0_b)
        h_c1, c_c1 = _lstm_cell_ref(h_c0, h_c1, c_c1, c1_wih, c1_whh, c1_b)
        bar_codes.append(_bdot(h_c1, co_w) + co_b)
    dec_out = jnp.zeros((1, NUM_PITCHES), jnp.float32)
    probs = []
    bar_state = bar_codes[0]
    h_d0 = c_d0 = h_d1 = c_d1 = None
    for note in range(SEQ_LEN):
        bar = note // TICKS
        if note % TICKS == 0:
            bar_state = bar_codes[bar]
            h_d0 = jnp.tanh(_bdot(bar_state, di_w) + di_b)
            c_d0 = jnp.zeros_like(h_d0)
            h_d1 = jnp.zeros_like(h_d0)
            c_d1 = jnp.zeros_like(h_d0)
        x_in = jnp.concatenate([bar_state, dec_out], axis=-1)
        h_d0, c_d0 = _lstm_cell_ref(x_in, h_d0, c_d0, d0_wih, d0_whh, d0_b)
        h_d1, c_d1 = _lstm_cell_ref(h_d0, h_d1, c_d1, d1_wih, d1_whh, d1_b)
        dec_out = _softmax_ref(_bdot(h_d1, fc_w) + fc_b)
        probs.append(dec_out)
    return jnp.stack(probs, axis=1)             # (1, SEQ_LEN, NUM_PITCHES)


if __name__ == "__main__":
    root = jax.random.PRNGKey(0)
    k_z, k_p = jax.random.split(root)
    z = jax.random.normal(k_z, (1, LATENT), jnp.float32)   # eval path: batch = 1
    params = make_params(k_p)
    packed = pack_params(params)

    probs = jax.block_until_ready(decoder_forward(z, packed))
    assert probs.shape == (1, SEQ_LEN, NUM_PITCHES), probs.shape

    ref = decoder_reference(z, params)
    # bf16 weights/activations -> compare against the bf16-quantized reference
    # (tolerance covers summation-order + approx-reciprocal-with-NR deltas).
    assert jnp.allclose(probs, ref, atol=1e-3, rtol=1e-3), (
        float(jnp.max(jnp.abs(probs - ref))))
    # each timestep's softmax should sum to 1
    assert jnp.allclose(jnp.sum(probs, axis=-1), 1.0, atol=1e-3)

    print("KERNEL_OK")
</pallas_src>

<mosaic_0001>
module attributes {stable_mosaic.version = 11 : i64} {
  func.func @decoder_kernel(%arg0: memref<1x128xf32, #tpu.memory_space<vmem>>, %arg1: memref<128x128xbf16, #tpu.memory_space<vmem>>, %arg2: memref<1x128xf32, #tpu.memory_space<vmem>>, %arg3: memref<128x512xbf16, #tpu.memory_space<vmem>>, %arg4: memref<1x512xf32, #tpu.memory_space<vmem>>, %arg5: memref<256x512xbf16, #tpu.memory_space<vmem>>, %arg6: memref<1x512xf32, #tpu.memory_space<vmem>>, %arg7: memref<128x128xbf16, #tpu.memory_space<vmem>>, %arg8: memref<1x128xf32, #tpu.memory_space<vmem>>, %arg9: memref<128x128xbf16, #tpu.memory_space<vmem>>, %arg10: memref<1x128xf32, #tpu.memory_space<vmem>>, %arg11: memref<128x512xbf16, #tpu.memory_space<vmem>>, %arg12: memref<1x512xf32, #tpu.memory_space<vmem>>, %arg13: memref<256x512xbf16, #tpu.memory_space<vmem>>, %arg14: memref<256x512xbf16, #tpu.memory_space<vmem>>, %arg15: memref<1x512xf32, #tpu.memory_space<vmem>>, %arg16: memref<128x128xbf16, #tpu.memory_space<vmem>>, %arg17: memref<1x128xf32, #tpu.memory_space<vmem>>, %arg18: memref<8x128xf32, #tpu.memory_space<vmem>>, %arg19: memref<2x512xf32, #tpu.memory_space<vmem>>, %arg20: memref<2x128xf32, #tpu.memory_space<vmem>>) attributes {dimension_semantics = [], scalar_prefetch = 0 : i64, scratch_operands = 2 : i64, tpu.core_type = #tpu.core_type<tc>} {
    %c0 = arith.constant 0 : index
    %c0_0 = arith.constant 0 : index
    %0 = vector.load %arg0[%c0, %c0_0] : memref<1x128xf32, #tpu.memory_space<vmem>>, vector<1x128xf32>
    %1 = arith.truncf %0 : vector<1x128xf32> to vector<1x128xbf16>
    %c0_1 = arith.constant 0 : index
    %c0_2 = arith.constant 0 : index
    %2 = vector.load %arg1[%c0_1, %c0_2] : memref<128x128xbf16, #tpu.memory_space<vmem>>, vector<128x128xbf16>
    %cst = arith.constant dense<0.000000e+00> : vector<1x128xf32>
    %3 = tpu.matmul %1, %2, %cst {dimension_numbers = #tpu.dot_dimension_numbers<[1], [0], [0], [1], [0, 0, 1, 1], [], []>} : vector<1x128xbf16>, vector<128x128xbf16>, vector<1x128xf32> -> vector<1x128xf32>
    %c0_3 = arith.constant 0 : index
    %c0_4 = arith.constant 0 : index
    %4 = vector.load %arg2[%c0_3, %c0_4] : memref<1x128xf32, #tpu.memory_space<vmem>>, vector<1x128xf32>
    %5 = arith.addf %3, %4 : vector<1x128xf32>
    %6 = math.tanh %5 : vector<1x128xf32>
    %cst_5 = arith.constant 0.000000e+00 : f32
    %7 = vector.broadcast %cst_5 : f32 to vector<1x128xf32>
    %cst_6 = arith.constant 0.000000e+00 : f32
    %8 = vector.broadcast %cst_6 : f32 to vector<1x128xf32>
    %cst_7 = arith.constant 0.000000e+00 : f32
    %9 = vector.broadcast %cst_7 : f32 to vector<1x128xf32>
    %10 = arith.truncf %6 : vector<1x128xf32> to vector<1x128xbf16>
    %c0_8 = arith.constant 0 : index
    %c0_9 = arith.constant 0 : index
    %11 = vector.load %arg3[%c0_8, %c0_9] : memref<128x512xbf16, #tpu.memory_space<vmem>>, vector<128x512xbf16>
    %cst_10 = arith.constant dense<0.000000e+00> : vector<1x512xf32>
    %12 = tpu.matmul %10, %11, %cst_10 {dimension_numbers = #tpu.dot_dimension_numbers<[1], [0], [0], [1], [0, 0, 1, 1], [], []>} : vector<1x128xbf16>, vector<128x512xbf16>, vector<1x512xf32> -> vector<1x512xf32>
    %c0_11 = arith.constant 0 : index
    %c0_12 = arith.constant 0 : index
    %13 = vector.load %arg4[%c0_11, %c0_12] : memref<1x512xf32, #tpu.memory_space<vmem>>, vector<1x512xf32>
    %14 = arith.addf %12, %13 : vector<1x512xf32>
    %15 = vector.extract_strided_slice %14 {offsets = [0, 0], sizes = [1, 128], strides = [1, 1]} : vector<1x512xf32> to vector<1x128xf32>
    %16 = arith.negf %15 : vector<1x128xf32>
    %17 = math.exp %16 : vector<1x128xf32>
    %cst_13 = arith.constant 1.000000e+00 : f32
    %18 = vector.broadcast %cst_13 : f32 to vector<1x128xf32>
    %19 = arith.addf %18, %17 : vector<1x128xf32>
    %20 = arith.divf %18, %19 : vector<1x128xf32>
    %21 = vector.extract_strided_slice %14 {offsets = [0, 128], sizes = [1, 128], strides = [1, 1]} : vector<1x512xf32> to vector<1x128xf32>
    %22 = arith.negf %21 : vector<1x128xf32>
    %23 = math.exp %22 : vector<1x128xf32>
    %cst_14 = arith.constant 1.000000e+00 : f32
    %24 = vector.broadcast %cst_14 : f32 to vector<1x128xf32>
    %25 = arith.addf %24, %23 : vector<1x128xf32>
    %26 = arith.divf %24, %25 : vector<1x128xf32>
    %27 = vector.extract_strided_slice %14 {offsets = [0, 256], sizes = [1, 128], strides = [1, 1]} : vector<1x512xf32> to vector<1x128xf32>
    %28 = math.tanh %27 : vector<1x128xf32>
    %29 = vector.extract_strided_slice %14 {offsets = [0, 384], sizes = [1, 128], strides = [1, 1]} : vector<1x512xf32> to vector<1x128xf32>
    %30 = arith.negf %29 : vector<1x128xf32>
    %31 = math.exp %30 : vector<1x128xf32>
    %cst_15 = arith.constant 1.000000e+00 : f32
    %32 = vector.broadcast %cst_15 : f32 to vector<1x128xf32>
    %33 = arith.addf %32, %31 : vector<1x128xf32>
    %34 = arith.divf %32, %33 : vector<1x128xf32>
    %35 = arith.mulf %26, %7 : vector<1x128xf32>
    %36 = arith.mulf %20, %28 : vector<1x128xf32>
    %37 = arith.addf %35, %36 : vector<1x128xf32>
    %38 = math.tanh %37 : vector<1x128xf32>
    %39 = arith.mulf %34, %38 : vector<1x128xf32>
    %40 = tpu.concatenate %39, %8 in 1 : vector<1x128xf32>, vector<1x128xf32> -> vector<1x256xf32>
    %41 = arith.truncf %40 : vector<1x256xf32> to vector<1x256xbf16>
    %c0_16 = arith.constant 0 : index
    %c0_17 = arith.constant 0 : index
    %42 = vector.load %arg5[%c0_16, %c0_17] : memref<256x512xbf16, #tpu.memory_space<vmem>>, vector<256x512xbf16>
    %cst_18 = arith.constant dense<0.000000e+00> : vector<1x512xf32>
    %43 = tpu.matmul %41, %42, %cst_18 {dimension_numbers = #tpu.dot_dimension_numbers<[1], [0], [0], [1], [0, 0, 1, 1], [], []>} : vector<1x256xbf16>, vector<256x512xbf16>, vector<1x512xf32> -> vector<1x512xf32>
    %c0_19 = arith.constant 0 : index
    %c0_20 = arith.constant 0 : index
    %44 = vector.load %arg6[%c0_19, %c0_20] : memref<1x512xf32, #tpu.memory_space<vmem>>, vector<1x512xf32>
    %45 = arith.addf %43, %44 : vector<1x512xf32>
    %46 = vector.extract_strided_slice %45 {offsets = [0, 0], sizes = [1, 128], strides = [1, 1]} : vector<1x512xf32> to vector<1x128xf32>
    %47 = arith.negf %46 : vector<1x128xf32>
    %48 = math.exp %47 : vector<1x128xf32>
    %cst_21 = arith.constant 1.000000e+00 : f32
    %49 = vector.broadcast %cst_21 : f32 to vector<1x128xf32>
    %50 = arith.addf %49, %48 : vector<1x128xf32>
    %51 = arith.divf %49, %50 : vector<1x128xf32>
    %52 = vector.extract_strided_slice %45 {offsets = [0, 128], sizes = [1, 128], strides = [1, 1]} : vector<1x512xf32> to vector<1x128xf32>
    %53 = arith.negf %52 : vector<1x128xf32>
    %54 = math.exp %53 : vector<1x128xf32>
    %cst_22 = arith.constant 1.000000e+00 : f32
    %55 = vector.broadcast %cst_22 : f32 to vector<1x128xf32>
    %56 = arith.addf %55, %54 : vector<1x128xf32>
    %57 = arith.divf %55, %56 : vector<1x128xf32>
    %58 = vector.extract_strided_slice %45 {offsets = [0, 256], sizes = [1, 128], strides = [1, 1]} : vector<1x512xf32> to vector<1x128xf32>
    %59 = math.tanh %58 : vector<1x128xf32>
    %60 = vector.extract_strided_slice %45 {offsets = [0, 384], sizes = [1, 128], strides = [1, 1]} : vector<1x512xf32> to vector<1x128xf32>
    %61 = arith.negf %60 : vector<1x128xf32>
    %62 = math.exp %61 : vector<1x128xf32>
    %cst_23 = arith.constant 1.000000e+00 : f32
    %63 = vector.broadcast %cst_23 : f32 to vector<1x128xf32>
    %64 = arith.addf %63, %62 : vector<1x128xf32>
    %65 = arith.divf %63, %64 : vector<1x128xf32>
    %66 = arith.mulf %57, %9 : vector<1x128xf32>
    %67 = arith.mulf %51, %59 : vector<1x128xf32>
    %68 = arith.addf %66, %67 : vector<1x128xf32>
    %69 = math.tanh %68 : vector<1x128xf32>
    %70 = arith.mulf %65, %69 : vector<1x128xf32>
    %71 = arith.truncf %39 : vector<1x128xf32> to vector<1x128xbf16>
    %c0_24 = arith.constant 0 : index
    %c0_25 = arith.constant 0 : index
    %72 = vector.load %arg3[%c0_24, %c0_25] : memref<128x512xbf16, #tpu.memory_space<vmem>>, vector<128x512xbf16>
    %cst_26 = arith.constant dense<0.000000e+00> : vector<1x512xf32>
    %73 = tpu.matmul %71, %72, %cst_26 {dimension_numbers = #tpu.dot_dimension_numbers<[1], [0], [0], [1], [0, 0, 1, 1], [], []>} : vector<1x128xbf16>, vector<128x512xbf16>, vector<1x512xf32> -> vector<1x512xf32>
    %c0_27 = arith.constant 0 : index
    %c0_28 = arith.constant 0 : index
    %74 = vector.load %arg4[%c0_27, %c0_28] : memref<1x512xf32, #tpu.memory_space<vmem>>, vector<1x512xf32>
    %75 = arith.addf %73, %74 : vector<1x512xf32>
    %76 = vector.extract_strided_slice %75 {offsets = [0, 0], sizes = [1, 128], strides = [1, 1]} : vector<1x512xf32> to vector<1x128xf32>
    %77 = arith.negf %76 : vector<1x128xf32>
    %78 = math.exp %77 : vector<1x128xf32>
    %cst_29 = arith.constant 1.000000e+00 : f32
    %79 = vector.broadcast %cst_29 : f32 to vector<1x128xf32>
    %80 = arith.addf %79, %78 : vector<1x128xf32>
    %81 = arith.divf %79, %80 : vector<1x128xf32>
    %82 = vector.extract_strided_slice %75 {offsets = [0, 128], sizes = [1, 128], strides = [1, 1]} : vector<1x512xf32> to vector<1x128xf32>
    %83 = arith.negf %82 : vector<1x128xf32>
    %84 = math.exp %83 : vector<1x128xf32>
    %cst_30 = arith.constant 1.000000e+00 : f32
    %85 = vector.broadcast %cst_30 : f32 to vector<1x128xf32>
    %86 = arith.addf %85, %84 : vector<1x128xf32>
    %87 = arith.divf %85, %86 : vector<1x128xf32>
    %88 = vector.extract_strided_slice %75 {offsets = [0, 256], sizes = [1, 128], strides = [1, 1]} : vector<1x512xf32> to vector<1x128xf32>
    %89 = math.tanh %88 : vector<1x128xf32>
    %90 = vector.extract_strided_slice %75 {offsets = [0, 384], sizes = [1, 128], strides = [1, 1]} : vector<1x512xf32> to vector<1x128xf32>
    %91 = arith.negf %90 : vector<1x128xf32>
    %92 = math.exp %91 : vector<1x128xf32>
    %cst_31 = arith.constant 1.000000e+00 : f32
    %93 = vector.broadcast %cst_31 : f32 to vector<1x128xf32>
    %94 = arith.addf %93, %92 : vector<1x128xf32>
    %95 = arith.divf %93, %94 : vector<1x128xf32>
    %96 = arith.mulf %87, %37 : vector<1x128xf32>
    %97 = arith.mulf %81, %89 : vector<1x128xf32>
    %98 = arith.addf %96, %97 : vector<1x128xf32>
    %99 = math.tanh %98 : vector<1x128xf32>
    %100 = arith.mulf %95, %99 : vector<1x128xf32>
    %101 = tpu.concatenate %100, %70 in 1 : vector<1x128xf32>, vector<1x128xf32> -> vector<1x256xf32>
    %102 = arith.truncf %101 : vector<1x256xf32> to vector<1x256xbf16>
    %c0_32 = arith.constant 0 : index
    %c0_33 = arith.constant 0 : index
    %103 = vector.load %arg5[%c0_32, %c0_33] : memref<256x512xbf16, #tpu.memory_space<vmem>>, vector<256x512xbf16>
    %cst_34 = arith.constant dense<0.000000e+00> : vector<1x512xf32>
    %104 = tpu.matmul %102, %103, %cst_34 {dimension_numbers = #tpu.dot_dimension_numbers<[1], [0], [0], [1], [0, 0, 1, 1], [], []>} : vector<1x256xbf16>, vector<256x512xbf16>, vector<1x512xf32> -> vector<1x512xf32>
    %c0_35 = arith.constant 0 : index
    %c0_36 = arith.constant 0 : index
    %105 = vector.load %arg6[%c0_35, %c0_36] : memref<1x512xf32, #tpu.memory_space<vmem>>, vector<1x512xf32>
    %106 = arith.addf %104, %105 : vector<1x512xf32>
    %107 = vector.extract_strided_slice %106 {offsets = [0, 0], sizes = [1, 128], strides = [1, 1]} : vector<1x512xf32> to vector<1x128xf32>
    %108 = arith.negf %107 : vector<1x128xf32>
    %109 = math.exp %108 : vector<1x128xf32>
    %cst_37 = arith.constant 1.000000e+00 : f32
    %110 = vector.broadcast %cst_37 : f32 to vector<1x128xf32>
    %111 = arith.addf %110, %109 : vector<1x128xf32>
    %112 = arith.divf %110, %111 : vector<1x128xf32>
    %113 = vector.extract_strided_slice %106 {offsets = [0, 128], sizes = [1, 128], strides = [1, 1]} : vector<1x512xf32> to vector<1x128xf32>
    %114 = arith.negf %113 : vector<1x128xf32>
    %115 = math.exp %114 : vector<1x128xf32>
    %cst_38 = arith.constant 1.000000e+00 : f32
    %116 = vector.broadcast %cst_38 : f32 to vector<1x128xf32>
    %117 = arith.addf %116, %115 : vector<1x128xf32>
    %118 = arith.divf %116, %117 : vector<1x128xf32>
    %119 = vector.extract_strided_slice %106 {offsets = [0, 256], sizes = [1, 128], strides = [1, 1]} : vector<1x512xf32> to vector<1x128xf32>
    %120 = math.tanh %119 : vector<1x128xf32>
    %121 = vector.extract_strided_slice %106 {offsets = [0, 384], sizes = [1, 128], strides = [1, 1]} : vector<1x512xf32> to vector<1x128xf32>
    %122 = arith.negf %121 : vector<1x128xf32>
    %123 = math.exp %122 : vector<1x128xf32>
    %cst_39 = arith.constant 1.000000e+00 : f32
    %124 = vector.broadcast %cst_39 : f32 to vector<1x128xf32>
    %125 = arith.addf %124, %123 : vector<1x128xf32>
    %126 = arith.divf %124, %125 : vector<1x128xf32>
    %127 = arith.mulf %118, %68 : vector<1x128xf32>
    %128 = arith.mulf %112, %120 : vector<1x128xf32>
    %129 = arith.addf %127, %128 : vector<1x128xf32>
    %130 = math.tanh %129 : vector<1x128xf32>
    %131 = arith.mulf %126, %130 : vector<1x128xf32>
    %132 = tpu.concatenate %70, %131 in 0 : vector<1x128xf32>, vector<1x128xf32> -> vector<2x128xf32>
    %133 = arith.truncf %132 : vector<2x128xf32> to vector<2x128xbf16>
    %c0_40 = arith.constant 0 : index
    %c0_41 = arith.constant 0 : index
    %134 = vector.load %arg7[%c0_40, %c0_41] : memref<128x128xbf16, #tpu.memory_space<vmem>>, vector<128x128xbf16>
    %cst_42 = arith.constant dense<0.000000e+00> : vector<2x128xf32>
    %135 = tpu.matmul %133, %134, %cst_42 {dimension_numbers = #tpu.dot_dimension_numbers<[1], [0], [0], [1], [0, 0, 1, 1], [], []>} : vector<2x128xbf16>, vector<128x128xbf16>, vector<2x128xf32> -> vector<2x128xf32>
    %c0_43 = arith.constant 0 : index
    %c0_44 = arith.constant 0 : index
    %136 = vector.load %arg8[%c0_43, %c0_44] : memref<1x128xf32, #tpu.memory_space<vmem>>, vector<1x128xf32>
    %137 = vector.broadcast %136 : vector<1x128xf32> to vector<2x128xf32>
    %138 = arith.addf %135, %137 : vector<2x128xf32>
    %139 = arith.truncf %138 : vector<2x128xf32> to vector<2x128xbf16>
    %c0_45 = arith.constant 0 : index
    %c0_46 = arith.constant 0 : index
    %140 = vector.load %arg9[%c0_45, %c0_46] : memref<128x128xbf16, #tpu.memory_space<vmem>>, vector<128x128xbf16>
    %cst_47 = arith.constant dense<0.000000e+00> : vector<2x128xf32>
    %141 = tpu.matmul %139, %140, %cst_47 {dimension_numbers = #tpu.dot_dimension_numbers<[1], [0], [0], [1], [0, 0, 1, 1], [], []>} : vector<2x128xbf16>, vector<128x128xbf16>, vector<2x128xf32> -> vector<2x128xf32>
    %c0_48 = arith.constant 0 : index
    %c0_49 = arith.constant 0 : index
    %142 = vector.load %arg10[%c0_48, %c0_49] : memref<1x128xf32, #tpu.memory_space<vmem>>, vector<1x128xf32>
    %143 = vector.broadcast %142 : vector<1x128xf32> to vector<2x128xf32>
    %144 = arith.addf %141, %143 : vector<2x128xf32>
    %145 = math.tanh %144 : vector<2x128xf32>
    %c0_50 = arith.constant 0 : index
    %c0_51 = arith.constant 0 : index
    %146 = vector.load %arg20[%c0_50, %c0_51] : memref<2x128xf32, #tpu.memory_space<vmem>>, vector<2x128xf32>
    tpu.vector_store %arg20[%c0_50, %c0_51], %145 {strides = array<i32>} : memref<2x128xf32, #tpu.memory_space<vmem>>, vector<2x128xf32>,
    %c0_52 = arith.constant 0 : index
    %c0_53 = arith.constant 0 : index
    %147 = vector.load %arg11[%c0_52, %c0_53] : memref<128x512xbf16, #tpu.memory_space<vmem>>, vector<128x512xbf16>
    %cst_54 = arith.constant dense<0.000000e+00> : vector<2x512xf32>
    %148 = tpu.matmul %139, %147, %cst_54 {dimension_numbers = #tpu.dot_dimension_numbers<[1], [0], [0], [1], [0, 0, 1, 1], [], []>} : vector<2x128xbf16>, vector<128x512xbf16>, vector<2x512xf32> -> vector<2x512xf32>
    %c0_55 = arith.constant 0 : index
    %c0_56 = arith.constant 0 : index
    %149 = vector.load %arg12[%c0_55, %c0_56] : memref<1x512xf32, #tpu.memory_space<vmem>>, vector<1x512xf32>
    %150 = vector.broadcast %149 : vector<1x512xf32> to vector<2x512xf32>
    %151 = arith.addf %148, %150 : vector<2x512xf32>
    %c0_57 = arith.constant 0 : index
    %c0_58 = arith.constant 0 : index
    %152 = vector.load %arg19[%c0_57, %c0_58] : memref<2x512xf32, #tpu.memory_space<vmem>>, vector<2x512xf32>
    tpu.vector_store %arg19[%c0_57, %c0_58], %151 {strides = array<i32>} : memref<2x512xf32, #tpu.memory_space<vmem>>, vector<2x512xf32>,
    %cst_59 = arith.constant 0.000000e+00 : f32
    %153 = vector.broadcast %cst_59 : f32 to vector<1x128xf32>
    %c0_i32 = arith.constant 0 : i32
    %c2_i32 = arith.constant 2 : i32
    %154 = arith.addi %c0_i32, %c2_i32 : i32
    %c1_i32 = arith.constant 1 : i32
    %155 = scf.for %arg21 = %c0_i32 to %154 step %c1_i32 iter_args(%arg22 = %153) -> (vector<1x128xf32>)  : i32 {
      %156 = arith.index_cast %arg21 : i32 to index
      %c0_61 = arith.constant 0 : index
      %157 = vector.load %arg19[%156, %c0_61] : memref<2x512xf32, #tpu.memory_space<vmem>>, vector<1x512xf32>
      %158 = arith.index_cast %arg21 : i32 to index
      %c0_62 = arith.constant 0 : index
      %159 = vector.load %arg20[%158, %c0_62] : memref<2x128xf32, #tpu.memory_space<vmem>>, vector<1x128xf32>
      %cst_63 = arith.constant 0.000000e+00 : f32
      %160 = vector.broadcast %cst_63 : f32 to vector<1x128xf32>
      %cst_64 = arith.constant 0.000000e+00 : f32
      %161 = vector.broadcast %cst_64 : f32 to vector<1x128xf32>
      %cst_65 = arith.constant 0.000000e+00 : f32
      %162 = vector.broadcast %cst_65 : f32 to vector<1x128xf32>
      %163 = tpu.concatenate %arg22, %159 in 1 : vector<1x128xf32>, vector<1x128xf32> -> vector<1x256xf32>
      %164 = arith.truncf %163 : vector<1x256xf32> to vector<1x256xbf16>
      %c0_66 = arith.constant 0 : index
      %c0_67 = arith.constant 0 : index
      %165 = vector.load %arg13[%c0_66, %c0_67] : memref<256x512xbf16, #tpu.memory_space<vmem>>, vector<256x512xbf16>
      %cst_68 = arith.constant dense<0.000000e+00> : vector<1x512xf32>
      %166 = tpu.matmul %164, %165, %cst_68 {dimension_numbers = #tpu.dot_dimension_numbers<[1], [0], [0], [1], [0, 0, 1, 1], [], []>} : vector<1x256xbf16>, vector<256x512xbf16>, vector<1x512xf32> -> vector<1x512xf32>
      %167 = arith.addf %166, %157 : vector<1x512xf32>
      %168 = vector.extract_strided_slice %167 {offsets = [0, 0], sizes = [1, 128], strides = [1, 1]} : vector<1x512xf32> to vector<1x128xf32>
      %169 = arith.negf %168 : vector<1x128xf32>
      %170 = math.exp %169 : vector<1x128xf32>
      %cst_69 = arith.constant 1.000000e+00 : f32
      %171 = vector.broadcast %cst_69 : f32 to vector<1x128xf32>
      %172 = arith.addf %171, %170 : vector<1x128xf32>
      %173 = arith.divf %171, %172 : vector<1x128xf32>
      %174 = vector.extract_strided_slice %167 {offsets = [0, 128], sizes = [1, 128], strides = [1, 1]} : vector<1x512xf32> to vector<1x128xf32>
      %175 = arith.negf %174 : vector<1x128xf32>
      %176 = math.exp %175 : vector<1x128xf32>
      %cst_70 = arith.constant 1.000000e+00 : f32
      %177 = vector.broadcast %cst_70 : f32 to vector<1x128xf32>
      %178 = arith.addf %177, %176 : vector<1x128xf32>
      %179 = arith.divf %177, %178 : vector<1x128xf32>
      %180 = vector.extract_strided_slice %167 {offsets = [0, 256], sizes = [1, 128], strides = [1, 1]} : vector<1x512xf32> to vector<1x128xf32>
      %181 = math.tanh %180 : vector<1x128xf32>
      %182 = vector.extract_strided_slice %167 {offsets = [0, 384], sizes = [1, 128], strides = [1, 1]} : vector<1x512xf32> to vector<1x128xf32>
      %183 = arith.negf %182 : vector<1x128xf32>
      %184 = math.exp %183 : vector<1x128xf32>
      %cst_71 = arith.constant 1.000000e+00 : f32
      %185 = vector.broadcast %cst_71 : f32 to vector<1x128xf32>
      %186 = arith.addf %185, %184 : vector<1x128xf32>
      %187 = arith.divf %185, %186 : vector<1x128xf32>
      %188 = arith.mulf %179, %160 : vector<1x128xf32>
      %189 = arith.mulf %173, %181 : vector<1x128xf32>
      %190 = arith.addf %188, %189 : vector<1x128xf32>
      %191 = math.tanh %190 : vector<1x128xf32>
      %192 = arith.mulf %187, %191 : vector<1x128xf32>
      %193 = tpu.concatenate %192, %161 in 1 : vector<1x128xf32>, vector<1x128xf32> -> vector<1x256xf32>
      %194 = arith.truncf %193 : vector<1x256xf32> to vector<1x256xbf16>
      %c0_72 = arith.constant 0 : index
      %c0_73 = arith.constant 0 : index
      %195 = vector.load %arg14[%c0_72, %c0_73] : memref<256x512xbf16, #tpu.memory_space<vmem>>, vector<256x512xbf16>
      %cst_74 = arith.constant dense<0.000000e+00> : vector<1x512xf32>
      %196 = tpu.matmul %194, %195, %cst_74 {dimension_numbers = #tpu.dot_dimension_numbers<[1], [0], [0], [1], [0, 0, 1, 1], [], []>} : vector<1x256xbf16>, vector<256x512xbf16>, vector<1x512xf32> -> vector<1x512xf32>
      %c0_75 = arith.constant 0 : index
      %c0_76 = arith.constant 0 : index
      %197 = vector.load %arg15[%c0_75, %c0_76] : memref<1x512xf32, #tpu.memory_space<vmem>>, vector<1x512xf32>
      %198 = arith.addf %196, %197 : vector<1x512xf32>
      %199 = vector.extract_strided_slice %198 {offsets = [0, 0], sizes = [1, 128], strides = [1, 1]} : vector<1x512xf32> to vector<1x128xf32>
      %200 = arith.negf %199 : vector<1x128xf32>
      %201 = math.exp %200 : vector<1x128xf32>
      %cst_77 = arith.constant 1.000000e+00 : f32
      %202 = vector.broadcast %cst_77 : f32 to vector<1x128xf32>
      %203 = arith.addf %202, %201 : vector<1x128xf32>
      %204 = arith.divf %202, %203 : vector<1x128xf32>
      %205 = vector.extract_strided_slice %198 {offsets = [0, 128], sizes = [1, 128], strides = [1, 1]} : vector<1x512xf32> to vector<1x128xf32>
      %206 = arith.negf %205 : vector<1x128xf32>
      %207 = math.exp %206 : vector<1x128xf32>
      %cst_78 = arith.constant 1.000000e+00 : f32
      %208 = vector.broadcast %cst_78 : f32 to vector<1x128xf32>
      %209 = arith.addf %208, %207 : vector<1x128xf32>
      %210 = arith.divf %208, %209 : vector<1x128xf32>
      %211 = vector.extract_strided_slice %198 {offsets = [0, 256], sizes = [1, 128], strides = [1, 1]} : vector<1x512xf32> to vector<1x128xf32>
      %212 = math.tanh %211 : vector<1x128xf32>
      %213 = vector.extract_strided_slice %198 {offsets = [0, 384], sizes = [1, 128], strides = [1, 1]} : vector<1x512xf32> to vector<1x128xf32>
      %214 = arith.negf %213 : vector<1x128xf32>
      %215 = math.exp %214 : vector<1x128xf32>
      %cst_79 = arith.constant 1.000000e+00 : f32
      %216 = vector.broadcast %cst_79 : f32 to vector<1x128xf32>
      %217 = arith.addf %216, %215 : vector<1x128xf32>
      %218 = arith.divf %216, %217 : vector<1x128xf32>
      %219 = arith.mulf %210, %162 : vector<1x128xf32>
      %220 = arith.mulf %204, %212 : vector<1x128xf32>
      %221 = arith.addf %219, %220 : vector<1x128xf32>
      %222 = math.tanh %221 : vector<1x128xf32>
      %223 = arith.mulf %218, %222 : vector<1x128xf32>
      %224 = arith.truncf %223 : vector<1x128xf32> to vector<1x128xbf16>
      %c0_80 = arith.constant 0 : index
      %c0_81 = arith.constant 0 : index
      %225 = vector.load %arg16[%c0_80, %c0_81] : memref<128x128xbf16, #tpu.memory_space<vmem>>, vector<128x128xbf16>
      %cst_82 = arith.constant dense<0.000000e+00> : vector<1x128xf32>
      %226 = tpu.matmul %224, %225, %cst_82 {dimension_numbers = #tpu.dot_dimension_numbers<[1], [0], [0], [1], [0, 0, 1, 1], [], []>} : vector<1x128xbf16>, vector<128x128xbf16>, vector<1x128xf32> -> vector<1x128xf32>
      %c0_83 = arith.constant 0 : index
      %c0_84 = arith.constant 0 : index
      %227 = vector.load %arg17[%c0_83, %c0_84] : memref<1x128xf32, #tpu.memory_space<vmem>>, vector<1x128xf32>
      %228 = arith.addf %226, %227 : vector<1x128xf32>
      %cst_85 = arith.constant dense<0xFF800000> : vector<1xf32>
      %229 = vector.multi_reduction <maximumf>, %228, %cst_85 [1] : vector<1x128xf32> to vector<1xf32>
      %230 = vector.shape_cast %229 : vector<1xf32> to vector<1x1xf32>
      %231 = vector.broadcast %230 : vector<1x1xf32> to vector<1x128xf32>
      %232 = arith.subf %228, %231 : vector<1x128xf32>
      %233 = math.exp %232 : vector<1x128xf32>
      %cst_86 = arith.constant dense<0.000000e+00> : vector<1xf32>
      %234 = vector.multi_reduction <add>, %233, %cst_86 [1] : vector<1x128xf32> to vector<1xf32>
      %235 = vector.shape_cast %234 : vector<1xf32> to vector<1x1xf32>
      %236 = tpu.reciprocal %235 {approx = true} : vector<1x1xf32> -> vector<1x1xf32>
      %237 = arith.mulf %235, %236 : vector<1x1xf32>
      %cst_87 = arith.constant 2.000000e+00 : f32
      %238 = vector.broadcast %cst_87 : f32 to vector<1x1xf32>
      %239 = arith.subf %238, %237 : vector<1x1xf32>
      %240 = arith.mulf %236, %239 : vector<1x1xf32>
      %241 = vector.broadcast %240 : vector<1x1xf32> to vector<1x128xf32>
      %242 = arith.mulf %233, %241 : vector<1x128xf32>
      %c4_i32 = arith.constant 4 : i32
      %243 = arith.muli %arg21, %c4_i32 : i32
      %c0_i32_88 = arith.constant 0 : i32
      %244 = arith.addi %243, %c0_i32_88 : i32
      %245 = arith.index_cast %244 : i32 to index
      %c0_89 = arith.constant 0 : index
      %246 = vector.load %arg18[%245, %c0_89] : memref<8x128xf32, #tpu.memory_space<vmem>>, vector<1x128xf32>
      tpu.vector_store %arg18[%245, %c0_89], %242 {strides = array<i32>} : memref<8x128xf32, #tpu.memory_space<vmem>>, vector<1x128xf32>,
      %247 = tpu.concatenate %242, %192 in 1 : vector<1x128xf32>, vector<1x128xf32> -> vector<1x256xf32>
      %248 = arith.truncf %247 : vector<1x256xf32> to vector<1x256xbf16>
      %c0_90 = arith.constant 0 : index
      %c0_91 = arith.constant 0 : index
      %249 = vector.load %arg13[%c0_90, %c0_91] : memref<256x512xbf16, #tpu.memory_space<vmem>>, vector<256x512xbf16>
      %cst_92 = arith.constant dense<0.000000e+00> : vector<1x512xf32>
      %250 = tpu.matmul %248, %249, %cst_92 {dimension_numbers = #tpu.dot_dimension_numbers<[1], [0], [0], [1], [0, 0, 1, 1], [], []>} : vector<1x256xbf16>, vector<256x512xbf16>, vector<1x512xf32> -> vector<1x512xf32>
      %251 = arith.addf %250, %157 : vector<1x512xf32>
      %252 = vector.extract_strided_slice %251 {offsets = [0, 0], sizes = [1, 128], strides = [1, 1]} : vector<1x512xf32> to vector<1x128xf32>
      %253 = arith.negf %252 : vector<1x128xf32>
      %254 = math.exp %253 : vector<1x128xf32>
      %cst_93 = arith.constant 1.000000e+00 : f32
      %255 = vector.broadcast %cst_93 : f32 to vector<1x128xf32>
      %256 = arith.addf %255, %254 : vector<1x128xf32>
      %257 = arith.divf %255, %256 : vector<1x128xf32>
      %258 = vector.extract_strided_slice %251 {offsets = [0, 128], sizes = [1, 128], strides = [1, 1]} : vector<1x512xf32> to vector<1x128xf32>
      %259 = arith.negf %258 : vector<1x128xf32>
      %260 = math.exp %259 : vector<1x128xf32>
      %cst_94 = arith.constant 1.000000e+00 : f32
      %261 = vector.broadcast %cst_94 : f32 to vector<1x128xf32>
      %262 = arith.addf %261, %260 : vector<1x128xf32>
      %263 = arith.divf %261, %262 : vector<1x128xf32>
      %264 = vector.extract_strided_slice %251 {offsets = [0, 256], sizes = [1, 128], strides = [1, 1]} : vector<1x512xf32> to vector<1x128xf32>
      %265 = math.tanh %264 : vector<1x128xf32>
      %266 = vector.extract_strided_slice %251 {offsets = [0, 384], sizes = [1, 128], strides = [1, 1]} : vector<1x512xf32> to vector<1x128xf32>
      %267 = arith.negf %266 : vector<1x128xf32>
      %268 = math.exp %267 : vector<1x128xf32>
      %cst_95 = arith.constant 1.000000e+00 : f32
      %269 = vector.broadcast %cst_95 : f32 to vector<1x128xf32>
      %270 = arith.addf %269, %268 : vector<1x128xf32>
      %271 = arith.divf %269, %270 : vector<1x128xf32>
      %272 = arith.mulf %263, %190 : vector<1x128xf32>
      %273 = arith.mulf %257, %265 : vector<1x128xf32>
      %274 = arith.addf %272, %273 : vector<1x128xf32>
      %275 = math.tanh %274 : vector<1x128xf32>
      %276 = arith.mulf %271, %275 : vector<1x128xf32>
      %277 = tpu.concatenate %276, %223 in 1 : vector<1x128xf32>, vector<1x128xf32> -> vector<1x256xf32>
      %278 = arith.truncf %277 : vector<1x256xf32> to vector<1x256xbf16>
      %c0_96 = arith.constant 0 : index
      %c0_97 = arith.constant 0 : index
      %279 = vector.load %arg14[%c0_96, %c0_97] : memref<256x512xbf16, #tpu.memory_space<vmem>>, vector<256x512xbf16>
      %cst_98 = arith.constant dense<0.000000e+00> : vector<1x512xf32>
      %280 = tpu.matmul %278, %279, %cst_98 {dimension_numbers = #tpu.dot_dimension_numbers<[1], [0], [0], [1], [0, 0, 1, 1], [], []>} : vector<1x256xbf16>, vector<256x512xbf16>, vector<1x512xf32> -> vector<1x512xf32>
      %c0_99 = arith.constant 0 : index
      %c0_100 = arith.constant 0 : index
      %281 = vector.load %arg15[%c0_99, %c0_100] : memref<1x512xf32, #tpu.memory_space<vmem>>, vector<1x512xf32>
      %282 = arith.addf %280, %281 : vector<1x512xf32>
      %283 = vector.extract_strided_slice %282 {offsets = [0, 0], sizes = [1, 128], strides = [1, 1]} : vector<1x512xf32> to vector<1x128xf32>
      %284 = arith.negf %283 : vector<1x128xf32>
      %285 = math.exp %284 : vector<1x128xf32>
      %cst_101 = arith.constant 1.000000e+00 : f32
      %286 = vector.broadcast %cst_101 : f32 to vector<1x128xf32>
      %287 = arith.addf %286, %285 : vector<1x128xf32>
      %288 = arith.divf %286, %287 : vector<1x128xf32>
      %289 = vector.extract_strided_slice %282 {offsets = [0, 128], sizes = [1, 128], strides = [1, 1]} : vector<1x512xf32> to vector<1x128xf32>
      %290 = arith.negf %289 : vector<1x128xf32>
      %291 = math.exp %290 : vector<1x128xf32>
      %cst_102 = arith.constant 1.000000e+00 : f32
      %292 = vector.broadcast %cst_102 : f32 to vector<1x128xf32>
      %293 = arith.addf %292, %291 : vector<1x128xf32>
      %294 = arith.divf %292, %293 : vector<1x128xf32>
      %295 = vector.extract_strided_slice %282 {offsets = [0, 256], sizes = [1, 128], strides = [1, 1]} : vector<1x512xf32> to vector<1x128xf32>
      %296 = math.tanh %295 : vector<1x128xf32>
      %297 = vector.extract_strided_slice %282 {offsets = [0, 384], sizes = [1, 128], strides = [1, 1]} : vector<1x512xf32> to vector<1x128xf32>
      %298 = arith.negf %297 : vector<1x128xf32>
      %299 = math.exp %298 : vector<1x128xf32>
      %cst_103 = arith.constant 1.000000e+00 : f32
      %300 = vector.broadcast %cst_103 : f32 to vector<1x128xf32>
      %301 = arith.addf %300, %299 : vector<1x128xf32>
      %302 = arith.divf %300, %301 : vector<1x128xf32>
      %303 = arith.mulf %294, %221 : vector<1x128xf32>
      %304 = arith.mulf %288, %296 : vector<1x128xf32>
      %305 = arith.addf %303, %304 : vector<1x128xf32>
      %306 = math.tanh %305 : vector<1x128xf32>
      %307 = arith.mulf %302, %306 : vector<1x128xf32>
      %308 = arith.truncf %307 : vector<1x128xf32> to vector<1x128xbf16>
      %c0_104 = arith.constant 0 : index
      %c0_105 = arith.constant 0 : index
      %309 = vector.load %arg16[%c0_104, %c0_105] : memref<128x128xbf16, #tpu.memory_space<vmem>>, vector<128x128xbf16>
      %cst_106 = arith.constant dense<0.000000e+00> : vector<1x128xf32>
      %310 = tpu.matmul %308, %309, %cst_106 {dimension_numbers = #tpu.dot_dimension_numbers<[1], [0], [0], [1], [0, 0, 1, 1], [], []>} : vector<1x128xbf16>, vector<128x128xbf16>, vector<1x128xf32> -> vector<1x128xf32>
      %c0_107 = arith.constant 0 : index
      %c0_108 = arith.constant 0 : index
      %311 = vector.load %arg17[%c0_107, %c0_108] : memref<1x128xf32, #tpu.memory_space<vmem>>, vector<1x128xf32>
      %312 = arith.addf %310, %311 : vector<1x128xf32>
      %cst_109 = arith.constant dense<0xFF800000> : vector<1xf32>
      %313 = vector.multi_reduction <maximumf>, %312, %cst_109 [1] : vector<1x128xf32> to vector<1xf32>
      %314 = vector.shape_cast %313 : vector<1xf32> to vector<1x1xf32>
      %315 = vector.broadcast %314 : vector<1x1xf32> to vector<1x128xf32>
      %316 = arith.subf %312, %315 : vector<1x128xf32>
      %317 = math.exp %316 : vector<1x128xf32>
      %cst_110 = arith.constant dense<0.000000e+00> : vector<1xf32>
      %318 = vector.multi_reduction <add>, %317, %cst_110 [1] : vector<1x128xf32> to vector<1xf32>
      %319 = vector.shape_cast %318 : vector<1xf32> to vector<1x1xf32>
      %320 = tpu.reciprocal %319 {approx = true} : vector<1x1xf32> -> vector<1x1xf32>
      %321 = arith.mulf %319, %320 : vector<1x1xf32>
      %cst_111 = arith.constant 2.000000e+00 : f32
      %322 = vector.broadcast %cst_111 : f32 to vector<1x1xf32>
      %323 = arith.subf %322, %321 : vector<1x1xf32>
      %324 = arith.mulf %320, %323 : vector<1x1xf32>
      %325 = vector.broadcast %324 : vector<1x1xf32> to vector<1x128xf32>
      %326 = arith.mulf %317, %325 : vector<1x128xf32>
      %c4_i32_112 = arith.constant 4 : i32
      %327 = arith.muli %arg21, %c4_i32_112 : i32
      %c1_i32_113 = arith.constant 1 : i32
      %328 = arith.addi %327, %c1_i32_113 : i32
      %329 = arith.index_cast %328 : i32 to index
      %c0_114 = arith.constant 0 : index
      %330 = vector.load %arg18[%329, %c0_114] : memref<8x128xf32, #tpu.memory_space<vmem>>, vector<1x128xf32>
      tpu.vector_store %arg18[%329, %c0_114], %326 {strides = array<i32>} : memref<8x128xf32, #tpu.memory_space<vmem>>, vector<1x128xf32>,
      %331 = tpu.concatenate %326, %276 in 1 : vector<1x128xf32>, vector<1x128xf32> -> vector<1x256xf32>
      %332 = arith.truncf %331 : vector<1x256xf32> to vector<1x256xbf16>
      %c0_115 = arith.constant 0 : index
      %c0_116 = arith.constant 0 : index
      %333 = vector.load %arg13[%c0_115, %c0_116] : memref<256x512xbf16, #tpu.memory_space<vmem>>, vector<256x512xbf16>
      %cst_117 = arith.constant dense<0.000000e+00> : vector<1x512xf32>
      %334 = tpu.matmul %332, %333, %cst_117 {dimension_numbers = #tpu.dot_dimension_numbers<[1], [0], [0], [1], [0, 0, 1, 1], [], []>} : vector<1x256xbf16>, vector<256x512xbf16>, vector<1x512xf32> -> vector<1x512xf32>
      %335 = arith.addf %334, %157 : vector<1x512xf32>
      %336 = vector.extract_strided_slice %335 {offsets = [0, 0], sizes = [1, 128], strides = [1, 1]} : vector<1x512xf32> to vector<1x128xf32>
      %337 = arith.negf %336 : vector<1x128xf32>
      %338 = math.exp %337 : vector<1x128xf32>
      %cst_118 = arith.constant 1.000000e+00 : f32
      %339 = vector.broadcast %cst_118 : f32 to vector<1x128xf32>
      %340 = arith.addf %339, %338 : vector<1x128xf32>
      %341 = arith.divf %339, %340 : vector<1x128xf32>
      %342 = vector.extract_strided_slice %335 {offsets = [0, 128], sizes = [1, 128], strides = [1, 1]} : vector<1x512xf32> to vector<1x128xf32>
      %343 = arith.negf %342 : vector<1x128xf32>
      %344 = math.exp %343 : vector<1x128xf32>
      %cst_119 = arith.constant 1.000000e+00 : f32
      %345 = vector.broadcast %cst_119 : f32 to vector<1x128xf32>
      %346 = arith.addf %345, %344 : vector<1x128xf32>
      %347 = arith.divf %345, %346 : vector<1x128xf32>
      %348 = vector.extract_strided_slice %335 {offsets = [0, 256], sizes = [1, 128], strides = [1, 1]} : vector<1x512xf32> to vector<1x128xf32>
      %349 = math.tanh %348 : vector<1x128xf32>
      %350 = vector.extract_strided_slice %335 {offsets = [0, 384], sizes = [1, 128], strides = [1, 1]} : vector<1x512xf32> to vector<1x128xf32>
      %351 = arith.negf %350 : vector<1x128xf32>
      %352 = math.exp %351 : vector<1x128xf32>
      %cst_120 = arith.constant 1.000000e+00 : f32
      %353 = vector.broadcast %cst_120 : f32 to vector<1x128xf32>
      %354 = arith.addf %353, %352 : vector<1x128xf32>
      %355 = arith.divf %353, %354 : vector<1x128xf32>
      %356 = arith.mulf %347, %274 : vector<1x128xf32>
      %357 = arith.mulf %341, %349 : vector<1x128xf32>
      %358 = arith.addf %356, %357 : vector<1x128xf32>
      %359 = math.tanh %358 : vector<1x128xf32>
      %360 = arith.mulf %355, %359 : vector<1x128xf32>
      %361 = tpu.concatenate %360, %307 in 1 : vector<1x128xf32>, vector<1x128xf32> -> vector<1x256xf32>
      %362 = arith.truncf %361 : vector<1x256xf32> to vector<1x256xbf16>
      %c0_121 = arith.constant 0 : index
      %c0_122 = arith.constant 0 : index
      %363 = vector.load %arg14[%c0_121, %c0_122] : memref<256x512xbf16, #tpu.memory_space<vmem>>, vector<256x512xbf16>
      %cst_123 = arith.constant dense<0.000000e+00> : vector<1x512xf32>
      %364 = tpu.matmul %362, %363, %cst_123 {dimension_numbers = #tpu.dot_dimension_numbers<[1], [0], [0], [1], [0, 0, 1, 1], [], []>} : vector<1x256xbf16>, vector<256x512xbf16>, vector<1x512xf32> -> vector<1x512xf32>
      %c0_124 = arith.constant 0 : index
      %c0_125 = arith.constant 0 : index
      %365 = vector.load %arg15[%c0_124, %c0_125] : memref<1x512xf32, #tpu.memory_space<vmem>>, vector<1x512xf32>
      %366 = arith.addf %364, %365 : vector<1x512xf32>
      %367 = vector.extract_strided_slice %366 {offsets = [0, 0], sizes = [1, 128], strides = [1, 1]} : vector<1x512xf32> to vector<1x128xf32>
      %368 = arith.negf %367 : vector<1x128xf32>
      %369 = math.exp %368 : vector<1x128xf32>
      %cst_126 = arith.constant 1.000000e+00 : f32
      %370 = vector.broadcast %cst_126 : f32 to vector<1x128xf32>
      %371 = arith.addf %370, %369 : vector<1x128xf32>
      %372 = arith.divf %370, %371 : vector<1x128xf32>
      %373 = vector.extract_strided_slice %366 {offsets = [0, 128], sizes = [1, 128], strides = [1, 1]} : vector<1x512xf32> to vector<1x128xf32>
      %374 = arith.negf %373 : vector<1x128xf32>
      %375 = math.exp %374 : vector<1x128xf32>
      %cst_127 = arith.constant 1.000000e+00 : f32
      %376 = vector.broadcast %cst_127 : f32 to vector<1x128xf32>
      %377 = arith.addf %376, %375 : vector<1x128xf32>
      %378 = arith.divf %376, %377 : vector<1x128xf32>
      %379 = vector.extract_strided_slice %366 {offsets = [0, 256], sizes = [1, 128], strides = [1, 1]} : vector<1x512xf32> to vector<1x128xf32>
      %380 = math.tanh %379 : vector<1x128xf32>
      %381 = vector.extract_strided_slice %366 {offsets = [0, 384], sizes = [1, 128], strides = [1, 1]} : vector<1x512xf32> to vector<1x128xf32>
      %382 = arith.negf %381 : vector<1x128xf32>
      %383 = math.exp %382 : vector<1x128xf32>
      %cst_128 = arith.constant 1.000000e+00 : f32
      %384 = vector.broadcast %cst_128 : f32 to vector<1x128xf32>
      %385 = arith.addf %384, %383 : vector<1x128xf32>
      %386 = arith.divf %384, %385 : vector<1x128xf32>
      %387 = arith.mulf %378, %305 : vector<1x128xf32>
      %388 = arith.mulf %372, %380 : vector<1x128xf32>
      %389 = arith.addf %387, %388 : vector<1x128xf32>
      %390 = math.tanh %389 : vector<1x128xf32>
      %391 = arith.mulf %386, %390 : vector<1x128xf32>
      %392 = arith.truncf %391 : vector<1x128xf32> to vector<1x128xbf16>
      %c0_129 = arith.constant 0 : index
      %c0_130 = arith.constant 0 : index
      %393 = vector.load %arg16[%c0_129, %c0_130] : memref<128x128xbf16, #tpu.memory_space<vmem>>, vector<128x128xbf16>
      %cst_131 = arith.constant dense<0.000000e+00> : vector<1x128xf32>
      %394 = tpu.matmul %392, %393, %cst_131 {dimension_numbers = #tpu.dot_dimension_numbers<[1], [0], [0], [1], [0, 0, 1, 1], [], []>} : vector<1x128xbf16>, vector<128x128xbf16>, vector<1x128xf32> -> vector<1x128xf32>
      %c0_132 = arith.constant 0 : index
      %c0_133 = arith.constant 0 : index
      %395 = vector.load %arg17[%c0_132, %c0_133] : memref<1x128xf32, #tpu.memory_space<vmem>>, vector<1x128xf32>
      %396 = arith.addf %394, %395 : vector<1x128xf32>
      %cst_134 = arith.constant dense<0xFF800000> : vector<1xf32>
      %397 = vector.multi_reduction <maximumf>, %396, %cst_134 [1] : vector<1x128xf32> to vector<1xf32>
      %398 = vector.shape_cast %397 : vector<1xf32> to vector<1x1xf32>
      %399 = vector.broadcast %398 : vector<1x1xf32> to vector<1x128xf32>
      %400 = arith.subf %396, %399 : vector<1x128xf32>
      %401 = math.exp %400 : vector<1x128xf32>
      %cst_135 = arith.constant dense<0.000000e+00> : vector<1xf32>
      %402 = vector.multi_reduction <add>, %401, %cst_135 [1] : vector<1x128xf32> to vector<1xf32>
      %403 = vector.shape_cast %402 : vector<1xf32> to vector<1x1xf32>
      %404 = tpu.reciprocal %403 {approx = true} : vector<1x1xf32> -> vector<1x1xf32>
      %405 = arith.mulf %403, %404 : vector<1x1xf32>
      %cst_136 = arith.constant 2.000000e+00 : f32
      %406 = vector.broadcast %cst_136 : f32 to vector<1x1xf32>
      %407 = arith.subf %406, %405 : vector<1x1xf32>
      %408 = arith.mulf %404, %407 : vector<1x1xf32>
      %409 = vector.broadcast %408 : vector<1x1xf32> to vector<1x128xf32>
      %410 = arith.mulf %401, %409 : vector<1x128xf32>
      %c4_i32_137 = arith.constant 4 : i32
      %411 = arith.muli %arg21, %c4_i32_137 : i32
      %c2_i32_138 = arith.constant 2 : i32
      %412 = arith.addi %411, %c2_i32_138 : i32
      %413 = arith.index_cast %412 : i32 to index
      %c0_139 = arith.constant 0 : index
      %414 = vector.load %arg18[%413, %c0_139] : memref<8x128xf32, #tpu.memory_space<vmem>>, vector<1x128xf32>
      tpu.vector_store %arg18[%413, %c0_139], %410 {strides = array<i32>} : memref<8x128xf32, #tpu.memory_space<vmem>>, vector<1x128xf32>,
      %415 = tpu.concatenate %410, %360 in 1 : vector<1x128xf32>, vector<1x128xf32> -> vector<1x256xf32>
      %416 = arith.truncf %415 : vector<1x256xf32> to vector<1x256xbf16>
      %c0_140 = arith.constant 0 : index
      %c0_141 = arith.constant 0 : index
      %417 = vector.load %arg13[%c0_140, %c0_141] : memref<256x512xbf16, #tpu.memory_space<vmem>>, vector<256x512xbf16>
      %cst_142 = arith.constant dense<0.000000e+00> : vector<1x512xf32>
      %418 = tpu.matmul %416, %417, %cst_142 {dimension_numbers = #tpu.dot_dimension_numbers<[1], [0], [0], [1], [0, 0, 1, 1], [], []>} : vector<1x256xbf16>, vector<256x512xbf16>, vector<1x512xf32> -> vector<1x512xf32>
      %419 = arith.addf %418, %157 : vector<1x512xf32>
      %420 = vector.extract_strided_slice %419 {offsets = [0, 0], sizes = [1, 128], strides = [1, 1]} : vector<1x512xf32> to vector<1x128xf32>
      %421 = arith.negf %420 : vector<1x128xf32>
      %422 = math.exp %421 : vector<1x128xf32>
      %cst_143 = arith.constant 1.000000e+00 : f32
      %423 = vector.broadcast %cst_143 : f32 to vector<1x128xf32>
      %424 = arith.addf %423, %422 : vector<1x128xf32>
      %425 = arith.divf %423, %424 : vector<1x128xf32>
      %426 = vector.extract_strided_slice %419 {offsets = [0, 128], sizes = [1, 128], strides = [1, 1]} : vector<1x512xf32> to vector<1x128xf32>
      %427 = arith.negf %426 : vector<1x128xf32>
      %428 = math.exp %427 : vector<1x128xf32>
      %cst_144 = arith.constant 1.000000e+00 : f32
      %429 = vector.broadcast %cst_144 : f32 to vector<1x128xf32>
      %430 = arith.addf %429, %428 : vector<1x128xf32>
      %431 = arith.divf %429, %430 : vector<1x128xf32>
      %432 = vector.extract_strided_slice %419 {offsets = [0, 256], sizes = [1, 128], strides = [1, 1]} : vector<1x512xf32> to vector<1x128xf32>
      %433 = math.tanh %432 : vector<1x128xf32>
      %434 = vector.extract_strided_slice %419 {offsets = [0, 384], sizes = [1, 128], strides = [1, 1]} : vector<1x512xf32> to vector<1x128xf32>
      %435 = arith.negf %434 : vector<1x128xf32>
      %436 = math.exp %435 : vector<1x128xf32>
      %cst_145 = arith.constant 1.000000e+00 : f32
      %437 = vector.broadcast %cst_145 : f32 to vector<1x128xf32>
      %438 = arith.addf %437, %436 : vector<1x128xf32>
      %439 = arith.divf %437, %438 : vector<1x128xf32>
      %440 = arith.mulf %431, %358 : vector<1x128xf32>
      %441 = arith.mulf %425, %433 : vector<1x128xf32>
      %442 = arith.addf %440, %441 : vector<1x128xf32>
      %443 = math.tanh %442 : vector<1x128xf32>
      %444 = arith.mulf %439, %443 : vector<1x128xf32>
      %445 = tpu.concatenate %444, %391 in 1 : vector<1x128xf32>, vector<1x128xf32> -> vector<1x256xf32>
      %446 = arith.truncf %445 : vector<1x256xf32> to vector<1x256xbf16>
      %c0_146 = arith.constant 0 : index
      %c0_147 = arith.constant 0 : index
      %447 = vector.load %arg14[%c0_146, %c0_147] : memref<256x512xbf16, #tpu.memory_space<vmem>>, vector<256x512xbf16>
      %cst_148 = arith.constant dense<0.000000e+00> : vector<1x512xf32>
      %448 = tpu.matmul %446, %447, %cst_148 {dimension_numbers = #tpu.dot_dimension_numbers<[1], [0], [0], [1], [0, 0, 1, 1], [], []>} : vector<1x256xbf16>, vector<256x512xbf16>, vector<1x512xf32> -> vector<1x512xf32>
      %c0_149 = arith.constant 0 : index
      %c0_150 = arith.constant 0 : index
      %449 = vector.load %arg15[%c0_149, %c0_150] : memref<1x512xf32, #tpu.memory_space<vmem>>, vector<1x512xf32>
      %450 = arith.addf %448, %449 : vector<1x512xf32>
      %451 = vector.extract_strided_slice %450 {offsets = [0, 0], sizes = [1, 128], strides = [1, 1]} : vector<1x512xf32> to vector<1x128xf32>
      %452 = arith.negf %451 : vector<1x128xf32>
      %453 = math.exp %452 : vector<1x128xf32>
      %cst_151 = arith.constant 1.000000e+00 : f32
      %454 = vector.broadcast %cst_151 : f32 to vector<1x128xf32>
      %455 = arith.addf %454, %453 : vector<1x128xf32>
      %456 = arith.divf %454, %455 : vector<1x128xf32>
      %457 = vector.extract_strided_slice %450 {offsets = [0, 128], sizes = [1, 128], strides = [1, 1]} : vector<1x512xf32> to vector<1x128xf32>
      %458 = arith.negf %457 : vector<1x128xf32>
      %459 = math.exp %458 : vector<1x128xf32>
      %cst_152 = arith.constant 1.000000e+00 : f32
      %460 = vector.broadcast %cst_152 : f32 to vector<1x128xf32>
      %461 = arith.addf %460, %459 : vector<1x128xf32>
      %462 = arith.divf %460, %461 : vector<1x128xf32>
      %463 = vector.extract_strided_slice %450 {offsets = [0, 256], sizes = [1, 128], strides = [1, 1]} : vector<1x512xf32> to vector<1x128xf32>
      %464 = math.tanh %463 : vector<1x128xf32>
      %465 = vector.extract_strided_slice %450 {offsets = [0, 384], sizes = [1, 128], strides = [1, 1]} : vector<1x512xf32> to vector<1x128xf32>
      %466 = arith.negf %465 : vector<1x128xf32>
      %467 = math.exp %466 : vector<1x128xf32>
      %cst_153 = arith.constant 1.000000e+00 : f32
      %468 = vector.broadcast %cst_153 : f32 to vector<1x128xf32>
      %469 = arith.addf %468, %467 : vector<1x128xf32>
      %470 = arith.divf %468, %469 : vector<1x128xf32>
      %471 = arith.mulf %462, %389 : vector<1x128xf32>
      %472 = arith.mulf %456, %464 : vector<1x128xf32>
      %473 = arith.addf %471, %472 : vector<1x128xf32>
      %474 = math.tanh %473 : vector<1x128xf32>
      %475 = arith.mulf %470, %474 : vector<1x128xf32>
      %476 = arith.truncf %475 : vector<1x128xf32> to vector<1x128xbf16>
      %c0_154 = arith.constant 0 : index
      %c0_155 = arith.constant 0 : index
      %477 = vector.load %arg16[%c0_154, %c0_155] : memref<128x128xbf16, #tpu.memory_space<vmem>>, vector<128x128xbf16>
      %cst_156 = arith.constant dense<0.000000e+00> : vector<1x128xf32>
      %478 = tpu.matmul %476, %477, %cst_156 {dimension_numbers = #tpu.dot_dimension_numbers<[1], [0], [0], [1], [0, 0, 1, 1], [], []>} : vector<1x128xbf16>, vector<128x128xbf16>, vector<1x128xf32> -> vector<1x128xf32>
      %c0_157 = arith.constant 0 : index
      %c0_158 = arith.constant 0 : index
      %479 = vector.load %arg17[%c0_157, %c0_158] : memref<1x128xf32, #tpu.memory_space<vmem>>, vector<1x128xf32>
      %480 = arith.addf %478, %479 : vector<1x128xf32>
      %cst_159 = arith.constant dense<0xFF800000> : vector<1xf32>
      %481 = vector.multi_reduction <maximumf>, %480, %cst_159 [1] : vector<1x128xf32> to vector<1xf32>
      %482 = vector.shape_cast %481 : vector<1xf32> to vector<1x1xf32>
      %483 = vector.broadcast %482 : vector<1x1xf32> to vector<1x128xf32>
      %484 = arith.subf %480, %483 : vector<1x128xf32>
      %485 = math.exp %484 : vector<1x128xf32>
      %cst_160 = arith.constant dense<0.000000e+00> : vector<1xf32>
      %486 = vector.multi_reduction <add>, %485, %cst_160 [1] : vector<1x128xf32> to vector<1xf32>
      %487 = vector.shape_cast %486 : vector<1xf32> to vector<1x1xf32>
      %488 = tpu.reciprocal %487 {approx = true} : vector<1x1xf32> -> vector<1x1xf32>
      %489 = arith.mulf %487, %488 : vector<1x1xf32>
      %cst_161 = arith.constant 2.000000e+00 : f32
      %490 = vector.broadcast %cst_161 : f32 to vector<1x1xf32>
      %491 = arith.subf %490, %489 : vector<1x1xf32>
      %492 = arith.mulf %488, %491 : vector<1x1xf32>
      %493 = vector.broadcast %492 : vector<1x1xf32> to vector<1x128xf32>
      %494 = arith.mulf %485, %493 : vector<1x128xf32>
      %c4_i32_162 = arith.constant 4 : i32
      %495 = arith.muli %arg21, %c4_i32_162 : i32
      %c3_i32 = arith.constant 3 : i32
      %496 = arith.addi %495, %c3_i32 : i32
      %497 = arith.index_cast %496 : i32 to index
      %c0_163 = arith.constant 0 : index
      %498 = vector.load %arg18[%497, %c0_163] : memref<8x128xf32, #tpu.memory_space<vmem>>, vector<1x128xf32>
      tpu.vector_store %arg18[%497, %c0_163], %494 {strides = array<i32>} : memref<8x128xf32, #tpu.memory_space<vmem>>, vector<1x128xf32>,
      scf.yield %494 : vector<1x128xf32>
    }
    %c2_i32_60 = arith.constant 2 : i32
    return
  }
}

</mosaic_0001>

<llo_original>
// kernel: tpu_custom_call.1
$region0: #{tpu_custom_call.1}
  #allocation0 [shape = 'u32[]', space=smem, size = 0x4, offset = 0x4, fixed_abs, tag = 'smem constant byte address 0x4 - core index']
  #allocation1 [shape = 'u32[72,128]{1,0:T(1,128)}', space=vmem, size = 0x9000, scoped, tag = 'internal scratch']
  #allocation2 [shape = 'f32[2,512]{1,0:T(2,128)}', space=vmem, size = 0x1000, scoped, tag = 'scratch operand']
  #allocation3 [shape = 'f32[2,128]{1,0:T(2,128)}', space=vmem, size = 0x400, scoped, tag = 'scratch operand']
  %s0 = inlined_call_operand.hbm [shape: f32[1,128], index: 0, kind: input, shape index: {}]
  %s1 = inlined_call_operand.hbm [shape: bf16[128,128], index: 1, kind: input, shape index: {}]
  %s2 = inlined_call_operand.hbm [shape: f32[1,128], index: 2, kind: input, shape index: {}]
  %s3 = inlined_call_operand.hbm [shape: bf16[128,512], index: 3, kind: input, shape index: {}]
  %s4 = inlined_call_operand.hbm [shape: f32[1,512], index: 4, kind: input, shape index: {}]
  %s5 = inlined_call_operand.hbm [shape: bf16[256,512], index: 5, kind: input, shape index: {}]
  %s6 = inlined_call_operand.vmem [shape: f32[1,512], index: 6, kind: input, shape index: {}]
  %s7 = inlined_call_operand.hbm [shape: bf16[128,128], index: 7, kind: input, shape index: {}]
  %s8 = inlined_call_operand.hbm [shape: f32[1,128], index: 8, kind: input, shape index: {}]
  %s9 = inlined_call_operand.hbm [shape: bf16[128,128], index: 9, kind: input, shape index: {}]
  %s10 = inlined_call_operand.hbm [shape: f32[1,128], index: 10, kind: input, shape index: {}]
  %s11 = inlined_call_operand.hbm [shape: bf16[128,512], index: 11, kind: input, shape index: {}]
  %s12 = inlined_call_operand.vmem [shape: f32[1,512], index: 12, kind: input, shape index: {}]
  %s13 = inlined_call_operand.hbm [shape: bf16[256,512], index: 13, kind: input, shape index: {}]
  %s14 = inlined_call_operand.hbm [shape: bf16[256,512], index: 14, kind: input, shape index: {}]
  %s15 = inlined_call_operand.vmem [shape: f32[1,512], index: 15, kind: input, shape index: {}]
  %s16 = inlined_call_operand.hbm [shape: bf16[128,128], index: 16, kind: input, shape index: {}]
  %s17 = inlined_call_operand.vmem [shape: f32[1,128], index: 17, kind: input, shape index: {}]
  %s18 = inlined_call_operand.hbm [shape: f32[8,128], index: 18, kind: output, shape index: {}]
  %s19 = sld [smem:[#allocation0]]
  $region145: #{tpu_custom_call.1} parent=0
    _
  %s21 = ssub.s32 1, %s19
  %s22 = scalar_select 0, %s21, %s19
  $region1: #{tpu_custom_call.1} parent=0
    #allocation4 [shape = 'u8[512]{0}', space=vmem, size = 0x400, scoped, tag = 'input window, operand 0, single buffered']
    #allocation5 [shape = 's32[1]{0}', space=sflag, size = 0x4, scoped, tag = 'scoped memory for tpu_custom_call.1']
    #allocation6 [shape = 's32[1]{0}', space=sflag, size = 0x4, scoped, tag = 'scoped memory for tpu_custom_call.1']
    #allocation7 [shape = 'u8[32768]{0}', space=vmem, size = 0x8000, scoped, tag = 'input window, operand 1, single buffered']
    #allocation8 [shape = 's32[1]{0}', space=sflag, size = 0x4, scoped, tag = 'scoped memory for tpu_custom_call.1']
    #allocation9 [shape = 'u8[512]{0}', space=vmem, size = 0x400, scoped, tag = 'input window, operand 2, single buffered']
    #allocation10 [shape = 'u8[131072]{0}', space=vmem, size = 0x20000, scoped, tag = 'input window, operand 3, single buffered']
    #allocation11 [shape = 's32[1]{0}', space=sflag, size = 0x4, scoped, tag = 'scoped memory for tpu_custom_call.1']
    #allocation12 [shape = 'u8[2048]{0}', space=vmem, size = 0x800, scoped, tag = 'input window, operand 4, single buffered']
    #allocation13 [shape = 'u8[262144]{0}', space=vmem, size = 0x40000, scoped, tag = 'input window, operand 5, single buffered']
    #allocation14 [shape = 's32[1]{0}', space=sflag, size = 0x4, scoped, tag = 'scoped memory for tpu_custom_call.1']
    #allocation15 [shape = 'u8[32768]{0}', space=vmem, size = 0x8000, scoped, tag = 'input window, operand 7, single buffered']
    #allocation16 [shape = 'u8[512]{0}', space=vmem, size = 0x400, scoped, tag = 'input window, operand 8, single buffered']
    #allocation17 [shape = 's32[1]{0}', space=sflag, size = 0x4, scoped, tag = 'scoped memory for tpu_custom_call.1']
    #allocation18 [shape = 'u8[32768]{0}', space=vmem, size = 0x8000, scoped, tag = 'input window, operand 9, single buffered']
    #allocation19 [shape = 'u8[512]{0}', space=vmem, size = 0x400, scoped, tag = 'input window, operand 10, single buffered']
    #allocation20 [shape = 's32[1]{0}', space=sflag, size = 0x4, scoped, tag = 'scoped memory for tpu_custom_call.1']
    #allocation21 [shape = 'u8[131072]{0}', space=vmem, size = 0x20000, scoped, tag = 'input window, operand 11, single buffered']
    #allocation22 [shape = 'u8[262144]{0}', space=vmem, size = 0x40000, scoped, tag = 'input window, operand 13, single buffered']
    #allocation23 [shape = 's32[1]{0}', space=sflag, size = 0x4, scoped, tag = 'scoped memory for tpu_custom_call.1']
    #allocation24 [shape = 'u8[262144]{0}', space=vmem, size = 0x40000, scoped, tag = 'input window, operand 14, single buffered']
    #allocation25 [shape = 'u8[32768]{0}', space=vmem, size = 0x8000, scoped, tag = 'input window, operand 16, single buffered']
    #allocation26 [shape = 's32[1]{0}', space=sflag, size = 0x4, scoped, tag = 'scoped memory for tpu_custom_call.1']
    #allocation27 [shape = 'u8[4096]{0}', space=vmem, size = 0x1000, scoped, tag = 'output window, operand 0, single buffered']
    %23 = vsyncpa [#allocation5], 0
    %24 = vsyncpa [#allocation8], 0
    %25 = vsyncpa [#allocation11], 0
    %26 = vsyncpa [#allocation14], 0
    %27 = vsyncpa [#allocation17], 0
    %28 = vsyncpa [#allocation20], 0
    %29 = vsyncpa [#allocation23], 0
    %30 = vsyncpa [#allocation26], 0
    %31 = vsyncpa [#allocation6], 0
    // Predicated region
    $region2: #{tpu_custom_call.1} parent=1 // pred_check
      _
    $region3: #{tpu_custom_call.1} parent=1 // pred_check_branch
      %33 = sbr.rel (0) target = $region5
    $region4: #{tpu_custom_call.1} parent=1 // pred_region
      %35 = vsyncadd [#allocation5], 0
      %s37 = sshll.u32 %s0, 4
      %s38 = int_to_ptr.hbm [resolvable:$true] %s37
      %s39 = sshll.u32 [#allocation4], 4
      %s40 = int_to_ptr.vmem [resolvable:$true] %s39
      %42 = dma.hbm_to_vmem [thread:$0]  %s38, 16, %s40, [#allocation5]
    $region5: #{tpu_custom_call.1} parent=1 // pred_fallthru
      _
    // Predicated region
    $region6: #{tpu_custom_call.1} parent=1 // pred_check
      _
    $region7: #{tpu_custom_call.1} parent=1 // pred_check_branch
      %44 = sbr.rel (0) target = $region9
    $region8: #{tpu_custom_call.1} parent=1 // pred_region
      %46 = vsyncadd [#allocation8], 0
      %s47 = sshll.u32 %s1, 4
      %s48 = int_to_ptr.hbm [resolvable:$true] %s47
      %s49 = sshll.u32 [#allocation7], 4
      %s50 = int_to_ptr.vmem [resolvable:$true] %s49
      %55 = dma.hbm_to_vmem [thread:$0]  %s48, 1024, %s50, [#allocation8], 64, 64, 4
    $region9: #{tpu_custom_call.1} parent=1 // pred_fallthru
      _
    // Predicated region
    $region10: #{tpu_custom_call.1} parent=1 // pred_check
      _
    $region11: #{tpu_custom_call.1} parent=1 // pred_check_branch
      %57 = sbr.rel (0) target = $region13
    $region12: #{tpu_custom_call.1} parent=1 // pred_region
      %59 = vsyncadd [#allocation8], 0
      %s61 = sshll.u32 %s2, 4
      %s62 = int_to_ptr.hbm [resolvable:$true] %s61
      %s63 = sshll.u32 [#allocation9], 4
      %s64 = int_to_ptr.vmem [resolvable:$true] %s63
      %66 = dma.hbm_to_vmem [thread:$0]  %s62, 16, %s64, [#allocation8]
    $region13: #{tpu_custom_call.1} parent=1 // pred_fallthru
      _
    // Predicated region
    $region14: #{tpu_custom_call.1} parent=1 // pred_check
      _
    $region15: #{tpu_custom_call.1} parent=1 // pred_check_branch
      %68 = sbr.rel (0) target = $region17
    $region16: #{tpu_custom_call.1} parent=1 // pred_region
      %70 = vsyncadd [#allocation11], 0
      %s71 = sshll.u32 %s3, 4
      %s72 = int_to_ptr.hbm [resolvable:$true] %s71
      %s73 = sshll.u32 [#allocation10], 4
      %s74 = int_to_ptr.vmem [resolvable:$true] %s73
      %79 = dma.hbm_to_vmem [thread:$0]  %s72, 4096, %s74, [#allocation11], 256, 256, 16
    $region17: #{tpu_custom_call.1} parent=1 // pred_fallthru
      _
    // Predicated region
    $region18: #{tpu_custom_call.1} parent=1 // pred_check
      _
    $region19: #{tpu_custom_call.1} parent=1 // pred_check_branch
      %81 = sbr.rel (0) target = $region21
    $region20: #{tpu_custom_call.1} parent=1 // pred_region
      %83 = vsyncadd [#allocation11], 0
      %s85 = sshll.u32 %s4, 4
      %s86 = int_to_ptr.hbm [resolvable:$true] %s85
      %s87 = sshll.u32 [#allocation12], 4
      %s88 = int_to_ptr.vmem [resolvable:$true] %s87
      %90 = dma.hbm_to_vmem [thread:$0]  %s86, 64, %s88, [#allocation11]
    $region21: #{tpu_custom_call.1} parent=1 // pred_fallthru
      _
    // Predicated region
    $region22: #{tpu_custom_call.1} parent=1 // pred_check
      _
    $region23: #{tpu_custom_call.1} parent=1 // pred_check_branch
      %92 = sbr.rel (0) target = $region25
    $region24: #{tpu_custom_call.1} parent=1 // pred_region
      %94 = vsyncadd [#allocation14], 0
      %s95 = sshll.u32 %s5, 4
      %s96 = int_to_ptr.hbm [resolvable:$true] %s95
      %s97 = sshll.u32 [#allocation13], 4
      %s98 = int_to_ptr.vmem [resolvable:$true] %s97
      %103 = dma.hbm_to_vmem [thread:$0]  %s96, 8192, %s98, [#allocation14], 256, 256, 16
    $region25: #{tpu_custom_call.1} parent=1 // pred_fallthru
      _
    // Predicated region
    $region26: #{tpu_custom_call.1} parent=1 // pred_check
      _
    $region27: #{tpu_custom_call.1} parent=1 // pred_check_branch
      %105 = sbr.rel (0) target = $region29
    $region28: #{tpu_custom_call.1} parent=1 // pred_region
      _
    $region29: #{tpu_custom_call.1} parent=1 // pred_fallthru
      _
    // Predicated region
    $region30: #{tpu_custom_call.1} parent=1 // pred_check
      _
    $region31: #{tpu_custom_call.1} parent=1 // pred_check_branch
      %107 = sbr.rel (0) target = $region33
    $region32: #{tpu_custom_call.1} parent=1 // pred_region
      %109 = vsyncadd [#allocation14], 0
      %s110 = sshll.u32 %s7, 4
      %s111 = int_to_ptr.hbm [resolvable:$true] %s110
      %s112 = sshll.u32 [#allocation15], 4
      %s113 = int_to_ptr.vmem [resolvable:$true] %s112
      %118 = dma.hbm_to_vmem [thread:$0]  %s111, 1024, %s113, [#allocation14], 64, 64, 4
    $region33: #{tpu_custom_call.1} parent=1 // pred_fallthru
      _
    // Predicated region
    $region34: #{tpu_custom_call.1} parent=1 // pred_check
      _
    $region35: #{tpu_custom_call.1} parent=1 // pred_check_branch
      %120 = sbr.rel (0) target = $region37
    $region36: #{tpu_custom_call.1} parent=1 // pred_region
      %122 = vsyncadd [#allocation17], 0
      %s124 = sshll.u32 %s8, 4
      %s125 = int_to_ptr.hbm [resolvable:$true] %s124
      %s126 = sshll.u32 [#allocation16], 4
      %s127 = int_to_ptr.vmem [resolvable:$true] %s126
      %129 = dma.hbm_to_vmem [thread:$0]  %s125, 16, %s127, [#allocation17]
    $region37: #{tpu_custom_call.1} parent=1 // pred_fallthru
      _
    // Predicated region
    $region38: #{tpu_custom_call.1} parent=1 // pred_check
      _
    $region39: #{tpu_custom_call.1} parent=1 // pred_check_branch
      %131 = sbr.rel (0) target = $region41
    $region40: #{tpu_custom_call.1} parent=1 // pred_region
      %133 = vsyncadd [#allocation17], 0
      %s134 = sshll.u32 %s9, 4
      %s135 = int_to_ptr.hbm [resolvable:$true] %s134
      %s136 = sshll.u32 [#allocation18], 4
      %s137 = int_to_ptr.vmem [resolvable:$true] %s136
      %142 = dma.hbm_to_vmem [thread:$0]  %s135, 1024, %s137, [#allocation17], 64, 64, 4
    $region41: #{tpu_custom_call.1} parent=1 // pred_fallthru
      _
    // Predicated region
    $region42: #{tpu_custom_call.1} parent=1 // pred_check
      _
    $region43: #{tpu_custom_call.1} parent=1 // pred_check_branch
      %144 = sbr.rel (0) target = $region45
    $region44: #{tpu_custom_call.1} parent=1 // pred_region
      %146 = vsyncadd [#allocation20], 0
      %s148 = sshll.u32 %s10, 4
      %s149 = int_to_ptr.hbm [resolvable:$true] %s148
      %s150 = sshll.u32 [#allocation19], 4
      %s151 = int_to_ptr.vmem [resolvable:$true] %s150
      %153 = dma.hbm_to_vmem [thread:$0]  %s149, 16, %s151, [#allocation20]
    $region45: #{tpu_custom_call.1} parent=1 // pred_fallthru
      _
    // Predicated region
    $region46: #{tpu_custom_call.1} parent=1 // pred_check
      _
    $region47: #{tpu_custom_call.1} parent=1 // pred_check_branch
      %155 = sbr.rel (0) target = $region49
    $region48: #{tpu_custom_call.1} parent=1 // pred_region
      %157 = vsyncadd [#allocation20], 0
      %s158 = sshll.u32 %s11, 4
      %s159 = int_to_ptr.hbm [resolvable:$true] %s158
      %s160 = sshll.u32 [#allocation21], 4
      %s161 = int_to_ptr.vmem [resolvable:$true] %s160
      %166 = dma.hbm_to_vmem [thread:$0]  %s159, 4096, %s161, [#allocation20], 256, 256, 16
    $region49: #{tpu_custom_call.1} parent=1 // pred_fallthru
      _
    // Predicated region
    $region50: #{tpu_custom_call.1} parent=1 // pred_check
      _
    $region51: #{tpu_custom_call.1} parent=1 // pred_check_branch
      %168 = sbr.rel (0) target = $region53
    $region52: #{tpu_custom_call.1} parent=1 // pred_region
      _
    $region53: #{tpu_custom_call.1} parent=1 // pred_fallthru
      _
    // Predicated region
    $region54: #{tpu_custom_call.1} parent=1 // pred_check
      _
    $region55: #{tpu_custom_call.1} parent=1 // pred_check_branch
      %170 = sbr.rel (0) target = $region57
    $region56: #{tpu_custom_call.1} parent=1 // pred_region
      %172 = vsyncadd [#allocation23], 0
      %s173 = sshll.u32 %s13, 4
      %s174 = int_to_ptr.hbm [resolvable:$true] %s173
      %s175 = sshll.u32 [#allocation22], 4
      %s176 = int_to_ptr.vmem [resolvable:$true] %s175
      %181 = dma.hbm_to_vmem [thread:$0]  %s174, 8192, %s176, [#allocation23], 256, 256, 16
    $region57: #{tpu_custom_call.1} parent=1 // pred_fallthru
      _
    // Predicated region
    $region58: #{tpu_custom_call.1} parent=1 // pred_check
      _
    $region59: #{tpu_custom_call.1} parent=1 // pred_check_branch
      %183 = sbr.rel (0) target = $region61
    $region60: #{tpu_custom_call.1} parent=1 // pred_region
      %185 = vsyncadd [#allocation23], 0
      %s186 = sshll.u32 %s14, 4
      %s187 = int_to_ptr.hbm [resolvable:$true] %s186
      %s188 = sshll.u32 [#allocation24], 4
      %s189 = int_to_ptr.vmem [resolvable:$true] %s188
      %194 = dma.hbm_to_vmem [thread:$0]  %s187, 8192, %s189, [#allocation23], 256, 256, 16
    $region61: #{tpu_custom_call.1} parent=1 // pred_fallthru
      _
    // Predicated region
    $region62: #{tpu_custom_call.1} parent=1 // pred_check
      _
    $region63: #{tpu_custom_call.1} parent=1 // pred_check_branch
      %196 = sbr.rel (0) target = $region65
    $region64: #{tpu_custom_call.1} parent=1 // pred_region
      _
    $region65: #{tpu_custom_call.1} parent=1 // pred_fallthru
      _
    // Predicated region
    $region66: #{tpu_custom_call.1} parent=1 // pred_check
      _
    $region67: #{tpu_custom_call.1} parent=1 // pred_check_branch
      %198 = sbr.rel (0) target = $region69
    $region68: #{tpu_custom_call.1} parent=1 // pred_region
      %200 = vsyncadd [#allocation26], 0
      %s201 = sshll.u32 %s16, 4
      %s202 = int_to_ptr.hbm [resolvable:$true] %s201
      %s203 = sshll.u32 [#allocation25], 4
      %s204 = int_to_ptr.vmem [resolvable:$true] %s203
      %209 = dma.hbm_to_vmem [thread:$0]  %s202, 1024, %s204, [#allocation26], 64, 64, 4
    $region69: #{tpu_custom_call.1} parent=1 // pred_fallthru
      _
    // Predicated region
    $region70: #{tpu_custom_call.1} parent=1 // pred_check
      _
    $region71: #{tpu_custom_call.1} parent=1 // pred_check_branch
      %211 = sbr.rel (0) target = $region73
    $region72: #{tpu_custom_call.1} parent=1 // pred_region
      _
    $region73: #{tpu_custom_call.1} parent=1 // pred_fallthru
      _
    // Predicated region
    $region74: #{tpu_custom_call.1} parent=1 // pred_check
      _
    $region75: #{tpu_custom_call.1} parent=1 // pred_check_branch
      %213 = sbr.rel (0) target = $region77
    $region76: #{tpu_custom_call.1} parent=1 // pred_region
      %215 = dma.done [#allocation5], 16
    $region77: #{tpu_custom_call.1} parent=1 // pred_fallthru
      _
    // Predicated region
    $region78: #{tpu_custom_call.1} parent=1 // pred_check
      _
    $region79: #{tpu_custom_call.1} parent=1 // pred_check_branch
      %217 = sbr.rel (0) target = $region81
    $region80: #{tpu_custom_call.1} parent=1 // pred_region
      %219 = dma.done [#allocation8], 1024
    $region81: #{tpu_custom_call.1} parent=1 // pred_fallthru
      _
    // Predicated region
    $region82: #{tpu_custom_call.1} parent=1 // pred_check
      _
    $region83: #{tpu_custom_call.1} parent=1 // pred_check_branch
      %221 = sbr.rel (0) target = $region85
    $region84: #{tpu_custom_call.1} parent=1 // pred_region
      %223 = dma.done [#allocation8], 16
    $region85: #{tpu_custom_call.1} parent=1 // pred_fallthru
      _
    // Predicated region
    $region86: #{tpu_custom_call.1} parent=1 // pred_check
      _
    $region87: #{tpu_custom_call.1} parent=1 // pred_check_branch
      %225 = sbr.rel (0) target = $region89
    $region88: #{tpu_custom_call.1} parent=1 // pred_region
      %227 = dma.done [#allocation11], 4096
    $region89: #{tpu_custom_call.1} parent=1 // pred_fallthru
      _
    // Predicated region
    $region90: #{tpu_custom_call.1} parent=1 // pred_check
      _
    $region91: #{tpu_custom_call.1} parent=1 // pred_check_branch
      %229 = sbr.rel (0) target = $region93
    $region92: #{tpu_custom_call.1} parent=1 // pred_region
      %231 = dma.done [#allocation11], 64
    $region93: #{tpu_custom_call.1} parent=1 // pred_fallthru
      _
    // Predicated region
    $region94: #{tpu_custom_call.1} parent=1 // pred_check
      _
    $region95: #{tpu_custom_call.1} parent=1 // pred_check_branch
      %233 = sbr.rel (0) target = $region97
    $region96: #{tpu_custom_call.1} parent=1 // pred_region
      %235 = dma.done [#allocation14], 8192
    $region97: #{tpu_custom_call.1} parent=1 // pred_fallthru
      _
    // Predicated region
    $region98: #{tpu_custom_call.1} parent=1 // pred_check
      _
    $region99: #{tpu_custom_call.1} parent=1 // pred_check_branch
      %237 = sbr.rel (0) target = $region101
    $region100: #{tpu_custom_call.1} parent=1 // pred_region
      %239 = dma.done [#allocation14], 1024
    $region101: #{tpu_custom_call.1} parent=1 // pred_fallthru
      _
    // Predicated region
    $region102: #{tpu_custom_call.1} parent=1 // pred_check
      _
    $region103: #{tpu_custom_call.1} parent=1 // pred_check_branch
      %241 = sbr.rel (0) target = $region105
    $region104: #{tpu_custom_call.1} parent=1 // pred_region
      %243 = dma.done [#allocation17], 16
    $region105: #{tpu_custom_call.1} parent=1 // pred_fallthru
      _
    // Predicated region
    $region106: #{tpu_custom_call.1} parent=1 // pred_check
      _
    $region107: #{tpu_custom_call.1} parent=1 // pred_check_branch
      %245 = sbr.rel (0) target = $region109
    $region108: #{tpu_custom_call.1} parent=1 // pred_region
      %247 = dma.done [#allocation17], 1024
    $region109: #{tpu_custom_call.1} parent=1 // pred_fallthru
      _
    // Predicated region
    $region110: #{tpu_custom_call.1} parent=1 // pred_check
      _
    $region111: #{tpu_custom_call.1} parent=1 // pred_check_branch
      %249 = sbr.rel (0) target = $region113
    $region112: #{tpu_custom_call.1} parent=1 // pred_region
      %251 = dma.done [#allocation20], 16
    $region113: #{tpu_custom_call.1} parent=1 // pred_fallthru
      _
    // Predicated region
    $region114: #{tpu_custom_call.1} parent=1 // pred_check
      _
    $region115: #{tpu_custom_call.1} parent=1 // pred_check_branch
      %253 = sbr.rel (0) target = $region117
    $region116: #{tpu_custom_call.1} parent=1 // pred_region
      %255 = dma.done [#allocation20], 4096
    $region117: #{tpu_custom_call.1} parent=1 // pred_fallthru
      _
    // Predicated region
    $region118: #{tpu_custom_call.1} parent=1 // pred_check
      _
    $region119: #{tpu_custom_call.1} parent=1 // pred_check_branch
      %257 = sbr.rel (0) target = $region121
    $region120: #{tpu_custom_call.1} parent=1 // pred_region
      %259 = dma.done [#allocation23], 8192
    $region121: #{tpu_custom_call.1} parent=1 // pred_fallthru
      _
    // Predicated region
    $region122: #{tpu_custom_call.1} parent=1 // pred_check
      _
    $region123: #{tpu_custom_call.1} parent=1 // pred_check_branch
      %261 = sbr.rel (0) target = $region125
    $region124: #{tpu_custom_call.1} parent=1 // pred_region
      %263 = dma.done [#allocation23], 8192
    $region125: #{tpu_custom_call.1} parent=1 // pred_fallthru
      _
    // Predicated region
    $region126: #{tpu_custom_call.1} parent=1 // pred_check
      _
    $region127: #{tpu_custom_call.1} parent=1 // pred_check_branch
      %265 = sbr.rel (0) target = $region129
    $region128: #{tpu_custom_call.1} parent=1 // pred_region
      %267 = dma.done [#allocation26], 1024
    $region129: #{tpu_custom_call.1} parent=1 // pred_fallthru
      _
    %v268 = vld [vmem:[#allocation4] sm:$0x1]
    %v269 = vpack.c.bf16 %v268, %v268
    %v270 = vld [vmem:[#allocation7] sm:$0xf]
    %v271 = vld [vmem:[#allocation7 + $0x4] sm:$0xf]
    %v272 = vld [vmem:[#allocation7 + $0x8] sm:$0xf]
    %v273 = vld [vmem:[#allocation7 + $0xc] sm:$0xf]
    %v274 = vld [vmem:[#allocation7 + $0x10] sm:$0xf]
    %v275 = vld [vmem:[#allocation7 + $0x14] sm:$0xf]
    %v276 = vld [vmem:[#allocation7 + $0x18] sm:$0xf]
    %v277 = vld [vmem:[#allocation7 + $0x1c] sm:$0xf]
    %v278 = vld [vmem:[#allocation7 + $0x20] sm:$0xf]
    %v279 = vld [vmem:[#allocation7 + $0x24] sm:$0xf]
    %v280 = vld [vmem:[#allocation7 + $0x28] sm:$0xf]
    %v281 = vld [vmem:[#allocation7 + $0x2c] sm:$0xf]
    %v282 = vld [vmem:[#allocation7 + $0x30] sm:$0xf]
    %v283 = vld [vmem:[#allocation7 + $0x34] sm:$0xf]
    %v284 = vld [vmem:[#allocation7 + $0x38] sm:$0xf]
    %v285 = vld [vmem:[#allocation7 + $0x3c] sm:$0xf]
    %v286 = vld [vmem:[#allocation9] sm:$0x1]
    %v303 = vunpack.c.l.b16 %v270
    %v304 = vunpack.c.l.b16 %v271
    %v305 = vunpack.c.l.b16 %v272
    %v306 = vunpack.c.l.b16 %v273
    %v307 = vunpack.c.l.b16 %v274
    %v308 = vunpack.c.l.b16 %v275
    %v309 = vunpack.c.l.b16 %v276
    %v310 = vunpack.c.l.b16 %v277
    %v311 = vunpack.c.l.b16 %v278
    %v312 = vunpack.c.l.b16 %v279
    %v313 = vunpack.c.l.b16 %v280
    %v314 = vunpack.c.l.b16 %v281
    %v315 = vunpack.c.l.b16 %v282
    %v316 = vunpack.c.l.b16 %v283
    %v317 = vunpack.c.l.b16 %v284
    %v318 = vunpack.c.l.b16 %v285
    %v319 = vpack.c.b16 %v304, %v303
    %v320 = vpack.c.b16 %v306, %v305
    %v321 = vpack.c.b16 %v308, %v307
    %v322 = vpack.c.b16 %v310, %v309
    %v323 = vpack.c.b16 %v312, %v311
    %v324 = vpack.c.b16 %v314, %v313
    %v325 = vpack.c.b16 %v316, %v315
    %v326 = vpack.c.b16 %v318, %v317
    %335 = vmatpush.bf16.msra.mxu0 %v326
    %336 = vmatpush.bf16.msra.mxu0 %v325
    %337 = vmatpush.bf16.msra.mxu0 %v324
    %338 = vmatpush.bf16.msra.mxu0 %v323
    %339 = vmatpush.bf16.msra.mxu0 %v322
    %340 = vmatpush.bf16.msra.mxu0 %v321
    %341 = vmatpush.bf16.msra.mxu0 %v320
    %342 = vmatpush.bf16.msra.mxu0 %v319
    %343 = vmatmul.bf16.gmra.mxu0 %v269
    %v344 = vpop.f32.mrf.mxu0
    %v345 = vadd.f32 %v286, %v344
    %v346 = vpop.f32.mrf.mxu0
    %347 = vdwg.mxu0
    %v348 = vtanh.pop %v345
    %v349 = vpack.c.bf16 %v348, %v348
    %v350 = vld [vmem:[#allocation10] sm:$0xff]
    %v351 = vld [vmem:[#allocation10 + $0x8] sm:$0xff]
    %v352 = vld [vmem:[#allocation10 + $0x10] sm:$0xff]
    %v353 = vld [vmem:[#allocation10 + $0x18] sm:$0xff]
    %v354 = vld [vmem:[#allocation10 + $0x20] sm:$0xff]
    %v355 = vld [vmem:[#allocation10 + $0x28] sm:$0xff]
    %v356 = vld [vmem:[#allocation10 + $0x30] sm:$0xff]
    %v357 = vld [vmem:[#allocation10 + $0x38] sm:$0xff]
    %v358 = vld [vmem:[#allocation10 + $0x40] sm:$0xff]
    %v359 = vld [vmem:[#allocation10 + $0x48] sm:$0xff]
    %v360 = vld [vmem:[#allocation10 + $0x50] sm:$0xff]
    %v361 = vld [vmem:[#allocation10 + $0x58] sm:$0xff]
    %v362 = vld [vmem:[#allocation10 + $0x60] sm:$0xff]
    %v363 = vld [vmem:[#allocation10 + $0x68] sm:$0xff]
    %v364 = vld [vmem:[#allocation10 + $0x70] sm:$0xff]
    %v365 = vld [vmem:[#allocation10 + $0x78] sm:$0xff]
    %v366 = vld [vmem:[#allocation10 + $0x80] sm:$0xff]
    %v367 = vld [vmem:[#allocation10 + $0x88] sm:$0xff]
    %v368 = vld [vmem:[#allocation10 + $0x90] sm:$0xff]
    %v369 = vld [vmem:[#allocation10 + $0x98] sm:$0xff]
    %v370 = vld [vmem:[#allocation10 + $0xa0] sm:$0xff]
    %v371 = vld [vmem:[#allocation10 + $0xa8] sm:$0xff]
    %v372 = vld [vmem:[#allocation10 + $0xb0] sm:$0xff]
    %v373 = vld [vmem:[#allocation10 + $0xb8] sm:$0xff]
    %v374 = vld [vmem:[#allocation10 + $0xc0] sm:$0xff]
    %v375 = vld [vmem:[#allocation10 + $0xc8] sm:$0xff]
    %v376 = vld [vmem:[#allocation10 + $0xd0] sm:$0xff]
    %v377 = vld [vmem:[#allocation10 + $0xd8] sm:$0xff]
    %v378 = vld [vmem:[#allocation10 + $0xe0] sm:$0xff]
    %v379 = vld [vmem:[#allocation10 + $0xe8] sm:$0xff]
    %v380 = vld [vmem:[#allocation10 + $0xf0] sm:$0xff]
    %v381 = vld [vmem:[#allocation10 + $0xf8] sm:$0xff]
    %v382 = vld [vmem:[#allocation12] sm:$0xf]
    %v415 = vunpack.c.l.b16 %v350
    %v416 = vunpack.c.h.b16 %v350
    %v417 = vunpack.c.l.b16 %v351
    %v418 = vunpack.c.h.b16 %v351
    %v419 = vunpack.c.l.b16 %v352
    %v420 = vunpack.c.h.b16 %v352
    %v421 = vunpack.c.l.b16 %v353
    %v422 = vunpack.c.h.b16 %v353
    %v423 = vunpack.c.l.b16 %v354
    %v424 = vunpack.c.h.b16 %v354
    %v425 = vunpack.c.l.b16 %v355
    %v426 = vunpack.c.h.b16 %v355
    %v427 = vunpack.c.l.b16 %v356
    %v428 = vunpack.c.h.b16 %v356
    %v429 = vunpack.c.l.b16 %v357
    %v430 = vunpack.c.h.b16 %v357
    %v431 = vunpack.c.l.b16 %v358
    %v432 = vunpack.c.h.b16 %v358
    %v433 = vunpack.c.l.b16 %v359
    %v434 = vunpack.c.h.b16 %v359
    %v435 = vunpack.c.l.b16 %v360
    %v436 = vunpack.c.h.b16 %v360
    %v437 = vunpack.c.l.b16 %v361
    %v438 = vunpack.c.h.b16 %v361
    %v439 = vunpack.c.l.b16 %v362
    %v440 = vunpack.c.h.b16 %v362
    %v441 = vunpack.c.l.b16 %v363
    %v442 = vunpack.c.h.b16 %v363
    %v443 = vunpack.c.l.b16 %v364
    %v444 = vunpack.c.h.b16 %v364
    %v445 = vunpack.c.l.b16 %v365
    %v446 = vunpack.c.h.b16 %v365
    %v447 = vunpack.c.l.b16 %v366
    %v448 = vunpack.c.h.b16 %v366
    %v449 = vunpack.c.l.b16 %v367
    %v450 = vunpack.c.h.b16 %v367
    %v451 = vunpack.c.l.b16 %v368
    %v452 = vunpack.c.h.b16 %v368
    %v453 = vunpack.c.l.b16 %v369
    %v454 = vunpack.c.h.b16 %v369
    %v455 = vunpack.c.l.b16 %v370
    %v456 = vunpack.c.h.b16 %v370
    %v457 = vunpack.c.l.b16 %v371
    %v458 = vunpack.c.h.b16 %v371
    %v459 = vunpack.c.l.b16 %v372
    %v460 = vunpack.c.h.b16 %v372
    %v461 = vunpack.c.l.b16 %v373
    %v462 = vunpack.c.h.b16 %v373
    %v463 = vunpack.c.l.b16 %v374
    %v464 = vunpack.c.h.b16 %v374
    %v465 = vunpack.c.l.b16 %v375
    %v466 = vunpack.c.h.b16 %v375
    %v467 = vunpack.c.l.b16 %v376
    %v468 = vunpack.c.h.b16 %v376
    %v469 = vunpack.c.l.b16 %v377
    %v470 = vunpack.c.h.b16 %v377
    %v471 = vunpack.c.l.b16 %v378
    %v472 = vunpack.c.h.b16 %v378
    %v473 = vunpack.c.l.b16 %v379
    %v474 = vunpack.c.h.b16 %v379
    %v475 = vunpack.c.l.b16 %v380
    %v476 = vunpack.c.h.b16 %v380
    %v477 = vunpack.c.l.b16 %v381
    %v478 = vunpack.c.h.b16 %v381
    %v479 = vpack.c.b16 %v419, %v415
    %v480 = vpack.c.b16 %v420, %v416
    %v481 = vpack.c.b16 %v421, %v417
    %v482 = vpack.c.b16 %v422, %v418
    %v483 = vpack.c.b16 %v427, %v423
    %v484 = vpack.c.b16 %v428, %v424
    %v485 = vpack.c.b16 %v429, %v425
    %v486 = vpack.c.b16 %v430, %v426
    %v487 = vpack.c.b16 %v435, %v431
    %v488 = vpack.c.b16 %v436, %v432
    %v489 = vpack.c.b16 %v437, %v433
    %v490 = vpack.c.b16 %v438, %v434
    %v491 = vpack.c.b16 %v443, %v439
    %v492 = vpack.c.b16 %v444, %v440
    %v493 = vpack.c.b16 %v445, %v441
    %v494 = vpack.c.b16 %v446, %v442
    %v495 = vpack.c.b16 %v451, %v447
    %v496 = vpack.c.b16 %v452, %v448
    %v497 = vpack.c.b16 %v453, %v449
    %v498 = vpack.c.b16 %v454, %v450
    %v499 = vpack.c.b16 %v459, %v455
    %v500 = vpack.c.b16 %v460, %v456
    %v501 = vpack.c.b16 %v461, %v457
    %v502 = vpack.c.b16 %v462, %v458
    %v503 = vpack.c.b16 %v467, %v463
    %v504 = vpack.c.b16 %v468, %v464
    %v505 = vpack.c.b16 %v469, %v465
    %v506 = vpack.c.b16 %v470, %v466
    %v507 = vpack.c.b16 %v475, %v471
    %v508 = vpack.c.b16 %v476, %v472
    %v509 = vpack.c.b16 %v477, %v473
    %v510 = vpack.c.b16 %v478, %v474
    %v544 = vperm.slane %v382, 0
    %v545 = vperm.slane %v382, 1
    %v546 = vperm.slane %v382, 2
    %v547 = vperm.slane %v382, 3
    %552 = vmatpush.bf16.msra.mxu0 %v507
    %553 = vmatpush.bf16.msra.mxu0 %v503
    %554 = vmatpush.bf16.msra.mxu0 %v499
    %555 = vmatpush.bf16.msra.mxu0 %v495
    %556 = vmatpush.bf16.msra.mxu0 %v491
    %557 = vmatpush.bf16.msra.mxu0 %v487
    %558 = vmatpush.bf16.msra.mxu0 %v483
    %559 = vmatpush.bf16.msra.mxu0 %v479
    %560 = vmatmul.bf16.gmra.mxu0 %v349
    %v561 = vpop.f32.mrf.mxu0
    %v562 = vadd.f32 %v544, %v561
    %v563 = vpop.f32.mrf.mxu0
    %564 = vdwg.mxu0
    %565 = vmatpush.bf16.msra.mxu0 %v508
    %566 = vmatpush.bf16.msra.mxu0 %v504
    %567 = vmatpush.bf16.msra.mxu0 %v500
    %568 = vmatpush.bf16.msra.mxu0 %v496
    %569 = vmatpush.bf16.msra.mxu0 %v492
    %570 = vmatpush.bf16.msra.mxu0 %v488
    %571 = vmatpush.bf16.msra.mxu0 %v484
    %572 = vmatpush.bf16.msra.mxu0 %v480
    %573 = vmatmul.bf16.gmra.mxu0 %v349
    %v574 = vpop.f32.mrf.mxu0
    %v575 = vadd.f32 %v545, %v574
    %v576 = vpop.f32.mrf.mxu0
    %577 = vdwg.mxu0
    %578 = vmatpush.bf16.msra.mxu0 %v509
    %579 = vmatpush.bf16.msra.mxu0 %v505
    %580 = vmatpush.bf16.msra.mxu0 %v501
    %581 = vmatpush.bf16.msra.mxu0 %v497
    %582 = vmatpush.bf16.msra.mxu0 %v493
    %583 = vmatpush.bf16.msra.mxu0 %v489
    %584 = vmatpush.bf16.msra.mxu0 %v485
    %585 = vmatpush.bf16.msra.mxu0 %v481
    %586 = vmatmul.bf16.gmra.mxu0 %v349
    %v587 = vpop.f32.mrf.mxu0
    %v588 = vadd.f32 %v546, %v587
    %v589 = vpop.f32.mrf.mxu0
    %590 = vdwg.mxu0
    %591 = vmatpush.bf16.msra.mxu0 %v510
    %592 = vmatpush.bf16.msra.mxu0 %v506
    %593 = vmatpush.bf16.msra.mxu0 %v502
    %594 = vmatpush.bf16.msra.mxu0 %v498
    %595 = vmatpush.bf16.msra.mxu0 %v494
    %596 = vmatpush.bf16.msra.mxu0 %v490
    %597 = vmatpush.bf16.msra.mxu0 %v486
    %598 = vmatpush.bf16.msra.mxu0 %v482
    %599 = vmatmul.bf16.gmra.mxu0 %v349
    %v600 = vpop.f32.mrf.mxu0
    %v601 = vadd.f32 %v547, %v600
    %v602 = vpop.f32.mrf.mxu0
    %603 = vdwg.mxu0
    %v604 = vxor.u32 %v562, 2147483648
    %v605 = vmul.f32 %v604, 1.442695
    %v606 = vpow.pop %v605
    %v607 = vadd.f32 %v606, 1.0
    %v608 = vrcp.pop %v607
    %v609 = vmul.f32 %v607, %v608
    %v610 = vsub.f32 1.0, %v609
    %v611 = vmul.f32 %v608, %v610
    %v612 = vadd.f32 %v608, %v611
    %vm613 = vweird.f32 %v607
    %vm614 = vweird.f32 %v608
    %vm615 = vmor %vm613, %vm614
    %v616 = vsel %vm615, %v608, %v612
    %v617 = vand.u32 2147483647, %v607
    %vm618 = vcmp.eq.f32.partialorder %v617, 8.507059e+37
    %v619 = vand.u32 %v607, 2147483648
    %v620 = vor.u32 1.1754944e-38, %v619
    %v621 = vsel %vm618, %v620, %v616
    %v622 = vmul.f32 1.0, %v621
    %v623 = vxor.u32 %v575, 2147483648
    %v624 = vmul.f32 %v623, 1.442695
    %v625 = vpow.pop %v624
    %v626 = vadd.f32 %v625, 1.0
    %v627 = vrcp.pop %v626
    %v628 = vmul.f32 %v626, %v627
    %v629 = vsub.f32 1.0, %v628
    %v630 = vmul.f32 %v627, %v629
    %v631 = vadd.f32 %v627, %v630
    %vm632 = vweird.f32 %v626
    %vm633 = vweird.f32 %v627
    %vm634 = vmor %vm632, %vm633
    %v635 = vsel %vm634, %v627, %v631
    %v636 = vand.u32 2147483647, %v626
    %vm637 = vcmp.eq.f32.partialorder %v636, 8.507059e+37
    %v638 = vand.u32 %v626, 2147483648
    %v639 = vor.u32 1.1754944e-38, %v638
    %v640 = vsel %vm637, %v639, %v635
    %v641 = vmul.f32 1.0, %v640
    %v642 = vtanh.pop %v588
    %v643 = vxor.u32 %v601, 2147483648
    %v644 = vmul.f32 %v643, 1.442695
    %v645 = vpow.pop %v644
    %v646 = vadd.f32 %v645, 1.0
    %v647 = vrcp.pop %v646
    %v648 = vmul.f32 %v646, %v647
    %v649 = vsub.f32 1.0, %v648
    %v650 = vmul.f32 %v647, %v649
    %v651 = vadd.f32 %v647, %v650
    %vm652 = vweird.f32 %v646
    %vm653 = vweird.f32 %v647
    %vm654 = vmor %vm652, %vm653
    %v655 = vsel %vm654, %v647, %v651
    %v656 = vand.u32 2147483647, %v646
    %vm657 = vcmp.eq.f32.partialorder %v656, 8.507059e+37
    %v658 = vand.u32 %v646, 2147483648
    %v659 = vor.u32 1.1754944e-38, %v658
    %v660 = vsel %vm657, %v659, %v655
    %v661 = vmul.f32 1.0, %v660
    %v662 = vmul.f32 %v641, 0.0
    %v663 = vmul.f32 %v622, %v642
    %v664 = vadd.f32 %v662, %v663
    %v665 = vtanh.pop %v664
    %v666 = vmul.f32 %v661, %v665
    %v667 = vpack.c.bf16 %v666, %v666
    %v668 = vpack.c.bf16 0.0, 0.0
    %v669 = vld [vmem:[#allocation13] sm:$0xff]
    %v670 = vld [vmem:[#allocation13 + $0x8] sm:$0xff]
    %v671 = vld [vmem:[#allocation13 + $0x10] sm:$0xff]
    %v672 = vld [vmem:[#allocation13 + $0x18] sm:$0xff]
    %v673 = vld [vmem:[#allocation13 + $0x20] sm:$0xff]
    %v674 = vld [vmem:[#allocation13 + $0x28] sm:$0xff]
    %v675 = vld [vmem:[#allocation13 + $0x30] sm:$0xff]
    %v676 = vld [vmem:[#allocation13 + $0x38] sm:$0xff]
    %v677 = vld [vmem:[#allocation13 + $0x40] sm:$0xff]
    %v678 = vld [vmem:[#allocation13 + $0x48] sm:$0xff]
    %v679 = vld [vmem:[#allocation13 + $0x50] sm:$0xff]
    %v680 = vld [vmem:[#allocation13 + $0x58] sm:$0xff]
    %v681 = vld [vmem:[#allocation13 + $0x60] sm:$0xff]
    %v682 = vld [vmem:[#allocation13 + $0x68] sm:$0xff]
    %v683 = vld [vmem:[#allocation13 + $0x70] sm:$0xff]
    %v684 = vld [vmem:[#allocation13 + $0x78] sm:$0xff]
    %v685 = vld [vmem:[#allocation13 + $0x80] sm:$0xff]
    %v686 = vld [vmem:[#allocation13 + $0x88] sm:$0xff]
    %v687 = vld [vmem:[#allocation13 + $0x90] sm:$0xff]
    %v688 = vld [vmem:[#allocation13 + $0x98] sm:$0xff]
    %v689 = vld [vmem:[#allocation13 + $0xa0] sm:$0xff]
    %v690 = vld [vmem:[#allocation13 + $0xa8] sm:$0xff]
    %v691 = vld [vmem:[#allocation13 + $0xb0] sm:$0xff]
    %v692 = vld [vmem:[#allocation13 + $0xb8] sm:$0xff]
    %v693 = vld [vmem:[#allocation13 + $0xc0] sm:$0xff]
    %v694 = vld [vmem:[#allocation13 + $0xc8] sm:$0xff]
    %v695 = vld [vmem:[#allocation13 + $0xd0] sm:$0xff]
    %v696 = vld [vmem:[#allocation13 + $0xd8] sm:$0xff]
    %v697 = vld [vmem:[#allocation13 + $0xe0] sm:$0xff]
    %v698 = vld [vmem:[#allocation13 + $0xe8] sm:$0xff]
    %v699 = vld [vmem:[#allocation13 + $0xf0] sm:$0xff]
    %v700 = vld [vmem:[#allocation13 + $0xf8] sm:$0xff]
    %v701 = vld [vmem:[#allocation13 + $0x100] sm:$0xff]
    %v702 = vld [vmem:[#allocation13 + $0x108] sm:$0xff]
    %v703 = vld [vmem:[#allocation13 + $0x110] sm:$0xff]
    %v704 = vld [vmem:[#allocation13 + $0x118] sm:$0xff]
    %v705 = vld [vmem:[#allocation13 + $0x120] sm:$0xff]
    %v706 = vld [vmem:[#allocation13 + $0x128] sm:$0xff]
    %v707 = vld [vmem:[#allocation13 + $0x130] sm:$0xff]
    %v708 = vld [vmem:[#allocation13 + $0x138] sm:$0xff]
    %v709 = vld [vmem:[#allocation13 + $0x140] sm:$0xff]
    %v710 = vld [vmem:[#allocation13 + $0x148] sm:$0xff]
    %v711 = vld [vmem:[#allocation13 + $0x150] sm:$0xff]
    %v712 = vld [vmem:[#allocation13 + $0x158] sm:$0xff]
    %v713 = vld [vmem:[#allocation13 + $0x160] sm:$0xff]
    %v714 = vld [vmem:[#allocation13 + $0x168] sm:$0xff]
    %v715 = vld [vmem:[#allocation13 + $0x170] sm:$0xff]
    %v716 = vld [vmem:[#allocation13 + $0x178] sm:$0xff]
    %v717 = vld [vmem:[#allocation13 + $0x180] sm:$0xff]
    %v718 = vld [vmem:[#allocation13 + $0x188] sm:$0xff]
    %v719 = vld [vmem:[#allocation13 + $0x190] sm:$0xff]
    %v720 = vld [vmem:[#allocation13 + $0x198] sm:$0xff]
    %v721 = vld [vmem:[#allocation13 + $0x1a0] sm:$0xff]
    %v722 = vld [vmem:[#allocation13 + $0x1a8] sm:$0xff]
    %v723 = vld [vmem:[#allocation13 + $0x1b0] sm:$0xff]
    %v724 = vld [vmem:[#allocation13 + $0x1b8] sm:$0xff]
    %v725 = vld [vmem:[#allocation13 + $0x1c0] sm:$0xff]
    %v726 = vld [vmem:[#allocation13 + $0x1c8] sm:$0xff]
    %v727 = vld [vmem:[#allocation13 + $0x1d0] sm:$0xff]
    %v728 = vld [vmem:[#allocation13 + $0x1d8] sm:$0xff]
    %v729 = vld [vmem:[#allocation13 + $0x1e0] sm:$0xff]
    %v730 = vld [vmem:[#allocation13 + $0x1e8] sm:$0xff]
    %v731 = vld [vmem:[#allocation13 + $0x1f0] sm:$0xff]
    %v732 = vld [vmem:[#allocation13 + $0x1f8] sm:$0xff]
    %v733 = vld [vmem:[%s6] sm:$0xf]
    %v798 = vunpack.c.l.b16 %v669
    %v799 = vunpack.c.h.b16 %v669
    %v800 = vunpack.c.l.b16 %v670
    %v801 = vunpack.c.h.b16 %v670
    %v802 = vunpack.c.l.b16 %v671
    %v803 = vunpack.c.h.b16 %v671
    %v804 = vunpack.c.l.b16 %v672
    %v805 = vunpack.c.h.b16 %v672
    %v806 = vunpack.c.l.b16 %v673
    %v807 = vunpack.c.h.b16 %v673
    %v808 = vunpack.c.l.b16 %v674
    %v809 = vunpack.c.h.b16 %v674
    %v810 = vunpack.c.l.b16 %v675
    %v811 = vunpack.c.h.b16 %v675
    %v812 = vunpack.c.l.b16 %v676
    %v813 = vunpack.c.h.b16 %v676
    %v814 = vunpack.c.l.b16 %v677
    %v815 = vunpack.c.h.b16 %v677
    %v816 = vunpack.c.l.b16 %v678
    %v817 = vunpack.c.h.b16 %v678
    %v818 = vunpack.c.l.b16 %v679
    %v819 = vunpack.c.h.b16 %v679
    %v820 = vunpack.c.l.b16 %v680
    %v821 = vunpack.c.h.b16 %v680
    %v822 = vunpack.c.l.b16 %v681
    %v823 = vunpack.c.h.b16 %v681
    %v824 = vunpack.c.l.b16 %v682
    %v825 = vunpack.c.h.b16 %v682
    %v826 = vunpack.c.l.b16 %v683
    %v827 = vunpack.c.h.b16 %v683
    %v828 = vunpack.c.l.b16 %v684
    %v829 = vunpack.c.h.b16 %v684
    %v830 = vunpack.c.l.b16 %v685
    %v831 = vunpack.c.h.b16 %v685
    %v832 = vunpack.c.l.b16 %v686
    %v833 = vunpack.c.h.b16 %v686
    %v834 = vunpack.c.l.b16 %v687
    %v835 = vunpack.c.h.b16 %v687
    %v836 = vunpack.c.l.b16 %v688
    %v837 = vunpack.c.h.b16 %v688
    %v838 = vunpack.c.l.b16 %v689
    %v839 = vunpack.c.h.b16 %v689
    %v840 = vunpack.c.l.b16 %v690
    %v841 = vunpack.c.h.b16 %v690
    %v842 = vunpack.c.l.b16 %v691
    %v843 = vunpack.c.h.b16 %v691
    %v844 = vunpack.c.l.b16 %v692
    %v845 = vunpack.c.h.b16 %v692
    %v846 = vunpack.c.l.b16 %v693
    %v847 = vunpack.c.h.b16 %v693
    %v848 = vunpack.c.l.b16 %v694
    %v849 = vunpack.c.h.b16 %v694
    %v850 = vunpack.c.l.b16 %v695
    %v851 = vunpack.c.h.b16 %v695
    %v852 = vunpack.c.l.b16 %v696
    %v853 = vunpack.c.h.b16 %v696
    %v854 = vunpack.c.l.b16 %v697
    %v855 = vunpack.c.h.b16 %v697
    %v856 = vunpack.c.l.b16 %v698
    %v857 = vunpack.c.h.b16 %v698
    %v858 = vunpack.c.l.b16 %v699
    %v859 = vunpack.c.h.b16 %v699
    %v860 = vunpack.c.l.b16 %v700
    %v861 = vunpack.c.h.b16 %v700
    %v862 = vunpack.c.l.b16 %v701
    %v863 = vunpack.c.h.b16 %v701
    %v864 = vunpack.c.l.b16 %v702
    %v865 = vunpack.c.h.b16 %v702
    %v866 = vunpack.c.l.b16 %v703
    %v867 = vunpack.c.h.b16 %v703
    %v868 = vunpack.c.l.b16 %v704
    %v869 = vunpack.c.h.b16 %v704
    %v870 = vunpack.c.l.b16 %v705
    %v871 = vunpack.c.h.b16 %v705
    %v872 = vunpack.c.l.b16 %v706
    %v873 = vunpack.c.h.b16 %v706
    %v874 = vunpack.c.l.b16 %v707
    %v875 = vunpack.c.h.b16 %v707
    %v876 = vunpack.c.l.b16 %v708
    %v877 = vunpack.c.h.b16 %v708
    %v878 = vunpack.c.l.b16 %v709
    %v879 = vunpack.c.h.b16 %v709
    %v880 = vunpack.c.l.b16 %v710
    %v881 = vunpack.c.h.b16 %v710
    %v882 = vunpack.c.l.b16 %v711
    %v883 = vunpack.c.h.b16 %v711
    %v884 = vunpack.c.l.b16 %v712
    %v885 = vunpack.c.h.b16 %v712
    %v886 = vunpack.c.l.b16 %v713
    %v887 = vunpack.c.h.b16 %v713
    %v888 = vunpack.c.l.b16 %v714
    %v889 = vunpack.c.h.b16 %v714
    %v890 = vunpack.c.l.b16 %v715
    %v891 = vunpack.c.h.b16 %v715
    %v892 = vunpack.c.l.b16 %v716
    %v893 = vunpack.c.h.b16 %v716
    %v894 = vunpack.c.l.b16 %v717
    %v895 = vunpack.c.h.b16 %v717
    %v896 = vunpack.c.l.b16 %v718
    %v897 = vunpack.c.h.b16 %v718
    %v898 = vunpack.c.l.b16 %v719
    %v899 = vunpack.c.h.b16 %v719
    %v900 = vunpack.c.l.b16 %v720
    %v901 = vunpack.c.h.b16 %v720
    %v902 = vunpack.c.l.b16 %v721
    %v903 = vunpack.c.h.b16 %v721
    %v904 = vunpack.c.l.b16 %v722
    %v905 = vunpack.c.h.b16 %v722
    %v906 = vunpack.c.l.b16 %v723
    %v907 = vunpack.c.h.b16 %v723
    %v908 = vunpack.c.l.b16 %v724
    %v909 = vunpack.c.h.b16 %v724
    %v910 = vunpack.c.l.b16 %v725
    %v911 = vunpack.c.h.b16 %v725
    %v912 = vunpack.c.l.b16 %v726
    %v913 = vunpack.c.h.b16 %v726
    %v914 = vunpack.c.l.b16 %v727
    %v915 = vunpack.c.h.b16 %v727
    %v916 = vunpack.c.l.b16 %v728
    %v917 = vunpack.c.h.b16 %v728
    %v918 = vunpack.c.l.b16 %v729
    %v919 = vunpack.c.h.b16 %v729
    %v920 = vunpack.c.l.b16 %v730
    %v921 = vunpack.c.h.b16 %v730
    %v922 = vunpack.c.l.b16 %v731
    %v923 = vunpack.c.h.b16 %v731
    %v924 = vunpack.c.l.b16 %v732
    %v925 = vunpack.c.h.b16 %v732
    %v926 = vpack.c.b16 %v802, %v798
    %v927 = vpack.c.b16 %v803, %v799
    %v928 = vpack.c.b16 %v804, %v800
    %v929 = vpack.c.b16 %v805, %v801
    %v930 = vpack.c.b16 %v810, %v806
    %v931 = vpack.c.b16 %v811, %v807
    %v932 = vpack.c.b16 %v812, %v808
    %v933 = vpack.c.b16 %v813, %v809
    %v934 = vpack.c.b16 %v818, %v814
    %v935 = vpack.c.b16 %v819, %v815
    %v936 = vpack.c.b16 %v820, %v816
    %v937 = vpack.c.b16 %v821, %v817
    %v938 = vpack.c.b16 %v826, %v822
    %v939 = vpack.c.b16 %v827, %v823
    %v940 = vpack.c.b16 %v828, %v824
    %v941 = vpack.c.b16 %v829, %v825
    %v942 = vpack.c.b16 %v834, %v830
    %v943 = vpack.c.b16 %v835, %v831
    %v944 = vpack.c.b16 %v836, %v832
    %v945 = vpack.c.b16 %v837, %v833
    %v946 = vpack.c.b16 %v842, %v838
    %v947 = vpack.c.b16 %v843, %v839
    %v948 = vpack.c.b16 %v844, %v840
    %v949 = vpack.c.b16 %v845, %v841
    %v950 = vpack.c.b16 %v850, %v846
    %v951 = vpack.c.b16 %v851, %v847
    %v952 = vpack.c.b16 %v852, %v848
    %v953 = vpack.c.b16 %v853, %v849
    %v954 = vpack.c.b16 %v858, %v854
    %v955 = vpack.c.b16 %v859, %v855
    %v956 = vpack.c.b16 %v860, %v856
    %v957 = vpack.c.b16 %v861, %v857
    %v958 = vpack.c.b16 %v866, %v862
    %v959 = vpack.c.b16 %v867, %v863
    %v960 = vpack.c.b16 %v868, %v864
    %v961 = vpack.c.b16 %v869, %v865
    %v962 = vpack.c.b16 %v874, %v870
    %v963 = vpack.c.b16 %v875, %v871
    %v964 = vpack.c.b16 %v876, %v872
    %v965 = vpack.c.b16 %v877, %v873
    %v966 = vpack.c.b16 %v882, %v878
    %v967 = vpack.c.b16 %v883, %v879
    %v968 = vpack.c.b16 %v884, %v880
    %v969 = vpack.c.b16 %v885, %v881
    %v970 = vpack.c.b16 %v890, %v886
    %v971 = vpack.c.b16 %v891, %v887
    %v972 = vpack.c.b16 %v892, %v888
    %v973 = vpack.c.b16 %v893, %v889
    %v974 = vpack.c.b16 %v898, %v894
    %v975 = vpack.c.b16 %v899, %v895
    %v976 = vpack.c.b16 %v900, %v896
    %v977 = vpack.c.b16 %v901, %v897
    %v978 = vpack.c.b16 %v906, %v902
    %v979 = vpack.c.b16 %v907, %v903
    %v980 = vpack.c.b16 %v908, %v904
    %v981 = vpack.c.b16 %v909, %v905
    %v982 = vpack.c.b16 %v914, %v910
    %v983 = vpack.c.b16 %v915, %v911
    %v984 = vpack.c.b16 %v916, %v912
    %v985 = vpack.c.b16 %v917, %v913
    %v986 = vpack.c.b16 %v922, %v918
    %v987 = vpack.c.b16 %v923, %v919
    %v988 = vpack.c.b16 %v924, %v920
    %v989 = vpack.c.b16 %v925, %v921
    %v1055 = vperm.slane %v733, 0
    %v1056 = vperm.slane %v733, 1
    %v1057 = vperm.slane %v733, 2
    %v1058 = vperm.slane %v733, 3
    %1063 = vmatpush.bf16.msra.mxu0 %v954
    %1064 = vmatpush.bf16.msra.mxu0 %v950
    %1065 = vmatpush.bf16.msra.mxu0 %v946
    %1066 = vmatpush.bf16.msra.mxu0 %v942
    %1067 = vmatpush.bf16.msra.mxu0 %v938
    %1068 = vmatpush.bf16.msra.mxu0 %v934
    %1069 = vmatpush.bf16.msra.mxu0 %v930
    %1070 = vmatpush.bf16.msra.mxu0 %v926
    %1071 = vmatmul.bf16.gmra.mxu0 %v667
    %v1072 = vpop.f32.mrf.mxu0
    %v1073 = vadd.f32 %v1055, %v1072
    %v1074 = vpop.f32.mrf.mxu0
    %1075 = vdwg.mxu0
    %1076 = vmatpush.bf16.msra.mxu0 %v986
    %1077 = vmatpush.bf16.msra.mxu0 %v982
    %1078 = vmatpush.bf16.msra.mxu0 %v978
    %1079 = vmatpush.bf16.msra.mxu0 %v974
    %1080 = vmatpush.bf16.msra.mxu0 %v970
    %1081 = vmatpush.bf16.msra.mxu0 %v966
    %1082 = vmatpush.bf16.msra.mxu0 %v962
    %1083 = vmatpush.bf16.msra.mxu0 %v958
    %1084 = vmatmul.bf16.gmra.mxu0 %v668
    %v1085 = vpop.f32.mrf.mxu0
    %v1086 = vadd.f32 %v1073, %v1085
    %v1087 = vpop.f32.mrf.mxu0
    %1088 = vdwg.mxu0
    %1089 = vmatpush.bf16.msra.mxu0 %v955
    %1090 = vmatpush.bf16.msra.mxu0 %v951
    %1091 = vmatpush.bf16.msra.mxu0 %v947
    %1092 = vmatpush.bf16.msra.mxu0 %v943
    %1093 = vmatpush.bf16.msra.mxu0 %v939
    %1094 = vmatpush.bf16.msra.mxu0 %v935
    %1095 = vmatpush.bf16.msra.mxu0 %v931
    %1096 = vmatpush.bf16.msra.mxu0 %v927
    %1097 = vmatmul.bf16.gmra.mxu0 %v667
    %v1098 = vpop.f32.mrf.mxu0
    %v1099 = vadd.f32 %v1056, %v1098
    %v1100 = vpop.f32.mrf.mxu0
    %1101 = vdwg.mxu0
    %1102 = vmatpush.bf16.msra.mxu0 %v987
    %1103 = vmatpush.bf16.msra.mxu0 %v983
    %1104 = vmatpush.bf16.msra.mxu0 %v979
    %1105 = vmatpush.bf16.msra.mxu0 %v975
    %1106 = vmatpush.bf16.msra.mxu0 %v971
    %1107 = vmatpush.bf16.msra.mxu0 %v967
    %1108 = vmatpush.bf16.msra.mxu0 %v963
    %1109 = vmatpush.bf16.msra.mxu0 %v959
    %1110 = vmatmul.bf16.gmra.mxu0 %v668
    %v1111 = vpop.f32.mrf.mxu0
    %v1112 = vadd.f32 %v1099, %v1111
    %v1113 = vpop.f32.mrf.mxu0
    %1114 = vdwg.mxu0
    %1115 = vmatpush.bf16.msra.mxu0 %v956
    %1116 = vmatpush.bf16.msra.mxu0 %v952
    %1117 = vmatpush.bf16.msra.mxu0 %v948
    %1118 = vmatpush.bf16.msra.mxu0 %v944
    %1119 = vmatpush.bf16.msra.mxu0 %v940
    %1120 = vmatpush.bf16.msra.mxu0 %v936
    %1121 = vmatpush.bf16.msra.mxu0 %v932
    %1122 = vmatpush.bf16.msra.mxu0 %v928
    %1123 = vmatmul.bf16.gmra.mxu0 %v667
    %v1124 = vpop.f32.mrf.mxu0
    %v1125 = vadd.f32 %v1057, %v1124
    %v1126 = vpop.f32.mrf.mxu0
    %1127 = vdwg.mxu0
    %1128 = vmatpush.bf16.msra.mxu0 %v988
    %1129 = vmatpush.bf16.msra.mxu0 %v984
    %1130 = vmatpush.bf16.msra.mxu0 %v980
    %1131 = vmatpush.bf16.msra.mxu0 %v976
    %1132 = vmatpush.bf16.msra.mxu0 %v972
    %1133 = vmatpush.bf16.msra.mxu0 %v968
    %1134 = vmatpush.bf16.msra.mxu0 %v964
    %1135 = vmatpush.bf16.msra.mxu0 %v960
    %1136 = vmatmul.bf16.gmra.mxu0 %v668
    %v1137 = vpop.f32.mrf.mxu0
    %v1138 = vadd.f32 %v1125, %v1137
    %v1139 = vpop.f32.mrf.mxu0
    %1140 = vdwg.mxu0
    %1141 = vmatpush.bf16.msra.mxu0 %v957
    %1142 = vmatpush.bf16.msra.mxu0 %v953
    %1143 = vmatpush.bf16.msra.mxu0 %v949
    %1144 = vmatpush.bf16.msra.mxu0 %v945
    %1145 = vmatpush.bf16.msra.mxu0 %v941
    %1146 = vmatpush.bf16.msra.mxu0 %v937
    %1147 = vmatpush.bf16.msra.mxu0 %v933
    %1148 = vmatpush.bf16.msra.mxu0 %v929
    %1149 = vmatmul.bf16.gmra.mxu0 %v667
    %v1150 = vpop.f32.mrf.mxu0
    %v1151 = vadd.f32 %v1058, %v1150
    %v1152 = vpop.f32.mrf.mxu0
    %1153 = vdwg.mxu0
    %1154 = vmatpush.bf16.msra.mxu0 %v989
    %1155 = vmatpush.bf16.msra.mxu0 %v985
    %1156 = vmatpush.bf16.msra.mxu0 %v981
    %1157 = vmatpush.bf16.msra.mxu0 %v977
    %1158 = vmatpush.bf16.msra.mxu0 %v973
    %1159 = vmatpush.bf16.msra.mxu0 %v969
    %1160 = vmatpush.bf16.msra.mxu0 %v965
    %1161 = vmatpush.bf16.msra.mxu0 %v961
    %1162 = vmatmul.bf16.gmra.mxu0 %v668
    %v1163 = vpop.f32.mrf.mxu0
    %v1164 = vadd.f32 %v1151, %v1163
    %v1165 = vpop.f32.mrf.mxu0
    %1166 = vdwg.mxu0
    %v1167 = vxor.u32 %v1086, 2147483648
    %v1168 = vmul.f32 %v1167, 1.442695
    %v1169 = vpow.pop %v1168
    %v1170 = vadd.f32 %v1169, 1.0
    %v1171 = vrcp.pop %v1170
    %v1172 = vmul.f32 %v1170, %v1171
    %v1173 = vsub.f32 1.0, %v1172
    %v1174 = vmul.f32 %v1171, %v1173
    %v1175 = vadd.f32 %v1171, %v1174
    %vm1176 = vweird.f32 %v1170
    %vm1177 = vweird.f32 %v1171
    %vm1178 = vmor %vm1176, %vm1177
    %v1179 = vsel %vm1178, %v1171, %v1175
    %v1180 = vand.u32 2147483647, %v1170
    %vm1181 = vcmp.eq.f32.partialorder %v1180, 8.507059e+37
    %v1182 = vand.u32 %v1170, 2147483648
    %v1183 = vor.u32 1.1754944e-38, %v1182
    %v1184 = vsel %vm1181, %v1183, %v1179
    %v1185 = vmul.f32 1.0, %v1184
    %v1186 = vxor.u32 %v1112, 2147483648
    %v1187 = vmul.f32 %v1186, 1.442695
    %v1188 = vpow.pop %v1187
    %v1189 = vadd.f32 %v1188, 1.0
    %v1190 = vrcp.pop %v1189
    %v1191 = vmul.f32 %v1189, %v1190
    %v1192 = vsub.f32 1.0, %v1191
    %v1193 = vmul.f32 %v1190, %v1192
    %v1194 = vadd.f32 %v1190, %v1193
    %vm1195 = vweird.f32 %v1189
    %vm1196 = vweird.f32 %v1190
    %vm1197 = vmor %vm1195, %vm1196
    %v1198 = vsel %vm1197, %v1190, %v1194
    %v1199 = vand.u32 2147483647, %v1189
    %vm1200 = vcmp.eq.f32.partialorder %v1199, 8.507059e+37
    %v1201 = vand.u32 %v1189, 2147483648
    %v1202 = vor.u32 1.1754944e-38, %v1201
    %v1203 = vsel %vm1200, %v1202, %v1198
    %v1204 = vmul.f32 1.0, %v1203
    %v1205 = vtanh.pop %v1138
    %v1206 = vxor.u32 %v1164, 2147483648
    %v1207 = vmul.f32 %v1206, 1.442695
    %v1208 = vpow.pop %v1207
    %v1209 = vadd.f32 %v1208, 1.0
    %v1210 = vrcp.pop %v1209
    %v1211 = vmul.f32 %v1209, %v1210
    %v1212 = vsub.f32 1.0, %v1211
    %v1213 = vmul.f32 %v1210, %v1212
    %v1214 = vadd.f32 %v1210, %v1213
    %vm1215 = vweird.f32 %v1209
    %vm1216 = vweird.f32 %v1210
    %vm1217 = vmor %vm1215, %vm1216
    %v1218 = vsel %vm1217, %v1210, %v1214
    %v1219 = vand.u32 2147483647, %v1209
    %vm1220 = vcmp.eq.f32.partialorder %v1219, 8.507059e+37
    %v1221 = vand.u32 %v1209, 2147483648
    %v1222 = vor.u32 1.1754944e-38, %v1221
    %v1223 = vsel %vm1220, %v1222, %v1218
    %v1224 = vmul.f32 1.0, %v1223
    %v1225 = vmul.f32 %v1204, 0.0
    %v1226 = vmul.f32 %v1185, %v1205
    %v1227 = vadd.f32 %v1225, %v1226
    %v1228 = vtanh.pop %v1227
    %v1229 = vmul.f32 %v1224, %v1228
    %1230 = vmatpush.bf16.msra.mxu0 %v507
    %1231 = vmatpush.bf16.msra.mxu0 %v503
    %1232 = vmatpush.bf16.msra.mxu0 %v499
    %1233 = vmatpush.bf16.msra.mxu0 %v495
    %1234 = vmatpush.bf16.msra.mxu0 %v491
    %1235 = vmatpush.bf16.msra.mxu0 %v487
    %1236 = vmatpush.bf16.msra.mxu0 %v483
    %1237 = vmatpush.bf16.msra.mxu0 %v479
    %1238 = vmatmul.bf16.gmra.mxu0 %v667
    %v1239 = vpop.f32.mrf.mxu0
    %v1240 = vadd.f32 %v544, %v1239
    %v1241 = vpop.f32.mrf.mxu0
    %1242 = vdwg.mxu0
    %1243 = vmatpush.bf16.msra.mxu0 %v508
    %1244 = vmatpush.bf16.msra.mxu0 %v504
    %1245 = vmatpush.bf16.msra.mxu0 %v500
    %1246 = vmatpush.bf16.msra.mxu0 %v496
    %1247 = vmatpush.bf16.msra.mxu0 %v492
    %1248 = vmatpush.bf16.msra.mxu0 %v488
    %1249 = vmatpush.bf16.msra.mxu0 %v484
    %1250 = vmatpush.bf16.msra.mxu0 %v480
    %1251 = vmatmul.bf16.gmra.mxu0 %v667
    %v1252 = vpop.f32.mrf.mxu0
    %v1253 = vadd.f32 %v545, %v1252
    %v1254 = vpop.f32.mrf.mxu0
    %1255 = vdwg.mxu0
    %1256 = vmatpush.bf16.msra.mxu0 %v509
    %1257 = vmatpush.bf16.msra.mxu0 %v505
    %1258 = vmatpush.bf16.msra.mxu0 %v501
    %1259 = vmatpush.bf16.msra.mxu0 %v497
    %1260 = vmatpush.bf16.msra.mxu0 %v493
    %1261 = vmatpush.bf16.msra.mxu0 %v489
    %1262 = vmatpush.bf16.msra.mxu0 %v485
    %1263 = vmatpush.bf16.msra.mxu0 %v481
    %1264 = vmatmul.bf16.gmra.mxu0 %v667
    %v1265 = vpop.f32.mrf.mxu0
    %v1266 = vadd.f32 %v546, %v1265
    %v1267 = vpop.f32.mrf.mxu0
    %1268 = vdwg.mxu0
    %1269 = vmatpush.bf16.msra.mxu0 %v510
    %1270 = vmatpush.bf16.msra.mxu0 %v506
    %1271 = vmatpush.bf16.msra.mxu0 %v502
    %1272 = vmatpush.bf16.msra.mxu0 %v498
    %1273 = vmatpush.bf16.msra.mxu0 %v494
    %1274 = vmatpush.bf16.msra.mxu0 %v490
    %1275 = vmatpush.bf16.msra.mxu0 %v486
    %1276 = vmatpush.bf16.msra.mxu0 %v482
    %1277 = vmatmul.bf16.gmra.mxu0 %v667
    %v1278 = vpop.f32.mrf.mxu0
    %v1279 = vadd.f32 %v547, %v1278
    %v1280 = vpop.f32.mrf.mxu0
    %1281 = vdwg.mxu0
    %v1282 = vxor.u32 %v1240, 2147483648
    %v1283 = vmul.f32 %v1282, 1.442695
    %v1284 = vpow.pop %v1283
    %v1285 = vadd.f32 %v1284, 1.0
    %v1286 = vrcp.pop %v1285
    %v1287 = vmul.f32 %v1285, %v1286
    %v1288 = vsub.f32 1.0, %v1287
    %v1289 = vmul.f32 %v1286, %v1288
    %v1290 = vadd.f32 %v1286, %v1289
    %vm1291 = vweird.f32 %v1285
    %vm1292 = vweird.f32 %v1286
    %vm1293 = vmor %vm1291, %vm1292
    %v1294 = vsel %vm1293, %v1286, %v1290
    %v1295 = vand.u32 2147483647, %v1285
    %vm1296 = vcmp.eq.f32.partialorder %v1295, 8.507059e+37
    %v1297 = vand.u32 %v1285, 2147483648
    %v1298 = vor.u32 1.1754944e-38, %v1297
    %v1299 = vsel %vm1296, %v1298, %v1294
    %v1300 = vmul.f32 1.0, %v1299
    %v1301 = vxor.u32 %v1253, 2147483648
    %v1302 = vmul.f32 %v1301, 1.442695
    %v1303 = vpow.pop %v1302
    %v1304 = vadd.f32 %v1303, 1.0
    %v1305 = vrcp.pop %v1304
    %v1306 = vmul.f32 %v1304, %v1305
    %v1307 = vsub.f32 1.0, %v1306
    %v1308 = vmul.f32 %v1305, %v1307
    %v1309 = vadd.f32 %v1305, %v1308
    %vm1310 = vweird.f32 %v1304
    %vm1311 = vweird.f32 %v1305
    %vm1312 = vmor %vm1310, %vm1311
    %v1313 = vsel %vm1312, %v1305, %v1309
    %v1314 = vand.u32 2147483647, %v1304
    %vm1315 = vcmp.eq.f32.partialorder %v1314, 8.507059e+37
    %v1316 = vand.u32 %v1304, 2147483648
    %v1317 = vor.u32 1.1754944e-38, %v1316
    %v1318 = vsel %vm1315, %v1317, %v1313
    %v1319 = vmul.f32 1.0, %v1318
    %v1320 = vtanh.pop %v1266
    %v1321 = vxor.u32 %v1279, 2147483648
    %v1322 = vmul.f32 %v1321, 1.442695
    %v1323 = vpow.pop %v1322
    %v1324 = vadd.f32 %v1323, 1.0
    %v1325 = vrcp.pop %v1324
    %v1326 = vmul.f32 %v1324, %v1325
    %v1327 = vsub.f32 1.0, %v1326
    %v1328 = vmul.f32 %v1325, %v1327
    %v1329 = vadd.f32 %v1325, %v1328
    %vm1330 = vweird.f32 %v1324
    %vm1331 = vweird.f32 %v1325
    %vm1332 = vmor %vm1330, %vm1331
    %v1333 = vsel %vm1332, %v1325, %v1329
    %v1334 = vand.u32 2147483647, %v1324
    %vm1335 = vcmp.eq.f32.partialorder %v1334, 8.507059e+37
    %v1336 = vand.u32 %v1324, 2147483648
    %v1337 = vor.u32 1.1754944e-38, %v1336
    %v1338 = vsel %vm1335, %v1337, %v1333
    %v1339 = vmul.f32 1.0, %v1338
    %v1340 = vmul.f32 %v1319, %v664
    %v1341 = vmul.f32 %v1300, %v1320
    %v1342 = vadd.f32 %v1340, %v1341
    %v1343 = vtanh.pop %v1342
    %v1344 = vmul.f32 %v1339, %v1343
    %v1345 = vpack.c.bf16 %v1344, %v1344
    %v1346 = vpack.c.bf16 %v1229, %v1229
    %1347 = vmatpush.bf16.msra.mxu0 %v954
    %1348 = vmatpush.bf16.msra.mxu0 %v950
    %1349 = vmatpush.bf16.msra.mxu0 %v946
    %1350 = vmatpush.bf16.msra.mxu0 %v942
    %1351 = vmatpush.bf16.msra.mxu0 %v938
    %1352 = vmatpush.bf16.msra.mxu0 %v934
    %1353 = vmatpush.bf16.msra.mxu0 %v930
    %1354 = vmatpush.bf16.msra.mxu0 %v926
    %1355 = vmatmul.bf16.gmra.mxu0 %v1345
    %v1356 = vpop.f32.mrf.mxu0
    %v1357 = vadd.f32 %v1055, %v1356
    %v1358 = vpop.f32.mrf.mxu0
    %1359 = vdwg.mxu0
    %1360 = vmatpush.bf16.msra.mxu0 %v986
    %1361 = vmatpush.bf16.msra.mxu0 %v982
    %1362 = vmatpush.bf16.msra.mxu0 %v978
    %1363 = vmatpush.bf16.msra.mxu0 %v974
    %1364 = vmatpush.bf16.msra.mxu0 %v970
    %1365 = vmatpush.bf16.msra.mxu0 %v966
    %1366 = vmatpush.bf16.msra.mxu0 %v962
    %1367 = vmatpush.bf16.msra.mxu0 %v958
    %1368 = vmatmul.bf16.gmra.mxu0 %v1346
    %v1369 = vpop.f32.mrf.mxu0
    %v1370 = vadd.f32 %v1357, %v1369
    %v1371 = vpop.f32.mrf.mxu0
    %1372 = vdwg.mxu0
    %1373 = vmatpush.bf16.msra.mxu0 %v955
    %1374 = vmatpush.bf16.msra.mxu0 %v951
    %1375 = vmatpush.bf16.msra.mxu0 %v947
    %1376 = vmatpush.bf16.msra.mxu0 %v943
    %1377 = vmatpush.bf16.msra.mxu0 %v939
    %1378 = vmatpush.bf16.msra.mxu0 %v935
    %1379 = vmatpush.bf16.msra.mxu0 %v931
    %1380 = vmatpush.bf16.msra.mxu0 %v927
    %1381 = vmatmul.bf16.gmra.mxu0 %v1345
    %v1382 = vpop.f32.mrf.mxu0
    %v1383 = vadd.f32 %v1056, %v1382
    %v1384 = vpop.f32.mrf.mxu0
    %1385 = vdwg.mxu0
    %1386 = vmatpush.bf16.msra.mxu0 %v987
    %1387 = vmatpush.bf16.msra.mxu0 %v983
    %1388 = vmatpush.bf16.msra.mxu0 %v979
    %1389 = vmatpush.bf16.msra.mxu0 %v975
    %1390 = vmatpush.bf16.msra.mxu0 %v971
    %1391 = vmatpush.bf16.msra.mxu0 %v967
    %1392 = vmatpush.bf16.msra.mxu0 %v963
    %1393 = vmatpush.bf16.msra.mxu0 %v959
    %1394 = vmatmul.bf16.gmra.mxu0 %v1346
    %v1395 = vpop.f32.mrf.mxu0
    %v1396 = vadd.f32 %v1383, %v1395
    %v1397 = vpop.f32.mrf.mxu0
    %1398 = vdwg.mxu0
    %1399 = vmatpush.bf16.msra.mxu0 %v956
    %1400 = vmatpush.bf16.msra.mxu0 %v952
    %1401 = vmatpush.bf16.msra.mxu0 %v948
    %1402 = vmatpush.bf16.msra.mxu0 %v944
    %1403 = vmatpush.bf16.msra.mxu0 %v940
    %1404 = vmatpush.bf16.msra.mxu0 %v936
    %1405 = vmatpush.bf16.msra.mxu0 %v932
    %1406 = vmatpush.bf16.msra.mxu0 %v928
    %1407 = vmatmul.bf16.gmra.mxu0 %v1345
    %v1408 = vpop.f32.mrf.mxu0
    %v1409 = vadd.f32 %v1057, %v1408
    %v1410 = vpop.f32.mrf.mxu0
    %1411 = vdwg.mxu0
    %1412 = vmatpush.bf16.msra.mxu0 %v988
    %1413 = vmatpush.bf16.msra.mxu0 %v984
    %1414 = vmatpush.bf16.msra.mxu0 %v980
    %1415 = vmatpush.bf16.msra.mxu0 %v976
    %1416 = vmatpush.bf16.msra.mxu0 %v972
    %1417 = vmatpush.bf16.msra.mxu0 %v968
    %1418 = vmatpush.bf16.msra.mxu0 %v964
    %1419 = vmatpush.bf16.msra.mxu0 %v960
    %1420 = vmatmul.bf16.gmra.mxu0 %v1346
    %v1421 = vpop.f32.mrf.mxu0
    %v1422 = vadd.f32 %v1409, %v1421
    %v1423 = vpop.f32.mrf.mxu0
    %1424 = vdwg.mxu0
    %1425 = vmatpush.bf16.msra.mxu0 %v957
    %1426 = vmatpush.bf16.msra.mxu0 %v953
    %1427 = vmatpush.bf16.msra.mxu0 %v949
    %1428 = vmatpush.bf16.msra.mxu0 %v945
    %1429 = vmatpush.bf16.msra.mxu0 %v941
    %1430 = vmatpush.bf16.msra.mxu0 %v937
    %1431 = vmatpush.bf16.msra.mxu0 %v933
    %1432 = vmatpush.bf16.msra.mxu0 %v929
    %1433 = vmatmul.bf16.gmra.mxu0 %v1345
    %v1434 = vpop.f32.mrf.mxu0
    %v1435 = vadd.f32 %v1058, %v1434
    %v1436 = vpop.f32.mrf.mxu0
    %1437 = vdwg.mxu0
    %1438 = vmatpush.bf16.msra.mxu0 %v989
    %1439 = vmatpush.bf16.msra.mxu0 %v985
    %1440 = vmatpush.bf16.msra.mxu0 %v981
    %1441 = vmatpush.bf16.msra.mxu0 %v977
    %1442 = vmatpush.bf16.msra.mxu0 %v973
    %1443 = vmatpush.bf16.msra.mxu0 %v969
    %1444 = vmatpush.bf16.msra.mxu0 %v965
    %1445 = vmatpush.bf16.msra.mxu0 %v961
    %1446 = vmatmul.bf16.gmra.mxu0 %v1346
    %v1447 = vpop.f32.mrf.mxu0
    %v1448 = vadd.f32 %v1435, %v1447
    %v1449 = vpop.f32.mrf.mxu0
    %1450 = vdwg.mxu0
    %v1451 = vxor.u32 %v1370, 2147483648
    %v1452 = vmul.f32 %v1451, 1.442695
    %v1453 = vpow.pop %v1452
    %v1454 = vadd.f32 %v1453, 1.0
    %v1455 = vrcp.pop %v1454
    %v1456 = vmul.f32 %v1454, %v1455
    %v1457 = vsub.f32 1.0, %v1456
    %v1458 = vmul.f32 %v1455, %v1457
    %v1459 = vadd.f32 %v1455, %v1458
    %vm1460 = vweird.f32 %v1454
    %vm1461 = vweird.f32 %v1455
    %vm1462 = vmor %vm1460, %vm1461
    %v1463 = vsel %vm1462, %v1455, %v1459
    %v1464 = vand.u32 2147483647, %v1454
    %vm1465 = vcmp.eq.f32.partialorder %v1464, 8.507059e+37
    %v1466 = vand.u32 %v1454, 2147483648
    %v1467 = vor.u32 1.1754944e-38, %v1466
    %v1468 = vsel %vm1465, %v1467, %v1463
    %v1469 = vmul.f32 1.0, %v1468
    %v1470 = vxor.u32 %v1396, 2147483648
    %v1471 = vmul.f32 %v1470, 1.442695
    %v1472 = vpow.pop %v1471
    %v1473 = vadd.f32 %v1472, 1.0
    %v1474 = vrcp.pop %v1473
    %v1475 = vmul.f32 %v1473, %v1474
    %v1476 = vsub.f32 1.0, %v1475
    %v1477 = vmul.f32 %v1474, %v1476
    %v1478 = vadd.f32 %v1474, %v1477
    %vm1479 = vweird.f32 %v1473
    %vm1480 = vweird.f32 %v1474
    %vm1481 = vmor %vm1479, %vm1480
    %v1482 = vsel %vm1481, %v1474, %v1478
    %v1483 = vand.u32 2147483647, %v1473
    %vm1484 = vcmp.eq.f32.partialorder %v1483, 8.507059e+37
    %v1485 = vand.u32 %v1473, 2147483648
    %v1486 = vor.u32 1.1754944e-38, %v1485
    %v1487 = vsel %vm1484, %v1486, %v1482
    %v1488 = vmul.f32 1.0, %v1487
    %v1489 = vtanh.pop %v1422
    %v1490 = vxor.u32 %v1448, 2147483648
    %v1491 = vmul.f32 %v1490, 1.442695
    %v1492 = vpow.pop %v1491
    %v1493 = vadd.f32 %v1492, 1.0
    %v1494 = vrcp.pop %v1493
    %v1495 = vmul.f32 %v1493, %v1494
    %v1496 = vsub.f32 1.0, %v1495
    %v1497 = vmul.f32 %v1494, %v1496
    %v1498 = vadd.f32 %v1494, %v1497
    %vm1499 = vweird.f32 %v1493
    %vm1500 = vweird.f32 %v1494
    %vm1501 = vmor %vm1499, %vm1500
    %v1502 = vsel %vm1501, %v1494, %v1498
    %v1503 = vand.u32 2147483647, %v1493
    %vm1504 = vcmp.eq.f32.partialorder %v1503, 8.507059e+37
    %v1505 = vand.u32 %v1493, 2147483648
    %v1506 = vor.u32 1.1754944e-38, %v1505
    %v1507 = vsel %vm1504, %v1506, %v1502
    %v1508 = vmul.f32 1.0, %v1507
    %v1509 = vmul.f32 %v1488, %v1227
    %v1510 = vmul.f32 %v1469, %v1489
    %v1511 = vadd.f32 %v1509, %v1510
    %v1512 = vtanh.pop %v1511
    %v1513 = vmul.f32 %v1508, %v1512
    %v1515 = vrot.slane %v1513, 7
    %vm1517 = vcmask 1040384
    %v1518 = vsel %vm1517, %v1229, %v1515
    %v1519 = vpack.c.bf16 %v1518, %v1518
    %v1520 = vld [vmem:[#allocation15] sm:$0xf]
    %v1521 = vld [vmem:[#allocation15 + $0x4] sm:$0xf]
    %v1522 = vld [vmem:[#allocation15 + $0x8] sm:$0xf]
    %v1523 = vld [vmem:[#allocation15 + $0xc] sm:$0xf]
    %v1524 = vld [vmem:[#allocation15 + $0x10] sm:$0xf]
    %v1525 = vld [vmem:[#allocation15 + $0x14] sm:$0xf]
    %v1526 = vld [vmem:[#allocation15 + $0x18] sm:$0xf]
    %v1527 = vld [vmem:[#allocation15 + $0x1c] sm:$0xf]
    %v1528 = vld [vmem:[#allocation15 + $0x20] sm:$0xf]
    %v1529 = vld [vmem:[#allocation15 + $0x24] sm:$0xf]
    %v1530 = vld [vmem:[#allocation15 + $0x28] sm:$0xf]
    %v1531 = vld [vmem:[#allocation15 + $0x2c] sm:$0xf]
    %v1532 = vld [vmem:[#allocation15 + $0x30] sm:$0xf]
    %v1533 = vld [vmem:[#allocation15 + $0x34] sm:$0xf]
    %v1534 = vld [vmem:[#allocation15 + $0x38] sm:$0xf]
    %v1535 = vld [vmem:[#allocation15 + $0x3c] sm:$0xf]
    %v1536 = vld [vmem:[#allocation16] sm:$0x1]
    %v1538 = vperm.slane %v1536, 0
    %v1556 = vunpack.c.l.b16 %v1520
    %v1557 = vunpack.c.l.b16 %v1521
    %v1558 = vunpack.c.l.b16 %v1522
    %v1559 = vunpack.c.l.b16 %v1523
    %v1560 = vunpack.c.l.b16 %v1524
    %v1561 = vunpack.c.l.b16 %v1525
    %v1562 = vunpack.c.l.b16 %v1526
    %v1563 = vunpack.c.l.b16 %v1527
    %v1564 = vunpack.c.l.b16 %v1528
    %v1565 = vunpack.c.l.b16 %v1529
    %v1566 = vunpack.c.l.b16 %v1530
    %v1567 = vunpack.c.l.b16 %v1531
    %v1568 = vunpack.c.l.b16 %v1532
    %v1569 = vunpack.c.l.b16 %v1533
    %v1570 = vunpack.c.l.b16 %v1534
    %v1571 = vunpack.c.l.b16 %v1535
    %v1572 = vpack.c.b16 %v1557, %v1556
    %v1573 = vpack.c.b16 %v1559, %v1558
    %v1574 = vpack.c.b16 %v1561, %v1560
    %v1575 = vpack.c.b16 %v1563, %v1562
    %v1576 = vpack.c.b16 %v1565, %v1564
    %v1577 = vpack.c.b16 %v1567, %v1566
    %v1578 = vpack.c.b16 %v1569, %v1568
    %v1579 = vpack.c.b16 %v1571, %v1570
    %1588 = vmatpush.bf16.msra.mxu0 %v1579
    %1589 = vmatpush.bf16.msra.mxu0 %v1578
    %1590 = vmatpush.bf16.msra.mxu0 %v1577
    %1591 = vmatpush.bf16.msra.mxu0 %v1576
    %1592 = vmatpush.bf16.msra.mxu0 %v1575
    %1593 = vmatpush.bf16.msra.mxu0 %v1574
    %1594 = vmatpush.bf16.msra.mxu0 %v1573
    %1595 = vmatpush.bf16.msra.mxu0 %v1572
    %1596 = vmatmul.bf16.gmra.mxu0 %v1519
    %v1597 = vpop.f32.mrf.mxu0
    %v1598 = vadd.f32 %v1538, %v1597
    %v1599 = vpop.f32.mrf.mxu0
    %1600 = vdwg.mxu0
    %v1601 = vpack.c.bf16 %v1598, %v1598
    %v1602 = vld [vmem:[#allocation18] sm:$0xf]
    %v1603 = vld [vmem:[#allocation18 + $0x4] sm:$0xf]
    %v1604 = vld [vmem:[#allocation18 + $0x8] sm:$0xf]
    %v1605 = vld [vmem:[#allocation18 + $0xc] sm:$0xf]
    %v1606 = vld [vmem:[#allocation18 + $0x10] sm:$0xf]
    %v1607 = vld [vmem:[#allocation18 + $0x14] sm:$0xf]
    %v1608 = vld [vmem:[#allocation18 + $0x18] sm:$0xf]
    %v1609 = vld [vmem:[#allocation18 + $0x1c] sm:$0xf]
    %v1610 = vld [vmem:[#allocation18 + $0x20] sm:$0xf]
    %v1611 = vld [vmem:[#allocation18 + $0x24] sm:$0xf]
    %v1612 = vld [vmem:[#allocation18 + $0x28] sm:$0xf]
    %v1613 = vld [vmem:[#allocation18 + $0x2c] sm:$0xf]
    %v1614 = vld [vmem:[#allocation18 + $0x30] sm:$0xf]
    %v1615 = vld [vmem:[#allocation18 + $0x34] sm:$0xf]
    %v1616 = vld [vmem:[#allocation18 + $0x38] sm:$0xf]
    %v1617 = vld [vmem:[#allocation18 + $0x3c] sm:$0xf]
    %v1618 = vld [vmem:[#allocation19] sm:$0x1]
    %v1620 = vperm.slane %v1618, 0
    %v1638 = vunpack.c.l.b16 %v1602
    %v1639 = vunpack.c.l.b16 %v1603
    %v1640 = vunpack.c.l.b16 %v1604
    %v1641 = vunpack.c.l.b16 %v1605
    %v1642 = vunpack.c.l.b16 %v1606
    %v1643 = vunpack.c.l.b16 %v1607
    %v1644 = vunpack.c.l.b16 %v1608
    %v1645 = vunpack.c.l.b16 %v1609
    %v1646 = vunpack.c.l.b16 %v1610
    %v1647 = vunpack.c.l.b16 %v1611
    %v1648 = vunpack.c.l.b16 %v1612
    %v1649 = vunpack.c.l.b16 %v1613
    %v1650 = vunpack.c.l.b16 %v1614
    %v1651 = vunpack.c.l.b16 %v1615
    %v1652 = vunpack.c.l.b16 %v1616
    %v1653 = vunpack.c.l.b16 %v1617
    %v1654 = vpack.c.b16 %v1639, %v1638
    %v1655 = vpack.c.b16 %v1641, %v1640
    %v1656 = vpack.c.b16 %v1643, %v1642
    %v1657 = vpack.c.b16 %v1645, %v1644
    %v1658 = vpack.c.b16 %v1647, %v1646
    %v1659 = vpack.c.b16 %v1649, %v1648
    %v1660 = vpack.c.b16 %v1651, %v1650
    %v1661 = vpack.c.b16 %v1653, %v1652
    %1670 = vmatpush.bf16.msra.mxu0 %v1661
    %1671 = vmatpush.bf16.msra.mxu0 %v1660
    %1672 = vmatpush.bf16.msra.mxu0 %v1659
    %1673 = vmatpush.bf16.msra.mxu0 %v1658
    %1674 = vmatpush.bf16.msra.mxu0 %v1657
    %1675 = vmatpush.bf16.msra.mxu0 %v1656
    %1676 = vmatpush.bf16.msra.mxu0 %v1655
    %1677 = vmatpush.bf16.msra.mxu0 %v1654
    %1678 = vmatmul.bf16.gmra.mxu0 %v1601
    %v1679 = vpop.f32.mrf.mxu0
    %v1680 = vadd.f32 %v1620, %v1679
    %v1681 = vpop.f32.mrf.mxu0
    %1682 = vdwg.mxu0
    %v1683 = vtanh.pop %v1680
    %1684 = vst [vmem:[#allocation3] sm:$0x3] %v1683
    %v1685 = vld [vmem:[#allocation21] sm:$0xff]
    %v1686 = vld [vmem:[#allocation21 + $0x8] sm:$0xff]
    %v1687 = vld [vmem:[#allocation21 + $0x10] sm:$0xff]
    %v1688 = vld [vmem:[#allocation21 + $0x18] sm:$0xff]
    %v1689 = vld [vmem:[#allocation21 + $0x20] sm:$0xff]
    %v1690 = vld [vmem:[#allocation21 + $0x28] sm:$0xff]
    %v1691 = vld [vmem:[#allocation21 + $0x30] sm:$0xff]
    %v1692 = vld [vmem:[#allocation21 + $0x38] sm:$0xff]
    %v1693 = vld [vmem:[#allocation21 + $0x40] sm:$0xff]
    %v1694 = vld [vmem:[#allocation21 + $0x48] sm:$0xff]
    %v1695 = vld [vmem:[#allocation21 + $0x50] sm:$0xff]
    %v1696 = vld [vmem:[#allocation21 + $0x58] sm:$0xff]
    %v1697 = vld [vmem:[#allocation21 + $0x60] sm:$0xff]
    %v1698 = vld [vmem:[#allocation21 + $0x68] sm:$0xff]
    %v1699 = vld [vmem:[#allocation21 + $0x70] sm:$0xff]
    %v1700 = vld [vmem:[#allocation21 + $0x78] sm:$0xff]
    %v1701 = vld [vmem:[#allocation21 + $0x80] sm:$0xff]
    %v1702 = vld [vmem:[#allocation21 + $0x88] sm:$0xff]
    %v1703 = vld [vmem:[#allocation21 + $0x90] sm:$0xff]
    %v1704 = vld [vmem:[#allocation21 + $0x98] sm:$0xff]
    %v1705 = vld [vmem:[#allocation21 + $0xa0] sm:$0xff]
    %v1706 = vld [vmem:[#allocation21 + $0xa8] sm:$0xff]
    %v1707 = vld [vmem:[#allocation21 + $0xb0] sm:$0xff]
    %v1708 = vld [vmem:[#allocation21 + $0xb8] sm:$0xff]
    %v1709 = vld [vmem:[#allocation21 + $0xc0] sm:$0xff]
    %v1710 = vld [vmem:[#allocation21 + $0xc8] sm:$0xff]
    %v1711 = vld [vmem:[#allocation21 + $0xd0] sm:$0xff]
    %v1712 = vld [vmem:[#allocation21 + $0xd8] sm:$0xff]
    %v1713 = vld [vmem:[#allocation21 + $0xe0] sm:$0xff]
    %v1714 = vld [vmem:[#allocation21 + $0xe8] sm:$0xff]
    %v1715 = vld [vmem:[#allocation21 + $0xf0] sm:$0xff]
    %v1716 = vld [vmem:[#allocation21 + $0xf8] sm:$0xff]
    %v1717 = vld [vmem:[%s12] sm:$0xf]
    %v1719 = vperm.slane %v1717, 0
    %v1720 = vperm.slane %v1717, 1
    %v1721 = vperm.slane %v1717, 2
    %v1722 = vperm.slane %v1717, 3
    %v1759 = vunpack.c.l.b16 %v1685
    %v1760 = vunpack.c.h.b16 %v1685
    %v1761 = vunpack.c.l.b16 %v1686
    %v1762 = vunpack.c.h.b16 %v1686
    %v1763 = vunpack.c.l.b16 %v1687
    %v1764 = vunpack.c.h.b16 %v1687
    %v1765 = vunpack.c.l.b16 %v1688
    %v1766 = vunpack.c.h.b16 %v1688
    %v1767 = vunpack.c.l.b16 %v1689
    %v1768 = vunpack.c.h.b16 %v1689
    %v1769 = vunpack.c.l.b16 %v1690
    %v1770 = vunpack.c.h.b16 %v1690
    %v1771 = vunpack.c.l.b16 %v1691
    %v1772 = vunpack.c.h.b16 %v1691
    %v1773 = vunpack.c.l.b16 %v1692
    %v1774 = vunpack.c.h.b16 %v1692
    %v1775 = vunpack.c.l.b16 %v1693
    %v1776 = vunpack.c.h.b16 %v1693
    %v1777 = vunpack.c.l.b16 %v1694
    %v1778 = vunpack.c.h.b16 %v1694
    %v1779 = vunpack.c.l.b16 %v1695
    %v1780 = vunpack.c.h.b16 %v1695
    %v1781 = vunpack.c.l.b16 %v1696
    %v1782 = vunpack.c.h.b16 %v1696
    %v1783 = vunpack.c.l.b16 %v1697
    %v1784 = vunpack.c.h.b16 %v1697
    %v1785 = vunpack.c.l.b16 %v1698
    %v1786 = vunpack.c.h.b16 %v1698
    %v1787 = vunpack.c.l.b16 %v1699
    %v1788 = vunpack.c.h.b16 %v1699
    %v1789 = vunpack.c.l.b16 %v1700
    %v1790 = vunpack.c.h.b16 %v1700
    %v1791 = vunpack.c.l.b16 %v1701
    %v1792 = vunpack.c.h.b16 %v1701
    %v1793 = vunpack.c.l.b16 %v1702
    %v1794 = vunpack.c.h.b16 %v1702
    %v1795 = vunpack.c.l.b16 %v1703
    %v1796 = vunpack.c.h.b16 %v1703
    %v1797 = vunpack.c.l.b16 %v1704
    %v1798 = vunpack.c.h.b16 %v1704
    %v1799 = vunpack.c.l.b16 %v1705
    %v1800 = vunpack.c.h.b16 %v1705
    %v1801 = vunpack.c.l.b16 %v1706
    %v1802 = vunpack.c.h.b16 %v1706
    %v1803 = vunpack.c.l.b16 %v1707
    %v1804 = vunpack.c.h.b16 %v1707
    %v1805 = vunpack.c.l.b16 %v1708
    %v1806 = vunpack.c.h.b16 %v1708
    %v1807 = vunpack.c.l.b16 %v1709
    %v1808 = vunpack.c.h.b16 %v1709
    %v1809 = vunpack.c.l.b16 %v1710
    %v1810 = vunpack.c.h.b16 %v1710
    %v1811 = vunpack.c.l.b16 %v1711
    %v1812 = vunpack.c.h.b16 %v1711
    %v1813 = vunpack.c.l.b16 %v1712
    %v1814 = vunpack.c.h.b16 %v1712
    %v1815 = vunpack.c.l.b16 %v1713
    %v1816 = vunpack.c.h.b16 %v1713
    %v1817 = vunpack.c.l.b16 %v1714
    %v1818 = vunpack.c.h.b16 %v1714
    %v1819 = vunpack.c.l.b16 %v1715
    %v1820 = vunpack.c.h.b16 %v1715
    %v1821 = vunpack.c.l.b16 %v1716
    %v1822 = vunpack.c.h.b16 %v1716
    %v1823 = vpack.c.b16 %v1763, %v1759
    %v1824 = vpack.c.b16 %v1764, %v1760
    %v1825 = vpack.c.b16 %v1765, %v1761
    %v1826 = vpack.c.b16 %v1766, %v1762
    %v1827 = vpack.c.b16 %v1771, %v1767
    %v1828 = vpack.c.b16 %v1772, %v1768
    %v1829 = vpack.c.b16 %v1773, %v1769
    %v1830 = vpack.c.b16 %v1774, %v1770
    %v1831 = vpack.c.b16 %v1779, %v1775
    %v1832 = vpack.c.b16 %v1780, %v1776
    %v1833 = vpack.c.b16 %v1781, %v1777
    %v1834 = vpack.c.b16 %v1782, %v1778
    %v1835 = vpack.c.b16 %v1787, %v1783
    %v1836 = vpack.c.b16 %v1788, %v1784
    %v1837 = vpack.c.b16 %v1789, %v1785
    %v1838 = vpack.c.b16 %v1790, %v1786
    %v1839 = vpack.c.b16 %v1795, %v1791
    %v1840 = vpack.c.b16 %v1796, %v1792
    %v1841 = vpack.c.b16 %v1797, %v1793
    %v1842 = vpack.c.b16 %v1798, %v1794
    %v1843 = vpack.c.b16 %v1803, %v1799
    %v1844 = vpack.c.b16 %v1804, %v1800
    %v1845 = vpack.c.b16 %v1805, %v1801
    %v1846 = vpack.c.b16 %v1806, %v1802
    %v1847 = vpack.c.b16 %v1811, %v1807
    %v1848 = vpack.c.b16 %v1812, %v1808
    %v1849 = vpack.c.b16 %v1813, %v1809
    %v1850 = vpack.c.b16 %v1814, %v1810
    %v1851 = vpack.c.b16 %v1819, %v1815
    %v1852 = vpack.c.b16 %v1820, %v1816
    %v1853 = vpack.c.b16 %v1821, %v1817
    %v1854 = vpack.c.b16 %v1822, %v1818
    %1887 = vmatpush.bf16.msra.mxu0 %v1851
    %1888 = vmatpush.bf16.msra.mxu0 %v1847
    %1889 = vmatpush.bf16.msra.mxu0 %v1843
    %1890 = vmatpush.bf16.msra.mxu0 %v1839
    %1891 = vmatpush.bf16.msra.mxu0 %v1835
    %1892 = vmatpush.bf16.msra.mxu0 %v1831
    %1893 = vmatpush.bf16.msra.mxu0 %v1827
    %1894 = vmatpush.bf16.msra.mxu0 %v1823
    %1895 = vmatmul.bf16.gmra.mxu0 %v1601
    %v1896 = vpop.f32.mrf.mxu0
    %v1897 = vadd.f32 %v1719, %v1896
    %v1898 = vpop.f32.mrf.mxu0
    %1899 = vdwg.mxu0
    %1900 = vmatpush.bf16.msra.mxu0 %v1852
    %1901 = vmatpush.bf16.msra.mxu0 %v1848
    %1902 = vmatpush.bf16.msra.mxu0 %v1844
    %1903 = vmatpush.bf16.msra.mxu0 %v1840
    %1904 = vmatpush.bf16.msra.mxu0 %v1836
    %1905 = vmatpush.bf16.msra.mxu0 %v1832
    %1906 = vmatpush.bf16.msra.mxu0 %v1828
    %1907 = vmatpush.bf16.msra.mxu0 %v1824
    %1908 = vmatmul.bf16.gmra.mxu0 %v1601
    %v1909 = vpop.f32.mrf.mxu0
    %v1910 = vadd.f32 %v1720, %v1909
    %v1911 = vpop.f32.mrf.mxu0
    %1912 = vdwg.mxu0
    %1913 = vmatpush.bf16.msra.mxu0 %v1853
    %1914 = vmatpush.bf16.msra.mxu0 %v1849
    %1915 = vmatpush.bf16.msra.mxu0 %v1845
    %1916 = vmatpush.bf16.msra.mxu0 %v1841
    %1917 = vmatpush.bf16.msra.mxu0 %v1837
    %1918 = vmatpush.bf16.msra.mxu0 %v1833
    %1919 = vmatpush.bf16.msra.mxu0 %v1829
    %1920 = vmatpush.bf16.msra.mxu0 %v1825
    %1921 = vmatmul.bf16.gmra.mxu0 %v1601
    %v1922 = vpop.f32.mrf.mxu0
    %v1923 = vadd.f32 %v1721, %v1922
    %v1924 = vpop.f32.mrf.mxu0
    %1925 = vdwg.mxu0
    %1926 = vmatpush.bf16.msra.mxu0 %v1854
    %1927 = vmatpush.bf16.msra.mxu0 %v1850
    %1928 = vmatpush.bf16.msra.mxu0 %v1846
    %1929 = vmatpush.bf16.msra.mxu0 %v1842
    %1930 = vmatpush.bf16.msra.mxu0 %v1838
    %1931 = vmatpush.bf16.msra.mxu0 %v1834
    %1932 = vmatpush.bf16.msra.mxu0 %v1830
    %1933 = vmatpush.bf16.msra.mxu0 %v1826
    %1934 = vmatmul.bf16.gmra.mxu0 %v1601
    %v1935 = vpop.f32.mrf.mxu0
    %v1936 = vadd.f32 %v1722, %v1935
    %v1937 = vpop.f32.mrf.mxu0
    %1938 = vdwg.mxu0
    %v1943 = vrot.slane %v1910, 6
    %v1944 = vrot.slane %v1923, 4
    %v1945 = vrot.slane %v1936, 2
    %vm1946 = vcmask 1041408
    %v1947 = vsel %vm1946, %v1897, %v1943
    %vm1948 = vcmask 1045508
    %v1949 = vsel %vm1948, %v1944, %v1945
    %vm1950 = vcmask 1043456
    %v1951 = vsel %vm1950, %v1947, %v1949
    %1953 = vst [vmem:[#allocation2] sm:$0xff] %v1951
    loop: start=0, step=1, limit=2
    $region130: #{tpu_custom_call.1} parent=1 // loop_pre_header
      _
    $region131: #{tpu_custom_call.1} parent=1 // loop_header
      %s1955 = sphi 0, %s1959
      %p1956 = scmp.ge.s32.totalorder %s1955, 2
      %v1960 = vphi 0.0, %v6818
    $region132: #{tpu_custom_call.1} parent=1 // loop_header_branch
      %1958 = sbr.rel (%p1956) target = $region136
    $region133: #{tpu_custom_call.1} parent=1 // loop_body
      %s1961 = sshra.s32 %s1955, 1
      %s1962 = sand.u32 %s1955, 1
      %s1963 = sshra.s32 %s1955, 1
      %s1964 = sand.u32 %s1955, 1
      %s1965 = smul.u32 %s1961, 4
      %s1966 = smul.u32 %s1965, 2
      %s1967 = sadd.s32 %s1966, %s1964
      %s1968 = scalar_lea.vmem [#allocation2], %s1967
      %v1969 = vld [vmem:[%s1968] ss:$2 sm:$0xf]
      %s1970 = scalar_lea.vmem [#allocation3], %s1955
      %v1971 = vld [vmem:[%s1970] sm:$0x1]
      %v1972 = vpack.c.bf16 %v1960, %v1960
      %v1973 = vpack.c.bf16 %v1971, %v1971
      %v1974 = vld [vmem:[#allocation22] sm:$0xff]
      %v1975 = vld [vmem:[#allocation22 + $0x8] sm:$0xff]
      %v1976 = vld [vmem:[#allocation22 + $0x10] sm:$0xff]
      %v1977 = vld [vmem:[#allocation22 + $0x18] sm:$0xff]
      %v1978 = vld [vmem:[#allocation22 + $0x20] sm:$0xff]
      %v1979 = vld [vmem:[#allocation22 + $0x28] sm:$0xff]
      %v1980 = vld [vmem:[#allocation22 + $0x30] sm:$0xff]
      %v1981 = vld [vmem:[#allocation22 + $0x38] sm:$0xff]
      %v1982 = vld [vmem:[#allocation22 + $0x40] sm:$0xff]
      %v1983 = vld [vmem:[#allocation22 + $0x48] sm:$0xff]
      %v1984 = vld [vmem:[#allocation22 + $0x50] sm:$0xff]
      %v1985 = vld [vmem:[#allocation22 + $0x58] sm:$0xff]
      %v1986 = vld [vmem:[#allocation22 + $0x60] sm:$0xff]
      %v1987 = vld [vmem:[#allocation22 + $0x68] sm:$0xff]
      %v1988 = vld [vmem:[#allocation22 + $0x70] sm:$0xff]
      %v1989 = vld [vmem:[#allocation22 + $0x78] sm:$0xff]
      %v1990 = vld [vmem:[#allocation22 + $0x80] sm:$0xff]
      %v1991 = vld [vmem:[#allocation22 + $0x88] sm:$0xff]
      %v1992 = vld [vmem:[#allocation22 + $0x90] sm:$0xff]
      %v1993 = vld [vmem:[#allocation22 + $0x98] sm:$0xff]
      %v1994 = vld [vmem:[#allocation22 + $0xa0] sm:$0xff]
      %v1995 = vld [vmem:[#allocation22 + $0xa8] sm:$0xff]
      %v1996 = vld [vmem:[#allocation22 + $0xb0] sm:$0xff]
      %v1997 = vld [vmem:[#allocation22 + $0xb8] sm:$0xff]
      %v1998 = vld [vmem:[#allocation22 + $0xc0] sm:$0xff]
      %v1999 = vld [vmem:[#allocation22 + $0xc8] sm:$0xff]
      %v2000 = vld [vmem:[#allocation22 + $0xd0] sm:$0xff]
      %v2001 = vld [vmem:[#allocation22 + $0xd8] sm:$0xff]
      %v2002 = vld [vmem:[#allocation22 + $0xe0] sm:$0xff]
      %v2003 = vld [vmem:[#allocation22 + $0xe8] sm:$0xff]
      %v2004 = vld [vmem:[#allocation22 + $0xf0] sm:$0xff]
      %v2005 = vld [vmem:[#allocation22 + $0xf8] sm:$0xff]
      %v2006 = vld [vmem:[#allocation22 + $0x100] sm:$0xff]
      %v2007 = vld [vmem:[#allocation22 + $0x108] sm:$0xff]
      %v2008 = vld [vmem:[#allocation22 + $0x110] sm:$0xff]
      %v2009 = vld [vmem:[#allocation22 + $0x118] sm:$0xff]
      %v2010 = vld [vmem:[#allocation22 + $0x120] sm:$0xff]
      %v2011 = vld [vmem:[#allocation22 + $0x128] sm:$0xff]
      %v2012 = vld [vmem:[#allocation22 + $0x130] sm:$0xff]
      %v2013 = vld [vmem:[#allocation22 + $0x138] sm:$0xff]
      %v2014 = vld [vmem:[#allocation22 + $0x140] sm:$0xff]
      %v2015 = vld [vmem:[#allocation22 + $0x148] sm:$0xff]
      %v2016 = vld [vmem:[#allocation22 + $0x150] sm:$0xff]
      %v2017 = vld [vmem:[#allocation22 + $0x158] sm:$0xff]
      %v2018 = vld [vmem:[#allocation22 + $0x160] sm:$0xff]
      %v2019 = vld [vmem:[#allocation22 + $0x168] sm:$0xff]
      %v2020 = vld [vmem:[#allocation22 + $0x170] sm:$0xff]
      %v2021 = vld [vmem:[#allocation22 + $0x178] sm:$0xff]
      %v2022 = vld [vmem:[#allocation22 + $0x180] sm:$0xff]
      %v2023 = vld [vmem:[#allocation22 + $0x188] sm:$0xff]
      %v2024 = vld [vmem:[#allocation22 + $0x190] sm:$0xff]
      %v2025 = vld [vmem:[#allocation22 + $0x198] sm:$0xff]
      %v2026 = vld [vmem:[#allocation22 + $0x1a0] sm:$0xff]
      %v2027 = vld [vmem:[#allocation22 + $0x1a8] sm:$0xff]
      %v2028 = vld [vmem:[#allocation22 + $0x1b0] sm:$0xff]
      %v2029 = vld [vmem:[#allocation22 + $0x1b8] sm:$0xff]
      %v2030 = vld [vmem:[#allocation22 + $0x1c0] sm:$0xff]
      %v2031 = vld [vmem:[#allocation22 + $0x1c8] sm:$0xff]
      %v2032 = vld [vmem:[#allocation22 + $0x1d0] sm:$0xff]
      %v2033 = vld [vmem:[#allocation22 + $0x1d8] sm:$0xff]
      %v2034 = vld [vmem:[#allocation22 + $0x1e0] sm:$0xff]
      %v2035 = vld [vmem:[#allocation22 + $0x1e8] sm:$0xff]
      %v2036 = vld [vmem:[#allocation22 + $0x1f0] sm:$0xff]
      %v2037 = vld [vmem:[#allocation22 + $0x1f8] sm:$0xff]
      %v2102 = vunpack.c.l.b16 %v1974
      %v2103 = vunpack.c.h.b16 %v1974
      %v2104 = vunpack.c.l.b16 %v1975
      %v2105 = vunpack.c.h.b16 %v1975
      %v2106 = vunpack.c.l.b16 %v1976
      %v2107 = vunpack.c.h.b16 %v1976
      %v2108 = vunpack.c.l.b16 %v1977
      %v2109 = vunpack.c.h.b16 %v1977
      %v2110 = vunpack.c.l.b16 %v1978
      %v2111 = vunpack.c.h.b16 %v1978
      %v2112 = vunpack.c.l.b16 %v1979
      %v2113 = vunpack.c.h.b16 %v1979
      %v2114 = vunpack.c.l.b16 %v1980
      %v2115 = vunpack.c.h.b16 %v1980
      %v2116 = vunpack.c.l.b16 %v1981
      %v2117 = vunpack.c.h.b16 %v1981
      %v2118 = vunpack.c.l.b16 %v1982
      %v2119 = vunpack.c.h.b16 %v1982
      %v2120 = vunpack.c.l.b16 %v1983
      %v2121 = vunpack.c.h.b16 %v1983
      %v2122 = vunpack.c.l.b16 %v1984
      %v2123 = vunpack.c.h.b16 %v1984
      %v2124 = vunpack.c.l.b16 %v1985
      %v2125 = vunpack.c.h.b16 %v1985
      %v2126 = vunpack.c.l.b16 %v1986
      %v2127 = vunpack.c.h.b16 %v1986
      %v2128 = vunpack.c.l.b16 %v1987
      %v2129 = vunpack.c.h.b16 %v1987
      %v2130 = vunpack.c.l.b16 %v1988
      %v2131 = vunpack.c.h.b16 %v1988
      %v2132 = vunpack.c.l.b16 %v1989
      %v2133 = vunpack.c.h.b16 %v1989
      %v2134 = vunpack.c.l.b16 %v1990
      %v2135 = vunpack.c.h.b16 %v1990
      %v2136 = vunpack.c.l.b16 %v1991
      %v2137 = vunpack.c.h.b16 %v1991
      %v2138 = vunpack.c.l.b16 %v1992
      %v2139 = vunpack.c.h.b16 %v1992
      %v2140 = vunpack.c.l.b16 %v1993
      %v2141 = vunpack.c.h.b16 %v1993
      %v2142 = vunpack.c.l.b16 %v1994
      %v2143 = vunpack.c.h.b16 %v1994
      %v2144 = vunpack.c.l.b16 %v1995
      %v2145 = vunpack.c.h.b16 %v1995
      %v2146 = vunpack.c.l.b16 %v1996
      %v2147 = vunpack.c.h.b16 %v1996
      %v2148 = vunpack.c.l.b16 %v1997
      %v2149 = vunpack.c.h.b16 %v1997
      %v2150 = vunpack.c.l.b16 %v1998
      %v2151 = vunpack.c.h.b16 %v1998
      %v2152 = vunpack.c.l.b16 %v1999
      %v2153 = vunpack.c.h.b16 %v1999
      %v2154 = vunpack.c.l.b16 %v2000
      %v2155 = vunpack.c.h.b16 %v2000
      %v2156 = vunpack.c.l.b16 %v2001
      %v2157 = vunpack.c.h.b16 %v2001
      %v2158 = vunpack.c.l.b16 %v2002
      %v2159 = vunpack.c.h.b16 %v2002
      %v2160 = vunpack.c.l.b16 %v2003
      %v2161 = vunpack.c.h.b16 %v2003
      %v2162 = vunpack.c.l.b16 %v2004
      %v2163 = vunpack.c.h.b16 %v2004
      %v2164 = vunpack.c.l.b16 %v2005
      %v2165 = vunpack.c.h.b16 %v2005
      %v2166 = vunpack.c.l.b16 %v2006
      %v2167 = vunpack.c.h.b16 %v2006
      %v2168 = vunpack.c.l.b16 %v2007
      %v2169 = vunpack.c.h.b16 %v2007
      %v2170 = vunpack.c.l.b16 %v2008
      %v2171 = vunpack.c.h.b16 %v2008
      %v2172 = vunpack.c.l.b16 %v2009
      %v2173 = vunpack.c.h.b16 %v2009
      %v2174 = vunpack.c.l.b16 %v2010
      %v2175 = vunpack.c.h.b16 %v2010
      %v2176 = vunpack.c.l.b16 %v2011
      %v2177 = vunpack.c.h.b16 %v2011
      %v2178 = vunpack.c.l.b16 %v2012
      %v2179 = vunpack.c.h.b16 %v2012
      %v2180 = vunpack.c.l.b16 %v2013
      %v2181 = vunpack.c.h.b16 %v2013
      %v2182 = vunpack.c.l.b16 %v2014
      %v2183 = vunpack.c.h.b16 %v2014
      %v2184 = vunpack.c.l.b16 %v2015
      %v2185 = vunpack.c.h.b16 %v2015
      %v2186 = vunpack.c.l.b16 %v2016
      %v2187 = vunpack.c.h.b16 %v2016
      %v2188 = vunpack.c.l.b16 %v2017
      %v2189 = vunpack.c.h.b16 %v2017
      %v2190 = vunpack.c.l.b16 %v2018
      %v2191 = vunpack.c.h.b16 %v2018
      %v2192 = vunpack.c.l.b16 %v2019
      %v2193 = vunpack.c.h.b16 %v2019
      %v2194 = vunpack.c.l.b16 %v2020
      %v2195 = vunpack.c.h.b16 %v2020
      %v2196 = vunpack.c.l.b16 %v2021
      %v2197 = vunpack.c.h.b16 %v2021
      %v2198 = vunpack.c.l.b16 %v2022
      %v2199 = vunpack.c.h.b16 %v2022
      %v2200 = vunpack.c.l.b16 %v2023
      %v2201 = vunpack.c.h.b16 %v2023
      %v2202 = vunpack.c.l.b16 %v2024
      %v2203 = vunpack.c.h.b16 %v2024
      %v2204 = vunpack.c.l.b16 %v2025
      %v2205 = vunpack.c.h.b16 %v2025
      %v2206 = vunpack.c.l.b16 %v2026
      %v2207 = vunpack.c.h.b16 %v2026
      %v2208 = vunpack.c.l.b16 %v2027
      %v2209 = vunpack.c.h.b16 %v2027
      %v2210 = vunpack.c.l.b16 %v2028
      %v2211 = vunpack.c.h.b16 %v2028
      %v2212 = vunpack.c.l.b16 %v2029
      %v2213 = vunpack.c.h.b16 %v2029
      %v2214 = vunpack.c.l.b16 %v2030
      %v2215 = vunpack.c.h.b16 %v2030
      %v2216 = vunpack.c.l.b16 %v2031
      %v2217 = vunpack.c.h.b16 %v2031
      %v2218 = vunpack.c.l.b16 %v2032
      %v2219 = vunpack.c.h.b16 %v2032
      %v2220 = vunpack.c.l.b16 %v2033
      %v2221 = vunpack.c.h.b16 %v2033
      %v2222 = vunpack.c.l.b16 %v2034
      %v2223 = vunpack.c.h.b16 %v2034
      %v2224 = vunpack.c.l.b16 %v2035
      %v2225 = vunpack.c.h.b16 %v2035
      %v2226 = vunpack.c.l.b16 %v2036
      %v2227 = vunpack.c.h.b16 %v2036
      %v2228 = vunpack.c.l.b16 %v2037
      %v2229 = vunpack.c.h.b16 %v2037
      %v2230 = vpack.c.b16 %v2106, %v2102
      %v2231 = vpack.c.b16 %v2107, %v2103
      %v2232 = vpack.c.b16 %v2108, %v2104
      %v2233 = vpack.c.b16 %v2109, %v2105
      %v2234 = vpack.c.b16 %v2114, %v2110
      %v2235 = vpack.c.b16 %v2115, %v2111
      %v2236 = vpack.c.b16 %v2116, %v2112
      %v2237 = vpack.c.b16 %v2117, %v2113
      %v2238 = vpack.c.b16 %v2122, %v2118
      %v2239 = vpack.c.b16 %v2123, %v2119
      %v2240 = vpack.c.b16 %v2124, %v2120
      %v2241 = vpack.c.b16 %v2125, %v2121
      %v2242 = vpack.c.b16 %v2130, %v2126
      %v2243 = vpack.c.b16 %v2131, %v2127
      %v2244 = vpack.c.b16 %v2132, %v2128
      %v2245 = vpack.c.b16 %v2133, %v2129
      %v2246 = vpack.c.b16 %v2138, %v2134
      %v2247 = vpack.c.b16 %v2139, %v2135
      %v2248 = vpack.c.b16 %v2140, %v2136
      %v2249 = vpack.c.b16 %v2141, %v2137
      %v2250 = vpack.c.b16 %v2146, %v2142
      %v2251 = vpack.c.b16 %v2147, %v2143
      %v2252 = vpack.c.b16 %v2148, %v2144
      %v2253 = vpack.c.b16 %v2149, %v2145
      %v2254 = vpack.c.b16 %v2154, %v2150
      %v2255 = vpack.c.b16 %v2155, %v2151
      %v2256 = vpack.c.b16 %v2156, %v2152
      %v2257 = vpack.c.b16 %v2157, %v2153
      %v2258 = vpack.c.b16 %v2162, %v2158
      %v2259 = vpack.c.b16 %v2163, %v2159
      %v2260 = vpack.c.b16 %v2164, %v2160
      %v2261 = vpack.c.b16 %v2165, %v2161
      %v2262 = vpack.c.b16 %v2170, %v2166
      %v2263 = vpack.c.b16 %v2171, %v2167
      %v2264 = vpack.c.b16 %v2172, %v2168
      %v2265 = vpack.c.b16 %v2173, %v2169
      %v2266 = vpack.c.b16 %v2178, %v2174
      %v2267 = vpack.c.b16 %v2179, %v2175
      %v2268 = vpack.c.b16 %v2180, %v2176
      %v2269 = vpack.c.b16 %v2181, %v2177
      %v2270 = vpack.c.b16 %v2186, %v2182
      %v2271 = vpack.c.b16 %v2187, %v2183
      %v2272 = vpack.c.b16 %v2188, %v2184
      %v2273 = vpack.c.b16 %v2189, %v2185
      %v2274 = vpack.c.b16 %v2194, %v2190
      %v2275 = vpack.c.b16 %v2195, %v2191
      %v2276 = vpack.c.b16 %v2196, %v2192
      %v2277 = vpack.c.b16 %v2197, %v2193
      %v2278 = vpack.c.b16 %v2202, %v2198
      %v2279 = vpack.c.b16 %v2203, %v2199
      %v2280 = vpack.c.b16 %v2204, %v2200
      %v2281 = vpack.c.b16 %v2205, %v2201
      %v2282 = vpack.c.b16 %v2210, %v2206
      %v2283 = vpack.c.b16 %v2211, %v2207
      %v2284 = vpack.c.b16 %v2212, %v2208
      %v2285 = vpack.c.b16 %v2213, %v2209
      %v2286 = vpack.c.b16 %v2218, %v2214
      %v2287 = vpack.c.b16 %v2219, %v2215
      %v2288 = vpack.c.b16 %v2220, %v2216
      %v2289 = vpack.c.b16 %v2221, %v2217
      %v2290 = vpack.c.b16 %v2226, %v2222
      %v2291 = vpack.c.b16 %v2227, %v2223
      %v2292 = vpack.c.b16 %v2228, %v2224
      %v2293 = vpack.c.b16 %v2229, %v2225
      %v2359 = vperm.slane %v1969, 0
      %v2360 = vperm.slane %v1969, 1
      %v2361 = vperm.slane %v1969, 2
      %v2362 = vperm.slane %v1969, 3
      %2367 = vmatpush.bf16.msra.mxu0 %v2258
      %2368 = vmatpush.bf16.msra.mxu0 %v2254
      %2369 = vmatpush.bf16.msra.mxu0 %v2250
      %2370 = vmatpush.bf16.msra.mxu0 %v2246
      %2371 = vmatpush.bf16.msra.mxu0 %v2242
      %2372 = vmatpush.bf16.msra.mxu0 %v2238
      %2373 = vmatpush.bf16.msra.mxu0 %v2234
      %2374 = vmatpush.bf16.msra.mxu0 %v2230
      %2375 = vmatmul.bf16.gmra.mxu0 %v1972
      %v2376 = vpop.f32.mrf.mxu0
      %v2377 = vadd.f32 %v2359, %v2376
      %v2378 = vpop.f32.mrf.mxu0
      %2379 = vdwg.mxu0
      %2380 = vmatpush.bf16.msra.mxu0 %v2290
      %2381 = vmatpush.bf16.msra.mxu0 %v2286
      %2382 = vmatpush.bf16.msra.mxu0 %v2282
      %2383 = vmatpush.bf16.msra.mxu0 %v2278
      %2384 = vmatpush.bf16.msra.mxu0 %v2274
      %2385 = vmatpush.bf16.msra.mxu0 %v2270
      %2386 = vmatpush.bf16.msra.mxu0 %v2266
      %2387 = vmatpush.bf16.msra.mxu0 %v2262
      %2388 = vmatmul.bf16.gmra.mxu0 %v1973
      %v2389 = vpop.f32.mrf.mxu0
      %v2390 = vadd.f32 %v2377, %v2389
      %v2391 = vpop.f32.mrf.mxu0
      %2392 = vdwg.mxu0
      %2393 = vmatpush.bf16.msra.mxu0 %v2259
      %2394 = vmatpush.bf16.msra.mxu0 %v2255
      %2395 = vmatpush.bf16.msra.mxu0 %v2251
      %2396 = vmatpush.bf16.msra.mxu0 %v2247
      %2397 = vmatpush.bf16.msra.mxu0 %v2243
      %2398 = vmatpush.bf16.msra.mxu0 %v2239
      %2399 = vmatpush.bf16.msra.mxu0 %v2235
      %2400 = vmatpush.bf16.msra.mxu0 %v2231
      %2401 = vmatmul.bf16.gmra.mxu0 %v1972
      %v2402 = vpop.f32.mrf.mxu0
      %v2403 = vadd.f32 %v2360, %v2402
      %v2404 = vpop.f32.mrf.mxu0
      %2405 = vdwg.mxu0
      %2406 = vmatpush.bf16.msra.mxu0 %v2291
      %2407 = vmatpush.bf16.msra.mxu0 %v2287
      %2408 = vmatpush.bf16.msra.mxu0 %v2283
      %2409 = vmatpush.bf16.msra.mxu0 %v2279
      %2410 = vmatpush.bf16.msra.mxu0 %v2275
      %2411 = vmatpush.bf16.msra.mxu0 %v2271
      %2412 = vmatpush.bf16.msra.mxu0 %v2267
      %2413 = vmatpush.bf16.msra.mxu0 %v2263
      %2414 = vmatmul.bf16.gmra.mxu0 %v1973
      %v2415 = vpop.f32.mrf.mxu0
      %v2416 = vadd.f32 %v2403, %v2415
      %v2417 = vpop.f32.mrf.mxu0
      %2418 = vdwg.mxu0
      %2419 = vmatpush.bf16.msra.mxu0 %v2260
      %2420 = vmatpush.bf16.msra.mxu0 %v2256
      %2421 = vmatpush.bf16.msra.mxu0 %v2252
      %2422 = vmatpush.bf16.msra.mxu0 %v2248
      %2423 = vmatpush.bf16.msra.mxu0 %v2244
      %2424 = vmatpush.bf16.msra.mxu0 %v2240
      %2425 = vmatpush.bf16.msra.mxu0 %v2236
      %2426 = vmatpush.bf16.msra.mxu0 %v2232
      %2427 = vmatmul.bf16.gmra.mxu0 %v1972
      %v2428 = vpop.f32.mrf.mxu0
      %v2429 = vadd.f32 %v2361, %v2428
      %v2430 = vpop.f32.mrf.mxu0
      %2431 = vdwg.mxu0
      %2432 = vmatpush.bf16.msra.mxu0 %v2292
      %2433 = vmatpush.bf16.msra.mxu0 %v2288
      %2434 = vmatpush.bf16.msra.mxu0 %v2284
      %2435 = vmatpush.bf16.msra.mxu0 %v2280
      %2436 = vmatpush.bf16.msra.mxu0 %v2276
      %2437 = vmatpush.bf16.msra.mxu0 %v2272
      %2438 = vmatpush.bf16.msra.mxu0 %v2268
      %2439 = vmatpush.bf16.msra.mxu0 %v2264
      %2440 = vmatmul.bf16.gmra.mxu0 %v1973
      %v2441 = vpop.f32.mrf.mxu0
      %v2442 = vadd.f32 %v2429, %v2441
      %v2443 = vpop.f32.mrf.mxu0
      %2444 = vdwg.mxu0
      %2445 = vmatpush.bf16.msra.mxu0 %v2261
      %2446 = vmatpush.bf16.msra.mxu0 %v2257
      %2447 = vmatpush.bf16.msra.mxu0 %v2253
      %2448 = vmatpush.bf16.msra.mxu0 %v2249
      %2449 = vmatpush.bf16.msra.mxu0 %v2245
      %2450 = vmatpush.bf16.msra.mxu0 %v2241
      %2451 = vmatpush.bf16.msra.mxu0 %v2237
      %2452 = vmatpush.bf16.msra.mxu0 %v2233
      %2453 = vmatmul.bf16.gmra.mxu0 %v1972
      %v2454 = vpop.f32.mrf.mxu0
      %v2455 = vadd.f32 %v2362, %v2454
      %v2456 = vpop.f32.mrf.mxu0
      %2457 = vdwg.mxu0
      %2458 = vmatpush.bf16.msra.mxu0 %v2293
      %2459 = vmatpush.bf16.msra.mxu0 %v2289
      %2460 = vmatpush.bf16.msra.mxu0 %v2285
      %2461 = vmatpush.bf16.msra.mxu0 %v2281
      %2462 = vmatpush.bf16.msra.mxu0 %v2277
      %2463 = vmatpush.bf16.msra.mxu0 %v2273
      %2464 = vmatpush.bf16.msra.mxu0 %v2269
      %2465 = vmatpush.bf16.msra.mxu0 %v2265
      %2466 = vmatmul.bf16.gmra.mxu0 %v1973
      %v2467 = vpop.f32.mrf.mxu0
      %v2468 = vadd.f32 %v2455, %v2467
      %v2469 = vpop.f32.mrf.mxu0
      %2470 = vdwg.mxu0
      %v2471 = vxor.u32 %v2390, 2147483648
      %v2472 = vmul.f32 %v2471, 1.442695
      %v2473 = vpow.pop %v2472
      %v2474 = vadd.f32 %v2473, 1.0
      %v2475 = vrcp.pop %v2474
      %v2476 = vmul.f32 %v2474, %v2475
      %v2477 = vsub.f32 1.0, %v2476
      %v2478 = vmul.f32 %v2475, %v2477
      %v2479 = vadd.f32 %v2475, %v2478
      %vm2480 = vweird.f32 %v2474
      %vm2481 = vweird.f32 %v2475
      %vm2482 = vmor %vm2480, %vm2481
      %v2483 = vsel %vm2482, %v2475, %v2479
      %v2484 = vand.u32 2147483647, %v2474
      %vm2485 = vcmp.eq.f32.partialorder %v2484, 8.507059e+37
      %v2486 = vand.u32 %v2474, 2147483648
      %v2487 = vor.u32 1.1754944e-38, %v2486
      %v2488 = vsel %vm2485, %v2487, %v2483
      %v2489 = vmul.f32 1.0, %v2488
      %v2490 = vxor.u32 %v2416, 2147483648
      %v2491 = vmul.f32 %v2490, 1.442695
      %v2492 = vpow.pop %v2491
      %v2493 = vadd.f32 %v2492, 1.0
      %v2494 = vrcp.pop %v2493
      %v2495 = vmul.f32 %v2493, %v2494
      %v2496 = vsub.f32 1.0, %v2495
      %v2497 = vmul.f32 %v2494, %v2496
      %v2498 = vadd.f32 %v2494, %v2497
      %vm2499 = vweird.f32 %v2493
      %vm2500 = vweird.f32 %v2494
      %vm2501 = vmor %vm2499, %vm2500
      %v2502 = vsel %vm2501, %v2494, %v2498
      %v2503 = vand.u32 2147483647, %v2493
      %vm2504 = vcmp.eq.f32.partialorder %v2503, 8.507059e+37
      %v2505 = vand.u32 %v2493, 2147483648
      %v2506 = vor.u32 1.1754944e-38, %v2505
      %v2507 = vsel %vm2504, %v2506, %v2502
      %v2508 = vmul.f32 1.0, %v2507
      %v2509 = vtanh.pop %v2442
      %v2510 = vxor.u32 %v2468, 2147483648
      %v2511 = vmul.f32 %v2510, 1.442695
      %v2512 = vpow.pop %v2511
      %v2513 = vadd.f32 %v2512, 1.0
      %v2514 = vrcp.pop %v2513
      %v2515 = vmul.f32 %v2513, %v2514
      %v2516 = vsub.f32 1.0, %v2515
      %v2517 = vmul.f32 %v2514, %v2516
      %v2518 = vadd.f32 %v2514, %v2517
      %vm2519 = vweird.f32 %v2513
      %vm2520 = vweird.f32 %v2514
      %vm2521 = vmor %vm2519, %vm2520
      %v2522 = vsel %vm2521, %v2514, %v2518
      %v2523 = vand.u32 2147483647, %v2513
      %vm2524 = vcmp.eq.f32.partialorder %v2523, 8.507059e+37
      %v2525 = vand.u32 %v2513, 2147483648
      %v2526 = vor.u32 1.1754944e-38, %v2525
      %v2527 = vsel %vm2524, %v2526, %v2522
      %v2528 = vmul.f32 1.0, %v2527
      %v2529 = vmul.f32 %v2508, 0.0
      %v2530 = vmul.f32 %v2489, %v2509
      %v2531 = vadd.f32 %v2529, %v2530
      %v2532 = vtanh.pop %v2531
      %v2533 = vmul.f32 %v2528, %v2532
      %v2534 = vpack.c.bf16 %v2533, %v2533
      %v2535 = vld [vmem:[#allocation24] sm:$0xff]
      %v2536 = vld [vmem:[#allocation24 + $0x8] sm:$0xff]
      %v2537 = vld [vmem:[#allocation24 + $0x10] sm:$0xff]
      %v2538 = vld [vmem:[#allocation24 + $0x18] sm:$0xff]
      %v2539 = vld [vmem:[#allocation24 + $0x20] sm:$0xff]
      %v2540 = vld [vmem:[#allocation24 + $0x28] sm:$0xff]
      %v2541 = vld [vmem:[#allocation24 + $0x30] sm:$0xff]
      %v2542 = vld [vmem:[#allocation24 + $0x38] sm:$0xff]
      %v2543 = vld [vmem:[#allocation24 + $0x40] sm:$0xff]
      %v2544 = vld [vmem:[#allocation24 + $0x48] sm:$0xff]
      %v2545 = vld [vmem:[#allocation24 + $0x50] sm:$0xff]
      %v2546 = vld [vmem:[#allocation24 + $0x58] sm:$0xff]
      %v2547 = vld [vmem:[#allocation24 + $0x60] sm:$0xff]
      %v2548 = vld [vmem:[#allocation24 + $0x68] sm:$0xff]
      %v2549 = vld [vmem:[#allocation24 + $0x70] sm:$0xff]
      %v2550 = vld [vmem:[#allocation24 + $0x78] sm:$0xff]
      %v2551 = vld [vmem:[#allocation24 + $0x80] sm:$0xff]
      %v2552 = vld [vmem:[#allocation24 + $0x88] sm:$0xff]
      %v2553 = vld [vmem:[#allocation24 + $0x90] sm:$0xff]
      %v2554 = vld [vmem:[#allocation24 + $0x98] sm:$0xff]
      %v2555 = vld [vmem:[#allocation24 + $0xa0] sm:$0xff]
      %v2556 = vld [vmem:[#allocation24 + $0xa8] sm:$0xff]
      %v2557 = vld [vmem:[#allocation24 + $0xb0] sm:$0xff]
      %v2558 = vld [vmem:[#allocation24 + $0xb8] sm:$0xff]
      %v2559 = vld [vmem:[#allocation24 + $0xc0] sm:$0xff]
      %v2560 = vld [vmem:[#allocation24 + $0xc8] sm:$0xff]
      %v2561 = vld [vmem:[#allocation24 + $0xd0] sm:$0xff]
      %v2562 = vld [vmem:[#allocation24 + $0xd8] sm:$0xff]
      %v2563 = vld [vmem:[#allocation24 + $0xe0] sm:$0xff]
      %v2564 = vld [vmem:[#allocation24 + $0xe8] sm:$0xff]
      %v2565 = vld [vmem:[#allocation24 + $0xf0] sm:$0xff]
      %v2566 = vld [vmem:[#allocation24 + $0xf8] sm:$0xff]
      %v2567 = vld [vmem:[#allocation24 + $0x100] sm:$0xff]
      %v2568 = vld [vmem:[#allocation24 + $0x108] sm:$0xff]
      %v2569 = vld [vmem:[#allocation24 + $0x110] sm:$0xff]
      %v2570 = vld [vmem:[#allocation24 + $0x118] sm:$0xff]
      %v2571 = vld [vmem:[#allocation24 + $0x120] sm:$0xff]
      %v2572 = vld [vmem:[#allocation24 + $0x128] sm:$0xff]
      %v2573 = vld [vmem:[#allocation24 + $0x130] sm:$0xff]
      %v2574 = vld [vmem:[#allocation24 + $0x138] sm:$0xff]
      %v2575 = vld [vmem:[#allocation24 + $0x140] sm:$0xff]
      %v2576 = vld [vmem:[#allocation24 + $0x148] sm:$0xff]
      %v2577 = vld [vmem:[#allocation24 + $0x150] sm:$0xff]
      %v2578 = vld [vmem:[#allocation24 + $0x158] sm:$0xff]
      %v2579 = vld [vmem:[#allocation24 + $0x160] sm:$0xff]
      %v2580 = vld [vmem:[#allocation24 + $0x168] sm:$0xff]
      %v2581 = vld [vmem:[#allocation24 + $0x170] sm:$0xff]
      %v2582 = vld [vmem:[#allocation24 + $0x178] sm:$0xff]
      %v2583 = vld [vmem:[#allocation24 + $0x180] sm:$0xff]
      %v2584 = vld [vmem:[#allocation24 + $0x188] sm:$0xff]
      %v2585 = vld [vmem:[#allocation24 + $0x190] sm:$0xff]
      %v2586 = vld [vmem:[#allocation24 + $0x198] sm:$0xff]
      %v2587 = vld [vmem:[#allocation24 + $0x1a0] sm:$0xff]
      %v2588 = vld [vmem:[#allocation24 + $0x1a8] sm:$0xff]
      %v2589 = vld [vmem:[#allocation24 + $0x1b0] sm:$0xff]
      %v2590 = vld [vmem:[#allocation24 + $0x1b8] sm:$0xff]
      %v2591 = vld [vmem:[#allocation24 + $0x1c0] sm:$0xff]
      %v2592 = vld [vmem:[#allocation24 + $0x1c8] sm:$0xff]
      %v2593 = vld [vmem:[#allocation24 + $0x1d0] sm:$0xff]
      %v2594 = vld [vmem:[#allocation24 + $0x1d8] sm:$0xff]
      %v2595 = vld [vmem:[#allocation24 + $0x1e0] sm:$0xff]
      %v2596 = vld [vmem:[#allocation24 + $0x1e8] sm:$0xff]
      %v2597 = vld [vmem:[#allocation24 + $0x1f0] sm:$0xff]
      %v2598 = vld [vmem:[#allocation24 + $0x1f8] sm:$0xff]
      %v2599 = vld [vmem:[%s15] sm:$0xf]
      %v2664 = vunpack.c.l.b16 %v2535
      %v2665 = vunpack.c.h.b16 %v2535
      %v2666 = vunpack.c.l.b16 %v2536
      %v2667 = vunpack.c.h.b16 %v2536
      %v2668 = vunpack.c.l.b16 %v2537
      %v2669 = vunpack.c.h.b16 %v2537
      %v2670 = vunpack.c.l.b16 %v2538
      %v2671 = vunpack.c.h.b16 %v2538
      %v2672 = vunpack.c.l.b16 %v2539
      %v2673 = vunpack.c.h.b16 %v2539
      %v2674 = vunpack.c.l.b16 %v2540
      %v2675 = vunpack.c.h.b16 %v2540
      %v2676 = vunpack.c.l.b16 %v2541
      %v2677 = vunpack.c.h.b16 %v2541
      %v2678 = vunpack.c.l.b16 %v2542
      %v2679 = vunpack.c.h.b16 %v2542
      %v2680 = vunpack.c.l.b16 %v2543
      %v2681 = vunpack.c.h.b16 %v2543
      %v2682 = vunpack.c.l.b16 %v2544
      %v2683 = vunpack.c.h.b16 %v2544
      %v2684 = vunpack.c.l.b16 %v2545
      %v2685 = vunpack.c.h.b16 %v2545
      %v2686 = vunpack.c.l.b16 %v2546
      %v2687 = vunpack.c.h.b16 %v2546
      %v2688 = vunpack.c.l.b16 %v2547
      %v2689 = vunpack.c.h.b16 %v2547
      %v2690 = vunpack.c.l.b16 %v2548
      %v2691 = vunpack.c.h.b16 %v2548
      %v2692 = vunpack.c.l.b16 %v2549
      %v2693 = vunpack.c.h.b16 %v2549
      %v2694 = vunpack.c.l.b16 %v2550
      %v2695 = vunpack.c.h.b16 %v2550
      %v2696 = vunpack.c.l.b16 %v2551
      %v2697 = vunpack.c.h.b16 %v2551
      %v2698 = vunpack.c.l.b16 %v2552
      %v2699 = vunpack.c.h.b16 %v2552
      %v2700 = vunpack.c.l.b16 %v2553
      %v2701 = vunpack.c.h.b16 %v2553
      %v2702 = vunpack.c.l.b16 %v2554
      %v2703 = vunpack.c.h.b16 %v2554
      %v2704 = vunpack.c.l.b16 %v2555
      %v2705 = vunpack.c.h.b16 %v2555
      %v2706 = vunpack.c.l.b16 %v2556
      %v2707 = vunpack.c.h.b16 %v2556
      %v2708 = vunpack.c.l.b16 %v2557
      %v2709 = vunpack.c.h.b16 %v2557
      %v2710 = vunpack.c.l.b16 %v2558
      %v2711 = vunpack.c.h.b16 %v2558
      %v2712 = vunpack.c.l.b16 %v2559
      %v2713 = vunpack.c.h.b16 %v2559
      %v2714 = vunpack.c.l.b16 %v2560
      %v2715 = vunpack.c.h.b16 %v2560
      %v2716 = vunpack.c.l.b16 %v2561
      %v2717 = vunpack.c.h.b16 %v2561
      %v2718 = vunpack.c.l.b16 %v2562
      %v2719 = vunpack.c.h.b16 %v2562
      %v2720 = vunpack.c.l.b16 %v2563
      %v2721 = vunpack.c.h.b16 %v2563
      %v2722 = vunpack.c.l.b16 %v2564
      %v2723 = vunpack.c.h.b16 %v2564
      %v2724 = vunpack.c.l.b16 %v2565
      %v2725 = vunpack.c.h.b16 %v2565
      %v2726 = vunpack.c.l.b16 %v2566
      %v2727 = vunpack.c.h.b16 %v2566
      %v2728 = vunpack.c.l.b16 %v2567
      %v2729 = vunpack.c.h.b16 %v2567
      %v2730 = vunpack.c.l.b16 %v2568
      %v2731 = vunpack.c.h.b16 %v2568
      %v2732 = vunpack.c.l.b16 %v2569
      %v2733 = vunpack.c.h.b16 %v2569
      %v2734 = vunpack.c.l.b16 %v2570
      %v2735 = vunpack.c.h.b16 %v2570
      %v2736 = vunpack.c.l.b16 %v2571
      %v2737 = vunpack.c.h.b16 %v2571
      %v2738 = vunpack.c.l.b16 %v2572
      %v2739 = vunpack.c.h.b16 %v2572
      %v2740 = vunpack.c.l.b16 %v2573
      %v2741 = vunpack.c.h.b16 %v2573
      %v2742 = vunpack.c.l.b16 %v2574
      %v2743 = vunpack.c.h.b16 %v2574
      %v2744 = vunpack.c.l.b16 %v2575
      %v2745 = vunpack.c.h.b16 %v2575
      %v2746 = vunpack.c.l.b16 %v2576
      %v2747 = vunpack.c.h.b16 %v2576
      %v2748 = vunpack.c.l.b16 %v2577
      %v2749 = vunpack.c.h.b16 %v2577
      %v2750 = vunpack.c.l.b16 %v2578
      %v2751 = vunpack.c.h.b16 %v2578
      %v2752 = vunpack.c.l.b16 %v2579
      %v2753 = vunpack.c.h.b16 %v2579
      %v2754 = vunpack.c.l.b16 %v2580
      %v2755 = vunpack.c.h.b16 %v2580
      %v2756 = vunpack.c.l.b16 %v2581
      %v2757 = vunpack.c.h.b16 %v2581
      %v2758 = vunpack.c.l.b16 %v2582
      %v2759 = vunpack.c.h.b16 %v2582
      %v2760 = vunpack.c.l.b16 %v2583
      %v2761 = vunpack.c.h.b16 %v2583
      %v2762 = vunpack.c.l.b16 %v2584
      %v2763 = vunpack.c.h.b16 %v2584
      %v2764 = vunpack.c.l.b16 %v2585
      %v2765 = vunpack.c.h.b16 %v2585
      %v2766 = vunpack.c.l.b16 %v2586
      %v2767 = vunpack.c.h.b16 %v2586
      %v2768 = vunpack.c.l.b16 %v2587
      %v2769 = vunpack.c.h.b16 %v2587
      %v2770 = vunpack.c.l.b16 %v2588
      %v2771 = vunpack.c.h.b16 %v2588
      %v2772 = vunpack.c.l.b16 %v2589
      %v2773 = vunpack.c.h.b16 %v2589
      %v2774 = vunpack.c.l.b16 %v2590
      %v2775 = vunpack.c.h.b16 %v2590
      %v2776 = vunpack.c.l.b16 %v2591
      %v2777 = vunpack.c.h.b16 %v2591
      %v2778 = vunpack.c.l.b16 %v2592
      %v2779 = vunpack.c.h.b16 %v2592
      %v2780 = vunpack.c.l.b16 %v2593
      %v2781 = vunpack.c.h.b16 %v2593
      %v2782 = vunpack.c.l.b16 %v2594
      %v2783 = vunpack.c.h.b16 %v2594
      %v2784 = vunpack.c.l.b16 %v2595
      %v2785 = vunpack.c.h.b16 %v2595
      %v2786 = vunpack.c.l.b16 %v2596
      %v2787 = vunpack.c.h.b16 %v2596
      %v2788 = vunpack.c.l.b16 %v2597
      %v2789 = vunpack.c.h.b16 %v2597
      %v2790 = vunpack.c.l.b16 %v2598
      %v2791 = vunpack.c.h.b16 %v2598
      %v2792 = vpack.c.b16 %v2668, %v2664
      %v2793 = vpack.c.b16 %v2669, %v2665
      %v2794 = vpack.c.b16 %v2670, %v2666
      %v2795 = vpack.c.b16 %v2671, %v2667
      %v2796 = vpack.c.b16 %v2676, %v2672
      %v2797 = vpack.c.b16 %v2677, %v2673
      %v2798 = vpack.c.b16 %v2678, %v2674
      %v2799 = vpack.c.b16 %v2679, %v2675
      %v2800 = vpack.c.b16 %v2684, %v2680
      %v2801 = vpack.c.b16 %v2685, %v2681
      %v2802 = vpack.c.b16 %v2686, %v2682
      %v2803 = vpack.c.b16 %v2687, %v2683
      %v2804 = vpack.c.b16 %v2692, %v2688
      %v2805 = vpack.c.b16 %v2693, %v2689
      %v2806 = vpack.c.b16 %v2694, %v2690
      %v2807 = vpack.c.b16 %v2695, %v2691
      %v2808 = vpack.c.b16 %v2700, %v2696
      %v2809 = vpack.c.b16 %v2701, %v2697
      %v2810 = vpack.c.b16 %v2702, %v2698
      %v2811 = vpack.c.b16 %v2703, %v2699
      %v2812 = vpack.c.b16 %v2708, %v2704
      %v2813 = vpack.c.b16 %v2709, %v2705
      %v2814 = vpack.c.b16 %v2710, %v2706
      %v2815 = vpack.c.b16 %v2711, %v2707
      %v2816 = vpack.c.b16 %v2716, %v2712
      %v2817 = vpack.c.b16 %v2717, %v2713
      %v2818 = vpack.c.b16 %v2718, %v2714
      %v2819 = vpack.c.b16 %v2719, %v2715
      %v2820 = vpack.c.b16 %v2724, %v2720
      %v2821 = vpack.c.b16 %v2725, %v2721
      %v2822 = vpack.c.b16 %v2726, %v2722
      %v2823 = vpack.c.b16 %v2727, %v2723
      %v2824 = vpack.c.b16 %v2732, %v2728
      %v2825 = vpack.c.b16 %v2733, %v2729
      %v2826 = vpack.c.b16 %v2734, %v2730
      %v2827 = vpack.c.b16 %v2735, %v2731
      %v2828 = vpack.c.b16 %v2740, %v2736
      %v2829 = vpack.c.b16 %v2741, %v2737
      %v2830 = vpack.c.b16 %v2742, %v2738
      %v2831 = vpack.c.b16 %v2743, %v2739
      %v2832 = vpack.c.b16 %v2748, %v2744
      %v2833 = vpack.c.b16 %v2749, %v2745
      %v2834 = vpack.c.b16 %v2750, %v2746
      %v2835 = vpack.c.b16 %v2751, %v2747
      %v2836 = vpack.c.b16 %v2756, %v2752
      %v2837 = vpack.c.b16 %v2757, %v2753
      %v2838 = vpack.c.b16 %v2758, %v2754
      %v2839 = vpack.c.b16 %v2759, %v2755
      %v2840 = vpack.c.b16 %v2764, %v2760
      %v2841 = vpack.c.b16 %v2765, %v2761
      %v2842 = vpack.c.b16 %v2766, %v2762
      %v2843 = vpack.c.b16 %v2767, %v2763
      %v2844 = vpack.c.b16 %v2772, %v2768
      %v2845 = vpack.c.b16 %v2773, %v2769
      %v2846 = vpack.c.b16 %v2774, %v2770
      %v2847 = vpack.c.b16 %v2775, %v2771
      %v2848 = vpack.c.b16 %v2780, %v2776
      %v2849 = vpack.c.b16 %v2781, %v2777
      %v2850 = vpack.c.b16 %v2782, %v2778
      %v2851 = vpack.c.b16 %v2783, %v2779
      %v2852 = vpack.c.b16 %v2788, %v2784
      %v2853 = vpack.c.b16 %v2789, %v2785
      %v2854 = vpack.c.b16 %v2790, %v2786
      %v2855 = vpack.c.b16 %v2791, %v2787
      %v2921 = vperm.slane %v2599, 0
      %v2922 = vperm.slane %v2599, 1
      %v2923 = vperm.slane %v2599, 2
      %v2924 = vperm.slane %v2599, 3
      %2929 = vmatpush.bf16.msra.mxu0 %v2820
      %2930 = vmatpush.bf16.msra.mxu0 %v2816
      %2931 = vmatpush.bf16.msra.mxu0 %v2812
      %2932 = vmatpush.bf16.msra.mxu0 %v2808
      %2933 = vmatpush.bf16.msra.mxu0 %v2804
      %2934 = vmatpush.bf16.msra.mxu0 %v2800
      %2935 = vmatpush.bf16.msra.mxu0 %v2796
      %2936 = vmatpush.bf16.msra.mxu0 %v2792
      %2937 = vmatmul.bf16.gmra.mxu0 %v2534
      %v2938 = vpop.f32.mrf.mxu0
      %v2939 = vadd.f32 %v2921, %v2938
      %v2940 = vpop.f32.mrf.mxu0
      %2941 = vdwg.mxu0
      %2942 = vmatpush.bf16.msra.mxu0 %v2852
      %2943 = vmatpush.bf16.msra.mxu0 %v2848
      %2944 = vmatpush.bf16.msra.mxu0 %v2844
      %2945 = vmatpush.bf16.msra.mxu0 %v2840
      %2946 = vmatpush.bf16.msra.mxu0 %v2836
      %2947 = vmatpush.bf16.msra.mxu0 %v2832
      %2948 = vmatpush.bf16.msra.mxu0 %v2828
      %2949 = vmatpush.bf16.msra.mxu0 %v2824
      %2950 = vmatmul.bf16.gmra.mxu0 %v668
      %v2951 = vpop.f32.mrf.mxu0
      %v2952 = vadd.f32 %v2939, %v2951
      %v2953 = vpop.f32.mrf.mxu0
      %2954 = vdwg.mxu0
      %2955 = vmatpush.bf16.msra.mxu0 %v2821
      %2956 = vmatpush.bf16.msra.mxu0 %v2817
      %2957 = vmatpush.bf16.msra.mxu0 %v2813
      %2958 = vmatpush.bf16.msra.mxu0 %v2809
      %2959 = vmatpush.bf16.msra.mxu0 %v2805
      %2960 = vmatpush.bf16.msra.mxu0 %v2801
      %2961 = vmatpush.bf16.msra.mxu0 %v2797
      %2962 = vmatpush.bf16.msra.mxu0 %v2793
      %2963 = vmatmul.bf16.gmra.mxu0 %v2534
      %v2964 = vpop.f32.mrf.mxu0
      %v2965 = vadd.f32 %v2922, %v2964
      %v2966 = vpop.f32.mrf.mxu0
      %2967 = vdwg.mxu0
      %2968 = vmatpush.bf16.msra.mxu0 %v2853
      %2969 = vmatpush.bf16.msra.mxu0 %v2849
      %2970 = vmatpush.bf16.msra.mxu0 %v2845
      %2971 = vmatpush.bf16.msra.mxu0 %v2841
      %2972 = vmatpush.bf16.msra.mxu0 %v2837
      %2973 = vmatpush.bf16.msra.mxu0 %v2833
      %2974 = vmatpush.bf16.msra.mxu0 %v2829
      %2975 = vmatpush.bf16.msra.mxu0 %v2825
      %2976 = vmatmul.bf16.gmra.mxu0 %v668
      %v2977 = vpop.f32.mrf.mxu0
      %v2978 = vadd.f32 %v2965, %v2977
      %v2979 = vpop.f32.mrf.mxu0
      %2980 = vdwg.mxu0
      %2981 = vmatpush.bf16.msra.mxu0 %v2822
      %2982 = vmatpush.bf16.msra.mxu0 %v2818
      %2983 = vmatpush.bf16.msra.mxu0 %v2814
      %2984 = vmatpush.bf16.msra.mxu0 %v2810
      %2985 = vmatpush.bf16.msra.mxu0 %v2806
      %2986 = vmatpush.bf16.msra.mxu0 %v2802
      %2987 = vmatpush.bf16.msra.mxu0 %v2798
      %2988 = vmatpush.bf16.msra.mxu0 %v2794
      %2989 = vmatmul.bf16.gmra.mxu0 %v2534
      %v2990 = vpop.f32.mrf.mxu0
      %v2991 = vadd.f32 %v2923, %v2990
      %v2992 = vpop.f32.mrf.mxu0
      %2993 = vdwg.mxu0
      %2994 = vmatpush.bf16.msra.mxu0 %v2854
      %2995 = vmatpush.bf16.msra.mxu0 %v2850
      %2996 = vmatpush.bf16.msra.mxu0 %v2846
      %2997 = vmatpush.bf16.msra.mxu0 %v2842
      %2998 = vmatpush.bf16.msra.mxu0 %v2838
      %2999 = vmatpush.bf16.msra.mxu0 %v2834
      %3000 = vmatpush.bf16.msra.mxu0 %v2830
      %3001 = vmatpush.bf16.msra.mxu0 %v2826
      %3002 = vmatmul.bf16.gmra.mxu0 %v668
      %v3003 = vpop.f32.mrf.mxu0
      %v3004 = vadd.f32 %v2991, %v3003
      %v3005 = vpop.f32.mrf.mxu0
      %3006 = vdwg.mxu0
      %3007 = vmatpush.bf16.msra.mxu0 %v2823
      %3008 = vmatpush.bf16.msra.mxu0 %v2819
      %3009 = vmatpush.bf16.msra.mxu0 %v2815
      %3010 = vmatpush.bf16.msra.mxu0 %v2811
      %3011 = vmatpush.bf16.msra.mxu0 %v2807
      %3012 = vmatpush.bf16.msra.mxu0 %v2803
      %3013 = vmatpush.bf16.msra.mxu0 %v2799
      %3014 = vmatpush.bf16.msra.mxu0 %v2795
      %3015 = vmatmul.bf16.gmra.mxu0 %v2534
      %v3016 = vpop.f32.mrf.mxu0
      %v3017 = vadd.f32 %v2924, %v3016
      %v3018 = vpop.f32.mrf.mxu0
      %3019 = vdwg.mxu0
      %3020 = vmatpush.bf16.msra.mxu0 %v2855
      %3021 = vmatpush.bf16.msra.mxu0 %v2851
      %3022 = vmatpush.bf16.msra.mxu0 %v2847
      %3023 = vmatpush.bf16.msra.mxu0 %v2843
      %3024 = vmatpush.bf16.msra.mxu0 %v2839
      %3025 = vmatpush.bf16.msra.mxu0 %v2835
      %3026 = vmatpush.bf16.msra.mxu0 %v2831
      %3027 = vmatpush.bf16.msra.mxu0 %v2827
      %3028 = vmatmul.bf16.gmra.mxu0 %v668
      %v3029 = vpop.f32.mrf.mxu0
      %v3030 = vadd.f32 %v3017, %v3029
      %v3031 = vpop.f32.mrf.mxu0
      %3032 = vdwg.mxu0
      %v3033 = vxor.u32 %v2952, 2147483648
      %v3034 = vmul.f32 %v3033, 1.442695
      %v3035 = vpow.pop %v3034
      %v3036 = vadd.f32 %v3035, 1.0
      %v3037 = vrcp.pop %v3036
      %v3038 = vmul.f32 %v3036, %v3037
      %v3039 = vsub.f32 1.0, %v3038
      %v3040 = vmul.f32 %v3037, %v3039
      %v3041 = vadd.f32 %v3037, %v3040
      %vm3042 = vweird.f32 %v3036
      %vm3043 = vweird.f32 %v3037
      %vm3044 = vmor %vm3042, %vm3043
      %v3045 = vsel %vm3044, %v3037, %v3041
      %v3046 = vand.u32 2147483647, %v3036
      %vm3047 = vcmp.eq.f32.partialorder %v3046, 8.507059e+37
      %v3048 = vand.u32 %v3036, 2147483648
      %v3049 = vor.u32 1.1754944e-38, %v3048
      %v3050 = vsel %vm3047, %v3049, %v3045
      %v3051 = vmul.f32 1.0, %v3050
      %v3052 = vxor.u32 %v2978, 2147483648
      %v3053 = vmul.f32 %v3052, 1.442695
      %v3054 = vpow.pop %v3053
      %v3055 = vadd.f32 %v3054, 1.0
      %v3056 = vrcp.pop %v3055
      %v3057 = vmul.f32 %v3055, %v3056
      %v3058 = vsub.f32 1.0, %v3057
      %v3059 = vmul.f32 %v3056, %v3058
      %v3060 = vadd.f32 %v3056, %v3059
      %vm3061 = vweird.f32 %v3055
      %vm3062 = vweird.f32 %v3056
      %vm3063 = vmor %vm3061, %vm3062
      %v3064 = vsel %vm3063, %v3056, %v3060
      %v3065 = vand.u32 2147483647, %v3055
      %vm3066 = vcmp.eq.f32.partialorder %v3065, 8.507059e+37
      %v3067 = vand.u32 %v3055, 2147483648
      %v3068 = vor.u32 1.1754944e-38, %v3067
      %v3069 = vsel %vm3066, %v3068, %v3064
      %v3070 = vmul.f32 1.0, %v3069
      %v3071 = vtanh.pop %v3004
      %v3072 = vxor.u32 %v3030, 2147483648
      %v3073 = vmul.f32 %v3072, 1.442695
      %v3074 = vpow.pop %v3073
      %v3075 = vadd.f32 %v3074, 1.0
      %v3076 = vrcp.pop %v3075
      %v3077 = vmul.f32 %v3075, %v3076
      %v3078 = vsub.f32 1.0, %v3077
      %v3079 = vmul.f32 %v3076, %v3078
      %v3080 = vadd.f32 %v3076, %v3079
      %vm3081 = vweird.f32 %v3075
      %vm3082 = vweird.f32 %v3076
      %vm3083 = vmor %vm3081, %vm3082
      %v3084 = vsel %vm3083, %v3076, %v3080
      %v3085 = vand.u32 2147483647, %v3075
      %vm3086 = vcmp.eq.f32.partialorder %v3085, 8.507059e+37
      %v3087 = vand.u32 %v3075, 2147483648
      %v3088 = vor.u32 1.1754944e-38, %v3087
      %v3089 = vsel %vm3086, %v3088, %v3084
      %v3090 = vmul.f32 1.0, %v3089
      %v3091 = vmul.f32 %v3070, 0.0
      %v3092 = vmul.f32 %v3051, %v3071
      %v3093 = vadd.f32 %v3091, %v3092
      %v3094 = vtanh.pop %v3093
      %v3095 = vmul.f32 %v3090, %v3094
      %v3096 = vpack.c.bf16 %v3095, %v3095
      %v3097 = vld [vmem:[#allocation25] sm:$0xf]
      %v3098 = vld [vmem:[#allocation25 + $0x4] sm:$0xf]
      %v3099 = vld [vmem:[#allocation25 + $0x8] sm:$0xf]
      %v3100 = vld [vmem:[#allocation25 + $0xc] sm:$0xf]
      %v3101 = vld [vmem:[#allocation25 + $0x10] sm:$0xf]
      %v3102 = vld [vmem:[#allocation25 + $0x14] sm:$0xf]
      %v3103 = vld [vmem:[#allocation25 + $0x18] sm:$0xf]
      %v3104 = vld [vmem:[#allocation25 + $0x1c] sm:$0xf]
      %v3105 = vld [vmem:[#allocation25 + $0x20] sm:$0xf]
      %v3106 = vld [vmem:[#allocation25 + $0x24] sm:$0xf]
      %v3107 = vld [vmem:[#allocation25 + $0x28] sm:$0xf]
      %v3108 = vld [vmem:[#allocation25 + $0x2c] sm:$0xf]
      %v3109 = vld [vmem:[#allocation25 + $0x30] sm:$0xf]
      %v3110 = vld [vmem:[#allocation25 + $0x34] sm:$0xf]
      %v3111 = vld [vmem:[#allocation25 + $0x38] sm:$0xf]
      %v3112 = vld [vmem:[#allocation25 + $0x3c] sm:$0xf]
      %v3113 = vld [vmem:[%s17] sm:$0x1]
      %v3130 = vunpack.c.l.b16 %v3097
      %v3131 = vunpack.c.l.b16 %v3098
      %v3132 = vunpack.c.l.b16 %v3099
      %v3133 = vunpack.c.l.b16 %v3100
      %v3134 = vunpack.c.l.b16 %v3101
      %v3135 = vunpack.c.l.b16 %v3102
      %v3136 = vunpack.c.l.b16 %v3103
      %v3137 = vunpack.c.l.b16 %v3104
      %v3138 = vunpack.c.l.b16 %v3105
      %v3139 = vunpack.c.l.b16 %v3106
      %v3140 = vunpack.c.l.b16 %v3107
      %v3141 = vunpack.c.l.b16 %v3108
      %v3142 = vunpack.c.l.b16 %v3109
      %v3143 = vunpack.c.l.b16 %v3110
      %v3144 = vunpack.c.l.b16 %v3111
      %v3145 = vunpack.c.l.b16 %v3112
      %v3146 = vpack.c.b16 %v3131, %v3130
      %v3147 = vpack.c.b16 %v3133, %v3132
      %v3148 = vpack.c.b16 %v3135, %v3134
      %v3149 = vpack.c.b16 %v3137, %v3136
      %v3150 = vpack.c.b16 %v3139, %v3138
      %v3151 = vpack.c.b16 %v3141, %v3140
      %v3152 = vpack.c.b16 %v3143, %v3142
      %v3153 = vpack.c.b16 %v3145, %v3144
      %3162 = vmatpush.bf16.msra.mxu0 %v3153
      %3163 = vmatpush.bf16.msra.mxu0 %v3152
      %3164 = vmatpush.bf16.msra.mxu0 %v3151
      %3165 = vmatpush.bf16.msra.mxu0 %v3150
      %3166 = vmatpush.bf16.msra.mxu0 %v3149
      %3167 = vmatpush.bf16.msra.mxu0 %v3148
      %3168 = vmatpush.bf16.msra.mxu0 %v3147
      %3169 = vmatpush.bf16.msra.mxu0 %v3146
      %3170 = vmatmul.bf16.gmra.mxu0 %v3096
      %v3171 = vpop.f32.mrf.mxu0
      %v3172 = vadd.f32 %v3113, %v3171
      %v3173 = vpop.f32.mrf.mxu0
      %3174 = vdwg.mxu0
      %v3175 = vsel %vm1517, %v3172, -inf
      %3176 = vmax.xlane.f32.xlu0 %v3175
      %v3177 = vpop.xlane.xlu0 %3176
      %v3178 = vsub.f32 %v3172, %v3177
      %v3179 = vmul.f32 %v3178, 1.442695
      %v3180 = vpow.pop %v3179
      %v3181 = vsel %vm1517, %v3180, 0.0
      %3182 = vadd.xlane.f32.xlu0 %v3181
      %v3183 = vpop.xlane.xlu0 %3182
      %v3184 = vrcp.pop %v3183
      %v3185 = vmul.f32 %v3183, %v3184
      %v3186 = vsub.f32 2.0, %v3185
      %v3187 = vmul.f32 %v3184, %v3186
      %v3188 = vmul.f32 %v3180, %v3187
      %s3189 = smul.u32 %s1955, 4
      %s3190 = scalar_lea.vmem [#allocation27], %s3189
      %3191 = vst [vmem:[%s3190] sm:$0x1] %v3188
      %v3192 = vpack.c.bf16 %v3188, %v3188
      %v3193 = vld [vmem:[#allocation22] sm:$0xff]
      %v3194 = vld [vmem:[#allocation22 + $0x8] sm:$0xff]
      %v3195 = vld [vmem:[#allocation22 + $0x10] sm:$0xff]
      %v3196 = vld [vmem:[#allocation22 + $0x18] sm:$0xff]
      %v3197 = vld [vmem:[#allocation22 + $0x20] sm:$0xff]
      %v3198 = vld [vmem:[#allocation22 + $0x28] sm:$0xff]
      %v3199 = vld [vmem:[#allocation22 + $0x30] sm:$0xff]
      %v3200 = vld [vmem:[#allocation22 + $0x38] sm:$0xff]
      %v3201 = vld [vmem:[#allocation22 + $0x40] sm:$0xff]
      %v3202 = vld [vmem:[#allocation22 + $0x48] sm:$0xff]
      %v3203 = vld [vmem:[#allocation22 + $0x50] sm:$0xff]
      %v3204 = vld [vmem:[#allocation22 + $0x58] sm:$0xff]
      %v3205 = vld [vmem:[#allocation22 + $0x60] sm:$0xff]
      %v3206 = vld [vmem:[#allocation22 + $0x68] sm:$0xff]
      %v3207 = vld [vmem:[#allocation22 + $0x70] sm:$0xff]
      %v3208 = vld [vmem:[#allocation22 + $0x78] sm:$0xff]
      %v3209 = vld [vmem:[#allocation22 + $0x80] sm:$0xff]
      %v3210 = vld [vmem:[#allocation22 + $0x88] sm:$0xff]
      %v3211 = vld [vmem:[#allocation22 + $0x90] sm:$0xff]
      %v3212 = vld [vmem:[#allocation22 + $0x98] sm:$0xff]
      %v3213 = vld [vmem:[#allocation22 + $0xa0] sm:$0xff]
      %v3214 = vld [vmem:[#allocation22 + $0xa8] sm:$0xff]
      %v3215 = vld [vmem:[#allocation22 + $0xb0] sm:$0xff]
      %v3216 = vld [vmem:[#allocation22 + $0xb8] sm:$0xff]
      %v3217 = vld [vmem:[#allocation22 + $0xc0] sm:$0xff]
      %v3218 = vld [vmem:[#allocation22 + $0xc8] sm:$0xff]
      %v3219 = vld [vmem:[#allocation22 + $0xd0] sm:$0xff]
      %v3220 = vld [vmem:[#allocation22 + $0xd8] sm:$0xff]
      %v3221 = vld [vmem:[#allocation22 + $0xe0] sm:$0xff]
      %v3222 = vld [vmem:[#allocation22 + $0xe8] sm:$0xff]
      %v3223 = vld [vmem:[#allocation22 + $0xf0] sm:$0xff]
      %v3224 = vld [vmem:[#allocation22 + $0xf8] sm:$0xff]
      %v3225 = vld [vmem:[#allocation22 + $0x100] sm:$0xff]
      %v3226 = vld [vmem:[#allocation22 + $0x108] sm:$0xff]
      %v3227 = vld [vmem:[#allocation22 + $0x110] sm:$0xff]
      %v3228 = vld [vmem:[#allocation22 + $0x118] sm:$0xff]
      %v3229 = vld [vmem:[#allocation22 + $0x120] sm:$0xff]
      %v3230 = vld [vmem:[#allocation22 + $0x128] sm:$0xff]
      %v3231 = vld [vmem:[#allocation22 + $0x130] sm:$0xff]
      %v3232 = vld [vmem:[#allocation22 + $0x138] sm:$0xff]
      %v3233 = vld [vmem:[#allocation22 + $0x140] sm:$0xff]
      %v3234 = vld [vmem:[#allocation22 + $0x148] sm:$0xff]
      %v3235 = vld [vmem:[#allocation22 + $0x150] sm:$0xff]
      %v3236 = vld [vmem:[#allocation22 + $0x158] sm:$0xff]
      %v3237 = vld [vmem:[#allocation22 + $0x160] sm:$0xff]
      %v3238 = vld [vmem:[#allocation22 + $0x168] sm:$0xff]
      %v3239 = vld [vmem:[#allocation22 + $0x170] sm:$0xff]
      %v3240 = vld [vmem:[#allocation22 + $0x178] sm:$0xff]
      %v3241 = vld [vmem:[#allocation22 + $0x180] sm:$0xff]
      %v3242 = vld [vmem:[#allocation22 + $0x188] sm:$0xff]
      %v3243 = vld [vmem:[#allocation22 + $0x190] sm:$0xff]
      %v3244 = vld [vmem:[#allocation22 + $0x198] sm:$0xff]
      %v3245 = vld [vmem:[#allocation22 + $0x1a0] sm:$0xff]
      %v3246 = vld [vmem:[#allocation22 + $0x1a8] sm:$0xff]
      %v3247 = vld [vmem:[#allocation22 + $0x1b0] sm:$0xff]
      %v3248 = vld [vmem:[#allocation22 + $0x1b8] sm:$0xff]
      %v3249 = vld [vmem:[#allocation22 + $0x1c0] sm:$0xff]
      %v3250 = vld [vmem:[#allocation22 + $0x1c8] sm:$0xff]
      %v3251 = vld [vmem:[#allocation22 + $0x1d0] sm:$0xff]
      %v3252 = vld [vmem:[#allocation22 + $0x1d8] sm:$0xff]
      %v3253 = vld [vmem:[#allocation22 + $0x1e0] sm:$0xff]
      %v3254 = vld [vmem:[#allocation22 + $0x1e8] sm:$0xff]
      %v3255 = vld [vmem:[#allocation22 + $0x1f0] sm:$0xff]
      %v3256 = vld [vmem:[#allocation22 + $0x1f8] sm:$0xff]
      %v3321 = vunpack.c.l.b16 %v3193
      %v3322 = vunpack.c.h.b16 %v3193
      %v3323 = vunpack.c.l.b16 %v3194
      %v3324 = vunpack.c.h.b16 %v3194
      %v3325 = vunpack.c.l.b16 %v3195
      %v3326 = vunpack.c.h.b16 %v3195
      %v3327 = vunpack.c.l.b16 %v3196
      %v3328 = vunpack.c.h.b16 %v3196
      %v3329 = vunpack.c.l.b16 %v3197
      %v3330 = vunpack.c.h.b16 %v3197
      %v3331 = vunpack.c.l.b16 %v3198
      %v3332 = vunpack.c.h.b16 %v3198
      %v3333 = vunpack.c.l.b16 %v3199
      %v3334 = vunpack.c.h.b16 %v3199
      %v3335 = vunpack.c.l.b16 %v3200
      %v3336 = vunpack.c.h.b16 %v3200
      %v3337 = vunpack.c.l.b16 %v3201
      %v3338 = vunpack.c.h.b16 %v3201
      %v3339 = vunpack.c.l.b16 %v3202
      %v3340 = vunpack.c.h.b16 %v3202
      %v3341 = vunpack.c.l.b16 %v3203
      %v3342 = vunpack.c.h.b16 %v3203
      %v3343 = vunpack.c.l.b16 %v3204
      %v3344 = vunpack.c.h.b16 %v3204
      %v3345 = vunpack.c.l.b16 %v3205
      %v3346 = vunpack.c.h.b16 %v3205
      %v3347 = vunpack.c.l.b16 %v3206
      %v3348 = vunpack.c.h.b16 %v3206
      %v3349 = vunpack.c.l.b16 %v3207
      %v3350 = vunpack.c.h.b16 %v3207
      %v3351 = vunpack.c.l.b16 %v3208
      %v3352 = vunpack.c.h.b16 %v3208
      %v3353 = vunpack.c.l.b16 %v3209
      %v3354 = vunpack.c.h.b16 %v3209
      %v3355 = vunpack.c.l.b16 %v3210
      %v3356 = vunpack.c.h.b16 %v3210
      %v3357 = vunpack.c.l.b16 %v3211
      %v3358 = vunpack.c.h.b16 %v3211
      %v3359 = vunpack.c.l.b16 %v3212
      %v3360 = vunpack.c.h.b16 %v3212
      %v3361 = vunpack.c.l.b16 %v3213
      %v3362 = vunpack.c.h.b16 %v3213
      %v3363 = vunpack.c.l.b16 %v3214
      %v3364 = vunpack.c.h.b16 %v3214
      %v3365 = vunpack.c.l.b16 %v3215
      %v3366 = vunpack.c.h.b16 %v3215
      %v3367 = vunpack.c.l.b16 %v3216
      %v3368 = vunpack.c.h.b16 %v3216
      %v3369 = vunpack.c.l.b16 %v3217
      %v3370 = vunpack.c.h.b16 %v3217
      %v3371 = vunpack.c.l.b16 %v3218
      %v3372 = vunpack.c.h.b16 %v3218
      %v3373 = vunpack.c.l.b16 %v3219
      %v3374 = vunpack.c.h.b16 %v3219
      %v3375 = vunpack.c.l.b16 %v3220
      %v3376 = vunpack.c.h.b16 %v3220
      %v3377 = vunpack.c.l.b16 %v3221
      %v3378 = vunpack.c.h.b16 %v3221
      %v3379 = vunpack.c.l.b16 %v3222
      %v3380 = vunpack.c.h.b16 %v3222
      %v3381 = vunpack.c.l.b16 %v3223
      %v3382 = vunpack.c.h.b16 %v3223
      %v3383 = vunpack.c.l.b16 %v3224
      %v3384 = vunpack.c.h.b16 %v3224
      %v3385 = vunpack.c.l.b16 %v3225
      %v3386 = vunpack.c.h.b16 %v3225
      %v3387 = vunpack.c.l.b16 %v3226
      %v3388 = vunpack.c.h.b16 %v3226
      %v3389 = vunpack.c.l.b16 %v3227
      %v3390 = vunpack.c.h.b16 %v3227
      %v3391 = vunpack.c.l.b16 %v3228
      %v3392 = vunpack.c.h.b16 %v3228
      %v3393 = vunpack.c.l.b16 %v3229
      %v3394 = vunpack.c.h.b16 %v3229
      %v3395 = vunpack.c.l.b16 %v3230
      %v3396 = vunpack.c.h.b16 %v3230
      %v3397 = vunpack.c.l.b16 %v3231
      %v3398 = vunpack.c.h.b16 %v3231
      %v3399 = vunpack.c.l.b16 %v3232
      %v3400 = vunpack.c.h.b16 %v3232
      %v3401 = vunpack.c.l.b16 %v3233
      %v3402 = vunpack.c.h.b16 %v3233
      %v3403 = vunpack.c.l.b16 %v3234
      %v3404 = vunpack.c.h.b16 %v3234
      %v3405 = vunpack.c.l.b16 %v3235
      %v3406 = vunpack.c.h.b16 %v3235
      %v3407 = vunpack.c.l.b16 %v3236
      %v3408 = vunpack.c.h.b16 %v3236
      %v3409 = vunpack.c.l.b16 %v3237
      %v3410 = vunpack.c.h.b16 %v3237
      %v3411 = vunpack.c.l.b16 %v3238
      %v3412 = vunpack.c.h.b16 %v3238
      %v3413 = vunpack.c.l.b16 %v3239
      %v3414 = vunpack.c.h.b16 %v3239
      %v3415 = vunpack.c.l.b16 %v3240
      %v3416 = vunpack.c.h.b16 %v3240
      %v3417 = vunpack.c.l.b16 %v3241
      %v3418 = vunpack.c.h.b16 %v3241
      %v3419 = vunpack.c.l.b16 %v3242
      %v3420 = vunpack.c.h.b16 %v3242
      %v3421 = vunpack.c.l.b16 %v3243
      %v3422 = vunpack.c.h.b16 %v3243
      %v3423 = vunpack.c.l.b16 %v3244
      %v3424 = vunpack.c.h.b16 %v3244
      %v3425 = vunpack.c.l.b16 %v3245
      %v3426 = vunpack.c.h.b16 %v3245
      %v3427 = vunpack.c.l.b16 %v3246
      %v3428 = vunpack.c.h.b16 %v3246
      %v3429 = vunpack.c.l.b16 %v3247
      %v3430 = vunpack.c.h.b16 %v3247
      %v3431 = vunpack.c.l.b16 %v3248
      %v3432 = vunpack.c.h.b16 %v3248
      %v3433 = vunpack.c.l.b16 %v3249
      %v3434 = vunpack.c.h.b16 %v3249
      %v3435 = vunpack.c.l.b16 %v3250
      %v3436 = vunpack.c.h.b16 %v3250
      %v3437 = vunpack.c.l.b16 %v3251
      %v3438 = vunpack.c.h.b16 %v3251
      %v3439 = vunpack.c.l.b16 %v3252
      %v3440 = vunpack.c.h.b16 %v3252
      %v3441 = vunpack.c.l.b16 %v3253
      %v3442 = vunpack.c.h.b16 %v3253
      %v3443 = vunpack.c.l.b16 %v3254
      %v3444 = vunpack.c.h.b16 %v3254
      %v3445 = vunpack.c.l.b16 %v3255
      %v3446 = vunpack.c.h.b16 %v3255
      %v3447 = vunpack.c.l.b16 %v3256
      %v3448 = vunpack.c.h.b16 %v3256
      %v3449 = vpack.c.b16 %v3325, %v3321
      %v3450 = vpack.c.b16 %v3326, %v3322
      %v3451 = vpack.c.b16 %v3327, %v3323
      %v3452 = vpack.c.b16 %v3328, %v3324
      %v3453 = vpack.c.b16 %v3333, %v3329
      %v3454 = vpack.c.b16 %v3334, %v3330
      %v3455 = vpack.c.b16 %v3335, %v3331
      %v3456 = vpack.c.b16 %v3336, %v3332
      %v3457 = vpack.c.b16 %v3341, %v3337
      %v3458 = vpack.c.b16 %v3342, %v3338
      %v3459 = vpack.c.b16 %v3343, %v3339
      %v3460 = vpack.c.b16 %v3344, %v3340
      %v3461 = vpack.c.b16 %v3349, %v3345
      %v3462 = vpack.c.b16 %v3350, %v3346
      %v3463 = vpack.c.b16 %v3351, %v3347
      %v3464 = vpack.c.b16 %v3352, %v3348
      %v3465 = vpack.c.b16 %v3357, %v3353
      %v3466 = vpack.c.b16 %v3358, %v3354
      %v3467 = vpack.c.b16 %v3359, %v3355
      %v3468 = vpack.c.b16 %v3360, %v3356
      %v3469 = vpack.c.b16 %v3365, %v3361
      %v3470 = vpack.c.b16 %v3366, %v3362
      %v3471 = vpack.c.b16 %v3367, %v3363
      %v3472 = vpack.c.b16 %v3368, %v3364
      %v3473 = vpack.c.b16 %v3373, %v3369
      %v3474 = vpack.c.b16 %v3374, %v3370
      %v3475 = vpack.c.b16 %v3375, %v3371
      %v3476 = vpack.c.b16 %v3376, %v3372
      %v3477 = vpack.c.b16 %v3381, %v3377
      %v3478 = vpack.c.b16 %v3382, %v3378
      %v3479 = vpack.c.b16 %v3383, %v3379
      %v3480 = vpack.c.b16 %v3384, %v3380
      %v3481 = vpack.c.b16 %v3389, %v3385
      %v3482 = vpack.c.b16 %v3390, %v3386
      %v3483 = vpack.c.b16 %v3391, %v3387
      %v3484 = vpack.c.b16 %v3392, %v3388
      %v3485 = vpack.c.b16 %v3397, %v3393
      %v3486 = vpack.c.b16 %v3398, %v3394
      %v3487 = vpack.c.b16 %v3399, %v3395
      %v3488 = vpack.c.b16 %v3400, %v3396
      %v3489 = vpack.c.b16 %v3405, %v3401
      %v3490 = vpack.c.b16 %v3406, %v3402
      %v3491 = vpack.c.b16 %v3407, %v3403
      %v3492 = vpack.c.b16 %v3408, %v3404
      %v3493 = vpack.c.b16 %v3413, %v3409
      %v3494 = vpack.c.b16 %v3414, %v3410
      %v3495 = vpack.c.b16 %v3415, %v3411
      %v3496 = vpack.c.b16 %v3416, %v3412
      %v3497 = vpack.c.b16 %v3421, %v3417
      %v3498 = vpack.c.b16 %v3422, %v3418
      %v3499 = vpack.c.b16 %v3423, %v3419
      %v3500 = vpack.c.b16 %v3424, %v3420
      %v3501 = vpack.c.b16 %v3429, %v3425
      %v3502 = vpack.c.b16 %v3430, %v3426
      %v3503 = vpack.c.b16 %v3431, %v3427
      %v3504 = vpack.c.b16 %v3432, %v3428
      %v3505 = vpack.c.b16 %v3437, %v3433
      %v3506 = vpack.c.b16 %v3438, %v3434
      %v3507 = vpack.c.b16 %v3439, %v3435
      %v3508 = vpack.c.b16 %v3440, %v3436
      %v3509 = vpack.c.b16 %v3445, %v3441
      %v3510 = vpack.c.b16 %v3446, %v3442
      %v3511 = vpack.c.b16 %v3447, %v3443
      %v3512 = vpack.c.b16 %v3448, %v3444
      %3577 = vmatpush.bf16.msra.mxu0 %v3477
      %3578 = vmatpush.bf16.msra.mxu0 %v3473
      %3579 = vmatpush.bf16.msra.mxu0 %v3469
      %3580 = vmatpush.bf16.msra.mxu0 %v3465
      %3581 = vmatpush.bf16.msra.mxu0 %v3461
      %3582 = vmatpush.bf16.msra.mxu0 %v3457
      %3583 = vmatpush.bf16.msra.mxu0 %v3453
      %3584 = vmatpush.bf16.msra.mxu0 %v3449
      %3585 = vmatmul.bf16.gmra.mxu0 %v3192
      %v3586 = vpop.f32.mrf.mxu0
      %v3587 = vadd.f32 %v2359, %v3586
      %v3588 = vpop.f32.mrf.mxu0
      %3589 = vdwg.mxu0
      %3590 = vmatpush.bf16.msra.mxu0 %v3509
      %3591 = vmatpush.bf16.msra.mxu0 %v3505
      %3592 = vmatpush.bf16.msra.mxu0 %v3501
      %3593 = vmatpush.bf16.msra.mxu0 %v3497
      %3594 = vmatpush.bf16.msra.mxu0 %v3493
      %3595 = vmatpush.bf16.msra.mxu0 %v3489
      %3596 = vmatpush.bf16.msra.mxu0 %v3485
      %3597 = vmatpush.bf16.msra.mxu0 %v3481
      %3598 = vmatmul.bf16.gmra.mxu0 %v2534
      %v3599 = vpop.f32.mrf.mxu0
      %v3600 = vadd.f32 %v3587, %v3599
      %v3601 = vpop.f32.mrf.mxu0
      %3602 = vdwg.mxu0
      %3603 = vmatpush.bf16.msra.mxu0 %v3478
      %3604 = vmatpush.bf16.msra.mxu0 %v3474
      %3605 = vmatpush.bf16.msra.mxu0 %v3470
      %3606 = vmatpush.bf16.msra.mxu0 %v3466
      %3607 = vmatpush.bf16.msra.mxu0 %v3462
      %3608 = vmatpush.bf16.msra.mxu0 %v3458
      %3609 = vmatpush.bf16.msra.mxu0 %v3454
      %3610 = vmatpush.bf16.msra.mxu0 %v3450
      %3611 = vmatmul.bf16.gmra.mxu0 %v3192
      %v3612 = vpop.f32.mrf.mxu0
      %v3613 = vadd.f32 %v2360, %v3612
      %v3614 = vpop.f32.mrf.mxu0
      %3615 = vdwg.mxu0
      %3616 = vmatpush.bf16.msra.mxu0 %v3510
      %3617 = vmatpush.bf16.msra.mxu0 %v3506
      %3618 = vmatpush.bf16.msra.mxu0 %v3502
      %3619 = vmatpush.bf16.msra.mxu0 %v3498
      %3620 = vmatpush.bf16.msra.mxu0 %v3494
      %3621 = vmatpush.bf16.msra.mxu0 %v3490
      %3622 = vmatpush.bf16.msra.mxu0 %v3486
      %3623 = vmatpush.bf16.msra.mxu0 %v3482
      %3624 = vmatmul.bf16.gmra.mxu0 %v2534
      %v3625 = vpop.f32.mrf.mxu0
      %v3626 = vadd.f32 %v3613, %v3625
      %v3627 = vpop.f32.mrf.mxu0
      %3628 = vdwg.mxu0
      %3629 = vmatpush.bf16.msra.mxu0 %v3479
      %3630 = vmatpush.bf16.msra.mxu0 %v3475
      %3631 = vmatpush.bf16.msra.mxu0 %v3471
      %3632 = vmatpush.bf16.msra.mxu0 %v3467
      %3633 = vmatpush.bf16.msra.mxu0 %v3463
      %3634 = vmatpush.bf16.msra.mxu0 %v3459
      %3635 = vmatpush.bf16.msra.mxu0 %v3455
      %3636 = vmatpush.bf16.msra.mxu0 %v3451
      %3637 = vmatmul.bf16.gmra.mxu0 %v3192
      %v3638 = vpop.f32.mrf.mxu0
      %v3639 = vadd.f32 %v2361, %v3638
      %v3640 = vpop.f32.mrf.mxu0
      %3641 = vdwg.mxu0
      %3642 = vmatpush.bf16.msra.mxu0 %v3511
      %3643 = vmatpush.bf16.msra.mxu0 %v3507
      %3644 = vmatpush.bf16.msra.mxu0 %v3503
      %3645 = vmatpush.bf16.msra.mxu0 %v3499
      %3646 = vmatpush.bf16.msra.mxu0 %v3495
      %3647 = vmatpush.bf16.msra.mxu0 %v3491
      %3648 = vmatpush.bf16.msra.mxu0 %v3487
      %3649 = vmatpush.bf16.msra.mxu0 %v3483
      %3650 = vmatmul.bf16.gmra.mxu0 %v2534
      %v3651 = vpop.f32.mrf.mxu0
      %v3652 = vadd.f32 %v3639, %v3651
      %v3653 = vpop.f32.mrf.mxu0
      %3654 = vdwg.mxu0
      %3655 = vmatpush.bf16.msra.mxu0 %v3480
      %3656 = vmatpush.bf16.msra.mxu0 %v3476
      %3657 = vmatpush.bf16.msra.mxu0 %v3472
      %3658 = vmatpush.bf16.msra.mxu0 %v3468
      %3659 = vmatpush.bf16.msra.mxu0 %v3464
      %3660 = vmatpush.bf16.msra.mxu0 %v3460
      %3661 = vmatpush.bf16.msra.mxu0 %v3456
      %3662 = vmatpush.bf16.msra.mxu0 %v3452
      %3663 = vmatmul.bf16.gmra.mxu0 %v3192
      %v3664 = vpop.f32.mrf.mxu0
      %v3665 = vadd.f32 %v2362, %v3664
      %v3666 = vpop.f32.mrf.mxu0
      %3667 = vdwg.mxu0
      %3668 = vmatpush.bf16.msra.mxu0 %v3512
      %3669 = vmatpush.bf16.msra.mxu0 %v3508
      %3670 = vmatpush.bf16.msra.mxu0 %v3504
      %3671 = vmatpush.bf16.msra.mxu0 %v3500
      %3672 = vmatpush.bf16.msra.mxu0 %v3496
      %3673 = vmatpush.bf16.msra.mxu0 %v3492
      %3674 = vmatpush.bf16.msra.mxu0 %v3488
      %3675 = vmatpush.bf16.msra.mxu0 %v3484
      %3676 = vmatmul.bf16.gmra.mxu0 %v2534
      %v3677 = vpop.f32.mrf.mxu0
      %v3678 = vadd.f32 %v3665, %v3677
      %v3679 = vpop.f32.mrf.mxu0
      %3680 = vdwg.mxu0
      %v3681 = vxor.u32 %v3600, 2147483648
      %v3682 = vmul.f32 %v3681, 1.442695
      %v3683 = vpow.pop %v3682
      %v3684 = vadd.f32 %v3683, 1.0
      %v3685 = vrcp.pop %v3684
      %v3686 = vmul.f32 %v3684, %v3685
      %v3687 = vsub.f32 1.0, %v3686
      %v3688 = vmul.f32 %v3685, %v3687
      %v3689 = vadd.f32 %v3685, %v3688
      %vm3690 = vweird.f32 %v3684
      %vm3691 = vweird.f32 %v3685
      %vm3692 = vmor %vm3690, %vm3691
      %v3693 = vsel %vm3692, %v3685, %v3689
      %v3694 = vand.u32 2147483647, %v3684
      %vm3695 = vcmp.eq.f32.partialorder %v3694, 8.507059e+37
      %v3696 = vand.u32 %v3684, 2147483648
      %v3697 = vor.u32 1.1754944e-38, %v3696
      %v3698 = vsel %vm3695, %v3697, %v3693
      %v3699 = vmul.f32 1.0, %v3698
      %v3700 = vxor.u32 %v3626, 2147483648
      %v3701 = vmul.f32 %v3700, 1.442695
      %v3702 = vpow.pop %v3701
      %v3703 = vadd.f32 %v3702, 1.0
      %v3704 = vrcp.pop %v3703
      %v3705 = vmul.f32 %v3703, %v3704
      %v3706 = vsub.f32 1.0, %v3705
      %v3707 = vmul.f32 %v3704, %v3706
      %v3708 = vadd.f32 %v3704, %v3707
      %vm3709 = vweird.f32 %v3703
      %vm3710 = vweird.f32 %v3704
      %vm3711 = vmor %vm3709, %vm3710
      %v3712 = vsel %vm3711, %v3704, %v3708
      %v3713 = vand.u32 2147483647, %v3703
      %vm3714 = vcmp.eq.f32.partialorder %v3713, 8.507059e+37
      %v3715 = vand.u32 %v3703, 2147483648
      %v3716 = vor.u32 1.1754944e-38, %v3715
      %v3717 = vsel %vm3714, %v3716, %v3712
      %v3718 = vmul.f32 1.0, %v3717
      %v3719 = vtanh.pop %v3652
      %v3720 = vxor.u32 %v3678, 2147483648
      %v3721 = vmul.f32 %v3720, 1.442695
      %v3722 = vpow.pop %v3721
      %v3723 = vadd.f32 %v3722, 1.0
      %v3724 = vrcp.pop %v3723
      %v3725 = vmul.f32 %v3723, %v3724
      %v3726 = vsub.f32 1.0, %v3725
      %v3727 = vmul.f32 %v3724, %v3726
      %v3728 = vadd.f32 %v3724, %v3727
      %vm3729 = vweird.f32 %v3723
      %vm3730 = vweird.f32 %v3724
      %vm3731 = vmor %vm3729, %vm3730
      %v3732 = vsel %vm3731, %v3724, %v3728
      %v3733 = vand.u32 2147483647, %v3723
      %vm3734 = vcmp.eq.f32.partialorder %v3733, 8.507059e+37
      %v3735 = vand.u32 %v3723, 2147483648
      %v3736 = vor.u32 1.1754944e-38, %v3735
      %v3737 = vsel %vm3734, %v3736, %v3732
      %v3738 = vmul.f32 1.0, %v3737
      %v3739 = vmul.f32 %v3718, %v2531
      %v3740 = vmul.f32 %v3699, %v3719
      %v3741 = vadd.f32 %v3739, %v3740
      %v3742 = vtanh.pop %v3741
      %v3743 = vmul.f32 %v3738, %v3742
      %v3744 = vpack.c.bf16 %v3743, %v3743
      %v3745 = vld [vmem:[#allocation24] sm:$0xff]
      %v3746 = vld [vmem:[#allocation24 + $0x8] sm:$0xff]
      %v3747 = vld [vmem:[#allocation24 + $0x10] sm:$0xff]
      %v3748 = vld [vmem:[#allocation24 + $0x18] sm:$0xff]
      %v3749 = vld [vmem:[#allocation24 + $0x20] sm:$0xff]
      %v3750 = vld [vmem:[#allocation24 + $0x28] sm:$0xff]
      %v3751 = vld [vmem:[#allocation24 + $0x30] sm:$0xff]
      %v3752 = vld [vmem:[#allocation24 + $0x38] sm:$0xff]
      %v3753 = vld [vmem:[#allocation24 + $0x40] sm:$0xff]
      %v3754 = vld [vmem:[#allocation24 + $0x48] sm:$0xff]
      %v3755 = vld [vmem:[#allocation24 + $0x50] sm:$0xff]
      %v3756 = vld [vmem:[#allocation24 + $0x58] sm:$0xff]
      %v3757 = vld [vmem:[#allocation24 + $0x60] sm:$0xff]
      %v3758 = vld [vmem:[#allocation24 + $0x68] sm:$0xff]
      %v3759 = vld [vmem:[#allocation24 + $0x70] sm:$0xff]
      %v3760 = vld [vmem:[#allocation24 + $0x78] sm:$0xff]
      %v3761 = vld [vmem:[#allocation24 + $0x80] sm:$0xff]
      %v3762 = vld [vmem:[#allocation24 + $0x88] sm:$0xff]
      %v3763 = vld [vmem:[#allocation24 + $0x90] sm:$0xff]
      %v3764 = vld [vmem:[#allocation24 + $0x98] sm:$0xff]
      %v3765 = vld [vmem:[#allocation24 + $0xa0] sm:$0xff]
      %v3766 = vld [vmem:[#allocation24 + $0xa8] sm:$0xff]
      %v3767 = vld [vmem:[#allocation24 + $0xb0] sm:$0xff]
      %v3768 = vld [vmem:[#allocation24 + $0xb8] sm:$0xff]
      %v3769 = vld [vmem:[#allocation24 + $0xc0] sm:$0xff]
      %v3770 = vld [vmem:[#allocation24 + $0xc8] sm:$0xff]
      %v3771 = vld [vmem:[#allocation24 + $0xd0] sm:$0xff]
      %v3772 = vld [vmem:[#allocation24 + $0xd8] sm:$0xff]
      %v3773 = vld [vmem:[#allocation24 + $0xe0] sm:$0xff]
      %v3774 = vld [vmem:[#allocation24 + $0xe8] sm:$0xff]
      %v3775 = vld [vmem:[#allocation24 + $0xf0] sm:$0xff]
      %v3776 = vld [vmem:[#allocation24 + $0xf8] sm:$0xff]
      %v3777 = vld [vmem:[#allocation24 + $0x100] sm:$0xff]
      %v3778 = vld [vmem:[#allocation24 + $0x108] sm:$0xff]
      %v3779 = vld [vmem:[#allocation24 + $0x110] sm:$0xff]
      %v3780 = vld [vmem:[#allocation24 + $0x118] sm:$0xff]
      %v3781 = vld [vmem:[#allocation24 + $0x120] sm:$0xff]
      %v3782 = vld [vmem:[#allocation24 + $0x128] sm:$0xff]
      %v3783 = vld [vmem:[#allocation24 + $0x130] sm:$0xff]
      %v3784 = vld [vmem:[#allocation24 + $0x138] sm:$0xff]
      %v3785 = vld [vmem:[#allocation24 + $0x140] sm:$0xff]
      %v3786 = vld [vmem:[#allocation24 + $0x148] sm:$0xff]
      %v3787 = vld [vmem:[#allocation24 + $0x150] sm:$0xff]
      %v3788 = vld [vmem:[#allocation24 + $0x158] sm:$0xff]
      %v3789 = vld [vmem:[#allocation24 + $0x160] sm:$0xff]
      %v3790 = vld [vmem:[#allocation24 + $0x168] sm:$0xff]
      %v3791 = vld [vmem:[#allocation24 + $0x170] sm:$0xff]
      %v3792 = vld [vmem:[#allocation24 + $0x178] sm:$0xff]
      %v3793 = vld [vmem:[#allocation24 + $0x180] sm:$0xff]
      %v3794 = vld [vmem:[#allocation24 + $0x188] sm:$0xff]
      %v3795 = vld [vmem:[#allocation24 + $0x190] sm:$0xff]
      %v3796 = vld [vmem:[#allocation24 + $0x198] sm:$0xff]
      %v3797 = vld [vmem:[#allocation24 + $0x1a0] sm:$0xff]
      %v3798 = vld [vmem:[#allocation24 + $0x1a8] sm:$0xff]
      %v3799 = vld [vmem:[#allocation24 + $0x1b0] sm:$0xff]
      %v3800 = vld [vmem:[#allocation24 + $0x1b8] sm:$0xff]
      %v3801 = vld [vmem:[#allocation24 + $0x1c0] sm:$0xff]
      %v3802 = vld [vmem:[#allocation24 + $0x1c8] sm:$0xff]
      %v3803 = vld [vmem:[#allocation24 + $0x1d0] sm:$0xff]
      %v3804 = vld [vmem:[#allocation24 + $0x1d8] sm:$0xff]
      %v3805 = vld [vmem:[#allocation24 + $0x1e0] sm:$0xff]
      %v3806 = vld [vmem:[#allocation24 + $0x1e8] sm:$0xff]
      %v3807 = vld [vmem:[#allocation24 + $0x1f0] sm:$0xff]
      %v3808 = vld [vmem:[#allocation24 + $0x1f8] sm:$0xff]
      %v3809 = vld [vmem:[%s15] sm:$0xf]
      %v3874 = vunpack.c.l.b16 %v3745
      %v3875 = vunpack.c.h.b16 %v3745
      %v3876 = vunpack.c.l.b16 %v3746
      %v3877 = vunpack.c.h.b16 %v3746
      %v3878 = vunpack.c.l.b16 %v3747
      %v3879 = vunpack.c.h.b16 %v3747
      %v3880 = vunpack.c.l.b16 %v3748
      %v3881 = vunpack.c.h.b16 %v3748
      %v3882 = vunpack.c.l.b16 %v3749
      %v3883 = vunpack.c.h.b16 %v3749
      %v3884 = vunpack.c.l.b16 %v3750
      %v3885 = vunpack.c.h.b16 %v3750
      %v3886 = vunpack.c.l.b16 %v3751
      %v3887 = vunpack.c.h.b16 %v3751
      %v3888 = vunpack.c.l.b16 %v3752
      %v3889 = vunpack.c.h.b16 %v3752
      %v3890 = vunpack.c.l.b16 %v3753
      %v3891 = vunpack.c.h.b16 %v3753
      %v3892 = vunpack.c.l.b16 %v3754
      %v3893 = vunpack.c.h.b16 %v3754
      %v3894 = vunpack.c.l.b16 %v3755
      %v3895 = vunpack.c.h.b16 %v3755
      %v3896 = vunpack.c.l.b16 %v3756
      %v3897 = vunpack.c.h.b16 %v3756
      %v3898 = vunpack.c.l.b16 %v3757
      %v3899 = vunpack.c.h.b16 %v3757
      %v3900 = vunpack.c.l.b16 %v3758
      %v3901 = vunpack.c.h.b16 %v3758
      %v3902 = vunpack.c.l.b16 %v3759
      %v3903 = vunpack.c.h.b16 %v3759
      %v3904 = vunpack.c.l.b16 %v3760
      %v3905 = vunpack.c.h.b16 %v3760
      %v3906 = vunpack.c.l.b16 %v3761
      %v3907 = vunpack.c.h.b16 %v3761
      %v3908 = vunpack.c.l.b16 %v3762
      %v3909 = vunpack.c.h.b16 %v3762
      %v3910 = vunpack.c.l.b16 %v3763
      %v3911 = vunpack.c.h.b16 %v3763
      %v3912 = vunpack.c.l.b16 %v3764
      %v3913 = vunpack.c.h.b16 %v3764
      %v3914 = vunpack.c.l.b16 %v3765
      %v3915 = vunpack.c.h.b16 %v3765
      %v3916 = vunpack.c.l.b16 %v3766
      %v3917 = vunpack.c.h.b16 %v3766
      %v3918 = vunpack.c.l.b16 %v3767
      %v3919 = vunpack.c.h.b16 %v3767
      %v3920 = vunpack.c.l.b16 %v3768
      %v3921 = vunpack.c.h.b16 %v3768
      %v3922 = vunpack.c.l.b16 %v3769
      %v3923 = vunpack.c.h.b16 %v3769
      %v3924 = vunpack.c.l.b16 %v3770
      %v3925 = vunpack.c.h.b16 %v3770
      %v3926 = vunpack.c.l.b16 %v3771
      %v3927 = vunpack.c.h.b16 %v3771
      %v3928 = vunpack.c.l.b16 %v3772
      %v3929 = vunpack.c.h.b16 %v3772
      %v3930 = vunpack.c.l.b16 %v3773
      %v3931 = vunpack.c.h.b16 %v3773
      %v3932 = vunpack.c.l.b16 %v3774
      %v3933 = vunpack.c.h.b16 %v3774
      %v3934 = vunpack.c.l.b16 %v3775
      %v3935 = vunpack.c.h.b16 %v3775
      %v3936 = vunpack.c.l.b16 %v3776
      %v3937 = vunpack.c.h.b16 %v3776
      %v3938 = vunpack.c.l.b16 %v3777
      %v3939 = vunpack.c.h.b16 %v3777
      %v3940 = vunpack.c.l.b16 %v3778
      %v3941 = vunpack.c.h.b16 %v3778
      %v3942 = vunpack.c.l.b16 %v3779
      %v3943 = vunpack.c.h.b16 %v3779
      %v3944 = vunpack.c.l.b16 %v3780
      %v3945 = vunpack.c.h.b16 %v3780
      %v3946 = vunpack.c.l.b16 %v3781
      %v3947 = vunpack.c.h.b16 %v3781
      %v3948 = vunpack.c.l.b16 %v3782
      %v3949 = vunpack.c.h.b16 %v3782
      %v3950 = vunpack.c.l.b16 %v3783
      %v3951 = vunpack.c.h.b16 %v3783
      %v3952 = vunpack.c.l.b16 %v3784
      %v3953 = vunpack.c.h.b16 %v3784
      %v3954 = vunpack.c.l.b16 %v3785
      %v3955 = vunpack.c.h.b16 %v3785
      %v3956 = vunpack.c.l.b16 %v3786
      %v3957 = vunpack.c.h.b16 %v3786
      %v3958 = vunpack.c.l.b16 %v3787
      %v3959 = vunpack.c.h.b16 %v3787
      %v3960 = vunpack.c.l.b16 %v3788
      %v3961 = vunpack.c.h.b16 %v3788
      %v3962 = vunpack.c.l.b16 %v3789
      %v3963 = vunpack.c.h.b16 %v3789
      %v3964 = vunpack.c.l.b16 %v3790
      %v3965 = vunpack.c.h.b16 %v3790
      %v3966 = vunpack.c.l.b16 %v3791
      %v3967 = vunpack.c.h.b16 %v3791
      %v3968 = vunpack.c.l.b16 %v3792
      %v3969 = vunpack.c.h.b16 %v3792
      %v3970 = vunpack.c.l.b16 %v3793
      %v3971 = vunpack.c.h.b16 %v3793
      %v3972 = vunpack.c.l.b16 %v3794
      %v3973 = vunpack.c.h.b16 %v3794
      %v3974 = vunpack.c.l.b16 %v3795
      %v3975 = vunpack.c.h.b16 %v3795
      %v3976 = vunpack.c.l.b16 %v3796
      %v3977 = vunpack.c.h.b16 %v3796
      %v3978 = vunpack.c.l.b16 %v3797
      %v3979 = vunpack.c.h.b16 %v3797
      %v3980 = vunpack.c.l.b16 %v3798
      %v3981 = vunpack.c.h.b16 %v3798
      %v3982 = vunpack.c.l.b16 %v3799
      %v3983 = vunpack.c.h.b16 %v3799
      %v3984 = vunpack.c.l.b16 %v3800
      %v3985 = vunpack.c.h.b16 %v3800
      %v3986 = vunpack.c.l.b16 %v3801
      %v3987 = vunpack.c.h.b16 %v3801
      %v3988 = vunpack.c.l.b16 %v3802
      %v3989 = vunpack.c.h.b16 %v3802
      %v3990 = vunpack.c.l.b16 %v3803
      %v3991 = vunpack.c.h.b16 %v3803
      %v3992 = vunpack.c.l.b16 %v3804
      %v3993 = vunpack.c.h.b16 %v3804
      %v3994 = vunpack.c.l.b16 %v3805
      %v3995 = vunpack.c.h.b16 %v3805
      %v3996 = vunpack.c.l.b16 %v3806
      %v3997 = vunpack.c.h.b16 %v3806
      %v3998 = vunpack.c.l.b16 %v3807
      %v3999 = vunpack.c.h.b16 %v3807
      %v4000 = vunpack.c.l.b16 %v3808
      %v4001 = vunpack.c.h.b16 %v3808
      %v4002 = vpack.c.b16 %v3878, %v3874
      %v4003 = vpack.c.b16 %v3879, %v3875
      %v4004 = vpack.c.b16 %v3880, %v3876
      %v4005 = vpack.c.b16 %v3881, %v3877
      %v4006 = vpack.c.b16 %v3886, %v3882
      %v4007 = vpack.c.b16 %v3887, %v3883
      %v4008 = vpack.c.b16 %v3888, %v3884
      %v4009 = vpack.c.b16 %v3889, %v3885
      %v4010 = vpack.c.b16 %v3894, %v3890
      %v4011 = vpack.c.b16 %v3895, %v3891
      %v4012 = vpack.c.b16 %v3896, %v3892
      %v4013 = vpack.c.b16 %v3897, %v3893
      %v4014 = vpack.c.b16 %v3902, %v3898
      %v4015 = vpack.c.b16 %v3903, %v3899
      %v4016 = vpack.c.b16 %v3904, %v3900
      %v4017 = vpack.c.b16 %v3905, %v3901
      %v4018 = vpack.c.b16 %v3910, %v3906
      %v4019 = vpack.c.b16 %v3911, %v3907
      %v4020 = vpack.c.b16 %v3912, %v3908
      %v4021 = vpack.c.b16 %v3913, %v3909
      %v4022 = vpack.c.b16 %v3918, %v3914
      %v4023 = vpack.c.b16 %v3919, %v3915
      %v4024 = vpack.c.b16 %v3920, %v3916
      %v4025 = vpack.c.b16 %v3921, %v3917
      %v4026 = vpack.c.b16 %v3926, %v3922
      %v4027 = vpack.c.b16 %v3927, %v3923
      %v4028 = vpack.c.b16 %v3928, %v3924
      %v4029 = vpack.c.b16 %v3929, %v3925
      %v4030 = vpack.c.b16 %v3934, %v3930
      %v4031 = vpack.c.b16 %v3935, %v3931
      %v4032 = vpack.c.b16 %v3936, %v3932
      %v4033 = vpack.c.b16 %v3937, %v3933
      %v4034 = vpack.c.b16 %v3942, %v3938
      %v4035 = vpack.c.b16 %v3943, %v3939
      %v4036 = vpack.c.b16 %v3944, %v3940
      %v4037 = vpack.c.b16 %v3945, %v3941
      %v4038 = vpack.c.b16 %v3950, %v3946
      %v4039 = vpack.c.b16 %v3951, %v3947
      %v4040 = vpack.c.b16 %v3952, %v3948
      %v4041 = vpack.c.b16 %v3953, %v3949
      %v4042 = vpack.c.b16 %v3958, %v3954
      %v4043 = vpack.c.b16 %v3959, %v3955
      %v4044 = vpack.c.b16 %v3960, %v3956
      %v4045 = vpack.c.b16 %v3961, %v3957
      %v4046 = vpack.c.b16 %v3966, %v3962
      %v4047 = vpack.c.b16 %v3967, %v3963
      %v4048 = vpack.c.b16 %v3968, %v3964
      %v4049 = vpack.c.b16 %v3969, %v3965
      %v4050 = vpack.c.b16 %v3974, %v3970
      %v4051 = vpack.c.b16 %v3975, %v3971
      %v4052 = vpack.c.b16 %v3976, %v3972
      %v4053 = vpack.c.b16 %v3977, %v3973
      %v4054 = vpack.c.b16 %v3982, %v3978
      %v4055 = vpack.c.b16 %v3983, %v3979
      %v4056 = vpack.c.b16 %v3984, %v3980
      %v4057 = vpack.c.b16 %v3985, %v3981
      %v4058 = vpack.c.b16 %v3990, %v3986
      %v4059 = vpack.c.b16 %v3991, %v3987
      %v4060 = vpack.c.b16 %v3992, %v3988
      %v4061 = vpack.c.b16 %v3993, %v3989
      %v4062 = vpack.c.b16 %v3998, %v3994
      %v4063 = vpack.c.b16 %v3999, %v3995
      %v4064 = vpack.c.b16 %v4000, %v3996
      %v4065 = vpack.c.b16 %v4001, %v3997
      %v4131 = vperm.slane %v3809, 0
      %v4132 = vperm.slane %v3809, 1
      %v4133 = vperm.slane %v3809, 2
      %v4134 = vperm.slane %v3809, 3
      %4139 = vmatpush.bf16.msra.mxu0 %v4030
      %4140 = vmatpush.bf16.msra.mxu0 %v4026
      %4141 = vmatpush.bf16.msra.mxu0 %v4022
      %4142 = vmatpush.bf16.msra.mxu0 %v4018
      %4143 = vmatpush.bf16.msra.mxu0 %v4014
      %4144 = vmatpush.bf16.msra.mxu0 %v4010
      %4145 = vmatpush.bf16.msra.mxu0 %v4006
      %4146 = vmatpush.bf16.msra.mxu0 %v4002
      %4147 = vmatmul.bf16.gmra.mxu0 %v3744
      %v4148 = vpop.f32.mrf.mxu0
      %v4149 = vadd.f32 %v4131, %v4148
      %v4150 = vpop.f32.mrf.mxu0
      %4151 = vdwg.mxu0
      %4152 = vmatpush.bf16.msra.mxu0 %v4062
      %4153 = vmatpush.bf16.msra.mxu0 %v4058
      %4154 = vmatpush.bf16.msra.mxu0 %v4054
      %4155 = vmatpush.bf16.msra.mxu0 %v4050
      %4156 = vmatpush.bf16.msra.mxu0 %v4046
      %4157 = vmatpush.bf16.msra.mxu0 %v4042
      %4158 = vmatpush.bf16.msra.mxu0 %v4038
      %4159 = vmatpush.bf16.msra.mxu0 %v4034
      %4160 = vmatmul.bf16.gmra.mxu0 %v3096
      %v4161 = vpop.f32.mrf.mxu0
      %v4162 = vadd.f32 %v4149, %v4161
      %v4163 = vpop.f32.mrf.mxu0
      %4164 = vdwg.mxu0
      %4165 = vmatpush.bf16.msra.mxu0 %v4031
      %4166 = vmatpush.bf16.msra.mxu0 %v4027
      %4167 = vmatpush.bf16.msra.mxu0 %v4023
      %4168 = vmatpush.bf16.msra.mxu0 %v4019
      %4169 = vmatpush.bf16.msra.mxu0 %v4015
      %4170 = vmatpush.bf16.msra.mxu0 %v4011
      %4171 = vmatpush.bf16.msra.mxu0 %v4007
      %4172 = vmatpush.bf16.msra.mxu0 %v4003
      %4173 = vmatmul.bf16.gmra.mxu0 %v3744
      %v4174 = vpop.f32.mrf.mxu0
      %v4175 = vadd.f32 %v4132, %v4174
      %v4176 = vpop.f32.mrf.mxu0
      %4177 = vdwg.mxu0
      %4178 = vmatpush.bf16.msra.mxu0 %v4063
      %4179 = vmatpush.bf16.msra.mxu0 %v4059
      %4180 = vmatpush.bf16.msra.mxu0 %v4055
      %4181 = vmatpush.bf16.msra.mxu0 %v4051
      %4182 = vmatpush.bf16.msra.mxu0 %v4047
      %4183 = vmatpush.bf16.msra.mxu0 %v4043
      %4184 = vmatpush.bf16.msra.mxu0 %v4039
      %4185 = vmatpush.bf16.msra.mxu0 %v4035
      %4186 = vmatmul.bf16.gmra.mxu0 %v3096
      %v4187 = vpop.f32.mrf.mxu0
      %v4188 = vadd.f32 %v4175, %v4187
      %v4189 = vpop.f32.mrf.mxu0
      %4190 = vdwg.mxu0
      %4191 = vmatpush.bf16.msra.mxu0 %v4032
      %4192 = vmatpush.bf16.msra.mxu0 %v4028
      %4193 = vmatpush.bf16.msra.mxu0 %v4024
      %4194 = vmatpush.bf16.msra.mxu0 %v4020
      %4195 = vmatpush.bf16.msra.mxu0 %v4016
      %4196 = vmatpush.bf16.msra.mxu0 %v4012
      %4197 = vmatpush.bf16.msra.mxu0 %v4008
      %4198 = vmatpush.bf16.msra.mxu0 %v4004
      %4199 = vmatmul.bf16.gmra.mxu0 %v3744
      %v4200 = vpop.f32.mrf.mxu0
      %v4201 = vadd.f32 %v4133, %v4200
      %v4202 = vpop.f32.mrf.mxu0
      %4203 = vdwg.mxu0
      %4204 = vmatpush.bf16.msra.mxu0 %v4064
      %4205 = vmatpush.bf16.msra.mxu0 %v4060
      %4206 = vmatpush.bf16.msra.mxu0 %v4056
      %4207 = vmatpush.bf16.msra.mxu0 %v4052
      %4208 = vmatpush.bf16.msra.mxu0 %v4048
      %4209 = vmatpush.bf16.msra.mxu0 %v4044
      %4210 = vmatpush.bf16.msra.mxu0 %v4040
      %4211 = vmatpush.bf16.msra.mxu0 %v4036
      %4212 = vmatmul.bf16.gmra.mxu0 %v3096
      %v4213 = vpop.f32.mrf.mxu0
      %v4214 = vadd.f32 %v4201, %v4213
      %v4215 = vpop.f32.mrf.mxu0
      %4216 = vdwg.mxu0
      %4217 = vmatpush.bf16.msra.mxu0 %v4033
      %4218 = vmatpush.bf16.msra.mxu0 %v4029
      %4219 = vmatpush.bf16.msra.mxu0 %v4025
      %4220 = vmatpush.bf16.msra.mxu0 %v4021
      %4221 = vmatpush.bf16.msra.mxu0 %v4017
      %4222 = vmatpush.bf16.msra.mxu0 %v4013
      %4223 = vmatpush.bf16.msra.mxu0 %v4009
      %4224 = vmatpush.bf16.msra.mxu0 %v4005
      %4225 = vmatmul.bf16.gmra.mxu0 %v3744
      %v4226 = vpop.f32.mrf.mxu0
      %v4227 = vadd.f32 %v4134, %v4226
      %v4228 = vpop.f32.mrf.mxu0
      %4229 = vdwg.mxu0
      %4230 = vmatpush.bf16.msra.mxu0 %v4065
      %4231 = vmatpush.bf16.msra.mxu0 %v4061
      %4232 = vmatpush.bf16.msra.mxu0 %v4057
      %4233 = vmatpush.bf16.msra.mxu0 %v4053
      %4234 = vmatpush.bf16.msra.mxu0 %v4049
      %4235 = vmatpush.bf16.msra.mxu0 %v4045
      %4236 = vmatpush.bf16.msra.mxu0 %v4041
      %4237 = vmatpush.bf16.msra.mxu0 %v4037
      %4238 = vmatmul.bf16.gmra.mxu0 %v3096
      %v4239 = vpop.f32.mrf.mxu0
      %v4240 = vadd.f32 %v4227, %v4239
      %v4241 = vpop.f32.mrf.mxu0
      %4242 = vdwg.mxu0
      %v4243 = vxor.u32 %v4162, 2147483648
      %v4244 = vmul.f32 %v4243, 1.442695
      %v4245 = vpow.pop %v4244
      %v4246 = vadd.f32 %v4245, 1.0
      %v4247 = vrcp.pop %v4246
      %v4248 = vmul.f32 %v4246, %v4247
      %v4249 = vsub.f32 1.0, %v4248
      %v4250 = vmul.f32 %v4247, %v4249
      %v4251 = vadd.f32 %v4247, %v4250
      %vm4252 = vweird.f32 %v4246
      %vm4253 = vweird.f32 %v4247
      %vm4254 = vmor %vm4252, %vm4253
      %v4255 = vsel %vm4254, %v4247, %v4251
      %v4256 = vand.u32 2147483647, %v4246
      %vm4257 = vcmp.eq.f32.partialorder %v4256, 8.507059e+37
      %v4258 = vand.u32 %v4246, 2147483648
      %v4259 = vor.u32 1.1754944e-38, %v4258
      %v4260 = vsel %vm4257, %v4259, %v4255
      %v4261 = vmul.f32 1.0, %v4260
      %v4262 = vxor.u32 %v4188, 2147483648
      %v4263 = vmul.f32 %v4262, 1.442695
      %v4264 = vpow.pop %v4263
      %v4265 = vadd.f32 %v4264, 1.0
      %v4266 = vrcp.pop %v4265
      %v4267 = vmul.f32 %v4265, %v4266
      %v4268 = vsub.f32 1.0, %v4267
      %v4269 = vmul.f32 %v4266, %v4268
      %v4270 = vadd.f32 %v4266, %v4269
      %vm4271 = vweird.f32 %v4265
      %vm4272 = vweird.f32 %v4266
      %vm4273 = vmor %vm4271, %vm4272
      %v4274 = vsel %vm4273, %v4266, %v4270
      %v4275 = vand.u32 2147483647, %v4265
      %vm4276 = vcmp.eq.f32.partialorder %v4275, 8.507059e+37
      %v4277 = vand.u32 %v4265, 2147483648
      %v4278 = vor.u32 1.1754944e-38, %v4277
      %v4279 = vsel %vm4276, %v4278, %v4274
      %v4280 = vmul.f32 1.0, %v4279
      %v4281 = vtanh.pop %v4214
      %v4282 = vxor.u32 %v4240, 2147483648
      %v4283 = vmul.f32 %v4282, 1.442695
      %v4284 = vpow.pop %v4283
      %v4285 = vadd.f32 %v4284, 1.0
      %v4286 = vrcp.pop %v4285
      %v4287 = vmul.f32 %v4285, %v4286
      %v4288 = vsub.f32 1.0, %v4287
      %v4289 = vmul.f32 %v4286, %v4288
      %v4290 = vadd.f32 %v4286, %v4289
      %vm4291 = vweird.f32 %v4285
      %vm4292 = vweird.f32 %v4286
      %vm4293 = vmor %vm4291, %vm4292
      %v4294 = vsel %vm4293, %v4286, %v4290
      %v4295 = vand.u32 2147483647, %v4285
      %vm4296 = vcmp.eq.f32.partialorder %v4295, 8.507059e+37
      %v4297 = vand.u32 %v4285, 2147483648
      %v4298 = vor.u32 1.1754944e-38, %v4297
      %v4299 = vsel %vm4296, %v4298, %v4294
      %v4300 = vmul.f32 1.0, %v4299
      %v4301 = vmul.f32 %v4280, %v3093
      %v4302 = vmul.f32 %v4261, %v4281
      %v4303 = vadd.f32 %v4301, %v4302
      %v4304 = vtanh.pop %v4303
      %v4305 = vmul.f32 %v4300, %v4304
      %v4306 = vpack.c.bf16 %v4305, %v4305
      %v4307 = vld [vmem:[#allocation25] sm:$0xf]
      %v4308 = vld [vmem:[#allocation25 + $0x4] sm:$0xf]
      %v4309 = vld [vmem:[#allocation25 + $0x8] sm:$0xf]
      %v4310 = vld [vmem:[#allocation25 + $0xc] sm:$0xf]
      %v4311 = vld [vmem:[#allocation25 + $0x10] sm:$0xf]
      %v4312 = vld [vmem:[#allocation25 + $0x14] sm:$0xf]
      %v4313 = vld [vmem:[#allocation25 + $0x18] sm:$0xf]
      %v4314 = vld [vmem:[#allocation25 + $0x1c] sm:$0xf]
      %v4315 = vld [vmem:[#allocation25 + $0x20] sm:$0xf]
      %v4316 = vld [vmem:[#allocation25 + $0x24] sm:$0xf]
      %v4317 = vld [vmem:[#allocation25 + $0x28] sm:$0xf]
      %v4318 = vld [vmem:[#allocation25 + $0x2c] sm:$0xf]
      %v4319 = vld [vmem:[#allocation25 + $0x30] sm:$0xf]
      %v4320 = vld [vmem:[#allocation25 + $0x34] sm:$0xf]
      %v4321 = vld [vmem:[#allocation25 + $0x38] sm:$0xf]
      %v4322 = vld [vmem:[#allocation25 + $0x3c] sm:$0xf]
      %v4323 = vld [vmem:[%s17] sm:$0x1]
      %v4340 = vunpack.c.l.b16 %v4307
      %v4341 = vunpack.c.l.b16 %v4308
      %v4342 = vunpack.c.l.b16 %v4309
      %v4343 = vunpack.c.l.b16 %v4310
      %v4344 = vunpack.c.l.b16 %v4311
      %v4345 = vunpack.c.l.b16 %v4312
      %v4346 = vunpack.c.l.b16 %v4313
      %v4347 = vunpack.c.l.b16 %v4314
      %v4348 = vunpack.c.l.b16 %v4315
      %v4349 = vunpack.c.l.b16 %v4316
      %v4350 = vunpack.c.l.b16 %v4317
      %v4351 = vunpack.c.l.b16 %v4318
      %v4352 = vunpack.c.l.b16 %v4319
      %v4353 = vunpack.c.l.b16 %v4320
      %v4354 = vunpack.c.l.b16 %v4321
      %v4355 = vunpack.c.l.b16 %v4322
      %v4356 = vpack.c.b16 %v4341, %v4340
      %v4357 = vpack.c.b16 %v4343, %v4342
      %v4358 = vpack.c.b16 %v4345, %v4344
      %v4359 = vpack.c.b16 %v4347, %v4346
      %v4360 = vpack.c.b16 %v4349, %v4348
      %v4361 = vpack.c.b16 %v4351, %v4350
      %v4362 = vpack.c.b16 %v4353, %v4352
      %v4363 = vpack.c.b16 %v4355, %v4354
      %4372 = vmatpush.bf16.msra.mxu0 %v4363
      %4373 = vmatpush.bf16.msra.mxu0 %v4362
      %4374 = vmatpush.bf16.msra.mxu0 %v4361
      %4375 = vmatpush.bf16.msra.mxu0 %v4360
      %4376 = vmatpush.bf16.msra.mxu0 %v4359
      %4377 = vmatpush.bf16.msra.mxu0 %v4358
      %4378 = vmatpush.bf16.msra.mxu0 %v4357
      %4379 = vmatpush.bf16.msra.mxu0 %v4356
      %4380 = vmatmul.bf16.gmra.mxu0 %v4306
      %v4381 = vpop.f32.mrf.mxu0
      %v4382 = vadd.f32 %v4323, %v4381
      %v4383 = vpop.f32.mrf.mxu0
      %4384 = vdwg.mxu0
      %v4385 = vsel %vm1517, %v4382, -inf
      %4386 = vmax.xlane.f32.xlu0 %v4385
      %v4387 = vpop.xlane.xlu0 %4386
      %v4388 = vsub.f32 %v4382, %v4387
      %v4389 = vmul.f32 %v4388, 1.442695
      %v4390 = vpow.pop %v4389
      %v4391 = vsel %vm1517, %v4390, 0.0
      %4392 = vadd.xlane.f32.xlu0 %v4391
      %v4393 = vpop.xlane.xlu0 %4392
      %v4394 = vrcp.pop %v4393
      %v4395 = vmul.f32 %v4393, %v4394
      %v4396 = vsub.f32 2.0, %v4395
      %v4397 = vmul.f32 %v4394, %v4396
      %v4398 = vmul.f32 %v4390, %v4397
      %s4399 = sadd.s32 %s3189, 1
      %s4400 = scalar_lea.vmem [#allocation27], %s4399
      %4401 = vst [vmem:[%s4400] sm:$0x1] %v4398
      %v4402 = vpack.c.bf16 %v4398, %v4398
      %v4403 = vld [vmem:[#allocation22] sm:$0xff]
      %v4404 = vld [vmem:[#allocation22 + $0x8] sm:$0xff]
      %v4405 = vld [vmem:[#allocation22 + $0x10] sm:$0xff]
      %v4406 = vld [vmem:[#allocation22 + $0x18] sm:$0xff]
      %v4407 = vld [vmem:[#allocation22 + $0x20] sm:$0xff]
      %v4408 = vld [vmem:[#allocation22 + $0x28] sm:$0xff]
      %v4409 = vld [vmem:[#allocation22 + $0x30] sm:$0xff]
      %v4410 = vld [vmem:[#allocation22 + $0x38] sm:$0xff]
      %v4411 = vld [vmem:[#allocation22 + $0x40] sm:$0xff]
      %v4412 = vld [vmem:[#allocation22 + $0x48] sm:$0xff]
      %v4413 = vld [vmem:[#allocation22 + $0x50] sm:$0xff]
      %v4414 = vld [vmem:[#allocation22 + $0x58] sm:$0xff]
      %v4415 = vld [vmem:[#allocation22 + $0x60] sm:$0xff]
      %v4416 = vld [vmem:[#allocation22 + $0x68] sm:$0xff]
      %v4417 = vld [vmem:[#allocation22 + $0x70] sm:$0xff]
      %v4418 = vld [vmem:[#allocation22 + $0x78] sm:$0xff]
      %v4419 = vld [vmem:[#allocation22 + $0x80] sm:$0xff]
      %v4420 = vld [vmem:[#allocation22 + $0x88] sm:$0xff]
      %v4421 = vld [vmem:[#allocation22 + $0x90] sm:$0xff]
      %v4422 = vld [vmem:[#allocation22 + $0x98] sm:$0xff]
      %v4423 = vld [vmem:[#allocation22 + $0xa0] sm:$0xff]
      %v4424 = vld [vmem:[#allocation22 + $0xa8] sm:$0xff]
      %v4425 = vld [vmem:[#allocation22 + $0xb0] sm:$0xff]
      %v4426 = vld [vmem:[#allocation22 + $0xb8] sm:$0xff]
      %v4427 = vld [vmem:[#allocation22 + $0xc0] sm:$0xff]
      %v4428 = vld [vmem:[#allocation22 + $0xc8] sm:$0xff]
      %v4429 = vld [vmem:[#allocation22 + $0xd0] sm:$0xff]
      %v4430 = vld [vmem:[#allocation22 + $0xd8] sm:$0xff]
      %v4431 = vld [vmem:[#allocation22 + $0xe0] sm:$0xff]
      %v4432 = vld [vmem:[#allocation22 + $0xe8] sm:$0xff]
      %v4433 = vld [vmem:[#allocation22 + $0xf0] sm:$0xff]
      %v4434 = vld [vmem:[#allocation22 + $0xf8] sm:$0xff]
      %v4435 = vld [vmem:[#allocation22 + $0x100] sm:$0xff]
      %v4436 = vld [vmem:[#allocation22 + $0x108] sm:$0xff]
      %v4437 = vld [vmem:[#allocation22 + $0x110] sm:$0xff]
      %v4438 = vld [vmem:[#allocation22 + $0x118] sm:$0xff]
      %v4439 = vld [vmem:[#allocation22 + $0x120] sm:$0xff]
      %v4440 = vld [vmem:[#allocation22 + $0x128] sm:$0xff]
      %v4441 = vld [vmem:[#allocation22 + $0x130] sm:$0xff]
      %v4442 = vld [vmem:[#allocation22 + $0x138] sm:$0xff]
      %v4443 = vld [vmem:[#allocation22 + $0x140] sm:$0xff]
      %v4444 = vld [vmem:[#allocation22 + $0x148] sm:$0xff]
      %v4445 = vld [vmem:[#allocation22 + $0x150] sm:$0xff]
      %v4446 = vld [vmem:[#allocation22 + $0x158] sm:$0xff]
      %v4447 = vld [vmem:[#allocation22 + $0x160] sm:$0xff]
      %v4448 = vld [vmem:[#allocation22 + $0x168] sm:$0xff]
      %v4449 = vld [vmem:[#allocation22 + $0x170] sm:$0xff]
      %v4450 = vld [vmem:[#allocation22 + $0x178] sm:$0xff]
      %v4451 = vld [vmem:[#allocation22 + $0x180] sm:$0xff]
      %v4452 = vld [vmem:[#allocation22 + $0x188] sm:$0xff]
      %v4453 = vld [vmem:[#allocation22 + $0x190] sm:$0xff]
      %v4454 = vld [vmem:[#allocation22 + $0x198] sm:$0xff]
      %v4455 = vld [vmem:[#allocation22 + $0x1a0] sm:$0xff]
      %v4456 = vld [vmem:[#allocation22 + $0x1a8] sm:$0xff]
      %v4457 = vld [vmem:[#allocation22 + $0x1b0] sm:$0xff]
      %v4458 = vld [vmem:[#allocation22 + $0x1b8] sm:$0xff]
      %v4459 = vld [vmem:[#allocation22 + $0x1c0] sm:$0xff]
      %v4460 = vld [vmem:[#allocation22 + $0x1c8] sm:$0xff]
      %v4461 = vld [vmem:[#allocation22 + $0x1d0] sm:$0xff]
      %v4462 = vld [vmem:[#allocation22 + $0x1d8] sm:$0xff]
      %v4463 = vld [vmem:[#allocation22 + $0x1e0] sm:$0xff]
      %v4464 = vld [vmem:[#allocation22 + $0x1e8] sm:$0xff]
      %v4465 = vld [vmem:[#allocation22 + $0x1f0] sm:$0xff]
      %v4466 = vld [vmem:[#allocation22 + $0x1f8] sm:$0xff]
      %v4531 = vunpack.c.l.b16 %v4403
      %v4532 = vunpack.c.h.b16 %v4403
      %v4533 = vunpack.c.l.b16 %v4404
      %v4534 = vunpack.c.h.b16 %v4404
      %v4535 = vunpack.c.l.b16 %v4405
      %v4536 = vunpack.c.h.b16 %v4405
      %v4537 = vunpack.c.l.b16 %v4406
      %v4538 = vunpack.c.h.b16 %v4406
      %v4539 = vunpack.c.l.b16 %v4407
      %v4540 = vunpack.c.h.b16 %v4407
      %v4541 = vunpack.c.l.b16 %v4408
      %v4542 = vunpack.c.h.b16 %v4408
      %v4543 = vunpack.c.l.b16 %v4409
      %v4544 = vunpack.c.h.b16 %v4409
      %v4545 = vunpack.c.l.b16 %v4410
      %v4546 = vunpack.c.h.b16 %v4410
      %v4547 = vunpack.c.l.b16 %v4411
      %v4548 = vunpack.c.h.b16 %v4411
      %v4549 = vunpack.c.l.b16 %v4412
      %v4550 = vunpack.c.h.b16 %v4412
      %v4551 = vunpack.c.l.b16 %v4413
      %v4552 = vunpack.c.h.b16 %v4413
      %v4553 = vunpack.c.l.b16 %v4414
      %v4554 = vunpack.c.h.b16 %v4414
      %v4555 = vunpack.c.l.b16 %v4415
      %v4556 = vunpack.c.h.b16 %v4415
      %v4557 = vunpack.c.l.b16 %v4416
      %v4558 = vunpack.c.h.b16 %v4416
      %v4559 = vunpack.c.l.b16 %v4417
      %v4560 = vunpack.c.h.b16 %v4417
      %v4561 = vunpack.c.l.b16 %v4418
      %v4562 = vunpack.c.h.b16 %v4418
      %v4563 = vunpack.c.l.b16 %v4419
      %v4564 = vunpack.c.h.b16 %v4419
      %v4565 = vunpack.c.l.b16 %v4420
      %v4566 = vunpack.c.h.b16 %v4420
      %v4567 = vunpack.c.l.b16 %v4421
      %v4568 = vunpack.c.h.b16 %v4421
      %v4569 = vunpack.c.l.b16 %v4422
      %v4570 = vunpack.c.h.b16 %v4422
      %v4571 = vunpack.c.l.b16 %v4423
      %v4572 = vunpack.c.h.b16 %v4423
      %v4573 = vunpack.c.l.b16 %v4424
      %v4574 = vunpack.c.h.b16 %v4424
      %v4575 = vunpack.c.l.b16 %v4425
      %v4576 = vunpack.c.h.b16 %v4425
      %v4577 = vunpack.c.l.b16 %v4426
      %v4578 = vunpack.c.h.b16 %v4426
      %v4579 = vunpack.c.l.b16 %v4427
      %v4580 = vunpack.c.h.b16 %v4427
      %v4581 = vunpack.c.l.b16 %v4428
      %v4582 = vunpack.c.h.b16 %v4428
      %v4583 = vunpack.c.l.b16 %v4429
      %v4584 = vunpack.c.h.b16 %v4429
      %v4585 = vunpack.c.l.b16 %v4430
      %v4586 = vunpack.c.h.b16 %v4430
      %v4587 = vunpack.c.l.b16 %v4431
      %v4588 = vunpack.c.h.b16 %v4431
      %v4589 = vunpack.c.l.b16 %v4432
      %v4590 = vunpack.c.h.b16 %v4432
      %v4591 = vunpack.c.l.b16 %v4433
      %v4592 = vunpack.c.h.b16 %v4433
      %v4593 = vunpack.c.l.b16 %v4434
      %v4594 = vunpack.c.h.b16 %v4434
      %v4595 = vunpack.c.l.b16 %v4435
      %v4596 = vunpack.c.h.b16 %v4435
      %v4597 = vunpack.c.l.b16 %v4436
      %v4598 = vunpack.c.h.b16 %v4436
      %v4599 = vunpack.c.l.b16 %v4437
      %v4600 = vunpack.c.h.b16 %v4437
      %v4601 = vunpack.c.l.b16 %v4438
      %v4602 = vunpack.c.h.b16 %v4438
      %v4603 = vunpack.c.l.b16 %v4439
      %v4604 = vunpack.c.h.b16 %v4439
      %v4605 = vunpack.c.l.b16 %v4440
      %v4606 = vunpack.c.h.b16 %v4440
      %v4607 = vunpack.c.l.b16 %v4441
      %v4608 = vunpack.c.h.b16 %v4441
      %v4609 = vunpack.c.l.b16 %v4442
      %v4610 = vunpack.c.h.b16 %v4442
      %v4611 = vunpack.c.l.b16 %v4443
      %v4612 = vunpack.c.h.b16 %v4443
      %v4613 = vunpack.c.l.b16 %v4444
      %v4614 = vunpack.c.h.b16 %v4444
      %v4615 = vunpack.c.l.b16 %v4445
      %v4616 = vunpack.c.h.b16 %v4445
      %v4617 = vunpack.c.l.b16 %v4446
      %v4618 = vunpack.c.h.b16 %v4446
      %v4619 = vunpack.c.l.b16 %v4447
      %v4620 = vunpack.c.h.b16 %v4447
      %v4621 = vunpack.c.l.b16 %v4448
      %v4622 = vunpack.c.h.b16 %v4448
      %v4623 = vunpack.c.l.b16 %v4449
      %v4624 = vunpack.c.h.b16 %v4449
      %v4625 = vunpack.c.l.b16 %v4450
      %v4626 = vunpack.c.h.b16 %v4450
      %v4627 = vunpack.c.l.b16 %v4451
      %v4628 = vunpack.c.h.b16 %v4451
      %v4629 = vunpack.c.l.b16 %v4452
      %v4630 = vunpack.c.h.b16 %v4452
      %v4631 = vunpack.c.l.b16 %v4453
      %v4632 = vunpack.c.h.b16 %v4453
      %v4633 = vunpack.c.l.b16 %v4454
      %v4634 = vunpack.c.h.b16 %v4454
      %v4635 = vunpack.c.l.b16 %v4455
      %v4636 = vunpack.c.h.b16 %v4455
      %v4637 = vunpack.c.l.b16 %v4456
      %v4638 = vunpack.c.h.b16 %v4456
      %v4639 = vunpack.c.l.b16 %v4457
      %v4640 = vunpack.c.h.b16 %v4457
      %v4641 = vunpack.c.l.b16 %v4458
      %v4642 = vunpack.c.h.b16 %v4458
      %v4643 = vunpack.c.l.b16 %v4459
      %v4644 = vunpack.c.h.b16 %v4459
      %v4645 = vunpack.c.l.b16 %v4460
      %v4646 = vunpack.c.h.b16 %v4460
      %v4647 = vunpack.c.l.b16 %v4461
      %v4648 = vunpack.c.h.b16 %v4461
      %v4649 = vunpack.c.l.b16 %v4462
      %v4650 = vunpack.c.h.b16 %v4462
      %v4651 = vunpack.c.l.b16 %v4463
      %v4652 = vunpack.c.h.b16 %v4463
      %v4653 = vunpack.c.l.b16 %v4464
      %v4654 = vunpack.c.h.b16 %v4464
      %v4655 = vunpack.c.l.b16 %v4465
      %v4656 = vunpack.c.h.b16 %v4465
      %v4657 = vunpack.c.l.b16 %v4466
      %v4658 = vunpack.c.h.b16 %v4466
      %v4659 = vpack.c.b16 %v4535, %v4531
      %v4660 = vpack.c.b16 %v4536, %v4532
      %v4661 = vpack.c.b16 %v4537, %v4533
      %v4662 = vpack.c.b16 %v4538, %v4534
      %v4663 = vpack.c.b16 %v4543, %v4539
      %v4664 = vpack.c.b16 %v4544, %v4540
      %v4665 = vpack.c.b16 %v4545, %v4541
      %v4666 = vpack.c.b16 %v4546, %v4542
      %v4667 = vpack.c.b16 %v4551, %v4547
      %v4668 = vpack.c.b16 %v4552, %v4548
      %v4669 = vpack.c.b16 %v4553, %v4549
      %v4670 = vpack.c.b16 %v4554, %v4550
      %v4671 = vpack.c.b16 %v4559, %v4555
      %v4672 = vpack.c.b16 %v4560, %v4556
      %v4673 = vpack.c.b16 %v4561, %v4557
      %v4674 = vpack.c.b16 %v4562, %v4558
      %v4675 = vpack.c.b16 %v4567, %v4563
      %v4676 = vpack.c.b16 %v4568, %v4564
      %v4677 = vpack.c.b16 %v4569, %v4565
      %v4678 = vpack.c.b16 %v4570, %v4566
      %v4679 = vpack.c.b16 %v4575, %v4571
      %v4680 = vpack.c.b16 %v4576, %v4572
      %v4681 = vpack.c.b16 %v4577, %v4573
      %v4682 = vpack.c.b16 %v4578, %v4574
      %v4683 = vpack.c.b16 %v4583, %v4579
      %v4684 = vpack.c.b16 %v4584, %v4580
      %v4685 = vpack.c.b16 %v4585, %v4581
      %v4686 = vpack.c.b16 %v4586, %v4582
      %v4687 = vpack.c.b16 %v4591, %v4587
      %v4688 = vpack.c.b16 %v4592, %v4588
      %v4689 = vpack.c.b16 %v4593, %v4589
      %v4690 = vpack.c.b16 %v4594, %v4590
      %v4691 = vpack.c.b16 %v4599, %v4595
      %v4692 = vpack.c.b16 %v4600, %v4596
      %v4693 = vpack.c.b16 %v4601, %v4597
      %v4694 = vpack.c.b16 %v4602, %v4598
      %v4695 = vpack.c.b16 %v4607, %v4603
      %v4696 = vpack.c.b16 %v4608, %v4604
      %v4697 = vpack.c.b16 %v4609, %v4605
      %v4698 = vpack.c.b16 %v4610, %v4606
      %v4699 = vpack.c.b16 %v4615, %v4611
      %v4700 = vpack.c.b16 %v4616, %v4612
      %v4701 = vpack.c.b16 %v4617, %v4613
      %v4702 = vpack.c.b16 %v4618, %v4614
      %v4703 = vpack.c.b16 %v4623, %v4619
      %v4704 = vpack.c.b16 %v4624, %v4620
      %v4705 = vpack.c.b16 %v4625, %v4621
      %v4706 = vpack.c.b16 %v4626, %v4622
      %v4707 = vpack.c.b16 %v4631, %v4627
      %v4708 = vpack.c.b16 %v4632, %v4628
      %v4709 = vpack.c.b16 %v4633, %v4629
      %v4710 = vpack.c.b16 %v4634, %v4630
      %v4711 = vpack.c.b16 %v4639, %v4635
      %v4712 = vpack.c.b16 %v4640, %v4636
      %v4713 = vpack.c.b16 %v4641, %v4637
      %v4714 = vpack.c.b16 %v4642, %v4638
      %v4715 = vpack.c.b16 %v4647, %v4643
      %v4716 = vpack.c.b16 %v4648, %v4644
      %v4717 = vpack.c.b16 %v4649, %v4645
      %v4718 = vpack.c.b16 %v4650, %v4646
      %v4719 = vpack.c.b16 %v4655, %v4651
      %v4720 = vpack.c.b16 %v4656, %v4652
      %v4721 = vpack.c.b16 %v4657, %v4653
      %v4722 = vpack.c.b16 %v4658, %v4654
      %4787 = vmatpush.bf16.msra.mxu0 %v4687
      %4788 = vmatpush.bf16.msra.mxu0 %v4683
      %4789 = vmatpush.bf16.msra.mxu0 %v4679
      %4790 = vmatpush.bf16.msra.mxu0 %v4675
      %4791 = vmatpush.bf16.msra.mxu0 %v4671
      %4792 = vmatpush.bf16.msra.mxu0 %v4667
      %4793 = vmatpush.bf16.msra.mxu0 %v4663
      %4794 = vmatpush.bf16.msra.mxu0 %v4659
      %4795 = vmatmul.bf16.gmra.mxu0 %v4402
      %v4796 = vpop.f32.mrf.mxu0
      %v4797 = vadd.f32 %v2359, %v4796
      %v4798 = vpop.f32.mrf.mxu0
      %4799 = vdwg.mxu0
      %4800 = vmatpush.bf16.msra.mxu0 %v4719
      %4801 = vmatpush.bf16.msra.mxu0 %v4715
      %4802 = vmatpush.bf16.msra.mxu0 %v4711
      %4803 = vmatpush.bf16.msra.mxu0 %v4707
      %4804 = vmatpush.bf16.msra.mxu0 %v4703
      %4805 = vmatpush.bf16.msra.mxu0 %v4699
      %4806 = vmatpush.bf16.msra.mxu0 %v4695
      %4807 = vmatpush.bf16.msra.mxu0 %v4691
      %4808 = vmatmul.bf16.gmra.mxu0 %v3744
      %v4809 = vpop.f32.mrf.mxu0
      %v4810 = vadd.f32 %v4797, %v4809
      %v4811 = vpop.f32.mrf.mxu0
      %4812 = vdwg.mxu0
      %4813 = vmatpush.bf16.msra.mxu0 %v4688
      %4814 = vmatpush.bf16.msra.mxu0 %v4684
      %4815 = vmatpush.bf16.msra.mxu0 %v4680
      %4816 = vmatpush.bf16.msra.mxu0 %v4676
      %4817 = vmatpush.bf16.msra.mxu0 %v4672
      %4818 = vmatpush.bf16.msra.mxu0 %v4668
      %4819 = vmatpush.bf16.msra.mxu0 %v4664
      %4820 = vmatpush.bf16.msra.mxu0 %v4660
      %4821 = vmatmul.bf16.gmra.mxu0 %v4402
      %v4822 = vpop.f32.mrf.mxu0
      %v4823 = vadd.f32 %v2360, %v4822
      %v4824 = vpop.f32.mrf.mxu0
      %4825 = vdwg.mxu0
      %4826 = vmatpush.bf16.msra.mxu0 %v4720
      %4827 = vmatpush.bf16.msra.mxu0 %v4716
      %4828 = vmatpush.bf16.msra.mxu0 %v4712
      %4829 = vmatpush.bf16.msra.mxu0 %v4708
      %4830 = vmatpush.bf16.msra.mxu0 %v4704
      %4831 = vmatpush.bf16.msra.mxu0 %v4700
      %4832 = vmatpush.bf16.msra.mxu0 %v4696
      %4833 = vmatpush.bf16.msra.mxu0 %v4692
      %4834 = vmatmul.bf16.gmra.mxu0 %v3744
      %v4835 = vpop.f32.mrf.mxu0
      %v4836 = vadd.f32 %v4823, %v4835
      %v4837 = vpop.f32.mrf.mxu0
      %4838 = vdwg.mxu0
      %4839 = vmatpush.bf16.msra.mxu0 %v4689
      %4840 = vmatpush.bf16.msra.mxu0 %v4685
      %4841 = vmatpush.bf16.msra.mxu0 %v4681
      %4842 = vmatpush.bf16.msra.mxu0 %v4677
      %4843 = vmatpush.bf16.msra.mxu0 %v4673
      %4844 = vmatpush.bf16.msra.mxu0 %v4669
      %4845 = vmatpush.bf16.msra.mxu0 %v4665
      %4846 = vmatpush.bf16.msra.mxu0 %v4661
      %4847 = vmatmul.bf16.gmra.mxu0 %v4402
      %v4848 = vpop.f32.mrf.mxu0
      %v4849 = vadd.f32 %v2361, %v4848
      %v4850 = vpop.f32.mrf.mxu0
      %4851 = vdwg.mxu0
      %4852 = vmatpush.bf16.msra.mxu0 %v4721
      %4853 = vmatpush.bf16.msra.mxu0 %v4717
      %4854 = vmatpush.bf16.msra.mxu0 %v4713
      %4855 = vmatpush.bf16.msra.mxu0 %v4709
      %4856 = vmatpush.bf16.msra.mxu0 %v4705
      %4857 = vmatpush.bf16.msra.mxu0 %v4701
      %4858 = vmatpush.bf16.msra.mxu0 %v4697
      %4859 = vmatpush.bf16.msra.mxu0 %v4693
      %4860 = vmatmul.bf16.gmra.mxu0 %v3744
      %v4861 = vpop.f32.mrf.mxu0
      %v4862 = vadd.f32 %v4849, %v4861
      %v4863 = vpop.f32.mrf.mxu0
      %4864 = vdwg.mxu0
      %4865 = vmatpush.bf16.msra.mxu0 %v4690
      %4866 = vmatpush.bf16.msra.mxu0 %v4686
      %4867 = vmatpush.bf16.msra.mxu0 %v4682
      %4868 = vmatpush.bf16.msra.mxu0 %v4678
      %4869 = vmatpush.bf16.msra.mxu0 %v4674
      %4870 = vmatpush.bf16.msra.mxu0 %v4670
      %4871 = vmatpush.bf16.msra.mxu0 %v4666
      %4872 = vmatpush.bf16.msra.mxu0 %v4662
      %4873 = vmatmul.bf16.gmra.mxu0 %v4402
      %v4874 = vpop.f32.mrf.mxu0
      %v4875 = vadd.f32 %v2362, %v4874
      %v4876 = vpop.f32.mrf.mxu0
      %4877 = vdwg.mxu0
      %4878 = vmatpush.bf16.msra.mxu0 %v4722
      %4879 = vmatpush.bf16.msra.mxu0 %v4718
      %4880 = vmatpush.bf16.msra.mxu0 %v4714
      %4881 = vmatpush.bf16.msra.mxu0 %v4710
      %4882 = vmatpush.bf16.msra.mxu0 %v4706
      %4883 = vmatpush.bf16.msra.mxu0 %v4702
      %4884 = vmatpush.bf16.msra.mxu0 %v4698
      %4885 = vmatpush.bf16.msra.mxu0 %v4694
      %4886 = vmatmul.bf16.gmra.mxu0 %v3744
      %v4887 = vpop.f32.mrf.mxu0
      %v4888 = vadd.f32 %v4875, %v4887
      %v4889 = vpop.f32.mrf.mxu0
      %4890 = vdwg.mxu0
      %v4891 = vxor.u32 %v4810, 2147483648
      %v4892 = vmul.f32 %v4891, 1.442695
      %v4893 = vpow.pop %v4892
      %v4894 = vadd.f32 %v4893, 1.0
      %v4895 = vrcp.pop %v4894
      %v4896 = vmul.f32 %v4894, %v4895
      %v4897 = vsub.f32 1.0, %v4896
      %v4898 = vmul.f32 %v4895, %v4897
      %v4899 = vadd.f32 %v4895, %v4898
      %vm4900 = vweird.f32 %v4894
      %vm4901 = vweird.f32 %v4895
      %vm4902 = vmor %vm4900, %vm4901
      %v4903 = vsel %vm4902, %v4895, %v4899
      %v4904 = vand.u32 2147483647, %v4894
      %vm4905 = vcmp.eq.f32.partialorder %v4904, 8.507059e+37
      %v4906 = vand.u32 %v4894, 2147483648
      %v4907 = vor.u32 1.1754944e-38, %v4906
      %v4908 = vsel %vm4905, %v4907, %v4903
      %v4909 = vmul.f32 1.0, %v4908
      %v4910 = vxor.u32 %v4836, 2147483648
      %v4911 = vmul.f32 %v4910, 1.442695
      %v4912 = vpow.pop %v4911
      %v4913 = vadd.f32 %v4912, 1.0
      %v4914 = vrcp.pop %v4913
      %v4915 = vmul.f32 %v4913, %v4914
      %v4916 = vsub.f32 1.0, %v4915
      %v4917 = vmul.f32 %v4914, %v4916
      %v4918 = vadd.f32 %v4914, %v4917
      %vm4919 = vweird.f32 %v4913
      %vm4920 = vweird.f32 %v4914
      %vm4921 = vmor %vm4919, %vm4920
      %v4922 = vsel %vm4921, %v4914, %v4918
      %v4923 = vand.u32 2147483647, %v4913
      %vm4924 = vcmp.eq.f32.partialorder %v4923, 8.507059e+37
      %v4925 = vand.u32 %v4913, 2147483648
      %v4926 = vor.u32 1.1754944e-38, %v4925
      %v4927 = vsel %vm4924, %v4926, %v4922
      %v4928 = vmul.f32 1.0, %v4927
      %v4929 = vtanh.pop %v4862
      %v4930 = vxor.u32 %v4888, 2147483648
      %v4931 = vmul.f32 %v4930, 1.442695
      %v4932 = vpow.pop %v4931
      %v4933 = vadd.f32 %v4932, 1.0
      %v4934 = vrcp.pop %v4933
      %v4935 = vmul.f32 %v4933, %v4934
      %v4936 = vsub.f32 1.0, %v4935
      %v4937 = vmul.f32 %v4934, %v4936
      %v4938 = vadd.f32 %v4934, %v4937
      %vm4939 = vweird.f32 %v4933
      %vm4940 = vweird.f32 %v4934
      %vm4941 = vmor %vm4939, %vm4940
      %v4942 = vsel %vm4941, %v4934, %v4938
      %v4943 = vand.u32 2147483647, %v4933
      %vm4944 = vcmp.eq.f32.partialorder %v4943, 8.507059e+37
      %v4945 = vand.u32 %v4933, 2147483648
      %v4946 = vor.u32 1.1754944e-38, %v4945
      %v4947 = vsel %vm4944, %v4946, %v4942
      %v4948 = vmul.f32 1.0, %v4947
      %v4949 = vmul.f32 %v4928, %v3741
      %v4950 = vmul.f32 %v4909, %v4929
      %v4951 = vadd.f32 %v4949, %v4950
      %v4952 = vtanh.pop %v4951
      %v4953 = vmul.f32 %v4948, %v4952
      %v4954 = vpack.c.bf16 %v4953, %v4953
      %v4955 = vld [vmem:[#allocation24] sm:$0xff]
      %v4956 = vld [vmem:[#allocation24 + $0x8] sm:$0xff]
      %v4957 = vld [vmem:[#allocation24 + $0x10] sm:$0xff]
      %v4958 = vld [vmem:[#allocation24 + $0x18] sm:$0xff]
      %v4959 = vld [vmem:[#allocation24 + $0x20] sm:$0xff]
      %v4960 = vld [vmem:[#allocation24 + $0x28] sm:$0xff]
      %v4961 = vld [vmem:[#allocation24 + $0x30] sm:$0xff]
      %v4962 = vld [vmem:[#allocation24 + $0x38] sm:$0xff]
      %v4963 = vld [vmem:[#allocation24 + $0x40] sm:$0xff]
      %v4964 = vld [vmem:[#allocation24 + $0x48] sm:$0xff]
      %v4965 = vld [vmem:[#allocation24 + $0x50] sm:$0xff]
      %v4966 = vld [vmem:[#allocation24 + $0x58] sm:$0xff]
      %v4967 = vld [vmem:[#allocation24 + $0x60] sm:$0xff]
      %v4968 = vld [vmem:[#allocation24 + $0x68] sm:$0xff]
      %v4969 = vld [vmem:[#allocation24 + $0x70] sm:$0xff]
      %v4970 = vld [vmem:[#allocation24 + $0x78] sm:$0xff]
      %v4971 = vld [vmem:[#allocation24 + $0x80] sm:$0xff]
      %v4972 = vld [vmem:[#allocation24 + $0x88] sm:$0xff]
      %v4973 = vld [vmem:[#allocation24 + $0x90] sm:$0xff]
      %v4974 = vld [vmem:[#allocation24 + $0x98] sm:$0xff]
      %v4975 = vld [vmem:[#allocation24 + $0xa0] sm:$0xff]
      %v4976 = vld [vmem:[#allocation24 + $0xa8] sm:$0xff]
      %v4977 = vld [vmem:[#allocation24 + $0xb0] sm:$0xff]
      %v4978 = vld [vmem:[#allocation24 + $0xb8] sm:$0xff]
      %v4979 = vld [vmem:[#allocation24 + $0xc0] sm:$0xff]
      %v4980 = vld [vmem:[#allocation24 + $0xc8] sm:$0xff]
      %v4981 = vld [vmem:[#allocation24 + $0xd0] sm:$0xff]
      %v4982 = vld [vmem:[#allocation24 + $0xd8] sm:$0xff]
      %v4983 = vld [vmem:[#allocation24 + $0xe0] sm:$0xff]
      %v4984 = vld [vmem:[#allocation24 + $0xe8] sm:$0xff]
      %v4985 = vld [vmem:[#allocation24 + $0xf0] sm:$0xff]
      %v4986 = vld [vmem:[#allocation24 + $0xf8] sm:$0xff]
      %v4987 = vld [vmem:[#allocation24 + $0x100] sm:$0xff]
      %v4988 = vld [vmem:[#allocation24 + $0x108] sm:$0xff]
      %v4989 = vld [vmem:[#allocation24 + $0x110] sm:$0xff]
      %v4990 = vld [vmem:[#allocation24 + $0x118] sm:$0xff]
      %v4991 = vld [vmem:[#allocation24 + $0x120] sm:$0xff]
      %v4992 = vld [vmem:[#allocation24 + $0x128] sm:$0xff]
      %v4993 = vld [vmem:[#allocation24 + $0x130] sm:$0xff]
      %v4994 = vld [vmem:[#allocation24 + $0x138] sm:$0xff]
      %v4995 = vld [vmem:[#allocation24 + $0x140] sm:$0xff]
      %v4996 = vld [vmem:[#allocation24 + $0x148] sm:$0xff]
      %v4997 = vld [vmem:[#allocation24 + $0x150] sm:$0xff]
      %v4998 = vld [vmem:[#allocation24 + $0x158] sm:$0xff]
      %v4999 = vld [vmem:[#allocation24 + $0x160] sm:$0xff]
      %v5000 = vld [vmem:[#allocation24 + $0x168] sm:$0xff]
      %v5001 = vld [vmem:[#allocation24 + $0x170] sm:$0xff]
      %v5002 = vld [vmem:[#allocation24 + $0x178] sm:$0xff]
      %v5003 = vld [vmem:[#allocation24 + $0x180] sm:$0xff]
      %v5004 = vld [vmem:[#allocation24 + $0x188] sm:$0xff]
      %v5005 = vld [vmem:[#allocation24 + $0x190] sm:$0xff]
      %v5006 = vld [vmem:[#allocation24 + $0x198] sm:$0xff]
      %v5007 = vld [vmem:[#allocation24 + $0x1a0] sm:$0xff]
      %v5008 = vld [vmem:[#allocation24 + $0x1a8] sm:$0xff]
      %v5009 = vld [vmem:[#allocation24 + $0x1b0] sm:$0xff]
      %v5010 = vld [vmem:[#allocation24 + $0x1b8] sm:$0xff]
      %v5011 = vld [vmem:[#allocation24 + $0x1c0] sm:$0xff]
      %v5012 = vld [vmem:[#allocation24 + $0x1c8] sm:$0xff]
      %v5013 = vld [vmem:[#allocation24 + $0x1d0] sm:$0xff]
      %v5014 = vld [vmem:[#allocation24 + $0x1d8] sm:$0xff]
      %v5015 = vld [vmem:[#allocation24 + $0x1e0] sm:$0xff]
      %v5016 = vld [vmem:[#allocation24 + $0x1e8] sm:$0xff]
      %v5017 = vld [vmem:[#allocation24 + $0x1f0] sm:$0xff]
      %v5018 = vld [vmem:[#allocation24 + $0x1f8] sm:$0xff]
      %v5019 = vld [vmem:[%s15] sm:$0xf]
      %v5084 = vunpack.c.l.b16 %v4955
      %v5085 = vunpack.c.h.b16 %v4955
      %v5086 = vunpack.c.l.b16 %v4956
      %v5087 = vunpack.c.h.b16 %v4956
      %v5088 = vunpack.c.l.b16 %v4957
      %v5089 = vunpack.c.h.b16 %v4957
      %v5090 = vunpack.c.l.b16 %v4958
      %v5091 = vunpack.c.h.b16 %v4958
      %v5092 = vunpack.c.l.b16 %v4959
      %v5093 = vunpack.c.h.b16 %v4959
      %v5094 = vunpack.c.l.b16 %v4960
      %v5095 = vunpack.c.h.b16 %v4960
      %v5096 = vunpack.c.l.b16 %v4961
      %v5097 = vunpack.c.h.b16 %v4961
      %v5098 = vunpack.c.l.b16 %v4962
      %v5099 = vunpack.c.h.b16 %v4962
      %v5100 = vunpack.c.l.b16 %v4963
      %v5101 = vunpack.c.h.b16 %v4963
      %v5102 = vunpack.c.l.b16 %v4964
      %v5103 = vunpack.c.h.b16 %v4964
      %v5104 = vunpack.c.l.b16 %v4965
      %v5105 = vunpack.c.h.b16 %v4965
      %v5106 = vunpack.c.l.b16 %v4966
      %v5107 = vunpack.c.h.b16 %v4966
      %v5108 = vunpack.c.l.b16 %v4967
      %v5109 = vunpack.c.h.b16 %v4967
      %v5110 = vunpack.c.l.b16 %v4968
      %v5111 = vunpack.c.h.b16 %v4968
      %v5112 = vunpack.c.l.b16 %v4969
      %v5113 = vunpack.c.h.b16 %v4969
      %v5114 = vunpack.c.l.b16 %v4970
      %v5115 = vunpack.c.h.b16 %v4970
      %v5116 = vunpack.c.l.b16 %v4971
      %v5117 = vunpack.c.h.b16 %v4971
      %v5118 = vunpack.c.l.b16 %v4972
      %v5119 = vunpack.c.h.b16 %v4972
      %v5120 = vunpack.c.l.b16 %v4973
      %v5121 = vunpack.c.h.b16 %v4973
      %v5122 = vunpack.c.l.b16 %v4974
      %v5123 = vunpack.c.h.b16 %v4974
      %v5124 = vunpack.c.l.b16 %v4975
      %v5125 = vunpack.c.h.b16 %v4975
      %v5126 = vunpack.c.l.b16 %v4976
      %v5127 = vunpack.c.h.b16 %v4976
      %v5128 = vunpack.c.l.b16 %v4977
      %v5129 = vunpack.c.h.b16 %v4977
      %v5130 = vunpack.c.l.b16 %v4978
      %v5131 = vunpack.c.h.b16 %v4978
      %v5132 = vunpack.c.l.b16 %v4979
      %v5133 = vunpack.c.h.b16 %v4979
      %v5134 = vunpack.c.l.b16 %v4980
      %v5135 = vunpack.c.h.b16 %v4980
      %v5136 = vunpack.c.l.b16 %v4981
      %v5137 = vunpack.c.h.b16 %v4981
      %v5138 = vunpack.c.l.b16 %v4982
      %v5139 = vunpack.c.h.b16 %v4982
      %v5140 = vunpack.c.l.b16 %v4983
      %v5141 = vunpack.c.h.b16 %v4983
      %v5142 = vunpack.c.l.b16 %v4984
      %v5143 = vunpack.c.h.b16 %v4984
      %v5144 = vunpack.c.l.b16 %v4985
      %v5145 = vunpack.c.h.b16 %v4985
      %v5146 = vunpack.c.l.b16 %v4986
      %v5147 = vunpack.c.h.b16 %v4986
      %v5148 = vunpack.c.l.b16 %v4987
      %v5149 = vunpack.c.h.b16 %v4987
      %v5150 = vunpack.c.l.b16 %v4988
      %v5151 = vunpack.c.h.b16 %v4988
      %v5152 = vunpack.c.l.b16 %v4989
      %v5153 = vunpack.c.h.b16 %v4989
      %v5154 = vunpack.c.l.b16 %v4990
      %v5155 = vunpack.c.h.b16 %v4990
      %v5156 = vunpack.c.l.b16 %v4991
      %v5157 = vunpack.c.h.b16 %v4991
      %v5158 = vunpack.c.l.b16 %v4992
      %v5159 = vunpack.c.h.b16 %v4992
      %v5160 = vunpack.c.l.b16 %v4993
      %v5161 = vunpack.c.h.b16 %v4993
      %v5162 = vunpack.c.l.b16 %v4994
      %v5163 = vunpack.c.h.b16 %v4994
      %v5164 = vunpack.c.l.b16 %v4995
      %v5165 = vunpack.c.h.b16 %v4995
      %v5166 = vunpack.c.l.b16 %v4996
      %v5167 = vunpack.c.h.b16 %v4996
      %v5168 = vunpack.c.l.b16 %v4997
      %v5169 = vunpack.c.h.b16 %v4997
      %v5170 = vunpack.c.l.b16 %v4998
      %v5171 = vunpack.c.h.b16 %v4998
      %v5172 = vunpack.c.l.b16 %v4999
      %v5173 = vunpack.c.h.b16 %v4999
      %v5174 = vunpack.c.l.b16 %v5000
      %v5175 = vunpack.c.h.b16 %v5000
      %v5176 = vunpack.c.l.b16 %v5001
      %v5177 = vunpack.c.h.b16 %v5001
      %v5178 = vunpack.c.l.b16 %v5002
      %v5179 = vunpack.c.h.b16 %v5002
      %v5180 = vunpack.c.l.b16 %v5003
      %v5181 = vunpack.c.h.b16 %v5003
      %v5182 = vunpack.c.l.b16 %v5004
      %v5183 = vunpack.c.h.b16 %v5004
      %v5184 = vunpack.c.l.b16 %v5005
      %v5185 = vunpack.c.h.b16 %v5005
      %v5186 = vunpack.c.l.b16 %v5006
      %v5187 = vunpack.c.h.b16 %v5006
      %v5188 = vunpack.c.l.b16 %v5007
      %v5189 = vunpack.c.h.b16 %v5007
      %v5190 = vunpack.c.l.b16 %v5008
      %v5191 = vunpack.c.h.b16 %v5008
      %v5192 = vunpack.c.l.b16 %v5009
      %v5193 = vunpack.c.h.b16 %v5009
      %v5194 = vunpack.c.l.b16 %v5010
      %v5195 = vunpack.c.h.b16 %v5010
      %v5196 = vunpack.c.l.b16 %v5011
      %v5197 = vunpack.c.h.b16 %v5011
      %v5198 = vunpack.c.l.b16 %v5012
      %v5199 = vunpack.c.h.b16 %v5012
      %v5200 = vunpack.c.l.b16 %v5013
      %v5201 = vunpack.c.h.b16 %v5013
      %v5202 = vunpack.c.l.b16 %v5014
      %v5203 = vunpack.c.h.b16 %v5014
      %v5204 = vunpack.c.l.b16 %v5015
      %v5205 = vunpack.c.h.b16 %v5015
      %v5206 = vunpack.c.l.b16 %v5016
      %v5207 = vunpack.c.h.b16 %v5016
      %v5208 = vunpack.c.l.b16 %v5017
      %v5209 = vunpack.c.h.b16 %v5017
      %v5210 = vunpack.c.l.b16 %v5018
      %v5211 = vunpack.c.h.b16 %v5018
      %v5212 = vpack.c.b16 %v5088, %v5084
      %v5213 = vpack.c.b16 %v5089, %v5085
      %v5214 = vpack.c.b16 %v5090, %v5086
      %v5215 = vpack.c.b16 %v5091, %v5087
      %v5216 = vpack.c.b16 %v5096, %v5092
      %v5217 = vpack.c.b16 %v5097, %v5093
      %v5218 = vpack.c.b16 %v5098, %v5094
      %v5219 = vpack.c.b16 %v5099, %v5095
      %v5220 = vpack.c.b16 %v5104, %v5100
      %v5221 = vpack.c.b16 %v5105, %v5101
      %v5222 = vpack.c.b16 %v5106, %v5102
      %v5223 = vpack.c.b16 %v5107, %v5103
      %v5224 = vpack.c.b16 %v5112, %v5108
      %v5225 = vpack.c.b16 %v5113, %v5109
      %v5226 = vpack.c.b16 %v5114, %v5110
      %v5227 = vpack.c.b16 %v5115, %v5111
      %v5228 = vpack.c.b16 %v5120, %v5116
      %v5229 = vpack.c.b16 %v5121, %v5117
      %v5230 = vpack.c.b16 %v5122, %v5118
      %v5231 = vpack.c.b16 %v5123, %v5119
      %v5232 = vpack.c.b16 %v5128, %v5124
      %v5233 = vpack.c.b16 %v5129, %v5125
      %v5234 = vpack.c.b16 %v5130, %v5126
      %v5235 = vpack.c.b16 %v5131, %v5127
      %v5236 = vpack.c.b16 %v5136, %v5132
      %v5237 = vpack.c.b16 %v5137, %v5133
      %v5238 = vpack.c.b16 %v5138, %v5134
      %v5239 = vpack.c.b16 %v5139, %v5135
      %v5240 = vpack.c.b16 %v5144, %v5140
      %v5241 = vpack.c.b16 %v5145, %v5141
      %v5242 = vpack.c.b16 %v5146, %v5142
      %v5243 = vpack.c.b16 %v5147, %v5143
      %v5244 = vpack.c.b16 %v5152, %v5148
      %v5245 = vpack.c.b16 %v5153, %v5149
      %v5246 = vpack.c.b16 %v5154, %v5150
      %v5247 = vpack.c.b16 %v5155, %v5151
      %v5248 = vpack.c.b16 %v5160, %v5156
      %v5249 = vpack.c.b16 %v5161, %v5157
      %v5250 = vpack.c.b16 %v5162, %v5158
      %v5251 = vpack.c.b16 %v5163, %v5159
      %v5252 = vpack.c.b16 %v5168, %v5164
      %v5253 = vpack.c.b16 %v5169, %v5165
      %v5254 = vpack.c.b16 %v5170, %v5166
      %v5255 = vpack.c.b16 %v5171, %v5167
      %v5256 = vpack.c.b16 %v5176, %v5172
      %v5257 = vpack.c.b16 %v5177, %v5173
      %v5258 = vpack.c.b16 %v5178, %v5174
      %v5259 = vpack.c.b16 %v5179, %v5175
      %v5260 = vpack.c.b16 %v5184, %v5180
      %v5261 = vpack.c.b16 %v5185, %v5181
      %v5262 = vpack.c.b16 %v5186, %v5182
      %v5263 = vpack.c.b16 %v5187, %v5183
      %v5264 = vpack.c.b16 %v5192, %v5188
      %v5265 = vpack.c.b16 %v5193, %v5189
      %v5266 = vpack.c.b16 %v5194, %v5190
      %v5267 = vpack.c.b16 %v5195, %v5191
      %v5268 = vpack.c.b16 %v5200, %v5196
      %v5269 = vpack.c.b16 %v5201, %v5197
      %v5270 = vpack.c.b16 %v5202, %v5198
      %v5271 = vpack.c.b16 %v5203, %v5199
      %v5272 = vpack.c.b16 %v5208, %v5204
      %v5273 = vpack.c.b16 %v5209, %v5205
      %v5274 = vpack.c.b16 %v5210, %v5206
      %v5275 = vpack.c.b16 %v5211, %v5207
      %v5341 = vperm.slane %v5019, 0
      %v5342 = vperm.slane %v5019, 1
      %v5343 = vperm.slane %v5019, 2
      %v5344 = vperm.slane %v5019, 3
      %5349 = vmatpush.bf16.msra.mxu0 %v5240
      %5350 = vmatpush.bf16.msra.mxu0 %v5236
      %5351 = vmatpush.bf16.msra.mxu0 %v5232
      %5352 = vmatpush.bf16.msra.mxu0 %v5228
      %5353 = vmatpush.bf16.msra.mxu0 %v5224
      %5354 = vmatpush.bf16.msra.mxu0 %v5220
      %5355 = vmatpush.bf16.msra.mxu0 %v5216
      %5356 = vmatpush.bf16.msra.mxu0 %v5212
      %5357 = vmatmul.bf16.gmra.mxu0 %v4954
      %v5358 = vpop.f32.mrf.mxu0
      %v5359 = vadd.f32 %v5341, %v5358
      %v5360 = vpop.f32.mrf.mxu0
      %5361 = vdwg.mxu0
      %5362 = vmatpush.bf16.msra.mxu0 %v5272
      %5363 = vmatpush.bf16.msra.mxu0 %v5268
      %5364 = vmatpush.bf16.msra.mxu0 %v5264
      %5365 = vmatpush.bf16.msra.mxu0 %v5260
      %5366 = vmatpush.bf16.msra.mxu0 %v5256
      %5367 = vmatpush.bf16.msra.mxu0 %v5252
      %5368 = vmatpush.bf16.msra.mxu0 %v5248
      %5369 = vmatpush.bf16.msra.mxu0 %v5244
      %5370 = vmatmul.bf16.gmra.mxu0 %v4306
      %v5371 = vpop.f32.mrf.mxu0
      %v5372 = vadd.f32 %v5359, %v5371
      %v5373 = vpop.f32.mrf.mxu0
      %5374 = vdwg.mxu0
      %5375 = vmatpush.bf16.msra.mxu0 %v5241
      %5376 = vmatpush.bf16.msra.mxu0 %v5237
      %5377 = vmatpush.bf16.msra.mxu0 %v5233
      %5378 = vmatpush.bf16.msra.mxu0 %v5229
      %5379 = vmatpush.bf16.msra.mxu0 %v5225
      %5380 = vmatpush.bf16.msra.mxu0 %v5221
      %5381 = vmatpush.bf16.msra.mxu0 %v5217
      %5382 = vmatpush.bf16.msra.mxu0 %v5213
      %5383 = vmatmul.bf16.gmra.mxu0 %v4954
      %v5384 = vpop.f32.mrf.mxu0
      %v5385 = vadd.f32 %v5342, %v5384
      %v5386 = vpop.f32.mrf.mxu0
      %5387 = vdwg.mxu0
      %5388 = vmatpush.bf16.msra.mxu0 %v5273
      %5389 = vmatpush.bf16.msra.mxu0 %v5269
      %5390 = vmatpush.bf16.msra.mxu0 %v5265
      %5391 = vmatpush.bf16.msra.mxu0 %v5261
      %5392 = vmatpush.bf16.msra.mxu0 %v5257
      %5393 = vmatpush.bf16.msra.mxu0 %v5253
      %5394 = vmatpush.bf16.msra.mxu0 %v5249
      %5395 = vmatpush.bf16.msra.mxu0 %v5245
      %5396 = vmatmul.bf16.gmra.mxu0 %v4306
      %v5397 = vpop.f32.mrf.mxu0
      %v5398 = vadd.f32 %v5385, %v5397
      %v5399 = vpop.f32.mrf.mxu0
      %5400 = vdwg.mxu0
      %5401 = vmatpush.bf16.msra.mxu0 %v5242
      %5402 = vmatpush.bf16.msra.mxu0 %v5238
      %5403 = vmatpush.bf16.msra.mxu0 %v5234
      %5404 = vmatpush.bf16.msra.mxu0 %v5230
      %5405 = vmatpush.bf16.msra.mxu0 %v5226
      %5406 = vmatpush.bf16.msra.mxu0 %v5222
      %5407 = vmatpush.bf16.msra.mxu0 %v5218
      %5408 = vmatpush.bf16.msra.mxu0 %v5214
      %5409 = vmatmul.bf16.gmra.mxu0 %v4954
      %v5410 = vpop.f32.mrf.mxu0
      %v5411 = vadd.f32 %v5343, %v5410
      %v5412 = vpop.f32.mrf.mxu0
      %5413 = vdwg.mxu0
      %5414 = vmatpush.bf16.msra.mxu0 %v5274
      %5415 = vmatpush.bf16.msra.mxu0 %v5270
      %5416 = vmatpush.bf16.msra.mxu0 %v5266
      %5417 = vmatpush.bf16.msra.mxu0 %v5262
      %5418 = vmatpush.bf16.msra.mxu0 %v5258
      %5419 = vmatpush.bf16.msra.mxu0 %v5254
      %5420 = vmatpush.bf16.msra.mxu0 %v5250
      %5421 = vmatpush.bf16.msra.mxu0 %v5246
      %5422 = vmatmul.bf16.gmra.mxu0 %v4306
      %v5423 = vpop.f32.mrf.mxu0
      %v5424 = vadd.f32 %v5411, %v5423
      %v5425 = vpop.f32.mrf.mxu0
      %5426 = vdwg.mxu0
      %5427 = vmatpush.bf16.msra.mxu0 %v5243
      %5428 = vmatpush.bf16.msra.mxu0 %v5239
      %5429 = vmatpush.bf16.msra.mxu0 %v5235
      %5430 = vmatpush.bf16.msra.mxu0 %v5231
      %5431 = vmatpush.bf16.msra.mxu0 %v5227
      %5432 = vmatpush.bf16.msra.mxu0 %v5223
      %5433 = vmatpush.bf16.msra.mxu0 %v5219
      %5434 = vmatpush.bf16.msra.mxu0 %v5215
      %5435 = vmatmul.bf16.gmra.mxu0 %v4954
      %v5436 = vpop.f32.mrf.mxu0
      %v5437 = vadd.f32 %v5344, %v5436
      %v5438 = vpop.f32.mrf.mxu0
      %5439 = vdwg.mxu0
      %5440 = vmatpush.bf16.msra.mxu0 %v5275
      %5441 = vmatpush.bf16.msra.mxu0 %v5271
      %5442 = vmatpush.bf16.msra.mxu0 %v5267
      %5443 = vmatpush.bf16.msra.mxu0 %v5263
      %5444 = vmatpush.bf16.msra.mxu0 %v5259
      %5445 = vmatpush.bf16.msra.mxu0 %v5255
      %5446 = vmatpush.bf16.msra.mxu0 %v5251
      %5447 = vmatpush.bf16.msra.mxu0 %v5247
      %5448 = vmatmul.bf16.gmra.mxu0 %v4306
      %v5449 = vpop.f32.mrf.mxu0
      %v5450 = vadd.f32 %v5437, %v5449
      %v5451 = vpop.f32.mrf.mxu0
      %5452 = vdwg.mxu0
      %v5453 = vxor.u32 %v5372, 2147483648
      %v5454 = vmul.f32 %v5453, 1.442695
      %v5455 = vpow.pop %v5454
      %v5456 = vadd.f32 %v5455, 1.0
      %v5457 = vrcp.pop %v5456
      %v5458 = vmul.f32 %v5456, %v5457
      %v5459 = vsub.f32 1.0, %v5458
      %v5460 = vmul.f32 %v5457, %v5459
      %v5461 = vadd.f32 %v5457, %v5460
      %vm5462 = vweird.f32 %v5456
      %vm5463 = vweird.f32 %v5457
      %vm5464 = vmor %vm5462, %vm5463
      %v5465 = vsel %vm5464, %v5457, %v5461
      %v5466 = vand.u32 2147483647, %v5456
      %vm5467 = vcmp.eq.f32.partialorder %v5466, 8.507059e+37
      %v5468 = vand.u32 %v5456, 2147483648
      %v5469 = vor.u32 1.1754944e-38, %v5468
      %v5470 = vsel %vm5467, %v5469, %v5465
      %v5471 = vmul.f32 1.0, %v5470
      %v5472 = vxor.u32 %v5398, 2147483648
      %v5473 = vmul.f32 %v5472, 1.442695
      %v5474 = vpow.pop %v5473
      %v5475 = vadd.f32 %v5474, 1.0
      %v5476 = vrcp.pop %v5475
      %v5477 = vmul.f32 %v5475, %v5476
      %v5478 = vsub.f32 1.0, %v5477
      %v5479 = vmul.f32 %v5476, %v5478
      %v5480 = vadd.f32 %v5476, %v5479
      %vm5481 = vweird.f32 %v5475
      %vm5482 = vweird.f32 %v5476
      %vm5483 = vmor %vm5481, %vm5482
      %v5484 = vsel %vm5483, %v5476, %v5480
      %v5485 = vand.u32 2147483647, %v5475
      %vm5486 = vcmp.eq.f32.partialorder %v5485, 8.507059e+37
      %v5487 = vand.u32 %v5475, 2147483648
      %v5488 = vor.u32 1.1754944e-38, %v5487
      %v5489 = vsel %vm5486, %v5488, %v5484
      %v5490 = vmul.f32 1.0, %v5489
      %v5491 = vtanh.pop %v5424
      %v5492 = vxor.u32 %v5450, 2147483648
      %v5493 = vmul.f32 %v5492, 1.442695
      %v5494 = vpow.pop %v5493
      %v5495 = vadd.f32 %v5494, 1.0
      %v5496 = vrcp.pop %v5495
      %v5497 = vmul.f32 %v5495, %v5496
      %v5498 = vsub.f32 1.0, %v5497
      %v5499 = vmul.f32 %v5496, %v5498
      %v5500 = vadd.f32 %v5496, %v5499
      %vm5501 = vweird.f32 %v5495
      %vm5502 = vweird.f32 %v5496
      %vm5503 = vmor %vm5501, %vm5502
      %v5504 = vsel %vm5503, %v5496, %v5500
      %v5505 = vand.u32 2147483647, %v5495
      %vm5506 = vcmp.eq.f32.partialorder %v5505, 8.507059e+37
      %v5507 = vand.u32 %v5495, 2147483648
      %v5508 = vor.u32 1.1754944e-38, %v5507
      %v5509 = vsel %vm5506, %v5508, %v5504
      %v5510 = vmul.f32 1.0, %v5509
      %v5511 = vmul.f32 %v5490, %v4303
      %v5512 = vmul.f32 %v5471, %v5491
      %v5513 = vadd.f32 %v5511, %v5512
      %v5514 = vtanh.pop %v5513
      %v5515 = vmul.f32 %v5510, %v5514
      %v5516 = vpack.c.bf16 %v5515, %v5515
      %v5517 = vld [vmem:[#allocation25] sm:$0xf]
      %v5518 = vld [vmem:[#allocation25 + $0x4] sm:$0xf]
      %v5519 = vld [vmem:[#allocation25 + $0x8] sm:$0xf]
      %v5520 = vld [vmem:[#allocation25 + $0xc] sm:$0xf]
      %v5521 = vld [vmem:[#allocation25 + $0x10] sm:$0xf]
      %v5522 = vld [vmem:[#allocation25 + $0x14] sm:$0xf]
      %v5523 = vld [vmem:[#allocation25 + $0x18] sm:$0xf]
      %v5524 = vld [vmem:[#allocation25 + $0x1c] sm:$0xf]
      %v5525 = vld [vmem:[#allocation25 + $0x20] sm:$0xf]
      %v5526 = vld [vmem:[#allocation25 + $0x24] sm:$0xf]
      %v5527 = vld [vmem:[#allocation25 + $0x28] sm:$0xf]
      %v5528 = vld [vmem:[#allocation25 + $0x2c] sm:$0xf]
      %v5529 = vld [vmem:[#allocation25 + $0x30] sm:$0xf]
      %v5530 = vld [vmem:[#allocation25 + $0x34] sm:$0xf]
      %v5531 = vld [vmem:[#allocation25 + $0x38] sm:$0xf]
      %v5532 = vld [vmem:[#allocation25 + $0x3c] sm:$0xf]
      %v5533 = vld [vmem:[%s17] sm:$0x1]
      %v5550 = vunpack.c.l.b16 %v5517
      %v5551 = vunpack.c.l.b16 %v5518
      %v5552 = vunpack.c.l.b16 %v5519
      %v5553 = vunpack.c.l.b16 %v5520
      %v5554 = vunpack.c.l.b16 %v5521
      %v5555 = vunpack.c.l.b16 %v5522
      %v5556 = vunpack.c.l.b16 %v5523
      %v5557 = vunpack.c.l.b16 %v5524
      %v5558 = vunpack.c.l.b16 %v5525
      %v5559 = vunpack.c.l.b16 %v5526
      %v5560 = vunpack.c.l.b16 %v5527
      %v5561 = vunpack.c.l.b16 %v5528
      %v5562 = vunpack.c.l.b16 %v5529
      %v5563 = vunpack.c.l.b16 %v5530
      %v5564 = vunpack.c.l.b16 %v5531
      %v5565 = vunpack.c.l.b16 %v5532
      %v5566 = vpack.c.b16 %v5551, %v5550
      %v5567 = vpack.c.b16 %v5553, %v5552
      %v5568 = vpack.c.b16 %v5555, %v5554
      %v5569 = vpack.c.b16 %v5557, %v5556
      %v5570 = vpack.c.b16 %v5559, %v5558
      %v5571 = vpack.c.b16 %v5561, %v5560
      %v5572 = vpack.c.b16 %v5563, %v5562
      %v5573 = vpack.c.b16 %v5565, %v5564
      %5582 = vmatpush.bf16.msra.mxu0 %v5573
      %5583 = vmatpush.bf16.msra.mxu0 %v5572
      %5584 = vmatpush.bf16.msra.mxu0 %v5571
      %5585 = vmatpush.bf16.msra.mxu0 %v5570
      %5586 = vmatpush.bf16.msra.mxu0 %v5569
      %5587 = vmatpush.bf16.msra.mxu0 %v5568
      %5588 = vmatpush.bf16.msra.mxu0 %v5567
      %5589 = vmatpush.bf16.msra.mxu0 %v5566
      %5590 = vmatmul.bf16.gmra.mxu0 %v5516
      %v5591 = vpop.f32.mrf.mxu0
      %v5592 = vadd.f32 %v5533, %v5591
      %v5593 = vpop.f32.mrf.mxu0
      %5594 = vdwg.mxu0
      %v5595 = vsel %vm1517, %v5592, -inf
      %5596 = vmax.xlane.f32.xlu0 %v5595
      %v5597 = vpop.xlane.xlu0 %5596
      %v5598 = vsub.f32 %v5592, %v5597
      %v5599 = vmul.f32 %v5598, 1.442695
      %v5600 = vpow.pop %v5599
      %v5601 = vsel %vm1517, %v5600, 0.0
      %5602 = vadd.xlane.f32.xlu0 %v5601
      %v5603 = vpop.xlane.xlu0 %5602
      %v5604 = vrcp.pop %v5603
      %v5605 = vmul.f32 %v5603, %v5604
      %v5606 = vsub.f32 2.0, %v5605
      %v5607 = vmul.f32 %v5604, %v5606
      %v5608 = vmul.f32 %v5600, %v5607
      %s5609 = sadd.s32 %s3189, 2
      %s5610 = scalar_lea.vmem [#allocation27], %s5609
      %5611 = vst [vmem:[%s5610] sm:$0x1] %v5608
      %v5612 = vpack.c.bf16 %v5608, %v5608
      %v5613 = vld [vmem:[#allocation22] sm:$0xff]
      %v5614 = vld [vmem:[#allocation22 + $0x8] sm:$0xff]
      %v5615 = vld [vmem:[#allocation22 + $0x10] sm:$0xff]
      %v5616 = vld [vmem:[#allocation22 + $0x18] sm:$0xff]
      %v5617 = vld [vmem:[#allocation22 + $0x20] sm:$0xff]
      %v5618 = vld [vmem:[#allocation22 + $0x28] sm:$0xff]
      %v5619 = vld [vmem:[#allocation22 + $0x30] sm:$0xff]
      %v5620 = vld [vmem:[#allocation22 + $0x38] sm:$0xff]
      %v5621 = vld [vmem:[#allocation22 + $0x40] sm:$0xff]
      %v5622 = vld [vmem:[#allocation22 + $0x48] sm:$0xff]
      %v5623 = vld [vmem:[#allocation22 + $0x50] sm:$0xff]
      %v5624 = vld [vmem:[#allocation22 + $0x58] sm:$0xff]
      %v5625 = vld [vmem:[#allocation22 + $0x60] sm:$0xff]
      %v5626 = vld [vmem:[#allocation22 + $0x68] sm:$0xff]
      %v5627 = vld [vmem:[#allocation22 + $0x70] sm:$0xff]
      %v5628 = vld [vmem:[#allocation22 + $0x78] sm:$0xff]
      %v5629 = vld [vmem:[#allocation22 + $0x80] sm:$0xff]
      %v5630 = vld [vmem:[#allocation22 + $0x88] sm:$0xff]
      %v5631 = vld [vmem:[#allocation22 + $0x90] sm:$0xff]
      %v5632 = vld [vmem:[#allocation22 + $0x98] sm:$0xff]
      %v5633 = vld [vmem:[#allocation22 + $0xa0] sm:$0xff]
      %v5634 = vld [vmem:[#allocation22 + $0xa8] sm:$0xff]
      %v5635 = vld [vmem:[#allocation22 + $0xb0] sm:$0xff]
      %v5636 = vld [vmem:[#allocation22 + $0xb8] sm:$0xff]
      %v5637 = vld [vmem:[#allocation22 + $0xc0] sm:$0xff]
      %v5638 = vld [vmem:[#allocation22 + $0xc8] sm:$0xff]
      %v5639 = vld [vmem:[#allocation22 + $0xd0] sm:$0xff]
      %v5640 = vld [vmem:[#allocation22 + $0xd8] sm:$0xff]
      %v5641 = vld [vmem:[#allocation22 + $0xe0] sm:$0xff]
      %v5642 = vld [vmem:[#allocation22 + $0xe8] sm:$0xff]
      %v5643 = vld [vmem:[#allocation22 + $0xf0] sm:$0xff]
      %v5644 = vld [vmem:[#allocation22 + $0xf8] sm:$0xff]
      %v5645 = vld [vmem:[#allocation22 + $0x100] sm:$0xff]
      %v5646 = vld [vmem:[#allocation22 + $0x108] sm:$0xff]
      %v5647 = vld [vmem:[#allocation22 + $0x110] sm:$0xff]
      %v5648 = vld [vmem:[#allocation22 + $0x118] sm:$0xff]
      %v5649 = vld [vmem:[#allocation22 + $0x120] sm:$0xff]
      %v5650 = vld [vmem:[#allocation22 + $0x128] sm:$0xff]
      %v5651 = vld [vmem:[#allocation22 + $0x130] sm:$0xff]
      %v5652 = vld [vmem:[#allocation22 + $0x138] sm:$0xff]
      %v5653 = vld [vmem:[#allocation22 + $0x140] sm:$0xff]
      %v5654 = vld [vmem:[#allocation22 + $0x148] sm:$0xff]
      %v5655 = vld [vmem:[#allocation22 + $0x150] sm:$0xff]
      %v5656 = vld [vmem:[#allocation22 + $0x158] sm:$0xff]
      %v5657 = vld [vmem:[#allocation22 + $0x160] sm:$0xff]
      %v5658 = vld [vmem:[#allocation22 + $0x168] sm:$0xff]
      %v5659 = vld [vmem:[#allocation22 + $0x170] sm:$0xff]
      %v5660 = vld [vmem:[#allocation22 + $0x178] sm:$0xff]
      %v5661 = vld [vmem:[#allocation22 + $0x180] sm:$0xff]
      %v5662 = vld [vmem:[#allocation22 + $0x188] sm:$0xff]
      %v5663 = vld [vmem:[#allocation22 + $0x190] sm:$0xff]
      %v5664 = vld [vmem:[#allocation22 + $0x198] sm:$0xff]
      %v5665 = vld [vmem:[#allocation22 + $0x1a0] sm:$0xff]
      %v5666 = vld [vmem:[#allocation22 + $0x1a8] sm:$0xff]
      %v5667 = vld [vmem:[#allocation22 + $0x1b0] sm:$0xff]
      %v5668 = vld [vmem:[#allocation22 + $0x1b8] sm:$0xff]
      %v5669 = vld [vmem:[#allocation22 + $0x1c0] sm:$0xff]
      %v5670 = vld [vmem:[#allocation22 + $0x1c8] sm:$0xff]
      %v5671 = vld [vmem:[#allocation22 + $0x1d0] sm:$0xff]
      %v5672 = vld [vmem:[#allocation22 + $0x1d8] sm:$0xff]
      %v5673 = vld [vmem:[#allocation22 + $0x1e0] sm:$0xff]
      %v5674 = vld [vmem:[#allocation22 + $0x1e8] sm:$0xff]
      %v5675 = vld [vmem:[#allocation22 + $0x1f0] sm:$0xff]
      %v5676 = vld [vmem:[#allocation22 + $0x1f8] sm:$0xff]
      %v5741 = vunpack.c.l.b16 %v5613
      %v5742 = vunpack.c.h.b16 %v5613
      %v5743 = vunpack.c.l.b16 %v5614
      %v5744 = vunpack.c.h.b16 %v5614
      %v5745 = vunpack.c.l.b16 %v5615
      %v5746 = vunpack.c.h.b16 %v5615
      %v5747 = vunpack.c.l.b16 %v5616
      %v5748 = vunpack.c.h.b16 %v5616
      %v5749 = vunpack.c.l.b16 %v5617
      %v5750 = vunpack.c.h.b16 %v5617
      %v5751 = vunpack.c.l.b16 %v5618
      %v5752 = vunpack.c.h.b16 %v5618
      %v5753 = vunpack.c.l.b16 %v5619
      %v5754 = vunpack.c.h.b16 %v5619
      %v5755 = vunpack.c.l.b16 %v5620
      %v5756 = vunpack.c.h.b16 %v5620
      %v5757 = vunpack.c.l.b16 %v5621
      %v5758 = vunpack.c.h.b16 %v5621
      %v5759 = vunpack.c.l.b16 %v5622
      %v5760 = vunpack.c.h.b16 %v5622
      %v5761 = vunpack.c.l.b16 %v5623
      %v5762 = vunpack.c.h.b16 %v5623
      %v5763 = vunpack.c.l.b16 %v5624
      %v5764 = vunpack.c.h.b16 %v5624
      %v5765 = vunpack.c.l.b16 %v5625
      %v5766 = vunpack.c.h.b16 %v5625
      %v5767 = vunpack.c.l.b16 %v5626
      %v5768 = vunpack.c.h.b16 %v5626
      %v5769 = vunpack.c.l.b16 %v5627
      %v5770 = vunpack.c.h.b16 %v5627
      %v5771 = vunpack.c.l.b16 %v5628
      %v5772 = vunpack.c.h.b16 %v5628
      %v5773 = vunpack.c.l.b16 %v5629
      %v5774 = vunpack.c.h.b16 %v5629
      %v5775 = vunpack.c.l.b16 %v5630
      %v5776 = vunpack.c.h.b16 %v5630
      %v5777 = vunpack.c.l.b16 %v5631
      %v5778 = vunpack.c.h.b16 %v5631
      %v5779 = vunpack.c.l.b16 %v5632
      %v5780 = vunpack.c.h.b16 %v5632
      %v5781 = vunpack.c.l.b16 %v5633
      %v5782 = vunpack.c.h.b16 %v5633
      %v5783 = vunpack.c.l.b16 %v5634
      %v5784 = vunpack.c.h.b16 %v5634
      %v5785 = vunpack.c.l.b16 %v5635
      %v5786 = vunpack.c.h.b16 %v5635
      %v5787 = vunpack.c.l.b16 %v5636
      %v5788 = vunpack.c.h.b16 %v5636
      %v5789 = vunpack.c.l.b16 %v5637
      %v5790 = vunpack.c.h.b16 %v5637
      %v5791 = vunpack.c.l.b16 %v5638
      %v5792 = vunpack.c.h.b16 %v5638
      %v5793 = vunpack.c.l.b16 %v5639
      %v5794 = vunpack.c.h.b16 %v5639
      %v5795 = vunpack.c.l.b16 %v5640
      %v5796 = vunpack.c.h.b16 %v5640
      %v5797 = vunpack.c.l.b16 %v5641
      %v5798 = vunpack.c.h.b16 %v5641
      %v5799 = vunpack.c.l.b16 %v5642
      %v5800 = vunpack.c.h.b16 %v5642
      %v5801 = vunpack.c.l.b16 %v5643
      %v5802 = vunpack.c.h.b16 %v5643
      %v5803 = vunpack.c.l.b16 %v5644
      %v5804 = vunpack.c.h.b16 %v5644
      %v5805 = vunpack.c.l.b16 %v5645
      %v5806 = vunpack.c.h.b16 %v5645
      %v5807 = vunpack.c.l.b16 %v5646
      %v5808 = vunpack.c.h.b16 %v5646
      %v5809 = vunpack.c.l.b16 %v5647
      %v5810 = vunpack.c.h.b16 %v5647
      %v5811 = vunpack.c.l.b16 %v5648
      %v5812 = vunpack.c.h.b16 %v5648
      %v5813 = vunpack.c.l.b16 %v5649
      %v5814 = vunpack.c.h.b16 %v5649
      %v5815 = vunpack.c.l.b16 %v5650
      %v5816 = vunpack.c.h.b16 %v5650
      %v5817 = vunpack.c.l.b16 %v5651
      %v5818 = vunpack.c.h.b16 %v5651
      %v5819 = vunpack.c.l.b16 %v5652
      %v5820 = vunpack.c.h.b16 %v5652
      %v5821 = vunpack.c.l.b16 %v5653
      %v5822 = vunpack.c.h.b16 %v5653
      %v5823 = vunpack.c.l.b16 %v5654
      %v5824 = vunpack.c.h.b16 %v5654
      %v5825 = vunpack.c.l.b16 %v5655
      %v5826 = vunpack.c.h.b16 %v5655
      %v5827 = vunpack.c.l.b16 %v5656
      %v5828 = vunpack.c.h.b16 %v5656
      %v5829 = vunpack.c.l.b16 %v5657
      %v5830 = vunpack.c.h.b16 %v5657
      %v5831 = vunpack.c.l.b16 %v5658
      %v5832 = vunpack.c.h.b16 %v5658
      %v5833 = vunpack.c.l.b16 %v5659
      %v5834 = vunpack.c.h.b16 %v5659
      %v5835 = vunpack.c.l.b16 %v5660
      %v5836 = vunpack.c.h.b16 %v5660
      %v5837 = vunpack.c.l.b16 %v5661
      %v5838 = vunpack.c.h.b16 %v5661
      %v5839 = vunpack.c.l.b16 %v5662
      %v5840 = vunpack.c.h.b16 %v5662
      %v5841 = vunpack.c.l.b16 %v5663
      %v5842 = vunpack.c.h.b16 %v5663
      %v5843 = vunpack.c.l.b16 %v5664
      %v5844 = vunpack.c.h.b16 %v5664
      %v5845 = vunpack.c.l.b16 %v5665
      %v5846 = vunpack.c.h.b16 %v5665
      %v5847 = vunpack.c.l.b16 %v5666
      %v5848 = vunpack.c.h.b16 %v5666
      %v5849 = vunpack.c.l.b16 %v5667
      %v5850 = vunpack.c.h.b16 %v5667
      %v5851 = vunpack.c.l.b16 %v5668
      %v5852 = vunpack.c.h.b16 %v5668
      %v5853 = vunpack.c.l.b16 %v5669
      %v5854 = vunpack.c.h.b16 %v5669
      %v5855 = vunpack.c.l.b16 %v5670
      %v5856 = vunpack.c.h.b16 %v5670
      %v5857 = vunpack.c.l.b16 %v5671
      %v5858 = vunpack.c.h.b16 %v5671
      %v5859 = vunpack.c.l.b16 %v5672
      %v5860 = vunpack.c.h.b16 %v5672
      %v5861 = vunpack.c.l.b16 %v5673
      %v5862 = vunpack.c.h.b16 %v5673
      %v5863 = vunpack.c.l.b16 %v5674
      %v5864 = vunpack.c.h.b16 %v5674
      %v5865 = vunpack.c.l.b16 %v5675
      %v5866 = vunpack.c.h.b16 %v5675
      %v5867 = vunpack.c.l.b16 %v5676
      %v5868 = vunpack.c.h.b16 %v5676
      %v5869 = vpack.c.b16 %v5745, %v5741
      %v5870 = vpack.c.b16 %v5746, %v5742
      %v5871 = vpack.c.b16 %v5747, %v5743
      %v5872 = vpack.c.b16 %v5748, %v5744
      %v5873 = vpack.c.b16 %v5753, %v5749
      %v5874 = vpack.c.b16 %v5754, %v5750
      %v5875 = vpack.c.b16 %v5755, %v5751
      %v5876 = vpack.c.b16 %v5756, %v5752
      %v5877 = vpack.c.b16 %v5761, %v5757
      %v5878 = vpack.c.b16 %v5762, %v5758
      %v5879 = vpack.c.b16 %v5763, %v5759
      %v5880 = vpack.c.b16 %v5764, %v5760
      %v5881 = vpack.c.b16 %v5769, %v5765
      %v5882 = vpack.c.b16 %v5770, %v5766
      %v5883 = vpack.c.b16 %v5771, %v5767
      %v5884 = vpack.c.b16 %v5772, %v5768
      %v5885 = vpack.c.b16 %v5777, %v5773
      %v5886 = vpack.c.b16 %v5778, %v5774
      %v5887 = vpack.c.b16 %v5779, %v5775
      %v5888 = vpack.c.b16 %v5780, %v5776
      %v5889 = vpack.c.b16 %v5785, %v5781
      %v5890 = vpack.c.b16 %v5786, %v5782
      %v5891 = vpack.c.b16 %v5787, %v5783
      %v5892 = vpack.c.b16 %v5788, %v5784
      %v5893 = vpack.c.b16 %v5793, %v5789
      %v5894 = vpack.c.b16 %v5794, %v5790
      %v5895 = vpack.c.b16 %v5795, %v5791
      %v5896 = vpack.c.b16 %v5796, %v5792
      %v5897 = vpack.c.b16 %v5801, %v5797
      %v5898 = vpack.c.b16 %v5802, %v5798
      %v5899 = vpack.c.b16 %v5803, %v5799
      %v5900 = vpack.c.b16 %v5804, %v5800
      %v5901 = vpack.c.b16 %v5809, %v5805
      %v5902 = vpack.c.b16 %v5810, %v5806
      %v5903 = vpack.c.b16 %v5811, %v5807
      %v5904 = vpack.c.b16 %v5812, %v5808
      %v5905 = vpack.c.b16 %v5817, %v5813
      %v5906 = vpack.c.b16 %v5818, %v5814
      %v5907 = vpack.c.b16 %v5819, %v5815
      %v5908 = vpack.c.b16 %v5820, %v5816
      %v5909 = vpack.c.b16 %v5825, %v5821
      %v5910 = vpack.c.b16 %v5826, %v5822
      %v5911 = vpack.c.b16 %v5827, %v5823
      %v5912 = vpack.c.b16 %v5828, %v5824
      %v5913 = vpack.c.b16 %v5833, %v5829
      %v5914 = vpack.c.b16 %v5834, %v5830
      %v5915 = vpack.c.b16 %v5835, %v5831
      %v5916 = vpack.c.b16 %v5836, %v5832
      %v5917 = vpack.c.b16 %v5841, %v5837
      %v5918 = vpack.c.b16 %v5842, %v5838
      %v5919 = vpack.c.b16 %v5843, %v5839
      %v5920 = vpack.c.b16 %v5844, %v5840
      %v5921 = vpack.c.b16 %v5849, %v5845
      %v5922 = vpack.c.b16 %v5850, %v5846
      %v5923 = vpack.c.b16 %v5851, %v5847
      %v5924 = vpack.c.b16 %v5852, %v5848
      %v5925 = vpack.c.b16 %v5857, %v5853
      %v5926 = vpack.c.b16 %v5858, %v5854
      %v5927 = vpack.c.b16 %v5859, %v5855
      %v5928 = vpack.c.b16 %v5860, %v5856
      %v5929 = vpack.c.b16 %v5865, %v5861
      %v5930 = vpack.c.b16 %v5866, %v5862
      %v5931 = vpack.c.b16 %v5867, %v5863
      %v5932 = vpack.c.b16 %v5868, %v5864
      %5997 = vmatpush.bf16.msra.mxu0 %v5897
      %5998 = vmatpush.bf16.msra.mxu0 %v5893
      %5999 = vmatpush.bf16.msra.mxu0 %v5889
      %6000 = vmatpush.bf16.msra.mxu0 %v5885
      %6001 = vmatpush.bf16.msra.mxu0 %v5881
      %6002 = vmatpush.bf16.msra.mxu0 %v5877
      %6003 = vmatpush.bf16.msra.mxu0 %v5873
      %6004 = vmatpush.bf16.msra.mxu0 %v5869
      %6005 = vmatmul.bf16.gmra.mxu0 %v5612
      %v6006 = vpop.f32.mrf.mxu0
      %v6007 = vadd.f32 %v2359, %v6006
      %v6008 = vpop.f32.mrf.mxu0
      %6009 = vdwg.mxu0
      %6010 = vmatpush.bf16.msra.mxu0 %v5929
      %6011 = vmatpush.bf16.msra.mxu0 %v5925
      %6012 = vmatpush.bf16.msra.mxu0 %v5921
      %6013 = vmatpush.bf16.msra.mxu0 %v5917
      %6014 = vmatpush.bf16.msra.mxu0 %v5913
      %6015 = vmatpush.bf16.msra.mxu0 %v5909
      %6016 = vmatpush.bf16.msra.mxu0 %v5905
      %6017 = vmatpush.bf16.msra.mxu0 %v5901
      %6018 = vmatmul.bf16.gmra.mxu0 %v4954
      %v6019 = vpop.f32.mrf.mxu0
      %v6020 = vadd.f32 %v6007, %v6019
      %v6021 = vpop.f32.mrf.mxu0
      %6022 = vdwg.mxu0
      %6023 = vmatpush.bf16.msra.mxu0 %v5898
      %6024 = vmatpush.bf16.msra.mxu0 %v5894
      %6025 = vmatpush.bf16.msra.mxu0 %v5890
      %6026 = vmatpush.bf16.msra.mxu0 %v5886
      %6027 = vmatpush.bf16.msra.mxu0 %v5882
      %6028 = vmatpush.bf16.msra.mxu0 %v5878
      %6029 = vmatpush.bf16.msra.mxu0 %v5874
      %6030 = vmatpush.bf16.msra.mxu0 %v5870
      %6031 = vmatmul.bf16.gmra.mxu0 %v5612
      %v6032 = vpop.f32.mrf.mxu0
      %v6033 = vadd.f32 %v2360, %v6032
      %v6034 = vpop.f32.mrf.mxu0
      %6035 = vdwg.mxu0
      %6036 = vmatpush.bf16.msra.mxu0 %v5930
      %6037 = vmatpush.bf16.msra.mxu0 %v5926
      %6038 = vmatpush.bf16.msra.mxu0 %v5922
      %6039 = vmatpush.bf16.msra.mxu0 %v5918
      %6040 = vmatpush.bf16.msra.mxu0 %v5914
      %6041 = vmatpush.bf16.msra.mxu0 %v5910
      %6042 = vmatpush.bf16.msra.mxu0 %v5906
      %6043 = vmatpush.bf16.msra.mxu0 %v5902
      %6044 = vmatmul.bf16.gmra.mxu0 %v4954
      %v6045 = vpop.f32.mrf.mxu0
      %v6046 = vadd.f32 %v6033, %v6045
      %v6047 = vpop.f32.mrf.mxu0
      %6048 = vdwg.mxu0
      %6049 = vmatpush.bf16.msra.mxu0 %v5899
      %6050 = vmatpush.bf16.msra.mxu0 %v5895
      %6051 = vmatpush.bf16.msra.mxu0 %v5891
      %6052 = vmatpush.bf16.msra.mxu0 %v5887
      %6053 = vmatpush.bf16.msra.mxu0 %v5883
      %6054 = vmatpush.bf16.msra.mxu0 %v5879
      %6055 = vmatpush.bf16.msra.mxu0 %v5875
      %6056 = vmatpush.bf16.msra.mxu0 %v5871
      %6057 = vmatmul.bf16.gmra.mxu0 %v5612
      %v6058 = vpop.f32.mrf.mxu0
      %v6059 = vadd.f32 %v2361, %v6058
      %v6060 = vpop.f32.mrf.mxu0
      %6061 = vdwg.mxu0
      %6062 = vmatpush.bf16.msra.mxu0 %v5931
      %6063 = vmatpush.bf16.msra.mxu0 %v5927
      %6064 = vmatpush.bf16.msra.mxu0 %v5923
      %6065 = vmatpush.bf16.msra.mxu0 %v5919
      %6066 = vmatpush.bf16.msra.mxu0 %v5915
      %6067 = vmatpush.bf16.msra.mxu0 %v5911
      %6068 = vmatpush.bf16.msra.mxu0 %v5907
      %6069 = vmatpush.bf16.msra.mxu0 %v5903
      %6070 = vmatmul.bf16.gmra.mxu0 %v4954
      %v6071 = vpop.f32.mrf.mxu0
      %v6072 = vadd.f32 %v6059, %v6071
      %v6073 = vpop.f32.mrf.mxu0
      %6074 = vdwg.mxu0
      %6075 = vmatpush.bf16.msra.mxu0 %v5900
      %6076 = vmatpush.bf16.msra.mxu0 %v5896
      %6077 = vmatpush.bf16.msra.mxu0 %v5892
      %6078 = vmatpush.bf16.msra.mxu0 %v5888
      %6079 = vmatpush.bf16.msra.mxu0 %v5884
      %6080 = vmatpush.bf16.msra.mxu0 %v5880
      %6081 = vmatpush.bf16.msra.mxu0 %v5876
      %6082 = vmatpush.bf16.msra.mxu0 %v5872
      %6083 = vmatmul.bf16.gmra.mxu0 %v5612
      %v6084 = vpop.f32.mrf.mxu0
      %v6085 = vadd.f32 %v2362, %v6084
      %v6086 = vpop.f32.mrf.mxu0
      %6087 = vdwg.mxu0
      %6088 = vmatpush.bf16.msra.mxu0 %v5932
      %6089 = vmatpush.bf16.msra.mxu0 %v5928
      %6090 = vmatpush.bf16.msra.mxu0 %v5924
      %6091 = vmatpush.bf16.msra.mxu0 %v5920
      %6092 = vmatpush.bf16.msra.mxu0 %v5916
      %6093 = vmatpush.bf16.msra.mxu0 %v5912
      %6094 = vmatpush.bf16.msra.mxu0 %v5908
      %6095 = vmatpush.bf16.msra.mxu0 %v5904
      %6096 = vmatmul.bf16.gmra.mxu0 %v4954
      %v6097 = vpop.f32.mrf.mxu0
      %v6098 = vadd.f32 %v6085, %v6097
      %v6099 = vpop.f32.mrf.mxu0
      %6100 = vdwg.mxu0
      %v6101 = vxor.u32 %v6020, 2147483648
      %v6102 = vmul.f32 %v6101, 1.442695
      %v6103 = vpow.pop %v6102
      %v6104 = vadd.f32 %v6103, 1.0
      %v6105 = vrcp.pop %v6104
      %v6106 = vmul.f32 %v6104, %v6105
      %v6107 = vsub.f32 1.0, %v6106
      %v6108 = vmul.f32 %v6105, %v6107
      %v6109 = vadd.f32 %v6105, %v6108
      %vm6110 = vweird.f32 %v6104
      %vm6111 = vweird.f32 %v6105
      %vm6112 = vmor %vm6110, %vm6111
      %v6113 = vsel %vm6112, %v6105, %v6109
      %v6114 = vand.u32 2147483647, %v6104
      %vm6115 = vcmp.eq.f32.partialorder %v6114, 8.507059e+37
      %v6116 = vand.u32 %v6104, 2147483648
      %v6117 = vor.u32 1.1754944e-38, %v6116
      %v6118 = vsel %vm6115, %v6117, %v6113
      %v6119 = vmul.f32 1.0, %v6118
      %v6120 = vxor.u32 %v6046, 2147483648
      %v6121 = vmul.f32 %v6120, 1.442695
      %v6122 = vpow.pop %v6121
      %v6123 = vadd.f32 %v6122, 1.0
      %v6124 = vrcp.pop %v6123
      %v6125 = vmul.f32 %v6123, %v6124
      %v6126 = vsub.f32 1.0, %v6125
      %v6127 = vmul.f32 %v6124, %v6126
      %v6128 = vadd.f32 %v6124, %v6127
      %vm6129 = vweird.f32 %v6123
      %vm6130 = vweird.f32 %v6124
      %vm6131 = vmor %vm6129, %vm6130
      %v6132 = vsel %vm6131, %v6124, %v6128
      %v6133 = vand.u32 2147483647, %v6123
      %vm6134 = vcmp.eq.f32.partialorder %v6133, 8.507059e+37
      %v6135 = vand.u32 %v6123, 2147483648
      %v6136 = vor.u32 1.1754944e-38, %v6135
      %v6137 = vsel %vm6134, %v6136, %v6132
      %v6138 = vmul.f32 1.0, %v6137
      %v6139 = vtanh.pop %v6072
      %v6140 = vxor.u32 %v6098, 2147483648
      %v6141 = vmul.f32 %v6140, 1.442695
      %v6142 = vpow.pop %v6141
      %v6143 = vadd.f32 %v6142, 1.0
      %v6144 = vrcp.pop %v6143
      %v6145 = vmul.f32 %v6143, %v6144
      %v6146 = vsub.f32 1.0, %v6145
      %v6147 = vmul.f32 %v6144, %v6146
      %v6148 = vadd.f32 %v6144, %v6147
      %vm6149 = vweird.f32 %v6143
      %vm6150 = vweird.f32 %v6144
      %vm6151 = vmor %vm6149, %vm6150
      %v6152 = vsel %vm6151, %v6144, %v6148
      %v6153 = vand.u32 2147483647, %v6143
      %vm6154 = vcmp.eq.f32.partialorder %v6153, 8.507059e+37
      %v6155 = vand.u32 %v6143, 2147483648
      %v6156 = vor.u32 1.1754944e-38, %v6155
      %v6157 = vsel %vm6154, %v6156, %v6152
      %v6158 = vmul.f32 1.0, %v6157
      %v6159 = vmul.f32 %v6138, %v4951
      %v6160 = vmul.f32 %v6119, %v6139
      %v6161 = vadd.f32 %v6159, %v6160
      %v6162 = vtanh.pop %v6161
      %v6163 = vmul.f32 %v6158, %v6162
      %v6164 = vpack.c.bf16 %v6163, %v6163
      %v6165 = vld [vmem:[#allocation24] sm:$0xff]
      %v6166 = vld [vmem:[#allocation24 + $0x8] sm:$0xff]
      %v6167 = vld [vmem:[#allocation24 + $0x10] sm:$0xff]
      %v6168 = vld [vmem:[#allocation24 + $0x18] sm:$0xff]
      %v6169 = vld [vmem:[#allocation24 + $0x20] sm:$0xff]
      %v6170 = vld [vmem:[#allocation24 + $0x28] sm:$0xff]
      %v6171 = vld [vmem:[#allocation24 + $0x30] sm:$0xff]
      %v6172 = vld [vmem:[#allocation24 + $0x38] sm:$0xff]
      %v6173 = vld [vmem:[#allocation24 + $0x40] sm:$0xff]
      %v6174 = vld [vmem:[#allocation24 + $0x48] sm:$0xff]
      %v6175 = vld [vmem:[#allocation24 + $0x50] sm:$0xff]
      %v6176 = vld [vmem:[#allocation24 + $0x58] sm:$0xff]
      %v6177 = vld [vmem:[#allocation24 + $0x60] sm:$0xff]
      %v6178 = vld [vmem:[#allocation24 + $0x68] sm:$0xff]
      %v6179 = vld [vmem:[#allocation24 + $0x70] sm:$0xff]
      %v6180 = vld [vmem:[#allocation24 + $0x78] sm:$0xff]
      %v6181 = vld [vmem:[#allocation24 + $0x80] sm:$0xff]
      %v6182 = vld [vmem:[#allocation24 + $0x88] sm:$0xff]
      %v6183 = vld [vmem:[#allocation24 + $0x90] sm:$0xff]
      %v6184 = vld [vmem:[#allocation24 + $0x98] sm:$0xff]
      %v6185 = vld [vmem:[#allocation24 + $0xa0] sm:$0xff]
      %v6186 = vld [vmem:[#allocation24 + $0xa8] sm:$0xff]
      %v6187 = vld [vmem:[#allocation24 + $0xb0] sm:$0xff]
      %v6188 = vld [vmem:[#allocation24 + $0xb8] sm:$0xff]
      %v6189 = vld [vmem:[#allocation24 + $0xc0] sm:$0xff]
      %v6190 = vld [vmem:[#allocation24 + $0xc8] sm:$0xff]
      %v6191 = vld [vmem:[#allocation24 + $0xd0] sm:$0xff]
      %v6192 = vld [vmem:[#allocation24 + $0xd8] sm:$0xff]
      %v6193 = vld [vmem:[#allocation24 + $0xe0] sm:$0xff]
      %v6194 = vld [vmem:[#allocation24 + $0xe8] sm:$0xff]
      %v6195 = vld [vmem:[#allocation24 + $0xf0] sm:$0xff]
      %v6196 = vld [vmem:[#allocation24 + $0xf8] sm:$0xff]
      %v6197 = vld [vmem:[#allocation24 + $0x100] sm:$0xff]
      %v6198 = vld [vmem:[#allocation24 + $0x108] sm:$0xff]
      %v6199 = vld [vmem:[#allocation24 + $0x110] sm:$0xff]
      %v6200 = vld [vmem:[#allocation24 + $0x118] sm:$0xff]
      %v6201 = vld [vmem:[#allocation24 + $0x120] sm:$0xff]
      %v6202 = vld [vmem:[#allocation24 + $0x128] sm:$0xff]
      %v6203 = vld [vmem:[#allocation24 + $0x130] sm:$0xff]
      %v6204 = vld [vmem:[#allocation24 + $0x138] sm:$0xff]
      %v6205 = vld [vmem:[#allocation24 + $0x140] sm:$0xff]
      %v6206 = vld [vmem:[#allocation24 + $0x148] sm:$0xff]
      %v6207 = vld [vmem:[#allocation24 + $0x150] sm:$0xff]
      %v6208 = vld [vmem:[#allocation24 + $0x158] sm:$0xff]
      %v6209 = vld [vmem:[#allocation24 + $0x160] sm:$0xff]
      %v6210 = vld [vmem:[#allocation24 + $0x168] sm:$0xff]
      %v6211 = vld [vmem:[#allocation24 + $0x170] sm:$0xff]
      %v6212 = vld [vmem:[#allocation24 + $0x178] sm:$0xff]
      %v6213 = vld [vmem:[#allocation24 + $0x180] sm:$0xff]
      %v6214 = vld [vmem:[#allocation24 + $0x188] sm:$0xff]
      %v6215 = vld [vmem:[#allocation24 + $0x190] sm:$0xff]
      %v6216 = vld [vmem:[#allocation24 + $0x198] sm:$0xff]
      %v6217 = vld [vmem:[#allocation24 + $0x1a0] sm:$0xff]
      %v6218 = vld [vmem:[#allocation24 + $0x1a8] sm:$0xff]
      %v6219 = vld [vmem:[#allocation24 + $0x1b0] sm:$0xff]
      %v6220 = vld [vmem:[#allocation24 + $0x1b8] sm:$0xff]
      %v6221 = vld [vmem:[#allocation24 + $0x1c0] sm:$0xff]
      %v6222 = vld [vmem:[#allocation24 + $0x1c8] sm:$0xff]
      %v6223 = vld [vmem:[#allocation24 + $0x1d0] sm:$0xff]
      %v6224 = vld [vmem:[#allocation24 + $0x1d8] sm:$0xff]
      %v6225 = vld [vmem:[#allocation24 + $0x1e0] sm:$0xff]
      %v6226 = vld [vmem:[#allocation24 + $0x1e8] sm:$0xff]
      %v6227 = vld [vmem:[#allocation24 + $0x1f0] sm:$0xff]
      %v6228 = vld [vmem:[#allocation24 + $0x1f8] sm:$0xff]
      %v6229 = vld [vmem:[%s15] sm:$0xf]
      %v6294 = vunpack.c.l.b16 %v6165
      %v6295 = vunpack.c.h.b16 %v6165
      %v6296 = vunpack.c.l.b16 %v6166
      %v6297 = vunpack.c.h.b16 %v6166
      %v6298 = vunpack.c.l.b16 %v6167
      %v6299 = vunpack.c.h.b16 %v6167
      %v6300 = vunpack.c.l.b16 %v6168
      %v6301 = vunpack.c.h.b16 %v6168
      %v6302 = vunpack.c.l.b16 %v6169
      %v6303 = vunpack.c.h.b16 %v6169
      %v6304 = vunpack.c.l.b16 %v6170
      %v6305 = vunpack.c.h.b16 %v6170
      %v6306 = vunpack.c.l.b16 %v6171
      %v6307 = vunpack.c.h.b16 %v6171
      %v6308 = vunpack.c.l.b16 %v6172
      %v6309 = vunpack.c.h.b16 %v6172
      %v6310 = vunpack.c.l.b16 %v6173
      %v6311 = vunpack.c.h.b16 %v6173
      %v6312 = vunpack.c.l.b16 %v6174
      %v6313 = vunpack.c.h.b16 %v6174
      %v6314 = vunpack.c.l.b16 %v6175
      %v6315 = vunpack.c.h.b16 %v6175
      %v6316 = vunpack.c.l.b16 %v6176
      %v6317 = vunpack.c.h.b16 %v6176
      %v6318 = vunpack.c.l.b16 %v6177
      %v6319 = vunpack.c.h.b16 %v6177
      %v6320 = vunpack.c.l.b16 %v6178
      %v6321 = vunpack.c.h.b16 %v6178
      %v6322 = vunpack.c.l.b16 %v6179
      %v6323 = vunpack.c.h.b16 %v6179
      %v6324 = vunpack.c.l.b16 %v6180
      %v6325 = vunpack.c.h.b16 %v6180
      %v6326 = vunpack.c.l.b16 %v6181
      %v6327 = vunpack.c.h.b16 %v6181
      %v6328 = vunpack.c.l.b16 %v6182
      %v6329 = vunpack.c.h.b16 %v6182
      %v6330 = vunpack.c.l.b16 %v6183
      %v6331 = vunpack.c.h.b16 %v6183
      %v6332 = vunpack.c.l.b16 %v6184
      %v6333 = vunpack.c.h.b16 %v6184
      %v6334 = vunpack.c.l.b16 %v6185
      %v6335 = vunpack.c.h.b16 %v6185
      %v6336 = vunpack.c.l.b16 %v6186
      %v6337 = vunpack.c.h.b16 %v6186
      %v6338 = vunpack.c.l.b16 %v6187
      %v6339 = vunpack.c.h.b16 %v6187
      %v6340 = vunpack.c.l.b16 %v6188
      %v6341 = vunpack.c.h.b16 %v6188
      %v6342 = vunpack.c.l.b16 %v6189
      %v6343 = vunpack.c.h.b16 %v6189
      %v6344 = vunpack.c.l.b16 %v6190
      %v6345 = vunpack.c.h.b16 %v6190
      %v6346 = vunpack.c.l.b16 %v6191
      %v6347 = vunpack.c.h.b16 %v6191
      %v6348 = vunpack.c.l.b16 %v6192
      %v6349 = vunpack.c.h.b16 %v6192
      %v6350 = vunpack.c.l.b16 %v6193
      %v6351 = vunpack.c.h.b16 %v6193
      %v6352 = vunpack.c.l.b16 %v6194
      %v6353 = vunpack.c.h.b16 %v6194
      %v6354 = vunpack.c.l.b16 %v6195
      %v6355 = vunpack.c.h.b16 %v6195
      %v6356 = vunpack.c.l.b16 %v6196
      %v6357 = vunpack.c.h.b16 %v6196
      %v6358 = vunpack.c.l.b16 %v6197
      %v6359 = vunpack.c.h.b16 %v6197
      %v6360 = vunpack.c.l.b16 %v6198
      %v6361 = vunpack.c.h.b16 %v6198
      %v6362 = vunpack.c.l.b16 %v6199
      %v6363 = vunpack.c.h.b16 %v6199
      %v6364 = vunpack.c.l.b16 %v6200
      %v6365 = vunpack.c.h.b16 %v6200
      %v6366 = vunpack.c.l.b16 %v6201
      %v6367 = vunpack.c.h.b16 %v6201
      %v6368 = vunpack.c.l.b16 %v6202
      %v6369 = vunpack.c.h.b16 %v6202
      %v6370 = vunpack.c.l.b16 %v6203
      %v6371 = vunpack.c.h.b16 %v6203
      %v6372 = vunpack.c.l.b16 %v6204
      %v6373 = vunpack.c.h.b16 %v6204
      %v6374 = vunpack.c.l.b16 %v6205
      %v6375 = vunpack.c.h.b16 %v6205
      %v6376 = vunpack.c.l.b16 %v6206
      %v6377 = vunpack.c.h.b16 %v6206
      %v6378 = vunpack.c.l.b16 %v6207
      %v6379 = vunpack.c.h.b16 %v6207
      %v6380 = vunpack.c.l.b16 %v6208
      %v6381 = vunpack.c.h.b16 %v6208
      %v6382 = vunpack.c.l.b16 %v6209
      %v6383 = vunpack.c.h.b16 %v6209
      %v6384 = vunpack.c.l.b16 %v6210
      %v6385 = vunpack.c.h.b16 %v6210
      %v6386 = vunpack.c.l.b16 %v6211
      %v6387 = vunpack.c.h.b16 %v6211
      %v6388 = vunpack.c.l.b16 %v6212
      %v6389 = vunpack.c.h.b16 %v6212
      %v6390 = vunpack.c.l.b16 %v6213
      %v6391 = vunpack.c.h.b16 %v6213
      %v6392 = vunpack.c.l.b16 %v6214
      %v6393 = vunpack.c.h.b16 %v6214
      %v6394 = vunpack.c.l.b16 %v6215
      %v6395 = vunpack.c.h.b16 %v6215
      %v6396 = vunpack.c.l.b16 %v6216
      %v6397 = vunpack.c.h.b16 %v6216
      %v6398 = vunpack.c.l.b16 %v6217
      %v6399 = vunpack.c.h.b16 %v6217
      %v6400 = vunpack.c.l.b16 %v6218
      %v6401 = vunpack.c.h.b16 %v6218
      %v6402 = vunpack.c.l.b16 %v6219
      %v6403 = vunpack.c.h.b16 %v6219
      %v6404 = vunpack.c.l.b16 %v6220
      %v6405 = vunpack.c.h.b16 %v6220
      %v6406 = vunpack.c.l.b16 %v6221
      %v6407 = vunpack.c.h.b16 %v6221
      %v6408 = vunpack.c.l.b16 %v6222
      %v6409 = vunpack.c.h.b16 %v6222
      %v6410 = vunpack.c.l.b16 %v6223
      %v6411 = vunpack.c.h.b16 %v6223
      %v6412 = vunpack.c.l.b16 %v6224
      %v6413 = vunpack.c.h.b16 %v6224
      %v6414 = vunpack.c.l.b16 %v6225
      %v6415 = vunpack.c.h.b16 %v6225
      %v6416 = vunpack.c.l.b16 %v6226
      %v6417 = vunpack.c.h.b16 %v6226
      %v6418 = vunpack.c.l.b16 %v6227
      %v6419 = vunpack.c.h.b16 %v6227
      %v6420 = vunpack.c.l.b16 %v6228
      %v6421 = vunpack.c.h.b16 %v6228
      %v6422 = vpack.c.b16 %v6298, %v6294
      %v6423 = vpack.c.b16 %v6299, %v6295
      %v6424 = vpack.c.b16 %v6300, %v6296
      %v6425 = vpack.c.b16 %v6301, %v6297
      %v6426 = vpack.c.b16 %v6306, %v6302
      %v6427 = vpack.c.b16 %v6307, %v6303
      %v6428 = vpack.c.b16 %v6308, %v6304
      %v6429 = vpack.c.b16 %v6309, %v6305
      %v6430 = vpack.c.b16 %v6314, %v6310
      %v6431 = vpack.c.b16 %v6315, %v6311
      %v6432 = vpack.c.b16 %v6316, %v6312
      %v6433 = vpack.c.b16 %v6317, %v6313
      %v6434 = vpack.c.b16 %v6322, %v6318
      %v6435 = vpack.c.b16 %v6323, %v6319
      %v6436 = vpack.c.b16 %v6324, %v6320
      %v6437 = vpack.c.b16 %v6325, %v6321
      %v6438 = vpack.c.b16 %v6330, %v6326
      %v6439 = vpack.c.b16 %v6331, %v6327
      %v6440 = vpack.c.b16 %v6332, %v6328
      %v6441 = vpack.c.b16 %v6333, %v6329
      %v6442 = vpack.c.b16 %v6338, %v6334
      %v6443 = vpack.c.b16 %v6339, %v6335
      %v6444 = vpack.c.b16 %v6340, %v6336
      %v6445 = vpack.c.b16 %v6341, %v6337
      %v6446 = vpack.c.b16 %v6346, %v6342
      %v6447 = vpack.c.b16 %v6347, %v6343
      %v6448 = vpack.c.b16 %v6348, %v6344
      %v6449 = vpack.c.b16 %v6349, %v6345
      %v6450 = vpack.c.b16 %v6354, %v6350
      %v6451 = vpack.c.b16 %v6355, %v6351
      %v6452 = vpack.c.b16 %v6356, %v6352
      %v6453 = vpack.c.b16 %v6357, %v6353
      %v6454 = vpack.c.b16 %v6362, %v6358
      %v6455 = vpack.c.b16 %v6363, %v6359
      %v6456 = vpack.c.b16 %v6364, %v6360
      %v6457 = vpack.c.b16 %v6365, %v6361
      %v6458 = vpack.c.b16 %v6370, %v6366
      %v6459 = vpack.c.b16 %v6371, %v6367
      %v6460 = vpack.c.b16 %v6372, %v6368
      %v6461 = vpack.c.b16 %v6373, %v6369
      %v6462 = vpack.c.b16 %v6378, %v6374
      %v6463 = vpack.c.b16 %v6379, %v6375
      %v6464 = vpack.c.b16 %v6380, %v6376
      %v6465 = vpack.c.b16 %v6381, %v6377
      %v6466 = vpack.c.b16 %v6386, %v6382
      %v6467 = vpack.c.b16 %v6387, %v6383
      %v6468 = vpack.c.b16 %v6388, %v6384
      %v6469 = vpack.c.b16 %v6389, %v6385
      %v6470 = vpack.c.b16 %v6394, %v6390
      %v6471 = vpack.c.b16 %v6395, %v6391
      %v6472 = vpack.c.b16 %v6396, %v6392
      %v6473 = vpack.c.b16 %v6397, %v6393
      %v6474 = vpack.c.b16 %v6402, %v6398
      %v6475 = vpack.c.b16 %v6403, %v6399
      %v6476 = vpack.c.b16 %v6404, %v6400
      %v6477 = vpack.c.b16 %v6405, %v6401
      %v6478 = vpack.c.b16 %v6410, %v6406
      %v6479 = vpack.c.b16 %v6411, %v6407
      %v6480 = vpack.c.b16 %v6412, %v6408
      %v6481 = vpack.c.b16 %v6413, %v6409
      %v6482 = vpack.c.b16 %v6418, %v6414
      %v6483 = vpack.c.b16 %v6419, %v6415
      %v6484 = vpack.c.b16 %v6420, %v6416
      %v6485 = vpack.c.b16 %v6421, %v6417
      %v6551 = vperm.slane %v6229, 0
      %v6552 = vperm.slane %v6229, 1
      %v6553 = vperm.slane %v6229, 2
      %v6554 = vperm.slane %v6229, 3
      %6559 = vmatpush.bf16.msra.mxu0 %v6450
      %6560 = vmatpush.bf16.msra.mxu0 %v6446
      %6561 = vmatpush.bf16.msra.mxu0 %v6442
      %6562 = vmatpush.bf16.msra.mxu0 %v6438
      %6563 = vmatpush.bf16.msra.mxu0 %v6434
      %6564 = vmatpush.bf16.msra.mxu0 %v6430
      %6565 = vmatpush.bf16.msra.mxu0 %v6426
      %6566 = vmatpush.bf16.msra.mxu0 %v6422
      %6567 = vmatmul.bf16.gmra.mxu0 %v6164
      %v6568 = vpop.f32.mrf.mxu0
      %v6569 = vadd.f32 %v6551, %v6568
      %v6570 = vpop.f32.mrf.mxu0
      %6571 = vdwg.mxu0
      %6572 = vmatpush.bf16.msra.mxu0 %v6482
      %6573 = vmatpush.bf16.msra.mxu0 %v6478
      %6574 = vmatpush.bf16.msra.mxu0 %v6474
      %6575 = vmatpush.bf16.msra.mxu0 %v6470
      %6576 = vmatpush.bf16.msra.mxu0 %v6466
      %6577 = vmatpush.bf16.msra.mxu0 %v6462
      %6578 = vmatpush.bf16.msra.mxu0 %v6458
      %6579 = vmatpush.bf16.msra.mxu0 %v6454
      %6580 = vmatmul.bf16.gmra.mxu0 %v5516
      %v6581 = vpop.f32.mrf.mxu0
      %v6582 = vadd.f32 %v6569, %v6581
      %v6583 = vpop.f32.mrf.mxu0
      %6584 = vdwg.mxu0
      %6585 = vmatpush.bf16.msra.mxu0 %v6451
      %6586 = vmatpush.bf16.msra.mxu0 %v6447
      %6587 = vmatpush.bf16.msra.mxu0 %v6443
      %6588 = vmatpush.bf16.msra.mxu0 %v6439
      %6589 = vmatpush.bf16.msra.mxu0 %v6435
      %6590 = vmatpush.bf16.msra.mxu0 %v6431
      %6591 = vmatpush.bf16.msra.mxu0 %v6427
      %6592 = vmatpush.bf16.msra.mxu0 %v6423
      %6593 = vmatmul.bf16.gmra.mxu0 %v6164
      %v6594 = vpop.f32.mrf.mxu0
      %v6595 = vadd.f32 %v6552, %v6594
      %v6596 = vpop.f32.mrf.mxu0
      %6597 = vdwg.mxu0
      %6598 = vmatpush.bf16.msra.mxu0 %v6483
      %6599 = vmatpush.bf16.msra.mxu0 %v6479
      %6600 = vmatpush.bf16.msra.mxu0 %v6475
      %6601 = vmatpush.bf16.msra.mxu0 %v6471
      %6602 = vmatpush.bf16.msra.mxu0 %v6467
      %6603 = vmatpush.bf16.msra.mxu0 %v6463
      %6604 = vmatpush.bf16.msra.mxu0 %v6459
      %6605 = vmatpush.bf16.msra.mxu0 %v6455
      %6606 = vmatmul.bf16.gmra.mxu0 %v5516
      %v6607 = vpop.f32.mrf.mxu0
      %v6608 = vadd.f32 %v6595, %v6607
      %v6609 = vpop.f32.mrf.mxu0
      %6610 = vdwg.mxu0
      %6611 = vmatpush.bf16.msra.mxu0 %v6452
      %6612 = vmatpush.bf16.msra.mxu0 %v6448
      %6613 = vmatpush.bf16.msra.mxu0 %v6444
      %6614 = vmatpush.bf16.msra.mxu0 %v6440
      %6615 = vmatpush.bf16.msra.mxu0 %v6436
      %6616 = vmatpush.bf16.msra.mxu0 %v6432
      %6617 = vmatpush.bf16.msra.mxu0 %v6428
      %6618 = vmatpush.bf16.msra.mxu0 %v6424
      %6619 = vmatmul.bf16.gmra.mxu0 %v6164
      %v6620 = vpop.f32.mrf.mxu0
      %v6621 = vadd.f32 %v6553, %v6620
      %v6622 = vpop.f32.mrf.mxu0
      %6623 = vdwg.mxu0
      %6624 = vmatpush.bf16.msra.mxu0 %v6484
      %6625 = vmatpush.bf16.msra.mxu0 %v6480
      %6626 = vmatpush.bf16.msra.mxu0 %v6476
      %6627 = vmatpush.bf16.msra.mxu0 %v6472
      %6628 = vmatpush.bf16.msra.mxu0 %v6468
      %6629 = vmatpush.bf16.msra.mxu0 %v6464
      %6630 = vmatpush.bf16.msra.mxu0 %v6460
      %6631 = vmatpush.bf16.msra.mxu0 %v6456
      %6632 = vmatmul.bf16.gmra.mxu0 %v5516
      %v6633 = vpop.f32.mrf.mxu0
      %v6634 = vadd.f32 %v6621, %v6633
      %v6635 = vpop.f32.mrf.mxu0
      %6636 = vdwg.mxu0
      %6637 = vmatpush.bf16.msra.mxu0 %v6453
      %6638 = vmatpush.bf16.msra.mxu0 %v6449
      %6639 = vmatpush.bf16.msra.mxu0 %v6445
      %6640 = vmatpush.bf16.msra.mxu0 %v6441
      %6641 = vmatpush.bf16.msra.mxu0 %v6437
      %6642 = vmatpush.bf16.msra.mxu0 %v6433
      %6643 = vmatpush.bf16.msra.mxu0 %v6429
      %6644 = vmatpush.bf16.msra.mxu0 %v6425
      %6645 = vmatmul.bf16.gmra.mxu0 %v6164
      %v6646 = vpop.f32.mrf.mxu0
      %v6647 = vadd.f32 %v6554, %v6646
      %v6648 = vpop.f32.mrf.mxu0
      %6649 = vdwg.mxu0
      %6650 = vmatpush.bf16.msra.mxu0 %v6485
      %6651 = vmatpush.bf16.msra.mxu0 %v6481
      %6652 = vmatpush.bf16.msra.mxu0 %v6477
      %6653 = vmatpush.bf16.msra.mxu0 %v6473
      %6654 = vmatpush.bf16.msra.mxu0 %v6469
      %6655 = vmatpush.bf16.msra.mxu0 %v6465
      %6656 = vmatpush.bf16.msra.mxu0 %v6461
      %6657 = vmatpush.bf16.msra.mxu0 %v6457
      %6658 = vmatmul.bf16.gmra.mxu0 %v5516
      %v6659 = vpop.f32.mrf.mxu0
      %v6660 = vadd.f32 %v6647, %v6659
      %v6661 = vpop.f32.mrf.mxu0
      %6662 = vdwg.mxu0
      %v6663 = vxor.u32 %v6582, 2147483648
      %v6664 = vmul.f32 %v6663, 1.442695
      %v6665 = vpow.pop %v6664
      %v6666 = vadd.f32 %v6665, 1.0
      %v6667 = vrcp.pop %v6666
      %v6668 = vmul.f32 %v6666, %v6667
      %v6669 = vsub.f32 1.0, %v6668
      %v6670 = vmul.f32 %v6667, %v6669
      %v6671 = vadd.f32 %v6667, %v6670
      %vm6672 = vweird.f32 %v6666
      %vm6673 = vweird.f32 %v6667
      %vm6674 = vmor %vm6672, %vm6673
      %v6675 = vsel %vm6674, %v6667, %v6671
      %v6676 = vand.u32 2147483647, %v6666
      %vm6677 = vcmp.eq.f32.partialorder %v6676, 8.507059e+37
      %v6678 = vand.u32 %v6666, 2147483648
      %v6679 = vor.u32 1.1754944e-38, %v6678
      %v6680 = vsel %vm6677, %v6679, %v6675
      %v6681 = vmul.f32 1.0, %v6680
      %v6682 = vxor.u32 %v6608, 2147483648
      %v6683 = vmul.f32 %v6682, 1.442695
      %v6684 = vpow.pop %v6683
      %v6685 = vadd.f32 %v6684, 1.0
      %v6686 = vrcp.pop %v6685
      %v6687 = vmul.f32 %v6685, %v6686
      %v6688 = vsub.f32 1.0, %v6687
      %v6689 = vmul.f32 %v6686, %v6688
      %v6690 = vadd.f32 %v6686, %v6689
      %vm6691 = vweird.f32 %v6685
      %vm6692 = vweird.f32 %v6686
      %vm6693 = vmor %vm6691, %vm6692
      %v6694 = vsel %vm6693, %v6686, %v6690
      %v6695 = vand.u32 2147483647, %v6685
      %vm6696 = vcmp.eq.f32.partialorder %v6695, 8.507059e+37
      %v6697 = vand.u32 %v6685, 2147483648
      %v6698 = vor.u32 1.1754944e-38, %v6697
      %v6699 = vsel %vm6696, %v6698, %v6694
      %v6700 = vmul.f32 1.0, %v6699
      %v6701 = vtanh.pop %v6634
      %v6702 = vxor.u32 %v6660, 2147483648
      %v6703 = vmul.f32 %v6702, 1.442695
      %v6704 = vpow.pop %v6703
      %v6705 = vadd.f32 %v6704, 1.0
      %v6706 = vrcp.pop %v6705
      %v6707 = vmul.f32 %v6705, %v6706
      %v6708 = vsub.f32 1.0, %v6707
      %v6709 = vmul.f32 %v6706, %v6708
      %v6710 = vadd.f32 %v6706, %v6709
      %vm6711 = vweird.f32 %v6705
      %vm6712 = vweird.f32 %v6706
      %vm6713 = vmor %vm6711, %vm6712
      %v6714 = vsel %vm6713, %v6706, %v6710
      %v6715 = vand.u32 2147483647, %v6705
      %vm6716 = vcmp.eq.f32.partialorder %v6715, 8.507059e+37
      %v6717 = vand.u32 %v6705, 2147483648
      %v6718 = vor.u32 1.1754944e-38, %v6717
      %v6719 = vsel %vm6716, %v6718, %v6714
      %v6720 = vmul.f32 1.0, %v6719
      %v6721 = vmul.f32 %v6700, %v5513
      %v6722 = vmul.f32 %v6681, %v6701
      %v6723 = vadd.f32 %v6721, %v6722
      %v6724 = vtanh.pop %v6723
      %v6725 = vmul.f32 %v6720, %v6724
      %v6726 = vpack.c.bf16 %v6725, %v6725
      %v6727 = vld [vmem:[#allocation25] sm:$0xf]
      %v6728 = vld [vmem:[#allocation25 + $0x4] sm:$0xf]
      %v6729 = vld [vmem:[#allocation25 + $0x8] sm:$0xf]
      %v6730 = vld [vmem:[#allocation25 + $0xc] sm:$0xf]
      %v6731 = vld [vmem:[#allocation25 + $0x10] sm:$0xf]
      %v6732 = vld [vmem:[#allocation25 + $0x14] sm:$0xf]
      %v6733 = vld [vmem:[#allocation25 + $0x18] sm:$0xf]
      %v6734 = vld [vmem:[#allocation25 + $0x1c] sm:$0xf]
      %v6735 = vld [vmem:[#allocation25 + $0x20] sm:$0xf]
      %v6736 = vld [vmem:[#allocation25 + $0x24] sm:$0xf]
      %v6737 = vld [vmem:[#allocation25 + $0x28] sm:$0xf]
      %v6738 = vld [vmem:[#allocation25 + $0x2c] sm:$0xf]
      %v6739 = vld [vmem:[#allocation25 + $0x30] sm:$0xf]
      %v6740 = vld [vmem:[#allocation25 + $0x34] sm:$0xf]
      %v6741 = vld [vmem:[#allocation25 + $0x38] sm:$0xf]
      %v6742 = vld [vmem:[#allocation25 + $0x3c] sm:$0xf]
      %v6743 = vld [vmem:[%s17] sm:$0x1]
      %v6760 = vunpack.c.l.b16 %v6727
      %v6761 = vunpack.c.l.b16 %v6728
      %v6762 = vunpack.c.l.b16 %v6729
      %v6763 = vunpack.c.l.b16 %v6730
      %v6764 = vunpack.c.l.b16 %v6731
      %v6765 = vunpack.c.l.b16 %v6732
      %v6766 = vunpack.c.l.b16 %v6733
      %v6767 = vunpack.c.l.b16 %v6734
      %v6768 = vunpack.c.l.b16 %v6735
      %v6769 = vunpack.c.l.b16 %v6736
      %v6770 = vunpack.c.l.b16 %v6737
      %v6771 = vunpack.c.l.b16 %v6738
      %v6772 = vunpack.c.l.b16 %v6739
      %v6773 = vunpack.c.l.b16 %v6740
      %v6774 = vunpack.c.l.b16 %v6741
      %v6775 = vunpack.c.l.b16 %v6742
      %v6776 = vpack.c.b16 %v6761, %v6760
      %v6777 = vpack.c.b16 %v6763, %v6762
      %v6778 = vpack.c.b16 %v6765, %v6764
      %v6779 = vpack.c.b16 %v6767, %v6766
      %v6780 = vpack.c.b16 %v6769, %v6768
      %v6781 = vpack.c.b16 %v6771, %v6770
      %v6782 = vpack.c.b16 %v6773, %v6772
      %v6783 = vpack.c.b16 %v6775, %v6774
      %6792 = vmatpush.bf16.msra.mxu0 %v6783
      %6793 = vmatpush.bf16.msra.mxu0 %v6782
      %6794 = vmatpush.bf16.msra.mxu0 %v6781
      %6795 = vmatpush.bf16.msra.mxu0 %v6780
      %6796 = vmatpush.bf16.msra.mxu0 %v6779
      %6797 = vmatpush.bf16.msra.mxu0 %v6778
      %6798 = vmatpush.bf16.msra.mxu0 %v6777
      %6799 = vmatpush.bf16.msra.mxu0 %v6776
      %6800 = vmatmul.bf16.gmra.mxu0 %v6726
      %v6801 = vpop.f32.mrf.mxu0
      %v6802 = vadd.f32 %v6743, %v6801
      %v6803 = vpop.f32.mrf.mxu0
      %6804 = vdwg.mxu0
      %v6805 = vsel %vm1517, %v6802, -inf
      %6806 = vmax.xlane.f32.xlu0 %v6805
      %v6807 = vpop.xlane.xlu0 %6806
      %v6808 = vsub.f32 %v6802, %v6807
      %v6809 = vmul.f32 %v6808, 1.442695
      %v6810 = vpow.pop %v6809
      %v6811 = vsel %vm1517, %v6810, 0.0
      %6812 = vadd.xlane.f32.xlu0 %v6811
      %v6813 = vpop.xlane.xlu0 %6812
      %v6814 = vrcp.pop %v6813
      %v6815 = vmul.f32 %v6813, %v6814
      %v6816 = vsub.f32 2.0, %v6815
      %v6817 = vmul.f32 %v6814, %v6816
      %v6818 = vmul.f32 %v6810, %v6817
      %s6819 = sadd.s32 %s3189, 3
      %s6820 = scalar_lea.vmem [#allocation27], %s6819
      %6821 = vst [vmem:[%s6820] sm:$0x1] %v6818
    $region134: #{tpu_custom_call.1} parent=1 // loop_footer
      %s1959 = sadd.s32 1, %s1955
    $region135: #{tpu_custom_call.1} parent=1 // loop_footer_branch
      %1954 = sbr.rel target = $region131
    $region136: #{tpu_custom_call.1} parent=1 // loop_exit
      _
    // Predicated region
    $region137: #{tpu_custom_call.1} parent=1 // pred_check
      _
    $region138: #{tpu_custom_call.1} parent=1 // pred_check_branch
      %6823 = sbr.rel (0) target = $region140
    $region139: #{tpu_custom_call.1} parent=1 // pred_region
      %6825 = vsyncadd [#allocation6], 0
      %s6827 = sshll.u32 [#allocation27], 4
      %s6828 = int_to_ptr.vmem [resolvable:$true] %s6827
      %s6829 = sshll.u32 %s18, 4
      %s6830 = int_to_ptr.hbm [resolvable:$true] %s6829
      %6832 = dma.vmem_to_hbm [thread:$0]  %s6828, 128, %s6830, [#allocation6]
    $region140: #{tpu_custom_call.1} parent=1 // pred_fallthru
      _
    // Predicated region
    $region141: #{tpu_custom_call.1} parent=1 // pred_check
      _
    $region142: #{tpu_custom_call.1} parent=1 // pred_check_branch
      %6834 = sbr.rel (0) target = $region144
    $region143: #{tpu_custom_call.1} parent=1 // pred_region
      %6836 = dma.done [#allocation6], 128
    $region144: #{tpu_custom_call.1} parent=1 // pred_fallthru
      _
    %6837 = vsyncpa [#allocation5], 1
    %6838 = vsyncpa [#allocation8], 1
    %6839 = vsyncpa [#allocation11], 1
    %6840 = vsyncpa [#allocation14], 1
    %6841 = vsyncpa [#allocation17], 1
    %6842 = vsyncpa [#allocation20], 1
    %6843 = vsyncpa [#allocation23], 1
    %6844 = vsyncpa [#allocation26], 1
    %6845 = vsyncpa [#allocation6], 1

</llo_original>
